<compile_context>
chip_gen: v5e
topology: v5e:2x2
jax: 0.10.0
libtpu: 0.0.40
codegen_flags: <defaults>
</compile_context>

<pallas_src>
import functools

import jax
import jax.numpy as jnp
from jax import lax
from jax.experimental import pallas as pl
from jax.experimental.pallas import tpu as pltpu

BN_EPS = 1e-5
KSIZE = 5


# ---------------------------------------------------------------------------
# Pallas kernels
# ---------------------------------------------------------------------------
def _linear_bn_lrelu_kernel(z_ref, w_ref, g_ref, b_ref, o_ref, *, alpha, inv_n):
    """o = leaky_relu(batchnorm1d(z @ w)); batch stats over rows (training mode).

    The Linear bias is omitted: a per-feature constant before BN is exactly
    cancelled by the mean subtraction (bit-exact).
    """
    y = jnp.dot(z_ref[...], w_ref[...], preferred_element_type=jnp.float32)
    mean = jnp.sum(y, axis=0, keepdims=True) * inv_n
    ex2 = jnp.sum(y * y, axis=0, keepdims=True) * inv_n
    var = ex2 - mean * mean                                  # biased variance
    scale = lax.rsqrt(var + BN_EPS) * g_ref[...]
    yb = (y - mean) * scale + b_ref[...]
    o_ref[...] = jnp.where(yb >= 0.0, yb, alpha * yb).astype(o_ref.dtype)


def _conv1_bn_lrelu_kernel(xp_ref, band_ref, pavg_ref, pexp_ref, g_ref, b_ref,
                           o_ref, *, alpha, batch, ho):
    """ConvTranspose2d (as 5 banded stride-1 matmuls) + BatchNorm2d + LeakyReLU.

    xp_ref   : (B, Hp, Wp*Cin)       zero-dilated/padded input, bf16
    band_ref : (KH, Wp*Cin, Wo*Cout) banded weight, one block per kernel row kh
    pavg_ref : (Wo*Cout, Cout)       tiled identity / (B*Ho*Wo)  -> channel mean
    pexp_ref : (Cout, Wo*Cout)       tiled identity              -> broadcast back
    g_ref/b_ref : (1, Wo*Cout)       gamma/beta tiled over Wo
    o_ref    : (B, Ho, Wo*Cout)
    """
    kh_taps = band_ref.shape[0]

    # Tap accumulation: out[b, oh, ow*Cout+co] = sum_kh xp[b, oh+kh, :] @ band[kh]
    accs = []
    for b in range(batch):
        acc = None
        for kh in range(kh_taps):
            lhs = xp_ref[b, kh:kh + ho, :]                       # (Ho, Wp*Cin) bf16
            t = jnp.dot(lhs, band_ref[kh], preferred_element_type=jnp.float32)
            acc = t if acc is None else acc + t
        accs.append(acc)                                         # (Ho, Wo*Cout) f32

    # BatchNorm2d stats: per-channel over (B, Ho, Wo).  Columns interleave
    # (ow, co), so collapse the Wo groups with a tiny matmul against a tiled
    # identity (and broadcast back the same way) instead of in-kernel reshapes.
    rowsum = accs[0].sum(axis=0, keepdims=True)
    rowsq = (accs[0] * accs[0]).sum(axis=0, keepdims=True)
    for a in accs[1:]:
        rowsum = rowsum + a.sum(axis=0, keepdims=True)
        rowsq = rowsq + (a * a).sum(axis=0, keepdims=True)
    mean_c = jnp.dot(rowsum, pavg_ref[...], preferred_element_type=jnp.float32)  # (1, Cout)
    ex2_c = jnp.dot(rowsq, pavg_ref[...], preferred_element_type=jnp.float32)
    var_c = ex2_c - mean_c * mean_c                              # biased variance
    inv_c = lax.rsqrt(var_c + BN_EPS)
    mean_l = jnp.dot(mean_c, pexp_ref[...], preferred_element_type=jnp.float32)  # (1, Wo*Cout)
    inv_l = jnp.dot(inv_c, pexp_ref[...], preferred_element_type=jnp.float32)
    scale = inv_l * g_ref[...]
    shift = b_ref[...] - mean_l * scale

    for b in range(batch):
        y = accs[b] * scale + shift
        y = jnp.where(y >= 0.0, y, alpha * y)
        o_ref[b, :, :] = y.astype(o_ref.dtype)


def _conv2_sigmoid_kernel(xp_ref, band_ref, o_ref, *, ho):
    """ConvTranspose2d (Cout=1) as banded matmuls + sigmoid, one batch element."""
    acc = None
    for kh in range(band_ref.shape[0]):
        lhs = xp_ref[0, kh:kh + ho, :]                           # (Ho, Wp*Cin) bf16
        t = jnp.dot(lhs, band_ref[kh], preferred_element_type=jnp.float32)
        acc = t if acc is None else acc + t
    o_ref[0, :, :] = jax.nn.sigmoid(acc)


# ---------------------------------------------------------------------------
# Pallas wrappers
# ---------------------------------------------------------------------------
def linear_bn_lrelu(z, w1, g1, beta1, alpha):
    B = z.shape[0]
    N = w1.shape[1]
    vmem = pl.BlockSpec(memory_space=pltpu.MemorySpace.VMEM)
    return pl.pallas_call(
        functools.partial(_linear_bn_lrelu_kernel, alpha=float(alpha), inv_n=1.0 / B),
        out_shape=jax.ShapeDtypeStruct((B, N), jnp.bfloat16),
        in_specs=[vmem, vmem, vmem, vmem],
        out_specs=vmem,
    )(z.astype(jnp.bfloat16), w1.astype(jnp.bfloat16),
      g1.reshape(1, N).astype(jnp.float32), beta1.reshape(1, N).astype(jnp.float32))


def conv1_bn_lrelu(xp, band, gamma, beta, alpha, *, ho, wo, cout):
    # xp: (B, Hp, Wp*Cin); band: (KH, Wp*Cin, Wo*Cout)
    B = xp.shape[0]
    n = B * ho * wo
    eye = jnp.eye(cout, dtype=jnp.float32)
    pavg = jnp.tile(eye, (wo, 1)) / n                       # (Wo*Cout, Cout)
    pexp = jnp.tile(eye, (1, wo))                           # (Cout, Wo*Cout)
    g_t = jnp.tile(gamma.reshape(1, cout).astype(jnp.float32), (1, wo))
    b_t = jnp.tile(beta.reshape(1, cout).astype(jnp.float32), (1, wo))
    vmem = pl.BlockSpec(memory_space=pltpu.MemorySpace.VMEM)
    return pl.pallas_call(
        functools.partial(_conv1_bn_lrelu_kernel, alpha=float(alpha), batch=B, ho=ho),
        out_shape=jax.ShapeDtypeStruct((B, ho, wo * cout), jnp.bfloat16),
        in_specs=[vmem] * 6,
        out_specs=vmem,
    )(xp.astype(jnp.bfloat16), band.astype(jnp.bfloat16), pavg, pexp, g_t, b_t)


def conv2_sigmoid(xp, band, *, ho, wo):
    # xp: (B, Hp, Wp*Cin); band: (KH, Wp*Cin, Wo)
    B, Hp, K = xp.shape
    KH = band.shape[0]
    return pl.pallas_call(
        functools.partial(_conv2_sigmoid_kernel, ho=ho),
        out_shape=jax.ShapeDtypeStruct((B, ho, wo), jnp.float32),
        grid=(B,),
        in_specs=[pl.BlockSpec((1, Hp, K), lambda b: (b, 0, 0)),
                  pl.BlockSpec((KH, K, wo), lambda b: (0, 0, 0))],
        out_specs=pl.BlockSpec((1, ho, wo), lambda b: (b, 0, 0)),
        compiler_params=pltpu.CompilerParams(dimension_semantics=("parallel",)),
    )(xp.astype(jnp.bfloat16), band.astype(jnp.bfloat16))


# ---------------------------------------------------------------------------
# Plain-JAX glue: ConvTranspose2d -> stride-1 conv on a zero-dilated input,
# with the per-kh weights pre-flattened into banded (block-Toeplitz) matrices.
# ---------------------------------------------------------------------------
def dilate_and_pad(x_nhwc, stride, k, pad, out_pad):
    """Zero-dilate + pad so a stride-1 conv reproduces ConvTranspose2d."""
    # TODO(synk): the stride-2 zero-dilation scatter stays in tiny XLA glue; a
    # strided in-kernel scatter store has no clean Pallas/Mosaic form.
    B, H, W, C = x_nhwc.shape
    Hd, Wd = (H - 1) * stride + 1, (W - 1) * stride + 1
    xd = jnp.zeros((B, Hd, Wd, C), x_nhwc.dtype)
    xd = xd.at[:, ::stride, ::stride, :].set(x_nhwc)
    lo = k - 1 - pad
    hi = k - 1 - pad + out_pad
    return jnp.pad(xd, ((0, 0), (lo, hi), (lo, hi), (0, 0)))


def convT_weight_to_banded(w_t, wp, wo):
    """torch ConvTranspose2d weight (Cin, Cout, KH, KW) -> (KH, Wp*Cin, Wo*Cout)
    banded matmul weights for the equivalent stride-1 conv on the dilated/padded
    input, with width folded into the contraction (rows) and output (cols) dims."""
    wc = jnp.flip(w_t, axis=(2, 3)).transpose(2, 3, 0, 1)    # (KH, KW, Cin, Cout)
    KH, KW, Cin, Cout = wc.shape
    iw = jnp.arange(wp)[:, None]
    ow = jnp.arange(wo)[None, :]
    kw = iw - ow                                             # (Wp, Wo)
    valid = ((kw >= 0) & (kw < KW)).astype(wc.dtype)
    band = wc[:, jnp.clip(kw, 0, KW - 1), :, :]              # (KH, Wp, Wo, Cin, Cout)
    band = band * valid[None, :, :, None, None]
    band = band.transpose(0, 1, 3, 2, 4)                     # (KH, Wp, Cin, Wo, Cout)
    return band.reshape(KH, wp * Cin, wo * Cout)


# ---------------------------------------------------------------------------
# Generator params + forward
# ---------------------------------------------------------------------------
def init_generator_params(sample_size, key):
    ks = jax.random.split(key, 7)
    p = {
        # nn.Linear(sample_size, 784): stored (in, out) for z @ W.
        # Bias is not needed: it cancels exactly under the following BatchNorm1d.
        "w1": jax.random.normal(ks[0], (sample_size, 784), jnp.float32) * 0.05,
        # BatchNorm1d(784)
        "g1": 1.0 + 0.1 * jax.random.normal(ks[1], (784,), jnp.float32),
        "beta1": 0.1 * jax.random.normal(ks[2], (784,), jnp.float32),
        # ConvTranspose2d(16, 32, 5, stride=2, padding=2, output_padding=1, bias=False)
        "wt1": jax.random.normal(ks[3], (16, 32, 5, 5), jnp.float32) * 0.05,
        # BatchNorm2d(32)
        "g2": 1.0 + 0.1 * jax.random.normal(ks[4], (32,), jnp.float32),
        "beta2": 0.1 * jax.random.normal(ks[5], (32,), jnp.float32),
        # ConvTranspose2d(32, 1, 5, stride=2, padding=2, output_padding=1, bias=False)
        "wt2": jax.random.normal(ks[6], (32, 1, 5, 5), jnp.float32) * 0.05,
    }
    # Pre-flatten transposed-conv weights into per-kh banded matmul weights (bf16).
    p["band1"] = convT_weight_to_banded(p["wt1"], wp=18, wo=14).astype(jnp.bfloat16)  # (5, 288, 448)
    p["band2"] = convT_weight_to_banded(p["wt2"], wp=32, wo=28).astype(jnp.bfloat16)  # (5, 1024, 28)
    return p


def generator_forward(params, batch_size, z_key, alpha):
    sample_size = params["w1"].shape[0]
    # z ~ N(0, 1)  (torch.randn equivalent, deterministic via explicit key)
    z = jax.random.normal(z_key, (batch_size, sample_size), jnp.float32)

    # ---- Linear(S, 784) + BatchNorm1d + LeakyReLU   (Pallas) ----
    x = linear_bn_lrelu(z, params["w1"], params["g1"], params["beta1"], alpha)   # (B, 784) bf16

    # torch.reshape(x, (-1, 16, 7, 7)) (NCHW) -> NHWC, dilate + pad for the
    # stride-2 transposed conv, W*Cin folded into the last (lane) dim.
    x = x.reshape(batch_size, 16, 7, 7).transpose(0, 2, 3, 1)                    # (B, 7, 7, 16)
    xp = dilate_and_pad(x, stride=2, k=KSIZE, pad=2, out_pad=1)                  # (B, 18, 18, 16)
    xp = xp.reshape(batch_size, 18, 18 * 16)                                     # (B, 18, 288)

    # ---- ConvTranspose2d(16->32) + BatchNorm2d + LeakyReLU   (Pallas) ----
    x = conv1_bn_lrelu(xp, params["band1"], params["g2"], params["beta2"], alpha,
                       ho=14, wo=14, cout=32)                                    # (B, 14, 448) bf16

    x = x.reshape(batch_size, 14, 14, 32)                                        # NHWC
    xp = dilate_and_pad(x, stride=2, k=KSIZE, pad=2, out_pad=1)                  # (B, 32, 32, 32)
    xp = xp.reshape(batch_size, 32, 32 * 32)                                     # (B, 32, 1024)

    # ---- ConvTranspose2d(32->1) + Sigmoid   (Pallas, batch grid, parallel) ----
    y = conv2_sigmoid(xp, params["band2"], ho=28, wo=28)                         # (B, 28, 28) f32

    # back to PyTorch NCHW
    return y.reshape(batch_size, 1, 28, 28)


if __name__ == "__main__":
    sample_size = 64
    alpha = 0.2
    batch_size = 2

    root = jax.random.PRNGKey(0)
    param_key, z_key = jax.random.split(root)

    params = init_generator_params(sample_size, param_key)

    fwd = jax.jit(functools.partial(generator_forward, params, batch_size, alpha=alpha))
    out = jax.block_until_ready(fwd(z_key))

    assert out.shape == (batch_size, 1, 28, 28), out.shape
    assert out.dtype == jnp.float32
    assert bool(jnp.all(jnp.isfinite(out)))
    assert bool(jnp.all((out >= 0.0) & (out <= 1.0)))   # sigmoid range
    print("KERNEL_OK")
</pallas_src>

<mosaic_0001>
module attributes {stable_mosaic.version = 11 : i64} {
  func.func @_linear_bn_lrelu_kernel(%arg0: memref<2x64xbf16, #tpu.memory_space<vmem>>, %arg1: memref<64x784xbf16, #tpu.memory_space<vmem>>, %arg2: memref<1x784xf32, #tpu.memory_space<vmem>>, %arg3: memref<1x784xf32, #tpu.memory_space<vmem>>, %arg4: memref<2x784xbf16, #tpu.memory_space<vmem>>) attributes {dimension_semantics = [], scalar_prefetch = 0 : i64, scratch_operands = 0 : i64, tpu.core_type = #tpu.core_type<tc>} {
    %c0 = arith.constant 0 : index
    %c0_0 = arith.constant 0 : index
    %0 = vector.load %arg0[%c0, %c0_0] : memref<2x64xbf16, #tpu.memory_space<vmem>>, vector<2x64xbf16>
    %c0_1 = arith.constant 0 : index
    %c0_2 = arith.constant 0 : index
    %1 = vector.load %arg1[%c0_1, %c0_2] : memref<64x784xbf16, #tpu.memory_space<vmem>>, vector<64x784xbf16>
    %cst = arith.constant dense<0.000000e+00> : vector<2x784xf32>
    %2 = tpu.matmul %0, %1, %cst {dimension_numbers = #tpu.dot_dimension_numbers<[1], [0], [0], [1], [0, 0, 1, 1], [], []>} : vector<2x64xbf16>, vector<64x784xbf16>, vector<2x784xf32> -> vector<2x784xf32>
    %cst_3 = arith.constant dense<0.000000e+00> : vector<784xf32>
    %3 = vector.multi_reduction <add>, %2, %cst_3 [0] : vector<2x784xf32> to vector<784xf32>
    %4 = vector.shape_cast %3 : vector<784xf32> to vector<1x784xf32>
    %cst_4 = arith.constant 5.000000e-01 : f32
    %5 = vector.broadcast %cst_4 : f32 to vector<1x784xf32>
    %6 = arith.mulf %4, %5 : vector<1x784xf32>
    %7 = arith.mulf %2, %2 : vector<2x784xf32>
    %cst_5 = arith.constant dense<0.000000e+00> : vector<784xf32>
    %8 = vector.multi_reduction <add>, %7, %cst_5 [0] : vector<2x784xf32> to vector<784xf32>
    %9 = vector.shape_cast %8 : vector<784xf32> to vector<1x784xf32>
    %cst_6 = arith.constant 5.000000e-01 : f32
    %10 = vector.broadcast %cst_6 : f32 to vector<1x784xf32>
    %11 = arith.mulf %9, %10 : vector<1x784xf32>
    %12 = arith.mulf %6, %6 : vector<1x784xf32>
    %13 = arith.subf %11, %12 : vector<1x784xf32>
    %cst_7 = arith.constant 9.99999974E-6 : f32
    %14 = vector.broadcast %cst_7 : f32 to vector<1x784xf32>
    %15 = arith.addf %13, %14 : vector<1x784xf32>
    %16 = math.rsqrt %15 : vector<1x784xf32>
    %c0_8 = arith.constant 0 : index
    %c0_9 = arith.constant 0 : index
    %17 = vector.load %arg2[%c0_8, %c0_9] : memref<1x784xf32, #tpu.memory_space<vmem>>, vector<1x784xf32>
    %18 = arith.mulf %16, %17 : vector<1x784xf32>
    %19 = vector.broadcast %6 : vector<1x784xf32> to vector<2x784xf32>
    %20 = arith.subf %2, %19 : vector<2x784xf32>
    %21 = vector.broadcast %18 : vector<1x784xf32> to vector<2x784xf32>
    %22 = arith.mulf %20, %21 : vector<2x784xf32>
    %c0_10 = arith.constant 0 : index
    %c0_11 = arith.constant 0 : index
    %23 = vector.load %arg3[%c0_10, %c0_11] : memref<1x784xf32, #tpu.memory_space<vmem>>, vector<1x784xf32>
    %24 = vector.broadcast %23 : vector<1x784xf32> to vector<2x784xf32>
    %25 = arith.addf %22, %24 : vector<2x784xf32>
    %cst_12 = arith.constant 0.000000e+00 : f32
    %26 = vector.broadcast %cst_12 : f32 to vector<2x784xf32>
    %27 = arith.cmpf oge, %25, %26 : vector<2x784xf32>
    %cst_13 = arith.constant 2.000000e-01 : f32
    %28 = vector.broadcast %cst_13 : f32 to vector<2x784xf32>
    %29 = arith.mulf %28, %25 : vector<2x784xf32>
    %30 = arith.select %27, %25, %29 : vector<2x784xi1>, vector<2x784xf32>
    %31 = arith.truncf %30 : vector<2x784xf32> to vector<2x784xbf16>
    %c0_14 = arith.constant 0 : index
    %c0_15 = arith.constant 0 : index
    %32 = vector.load %arg4[%c0_14, %c0_15] : memref<2x784xbf16, #tpu.memory_space<vmem>>, vector<2x784xbf16>
    tpu.vector_store %arg4[%c0_14, %c0_15], %31 {strides = array<i32>} : memref<2x784xbf16, #tpu.memory_space<vmem>>, vector<2x784xbf16>,
    return
  }
}

module attributes {stable_mosaic.version = 11 : i64} {
  func.func @_conv1_bn_lrelu_kernel(%arg0: memref<2x18x288xbf16, #tpu.memory_space<vmem>>, %arg1: memref<5x288x448xbf16, #tpu.memory_space<vmem>>, %arg2: memref<448x32xf32, #tpu.memory_space<vmem>>, %arg3: memref<32x448xf32, #tpu.memory_space<vmem>>, %arg4: memref<1x448xf32, #tpu.memory_space<vmem>>, %arg5: memref<1x448xf32, #tpu.memory_space<vmem>>, %arg6: memref<2x14x448xbf16, #tpu.memory_space<vmem>>) attributes {dimension_semantics = [], scalar_prefetch = 0 : i64, scratch_operands = 0 : i64, tpu.core_type = #tpu.core_type<tc>} {
    %c0 = arith.constant 0 : index
    %c0_0 = arith.constant 0 : index
    %c0_1 = arith.constant 0 : index
    %0 = vector.load %arg0[%c0, %c0_0, %c0_1] : memref<2x18x288xbf16, #tpu.memory_space<vmem>>, vector<1x14x288xbf16>
    %1 = vector.shape_cast %0 : vector<1x14x288xbf16> to vector<14x288xbf16>
    %c0_2 = arith.constant 0 : index
    %c0_3 = arith.constant 0 : index
    %c0_4 = arith.constant 0 : index
    %2 = vector.load %arg1[%c0_2, %c0_3, %c0_4] : memref<5x288x448xbf16, #tpu.memory_space<vmem>>, vector<1x288x448xbf16>
    %3 = vector.shape_cast %2 : vector<1x288x448xbf16> to vector<288x448xbf16>
    %cst = arith.constant dense<0.000000e+00> : vector<14x448xf32>
    %4 = tpu.matmul %1, %3, %cst {dimension_numbers = #tpu.dot_dimension_numbers<[1], [0], [0], [1], [0, 0, 1, 1], [], []>} : vector<14x288xbf16>, vector<288x448xbf16>, vector<14x448xf32> -> vector<14x448xf32>
    %c0_5 = arith.constant 0 : index
    %c1 = arith.constant 1 : index
    %c0_6 = arith.constant 0 : index
    %5 = vector.load %arg0[%c0_5, %c1, %c0_6] : memref<2x18x288xbf16, #tpu.memory_space<vmem>>, vector<1x14x288xbf16>
    %6 = vector.shape_cast %5 : vector<1x14x288xbf16> to vector<14x288xbf16>
    %c1_7 = arith.constant 1 : index
    %c0_8 = arith.constant 0 : index
    %c0_9 = arith.constant 0 : index
    %7 = vector.load %arg1[%c1_7, %c0_8, %c0_9] : memref<5x288x448xbf16, #tpu.memory_space<vmem>>, vector<1x288x448xbf16>
    %8 = vector.shape_cast %7 : vector<1x288x448xbf16> to vector<288x448xbf16>
    %cst_10 = arith.constant dense<0.000000e+00> : vector<14x448xf32>
    %9 = tpu.matmul %6, %8, %cst_10 {dimension_numbers = #tpu.dot_dimension_numbers<[1], [0], [0], [1], [0, 0, 1, 1], [], []>} : vector<14x288xbf16>, vector<288x448xbf16>, vector<14x448xf32> -> vector<14x448xf32>
    %10 = arith.addf %4, %9 : vector<14x448xf32>
    %c0_11 = arith.constant 0 : index
    %c2 = arith.constant 2 : index
    %c0_12 = arith.constant 0 : index
    %11 = vector.load %arg0[%c0_11, %c2, %c0_12] : memref<2x18x288xbf16, #tpu.memory_space<vmem>>, vector<1x14x288xbf16>
    %12 = vector.shape_cast %11 : vector<1x14x288xbf16> to vector<14x288xbf16>
    %c2_13 = arith.constant 2 : index
    %c0_14 = arith.constant 0 : index
    %c0_15 = arith.constant 0 : index
    %13 = vector.load %arg1[%c2_13, %c0_14, %c0_15] : memref<5x288x448xbf16, #tpu.memory_space<vmem>>, vector<1x288x448xbf16>
    %14 = vector.shape_cast %13 : vector<1x288x448xbf16> to vector<288x448xbf16>
    %cst_16 = arith.constant dense<0.000000e+00> : vector<14x448xf32>
    %15 = tpu.matmul %12, %14, %cst_16 {dimension_numbers = #tpu.dot_dimension_numbers<[1], [0], [0], [1], [0, 0, 1, 1], [], []>} : vector<14x288xbf16>, vector<288x448xbf16>, vector<14x448xf32> -> vector<14x448xf32>
    %16 = arith.addf %10, %15 : vector<14x448xf32>
    %c0_17 = arith.constant 0 : index
    %c3 = arith.constant 3 : index
    %c0_18 = arith.constant 0 : index
    %17 = vector.load %arg0[%c0_17, %c3, %c0_18] : memref<2x18x288xbf16, #tpu.memory_space<vmem>>, vector<1x14x288xbf16>
    %18 = vector.shape_cast %17 : vector<1x14x288xbf16> to vector<14x288xbf16>
    %c3_19 = arith.constant 3 : index
    %c0_20 = arith.constant 0 : index
    %c0_21 = arith.constant 0 : index
    %19 = vector.load %arg1[%c3_19, %c0_20, %c0_21] : memref<5x288x448xbf16, #tpu.memory_space<vmem>>, vector<1x288x448xbf16>
    %20 = vector.shape_cast %19 : vector<1x288x448xbf16> to vector<288x448xbf16>
    %cst_22 = arith.constant dense<0.000000e+00> : vector<14x448xf32>
    %21 = tpu.matmul %18, %20, %cst_22 {dimension_numbers = #tpu.dot_dimension_numbers<[1], [0], [0], [1], [0, 0, 1, 1], [], []>} : vector<14x288xbf16>, vector<288x448xbf16>, vector<14x448xf32> -> vector<14x448xf32>
    %22 = arith.addf %16, %21 : vector<14x448xf32>
    %c0_23 = arith.constant 0 : index
    %c4 = arith.constant 4 : index
    %c0_24 = arith.constant 0 : index
    %23 = vector.load %arg0[%c0_23, %c4, %c0_24] : memref<2x18x288xbf16, #tpu.memory_space<vmem>>, vector<1x14x288xbf16>
    %24 = vector.shape_cast %23 : vector<1x14x288xbf16> to vector<14x288xbf16>
    %c4_25 = arith.constant 4 : index
    %c0_26 = arith.constant 0 : index
    %c0_27 = arith.constant 0 : index
    %25 = vector.load %arg1[%c4_25, %c0_26, %c0_27] : memref<5x288x448xbf16, #tpu.memory_space<vmem>>, vector<1x288x448xbf16>
    %26 = vector.shape_cast %25 : vector<1x288x448xbf16> to vector<288x448xbf16>
    %cst_28 = arith.constant dense<0.000000e+00> : vector<14x448xf32>
    %27 = tpu.matmul %24, %26, %cst_28 {dimension_numbers = #tpu.dot_dimension_numbers<[1], [0], [0], [1], [0, 0, 1, 1], [], []>} : vector<14x288xbf16>, vector<288x448xbf16>, vector<14x448xf32> -> vector<14x448xf32>
    %28 = arith.addf %22, %27 : vector<14x448xf32>
    %c1_29 = arith.constant 1 : index
    %c0_30 = arith.constant 0 : index
    %c0_31 = arith.constant 0 : index
    %29 = vector.load %arg0[%c1_29, %c0_30, %c0_31] : memref<2x18x288xbf16, #tpu.memory_space<vmem>>, vector<1x14x288xbf16>
    %30 = vector.shape_cast %29 : vector<1x14x288xbf16> to vector<14x288xbf16>
    %c0_32 = arith.constant 0 : index
    %c0_33 = arith.constant 0 : index
    %c0_34 = arith.constant 0 : index
    %31 = vector.load %arg1[%c0_32, %c0_33, %c0_34] : memref<5x288x448xbf16, #tpu.memory_space<vmem>>, vector<1x288x448xbf16>
    %32 = vector.shape_cast %31 : vector<1x288x448xbf16> to vector<288x448xbf16>
    %cst_35 = arith.constant dense<0.000000e+00> : vector<14x448xf32>
    %33 = tpu.matmul %30, %32, %cst_35 {dimension_numbers = #tpu.dot_dimension_numbers<[1], [0], [0], [1], [0, 0, 1, 1], [], []>} : vector<14x288xbf16>, vector<288x448xbf16>, vector<14x448xf32> -> vector<14x448xf32>
    %c1_36 = arith.constant 1 : index
    %c1_37 = arith.constant 1 : index
    %c0_38 = arith.constant 0 : index
    %34 = vector.load %arg0[%c1_36, %c1_37, %c0_38] : memref<2x18x288xbf16, #tpu.memory_space<vmem>>, vector<1x14x288xbf16>
    %35 = vector.shape_cast %34 : vector<1x14x288xbf16> to vector<14x288xbf16>
    %c1_39 = arith.constant 1 : index
    %c0_40 = arith.constant 0 : index
    %c0_41 = arith.constant 0 : index
    %36 = vector.load %arg1[%c1_39, %c0_40, %c0_41] : memref<5x288x448xbf16, #tpu.memory_space<vmem>>, vector<1x288x448xbf16>
    %37 = vector.shape_cast %36 : vector<1x288x448xbf16> to vector<288x448xbf16>
    %cst_42 = arith.constant dense<0.000000e+00> : vector<14x448xf32>
    %38 = tpu.matmul %35, %37, %cst_42 {dimension_numbers = #tpu.dot_dimension_numbers<[1], [0], [0], [1], [0, 0, 1, 1], [], []>} : vector<14x288xbf16>, vector<288x448xbf16>, vector<14x448xf32> -> vector<14x448xf32>
    %39 = arith.addf %33, %38 : vector<14x448xf32>
    %c1_43 = arith.constant 1 : index
    %c2_44 = arith.constant 2 : index
    %c0_45 = arith.constant 0 : index
    %40 = vector.load %arg0[%c1_43, %c2_44, %c0_45] : memref<2x18x288xbf16, #tpu.memory_space<vmem>>, vector<1x14x288xbf16>
    %41 = vector.shape_cast %40 : vector<1x14x288xbf16> to vector<14x288xbf16>
    %c2_46 = arith.constant 2 : index
    %c0_47 = arith.constant 0 : index
    %c0_48 = arith.constant 0 : index
    %42 = vector.load %arg1[%c2_46, %c0_47, %c0_48] : memref<5x288x448xbf16, #tpu.memory_space<vmem>>, vector<1x288x448xbf16>
    %43 = vector.shape_cast %42 : vector<1x288x448xbf16> to vector<288x448xbf16>
    %cst_49 = arith.constant dense<0.000000e+00> : vector<14x448xf32>
    %44 = tpu.matmul %41, %43, %cst_49 {dimension_numbers = #tpu.dot_dimension_numbers<[1], [0], [0], [1], [0, 0, 1, 1], [], []>} : vector<14x288xbf16>, vector<288x448xbf16>, vector<14x448xf32> -> vector<14x448xf32>
    %45 = arith.addf %39, %44 : vector<14x448xf32>
    %c1_50 = arith.constant 1 : index
    %c3_51 = arith.constant 3 : index
    %c0_52 = arith.constant 0 : index
    %46 = vector.load %arg0[%c1_50, %c3_51, %c0_52] : memref<2x18x288xbf16, #tpu.memory_space<vmem>>, vector<1x14x288xbf16>
    %47 = vector.shape_cast %46 : vector<1x14x288xbf16> to vector<14x288xbf16>
    %c3_53 = arith.constant 3 : index
    %c0_54 = arith.constant 0 : index
    %c0_55 = arith.constant 0 : index
    %48 = vector.load %arg1[%c3_53, %c0_54, %c0_55] : memref<5x288x448xbf16, #tpu.memory_space<vmem>>, vector<1x288x448xbf16>
    %49 = vector.shape_cast %48 : vector<1x288x448xbf16> to vector<288x448xbf16>
    %cst_56 = arith.constant dense<0.000000e+00> : vector<14x448xf32>
    %50 = tpu.matmul %47, %49, %cst_56 {dimension_numbers = #tpu.dot_dimension_numbers<[1], [0], [0], [1], [0, 0, 1, 1], [], []>} : vector<14x288xbf16>, vector<288x448xbf16>, vector<14x448xf32> -> vector<14x448xf32>
    %51 = arith.addf %45, %50 : vector<14x448xf32>
    %c1_57 = arith.constant 1 : index
    %c4_58 = arith.constant 4 : index
    %c0_59 = arith.constant 0 : index
    %52 = vector.load %arg0[%c1_57, %c4_58, %c0_59] : memref<2x18x288xbf16, #tpu.memory_space<vmem>>, vector<1x14x288xbf16>
    %53 = vector.shape_cast %52 : vector<1x14x288xbf16> to vector<14x288xbf16>
    %c4_60 = arith.constant 4 : index
    %c0_61 = arith.constant 0 : index
    %c0_62 = arith.constant 0 : index
    %54 = vector.load %arg1[%c4_60, %c0_61, %c0_62] : memref<5x288x448xbf16, #tpu.memory_space<vmem>>, vector<1x288x448xbf16>
    %55 = vector.shape_cast %54 : vector<1x288x448xbf16> to vector<288x448xbf16>
    %cst_63 = arith.constant dense<0.000000e+00> : vector<14x448xf32>
    %56 = tpu.matmul %53, %55, %cst_63 {dimension_numbers = #tpu.dot_dimension_numbers<[1], [0], [0], [1], [0, 0, 1, 1], [], []>} : vector<14x288xbf16>, vector<288x448xbf16>, vector<14x448xf32> -> vector<14x448xf32>
    %57 = arith.addf %51, %56 : vector<14x448xf32>
    %cst_64 = arith.constant dense<0.000000e+00> : vector<448xf32>
    %58 = vector.multi_reduction <add>, %28, %cst_64 [0] : vector<14x448xf32> to vector<448xf32>
    %59 = vector.shape_cast %58 : vector<448xf32> to vector<1x448xf32>
    %60 = arith.mulf %28, %28 : vector<14x448xf32>
    %cst_65 = arith.constant dense<0.000000e+00> : vector<448xf32>
    %61 = vector.multi_reduction <add>, %60, %cst_65 [0] : vector<14x448xf32> to vector<448xf32>
    %62 = vector.shape_cast %61 : vector<448xf32> to vector<1x448xf32>
    %cst_66 = arith.constant dense<0.000000e+00> : vector<448xf32>
    %63 = vector.multi_reduction <add>, %57, %cst_66 [0] : vector<14x448xf32> to vector<448xf32>
    %64 = vector.shape_cast %63 : vector<448xf32> to vector<1x448xf32>
    %65 = arith.addf %59, %64 : vector<1x448xf32>
    %66 = arith.mulf %57, %57 : vector<14x448xf32>
    %cst_67 = arith.constant dense<0.000000e+00> : vector<448xf32>
    %67 = vector.multi_reduction <add>, %66, %cst_67 [0] : vector<14x448xf32> to vector<448xf32>
    %68 = vector.shape_cast %67 : vector<448xf32> to vector<1x448xf32>
    %69 = arith.addf %62, %68 : vector<1x448xf32>
    %c0_68 = arith.constant 0 : index
    %c0_69 = arith.constant 0 : index
    %70 = vector.load %arg2[%c0_68, %c0_69] : memref<448x32xf32, #tpu.memory_space<vmem>>, vector<448x32xf32>
    %cst_70 = arith.constant dense<0.000000e+00> : vector<1x32xf32>
    %71 = tpu.matmul %65, %70, %cst_70 {dimension_numbers = #tpu.dot_dimension_numbers<[1], [0], [0], [1], [0, 0, 1, 1], [], []>} : vector<1x448xf32>, vector<448x32xf32>, vector<1x32xf32> -> vector<1x32xf32>
    %c0_71 = arith.constant 0 : index
    %c0_72 = arith.constant 0 : index
    %72 = vector.load %arg2[%c0_71, %c0_72] : memref<448x32xf32, #tpu.memory_space<vmem>>, vector<448x32xf32>
    %cst_73 = arith.constant dense<0.000000e+00> : vector<1x32xf32>
    %73 = tpu.matmul %69, %72, %cst_73 {dimension_numbers = #tpu.dot_dimension_numbers<[1], [0], [0], [1], [0, 0, 1, 1], [], []>} : vector<1x448xf32>, vector<448x32xf32>, vector<1x32xf32> -> vector<1x32xf32>
    %74 = arith.mulf %71, %71 : vector<1x32xf32>
    %75 = arith.subf %73, %74 : vector<1x32xf32>
    %cst_74 = arith.constant 9.99999974E-6 : f32
    %76 = vector.broadcast %cst_74 : f32 to vector<1x32xf32>
    %77 = arith.addf %75, %76 : vector<1x32xf32>
    %78 = math.rsqrt %77 : vector<1x32xf32>
    %c0_75 = arith.constant 0 : index
    %c0_76 = arith.constant 0 : index
    %79 = vector.load %arg3[%c0_75, %c0_76] : memref<32x448xf32, #tpu.memory_space<vmem>>, vector<32x448xf32>
    %cst_77 = arith.constant dense<0.000000e+00> : vector<1x448xf32>
    %80 = tpu.matmul %71, %79, %cst_77 {dimension_numbers = #tpu.dot_dimension_numbers<[1], [0], [0], [1], [0, 0, 1, 1], [], []>} : vector<1x32xf32>, vector<32x448xf32>, vector<1x448xf32> -> vector<1x448xf32>
    %c0_78 = arith.constant 0 : index
    %c0_79 = arith.constant 0 : index
    %81 = vector.load %arg3[%c0_78, %c0_79] : memref<32x448xf32, #tpu.memory_space<vmem>>, vector<32x448xf32>
    %cst_80 = arith.constant dense<0.000000e+00> : vector<1x448xf32>
    %82 = tpu.matmul %78, %81, %cst_80 {dimension_numbers = #tpu.dot_dimension_numbers<[1], [0], [0], [1], [0, 0, 1, 1], [], []>} : vector<1x32xf32>, vector<32x448xf32>, vector<1x448xf32> -> vector<1x448xf32>
    %c0_81 = arith.constant 0 : index
    %c0_82 = arith.constant 0 : index
    %83 = vector.load %arg4[%c0_81, %c0_82] : memref<1x448xf32, #tpu.memory_space<vmem>>, vector<1x448xf32>
    %84 = arith.mulf %82, %83 : vector<1x448xf32>
    %c0_83 = arith.constant 0 : index
    %c0_84 = arith.constant 0 : index
    %85 = vector.load %arg5[%c0_83, %c0_84] : memref<1x448xf32, #tpu.memory_space<vmem>>, vector<1x448xf32>
    %86 = arith.mulf %80, %84 : vector<1x448xf32>
    %87 = arith.subf %85, %86 : vector<1x448xf32>
    %88 = vector.broadcast %84 : vector<1x448xf32> to vector<14x448xf32>
    %89 = arith.mulf %28, %88 : vector<14x448xf32>
    %90 = vector.broadcast %87 : vector<1x448xf32> to vector<14x448xf32>
    %91 = arith.addf %89, %90 : vector<14x448xf32>
    %cst_85 = arith.constant 0.000000e+00 : f32
    %92 = vector.broadcast %cst_85 : f32 to vector<14x448xf32>
    %93 = arith.cmpf oge, %91, %92 : vector<14x448xf32>
    %cst_86 = arith.constant 2.000000e-01 : f32
    %94 = vector.broadcast %cst_86 : f32 to vector<14x448xf32>
    %95 = arith.mulf %94, %91 : vector<14x448xf32>
    %96 = arith.select %93, %91, %95 : vector<14x448xi1>, vector<14x448xf32>
    %97 = arith.truncf %96 : vector<14x448xf32> to vector<14x448xbf16>
    %c0_87 = arith.constant 0 : index
    %c0_88 = arith.constant 0 : index
    %c0_89 = arith.constant 0 : index
    %98 = vector.load %arg6[%c0_87, %c0_88, %c0_89] : memref<2x14x448xbf16, #tpu.memory_space<vmem>>, vector<1x14x448xbf16>
    %99 = vector.shape_cast %98 : vector<1x14x448xbf16> to vector<14x448xbf16>
    %100 = vector.shape_cast %97 : vector<14x448xbf16> to vector<1x14x448xbf16>
    tpu.vector_store %arg6[%c0_87, %c0_88, %c0_89], %100 {strides = array<i32>} : memref<2x14x448xbf16, #tpu.memory_space<vmem>>, vector<1x14x448xbf16>,
    %101 = vector.broadcast %84 : vector<1x448xf32> to vector<14x448xf32>
    %102 = arith.mulf %57, %101 : vector<14x448xf32>
    %103 = vector.broadcast %87 : vector<1x448xf32> to vector<14x448xf32>
    %104 = arith.addf %102, %103 : vector<14x448xf32>
    %cst_90 = arith.constant 0.000000e+00 : f32
    %105 = vector.broadcast %cst_90 : f32 to vector<14x448xf32>
    %106 = arith.cmpf oge, %104, %105 : vector<14x448xf32>
    %cst_91 = arith.constant 2.000000e-01 : f32
    %107 = vector.broadcast %cst_91 : f32 to vector<14x448xf32>
    %108 = arith.mulf %107, %104 : vector<14x448xf32>
    %109 = arith.select %106, %104, %108 : vector<14x448xi1>, vector<14x448xf32>
    %110 = arith.truncf %109 : vector<14x448xf32> to vector<14x448xbf16>
    %c1_92 = arith.constant 1 : index
    %c0_93 = arith.constant 0 : index
    %c0_94 = arith.constant 0 : index
    %111 = vector.load %arg6[%c1_92, %c0_93, %c0_94] : memref<2x14x448xbf16, #tpu.memory_space<vmem>>, vector<1x14x448xbf16>
    %112 = vector.shape_cast %111 : vector<1x14x448xbf16> to vector<14x448xbf16>
    %113 = vector.shape_cast %110 : vector<14x448xbf16> to vector<1x14x448xbf16>
    tpu.vector_store %arg6[%c1_92, %c0_93, %c0_94], %113 {strides = array<i32>} : memref<2x14x448xbf16, #tpu.memory_space<vmem>>, vector<1x14x448xbf16>,
    return
  }
}

module attributes {stable_mosaic.version = 11 : i64} {
  func.func @_conv2_sigmoid_kernel(%arg0: i32, %arg1: memref<1x32x1024xbf16, #tpu.memory_space<vmem>>, %arg2: memref<5x1024x28xbf16, #tpu.memory_space<vmem>>, %arg3: memref<1x28x28xf32, #tpu.memory_space<vmem>>) attributes {dimension_semantics = [#tpu.dimension_semantics<parallel>], iteration_bounds = array<i64: 2>, scalar_prefetch = 0 : i64, scratch_operands = 0 : i64, tpu.core_type = #tpu.core_type<tc>, window_params = [{transform_indices = @transform_0, window_bounds = array<i64: 1, 32, 1024>}, {pipeline_mode = #tpu.pipeline_mode<synchronous>, transform_indices = @transform_1, window_bounds = array<i64: 5, 1024, 28>}, {transform_indices = @transform_2, window_bounds = array<i64: 1, 28, 28>}]} {
    %c0 = arith.constant 0 : index
    %c0_0 = arith.constant 0 : index
    %c0_1 = arith.constant 0 : index
    %0 = vector.load %arg1[%c0, %c0_0, %c0_1] : memref<1x32x1024xbf16, #tpu.memory_space<vmem>>, vector<1x28x1024xbf16>
    %1 = vector.shape_cast %0 : vector<1x28x1024xbf16> to vector<28x1024xbf16>
    %c0_2 = arith.constant 0 : index
    %c0_3 = arith.constant 0 : index
    %c0_4 = arith.constant 0 : index
    %2 = vector.load %arg2[%c0_2, %c0_3, %c0_4] : memref<5x1024x28xbf16, #tpu.memory_space<vmem>>, vector<1x1024x28xbf16>
    %3 = vector.shape_cast %2 : vector<1x1024x28xbf16> to vector<1024x28xbf16>
    %cst = arith.constant dense<0.000000e+00> : vector<28x28xf32>
    %4 = tpu.matmul %1, %3, %cst {dimension_numbers = #tpu.dot_dimension_numbers<[1], [0], [0], [1], [0, 0, 1, 1], [], []>} : vector<28x1024xbf16>, vector<1024x28xbf16>, vector<28x28xf32> -> vector<28x28xf32>
    %c0_5 = arith.constant 0 : index
    %c1 = arith.constant 1 : index
    %c0_6 = arith.constant 0 : index
    %5 = vector.load %arg1[%c0_5, %c1, %c0_6] : memref<1x32x1024xbf16, #tpu.memory_space<vmem>>, vector<1x28x1024xbf16>
    %6 = vector.shape_cast %5 : vector<1x28x1024xbf16> to vector<28x1024xbf16>
    %c1_7 = arith.constant 1 : index
    %c0_8 = arith.constant 0 : index
    %c0_9 = arith.constant 0 : index
    %7 = vector.load %arg2[%c1_7, %c0_8, %c0_9] : memref<5x1024x28xbf16, #tpu.memory_space<vmem>>, vector<1x1024x28xbf16>
    %8 = vector.shape_cast %7 : vector<1x1024x28xbf16> to vector<1024x28xbf16>
    %cst_10 = arith.constant dense<0.000000e+00> : vector<28x28xf32>
    %9 = tpu.matmul %6, %8, %cst_10 {dimension_numbers = #tpu.dot_dimension_numbers<[1], [0], [0], [1], [0, 0, 1, 1], [], []>} : vector<28x1024xbf16>, vector<1024x28xbf16>, vector<28x28xf32> -> vector<28x28xf32>
    %10 = arith.addf %4, %9 : vector<28x28xf32>
    %c0_11 = arith.constant 0 : index
    %c2 = arith.constant 2 : index
    %c0_12 = arith.constant 0 : index
    %11 = vector.load %arg1[%c0_11, %c2, %c0_12] : memref<1x32x1024xbf16, #tpu.memory_space<vmem>>, vector<1x28x1024xbf16>
    %12 = vector.shape_cast %11 : vector<1x28x1024xbf16> to vector<28x1024xbf16>
    %c2_13 = arith.constant 2 : index
    %c0_14 = arith.constant 0 : index
    %c0_15 = arith.constant 0 : index
    %13 = vector.load %arg2[%c2_13, %c0_14, %c0_15] : memref<5x1024x28xbf16, #tpu.memory_space<vmem>>, vector<1x1024x28xbf16>
    %14 = vector.shape_cast %13 : vector<1x1024x28xbf16> to vector<1024x28xbf16>
    %cst_16 = arith.constant dense<0.000000e+00> : vector<28x28xf32>
    %15 = tpu.matmul %12, %14, %cst_16 {dimension_numbers = #tpu.dot_dimension_numbers<[1], [0], [0], [1], [0, 0, 1, 1], [], []>} : vector<28x1024xbf16>, vector<1024x28xbf16>, vector<28x28xf32> -> vector<28x28xf32>
    %16 = arith.addf %10, %15 : vector<28x28xf32>
    %c0_17 = arith.constant 0 : index
    %c3 = arith.constant 3 : index
    %c0_18 = arith.constant 0 : index
    %17 = vector.load %arg1[%c0_17, %c3, %c0_18] : memref<1x32x1024xbf16, #tpu.memory_space<vmem>>, vector<1x28x1024xbf16>
    %18 = vector.shape_cast %17 : vector<1x28x1024xbf16> to vector<28x1024xbf16>
    %c3_19 = arith.constant 3 : index
    %c0_20 = arith.constant 0 : index
    %c0_21 = arith.constant 0 : index
    %19 = vector.load %arg2[%c3_19, %c0_20, %c0_21] : memref<5x1024x28xbf16, #tpu.memory_space<vmem>>, vector<1x1024x28xbf16>
    %20 = vector.shape_cast %19 : vector<1x1024x28xbf16> to vector<1024x28xbf16>
    %cst_22 = arith.constant dense<0.000000e+00> : vector<28x28xf32>
    %21 = tpu.matmul %18, %20, %cst_22 {dimension_numbers = #tpu.dot_dimension_numbers<[1], [0], [0], [1], [0, 0, 1, 1], [], []>} : vector<28x1024xbf16>, vector<1024x28xbf16>, vector<28x28xf32> -> vector<28x28xf32>
    %22 = arith.addf %16, %21 : vector<28x28xf32>
    %c0_23 = arith.constant 0 : index
    %c4 = arith.constant 4 : index
    %c0_24 = arith.constant 0 : index
    %23 = vector.load %arg1[%c0_23, %c4, %c0_24] : memref<1x32x1024xbf16, #tpu.memory_space<vmem>>, vector<1x28x1024xbf16>
    %24 = vector.shape_cast %23 : vector<1x28x1024xbf16> to vector<28x1024xbf16>
    %c4_25 = arith.constant 4 : index
    %c0_26 = arith.constant 0 : index
    %c0_27 = arith.constant 0 : index
    %25 = vector.load %arg2[%c4_25, %c0_26, %c0_27] : memref<5x1024x28xbf16, #tpu.memory_space<vmem>>, vector<1x1024x28xbf16>
    %26 = vector.shape_cast %25 : vector<1x1024x28xbf16> to vector<1024x28xbf16>
    %cst_28 = arith.constant dense<0.000000e+00> : vector<28x28xf32>
    %27 = tpu.matmul %24, %26, %cst_28 {dimension_numbers = #tpu.dot_dimension_numbers<[1], [0], [0], [1], [0, 0, 1, 1], [], []>} : vector<28x1024xbf16>, vector<1024x28xbf16>, vector<28x28xf32> -> vector<28x28xf32>
    %28 = arith.addf %22, %27 : vector<28x28xf32>
    %29 = arith.negf %28 : vector<28x28xf32>
    %30 = math.exp %29 : vector<28x28xf32>
    %cst_29 = arith.constant 1.000000e+00 : f32
    %31 = vector.broadcast %cst_29 : f32 to vector<28x28xf32>
    %32 = arith.addf %31, %30 : vector<28x28xf32>
    %33 = arith.divf %31, %32 : vector<28x28xf32>
    %c0_30 = arith.constant 0 : index
    %c0_31 = arith.constant 0 : index
    %c0_32 = arith.constant 0 : index
    %34 = vector.load %arg3[%c0_30, %c0_31, %c0_32] : memref<1x28x28xf32, #tpu.memory_space<vmem>>, vector<1x28x28xf32>
    %35 = vector.shape_cast %34 : vector<1x28x28xf32> to vector<28x28xf32>
    %36 = vector.shape_cast %33 : vector<28x28xf32> to vector<1x28x28xf32>
    tpu.vector_store %arg3[%c0_30, %c0_31, %c0_32], %36 {strides = array<i32>} : memref<1x28x28xf32, #tpu.memory_space<vmem>>, vector<1x28x28xf32>,
    return
  }
  func.func @transform_0(%arg0: i32) -> (i32, i32, i32) {
    %c0_i32 = arith.constant 0 : i32
    %c0_i32_0 = arith.constant 0 : i32
    %c0_i32_1 = arith.constant 0 : i32
    return %arg0, %c0_i32, %c0_i32_0 : i32, i32, i32
  }
  func.func @transform_1(%arg0: i32) -> (i32, i32, i32) {
    %c0_i32 = arith.constant 0 : i32
    %c0_i32_0 = arith.constant 0 : i32
    %c0_i32_1 = arith.constant 0 : i32
    %c0_i32_2 = arith.constant 0 : i32
    return %c0_i32, %c0_i32_0, %c0_i32_1 : i32, i32, i32
  }
  func.func @transform_2(%arg0: i32) -> (i32, i32, i32) {
    %c0_i32 = arith.constant 0 : i32
    %c0_i32_0 = arith.constant 0 : i32
    %c0_i32_1 = arith.constant 0 : i32
    return %arg0, %c0_i32, %c0_i32_0 : i32, i32, i32
  }
}

</mosaic_0001>

<llo_original>
// kernel: generator_forward.3
$region0: #{generator_forward.3}
  #allocation0 [shape = 'u32[]', space=smem, size = 0x4, offset = 0x4, fixed_abs, tag = 'smem constant byte address 0x4 - core index']
  #allocation1 [shape = 'u32[72,128]{1,0:T(1,128)}', space=vmem, size = 0x9000, scoped, tag = 'internal scratch']
  %s0 = inlined_call_operand.vmem [shape: bf16[2,64], index: 0, kind: input, shape index: {}]
  %s1 = inlined_call_operand.hbm [shape: bf16[64,784], index: 1, kind: input, shape index: {}]
  %s2 = inlined_call_operand.hbm [shape: f32[1,784], index: 2, kind: input, shape index: {}]
  %s3 = inlined_call_operand.hbm [shape: f32[1,784], index: 3, kind: input, shape index: {}]
  %s4 = inlined_call_operand.vmem [shape: bf16[2,784], index: 4, kind: output, shape index: {}]
  %s5 = sld [smem:[#allocation0]]
  $region38: #{generator_forward.3} parent=0
    _
  %s7 = ssub.s32 1, %s5
  %s8 = scalar_select 0, %s7, %s5
  $region1: #{generator_forward.3} parent=0
    #allocation2 [shape = 'u8[114688]{0}', space=vmem, size = 0x1c000, scoped, tag = 'input window, operand 1, single buffered']
    #allocation3 [shape = 's32[1]{0}', space=sflag, size = 0x4, scoped, tag = 'scoped memory for generator_forward.3']
    #allocation4 [shape = 'u8[3584]{0}', space=vmem, size = 0x1000, scoped, tag = 'input window, operand 2, single buffered']
    #allocation5 [shape = 's32[1]{0}', space=sflag, size = 0x4, scoped, tag = 'scoped memory for generator_forward.3']
    #allocation6 [shape = 'u8[3584]{0}', space=vmem, size = 0x1000, scoped, tag = 'input window, operand 3, single buffered']
    %9 = vsyncpa [#allocation3], 0
    %10 = vsyncpa [#allocation5], 0
    // Predicated region
    $region2: #{generator_forward.3} parent=1 // pred_check
      _
    $region3: #{generator_forward.3} parent=1 // pred_check_branch
      %12 = sbr.rel (0) target = $region5
    $region4: #{generator_forward.3} parent=1 // pred_region
      _
    $region5: #{generator_forward.3} parent=1 // pred_fallthru
      _
    // Predicated region
    $region6: #{generator_forward.3} parent=1 // pred_check
      _
    $region7: #{generator_forward.3} parent=1 // pred_check_branch
      %14 = sbr.rel (0) target = $region9
    $region8: #{generator_forward.3} parent=1 // pred_region
      %16 = vsyncadd [#allocation3], 0
      %s17 = sshll.u32 %s1, 4
      %s18 = int_to_ptr.hbm [resolvable:$true] %s17
      %s19 = sshll.u32 [#allocation2], 4
      %s20 = int_to_ptr.vmem [resolvable:$true] %s19
      %25 = dma.hbm_to_vmem [thread:$0]  %s18, 3584, %s20, [#allocation3], 448, 448, 28
    $region9: #{generator_forward.3} parent=1 // pred_fallthru
      _
    // Predicated region
    $region10: #{generator_forward.3} parent=1 // pred_check
      _
    $region11: #{generator_forward.3} parent=1 // pred_check_branch
      %27 = sbr.rel (0) target = $region13
    $region12: #{generator_forward.3} parent=1 // pred_region
      %29 = vsyncadd [#allocation5], 0
      %s31 = sshll.u32 %s2, 4
      %s32 = int_to_ptr.hbm [resolvable:$true] %s31
      %s33 = sshll.u32 [#allocation4], 4
      %s34 = int_to_ptr.vmem [resolvable:$true] %s33
      %36 = dma.hbm_to_vmem [thread:$0]  %s32, 112, %s34, [#allocation5]
    $region13: #{generator_forward.3} parent=1 // pred_fallthru
      _
    // Predicated region
    $region14: #{generator_forward.3} parent=1 // pred_check
      _
    $region15: #{generator_forward.3} parent=1 // pred_check_branch
      %38 = sbr.rel (0) target = $region17
    $region16: #{generator_forward.3} parent=1 // pred_region
      %40 = vsyncadd [#allocation5], 0
      %s42 = sshll.u32 %s3, 4
      %s43 = int_to_ptr.hbm [resolvable:$true] %s42
      %s44 = sshll.u32 [#allocation6], 4
      %s45 = int_to_ptr.vmem [resolvable:$true] %s44
      %47 = dma.hbm_to_vmem [thread:$0]  %s43, 112, %s45, [#allocation5]
    $region17: #{generator_forward.3} parent=1 // pred_fallthru
      _
    // Predicated region
    $region18: #{generator_forward.3} parent=1 // pred_check
      _
    $region19: #{generator_forward.3} parent=1 // pred_check_branch
      %49 = sbr.rel (0) target = $region21
    $region20: #{generator_forward.3} parent=1 // pred_region
      %51 = dma.done [#allocation3], 3584
    $region21: #{generator_forward.3} parent=1 // pred_fallthru
      _
    // Predicated region
    $region22: #{generator_forward.3} parent=1 // pred_check
      _
    $region23: #{generator_forward.3} parent=1 // pred_check_branch
      %53 = sbr.rel (0) target = $region25
    $region24: #{generator_forward.3} parent=1 // pred_region
      %55 = dma.done [#allocation5], 112
    $region25: #{generator_forward.3} parent=1 // pred_fallthru
      _
    // Predicated region
    $region26: #{generator_forward.3} parent=1 // pred_check
      _
    $region27: #{generator_forward.3} parent=1 // pred_check_branch
      %57 = sbr.rel (0) target = $region29
    $region28: #{generator_forward.3} parent=1 // pred_region
      %59 = dma.done [#allocation5], 112
    $region29: #{generator_forward.3} parent=1 // pred_fallthru
      _
    %v61 = vld [vmem:[%s0] sm:$0x1]
    %v62 = vld [vmem:[#allocation2] sm:$0xff]
    %v63 = vld [vmem:[#allocation2 + $0x8] sm:$0xff]
    %v64 = vld [vmem:[#allocation2 + $0x10] sm:$0xff]
    %v65 = vld [vmem:[#allocation2 + $0x18] sm:$0xf]
    %v66 = vld [vmem:[#allocation2 + $0x1c] sm:$0xff]
    %v67 = vld [vmem:[#allocation2 + $0x24] sm:$0xff]
    %v68 = vld [vmem:[#allocation2 + $0x2c] sm:$0xff]
    %v69 = vld [vmem:[#allocation2 + $0x34] sm:$0xf]
    %v70 = vld [vmem:[#allocation2 + $0x38] sm:$0xff]
    %v71 = vld [vmem:[#allocation2 + $0x40] sm:$0xff]
    %v72 = vld [vmem:[#allocation2 + $0x48] sm:$0xff]
    %v73 = vld [vmem:[#allocation2 + $0x50] sm:$0xf]
    %v74 = vld [vmem:[#allocation2 + $0x54] sm:$0xff]
    %v75 = vld [vmem:[#allocation2 + $0x5c] sm:$0xff]
    %v76 = vld [vmem:[#allocation2 + $0x64] sm:$0xff]
    %v77 = vld [vmem:[#allocation2 + $0x6c] sm:$0xf]
    %v78 = vld [vmem:[#allocation2 + $0x70] sm:$0xff]
    %v79 = vld [vmem:[#allocation2 + $0x78] sm:$0xff]
    %v80 = vld [vmem:[#allocation2 + $0x80] sm:$0xff]
    %v81 = vld [vmem:[#allocation2 + $0x88] sm:$0xf]
    %v82 = vld [vmem:[#allocation2 + $0x8c] sm:$0xff]
    %v83 = vld [vmem:[#allocation2 + $0x94] sm:$0xff]
    %v84 = vld [vmem:[#allocation2 + $0x9c] sm:$0xff]
    %v85 = vld [vmem:[#allocation2 + $0xa4] sm:$0xf]
    %v86 = vld [vmem:[#allocation2 + $0xa8] sm:$0xff]
    %v87 = vld [vmem:[#allocation2 + $0xb0] sm:$0xff]
    %v88 = vld [vmem:[#allocation2 + $0xb8] sm:$0xff]
    %v89 = vld [vmem:[#allocation2 + $0xc0] sm:$0xf]
    %v90 = vld [vmem:[#allocation2 + $0xc4] sm:$0xff]
    %v91 = vld [vmem:[#allocation2 + $0xcc] sm:$0xff]
    %v92 = vld [vmem:[#allocation2 + $0xd4] sm:$0xff]
    %v93 = vld [vmem:[#allocation2 + $0xdc] sm:$0xf]
    %v126 = vunpack.c.l.b16 %v62
    %v127 = vunpack.c.h.b16 %v62
    %v128 = vunpack.c.l.b16 %v63
    %v129 = vunpack.c.h.b16 %v63
    %v130 = vunpack.c.l.b16 %v64
    %v131 = vunpack.c.h.b16 %v64
    %v132 = vunpack.c.l.b16 %v65
    %v133 = vunpack.c.l.b16 %v66
    %v134 = vunpack.c.h.b16 %v66
    %v135 = vunpack.c.l.b16 %v67
    %v136 = vunpack.c.h.b16 %v67
    %v137 = vunpack.c.l.b16 %v68
    %v138 = vunpack.c.h.b16 %v68
    %v139 = vunpack.c.l.b16 %v69
    %v140 = vunpack.c.l.b16 %v70
    %v141 = vunpack.c.h.b16 %v70
    %v142 = vunpack.c.l.b16 %v71
    %v143 = vunpack.c.h.b16 %v71
    %v144 = vunpack.c.l.b16 %v72
    %v145 = vunpack.c.h.b16 %v72
    %v146 = vunpack.c.l.b16 %v73
    %v147 = vunpack.c.l.b16 %v74
    %v148 = vunpack.c.h.b16 %v74
    %v149 = vunpack.c.l.b16 %v75
    %v150 = vunpack.c.h.b16 %v75
    %v151 = vunpack.c.l.b16 %v76
    %v152 = vunpack.c.h.b16 %v76
    %v153 = vunpack.c.l.b16 %v77
    %v154 = vunpack.c.l.b16 %v78
    %v155 = vunpack.c.h.b16 %v78
    %v156 = vunpack.c.l.b16 %v79
    %v157 = vunpack.c.h.b16 %v79
    %v158 = vunpack.c.l.b16 %v80
    %v159 = vunpack.c.h.b16 %v80
    %v160 = vunpack.c.l.b16 %v81
    %v161 = vunpack.c.l.b16 %v82
    %v162 = vunpack.c.h.b16 %v82
    %v163 = vunpack.c.l.b16 %v83
    %v164 = vunpack.c.h.b16 %v83
    %v165 = vunpack.c.l.b16 %v84
    %v166 = vunpack.c.h.b16 %v84
    %v167 = vunpack.c.l.b16 %v85
    %v168 = vunpack.c.l.b16 %v86
    %v169 = vunpack.c.h.b16 %v86
    %v170 = vunpack.c.l.b16 %v87
    %v171 = vunpack.c.h.b16 %v87
    %v172 = vunpack.c.l.b16 %v88
    %v173 = vunpack.c.h.b16 %v88
    %v174 = vunpack.c.l.b16 %v89
    %v175 = vunpack.c.l.b16 %v90
    %v176 = vunpack.c.h.b16 %v90
    %v177 = vunpack.c.l.b16 %v91
    %v178 = vunpack.c.h.b16 %v91
    %v179 = vunpack.c.l.b16 %v92
    %v180 = vunpack.c.h.b16 %v92
    %v181 = vunpack.c.l.b16 %v93
    %v182 = vpack.c.b16 %v133, %v126
    %v183 = vpack.c.b16 %v134, %v127
    %v184 = vpack.c.b16 %v135, %v128
    %v185 = vpack.c.b16 %v136, %v129
    %v186 = vpack.c.b16 %v137, %v130
    %v187 = vpack.c.b16 %v138, %v131
    %v188 = vpack.c.b16 %v139, %v132
    %v189 = vpack.c.b16 %v147, %v140
    %v190 = vpack.c.b16 %v148, %v141
    %v191 = vpack.c.b16 %v149, %v142
    %v192 = vpack.c.b16 %v150, %v143
    %v193 = vpack.c.b16 %v151, %v144
    %v194 = vpack.c.b16 %v152, %v145
    %v195 = vpack.c.b16 %v153, %v146
    %v196 = vpack.c.b16 %v161, %v154
    %v197 = vpack.c.b16 %v162, %v155
    %v198 = vpack.c.b16 %v163, %v156
    %v199 = vpack.c.b16 %v164, %v157
    %v200 = vpack.c.b16 %v165, %v158
    %v201 = vpack.c.b16 %v166, %v159
    %v202 = vpack.c.b16 %v167, %v160
    %v203 = vpack.c.b16 %v175, %v168
    %v204 = vpack.c.b16 %v176, %v169
    %v205 = vpack.c.b16 %v177, %v170
    %v206 = vpack.c.b16 %v178, %v171
    %v207 = vpack.c.b16 %v179, %v172
    %v208 = vpack.c.b16 %v180, %v173
    %v209 = vpack.c.b16 %v181, %v174
    %vm238 = vcmask 523264
    %v240 = vsel %vm238, %v61, 0
    %242 = vmatpush.bf16.msra.mxu0 0
    %243 = vmatpush.bf16.msra.mxu0 0
    %244 = vmatpush.bf16.msra.mxu0 0
    %245 = vmatpush.bf16.msra.mxu0 0
    %246 = vmatpush.bf16.msra.mxu0 %v203
    %247 = vmatpush.bf16.msra.mxu0 %v196
    %248 = vmatpush.bf16.msra.mxu0 %v189
    %249 = vmatpush.bf16.msra.mxu0 %v182
    %250 = vmatmul.bf16.gmra.mxu0 %v240
    %v251 = vpop.f32.mrf.mxu0
    %v252 = vadd.f32 0.0, %v251
    %v253 = vpop.f32.mrf.mxu0
    %254 = vdwg.mxu0
    %255 = vmatpush.bf16.msra.mxu0 0
    %256 = vmatpush.bf16.msra.mxu0 0
    %257 = vmatpush.bf16.msra.mxu0 0
    %258 = vmatpush.bf16.msra.mxu0 0
    %259 = vmatpush.bf16.msra.mxu0 %v204
    %260 = vmatpush.bf16.msra.mxu0 %v197
    %261 = vmatpush.bf16.msra.mxu0 %v190
    %262 = vmatpush.bf16.msra.mxu0 %v183
    %263 = vmatmul.bf16.gmra.mxu0 %v240
    %v264 = vpop.f32.mrf.mxu0
    %v265 = vadd.f32 0.0, %v264
    %v266 = vpop.f32.mrf.mxu0
    %267 = vdwg.mxu0
    %268 = vmatpush.bf16.msra.mxu0 0
    %269 = vmatpush.bf16.msra.mxu0 0
    %270 = vmatpush.bf16.msra.mxu0 0
    %271 = vmatpush.bf16.msra.mxu0 0
    %272 = vmatpush.bf16.msra.mxu0 %v205
    %273 = vmatpush.bf16.msra.mxu0 %v198
    %274 = vmatpush.bf16.msra.mxu0 %v191
    %275 = vmatpush.bf16.msra.mxu0 %v184
    %276 = vmatmul.bf16.gmra.mxu0 %v240
    %v277 = vpop.f32.mrf.mxu0
    %v278 = vadd.f32 0.0, %v277
    %v279 = vpop.f32.mrf.mxu0
    %280 = vdwg.mxu0
    %281 = vmatpush.bf16.msra.mxu0 0
    %282 = vmatpush.bf16.msra.mxu0 0
    %283 = vmatpush.bf16.msra.mxu0 0
    %284 = vmatpush.bf16.msra.mxu0 0
    %285 = vmatpush.bf16.msra.mxu0 %v206
    %286 = vmatpush.bf16.msra.mxu0 %v199
    %287 = vmatpush.bf16.msra.mxu0 %v192
    %288 = vmatpush.bf16.msra.mxu0 %v185
    %289 = vmatmul.bf16.gmra.mxu0 %v240
    %v290 = vpop.f32.mrf.mxu0
    %v291 = vadd.f32 0.0, %v290
    %v292 = vpop.f32.mrf.mxu0
    %293 = vdwg.mxu0
    %294 = vmatpush.bf16.msra.mxu0 0
    %295 = vmatpush.bf16.msra.mxu0 0
    %296 = vmatpush.bf16.msra.mxu0 0
    %297 = vmatpush.bf16.msra.mxu0 0
    %298 = vmatpush.bf16.msra.mxu0 %v207
    %299 = vmatpush.bf16.msra.mxu0 %v200
    %300 = vmatpush.bf16.msra.mxu0 %v193
    %301 = vmatpush.bf16.msra.mxu0 %v186
    %302 = vmatmul.bf16.gmra.mxu0 %v240
    %v303 = vpop.f32.mrf.mxu0
    %v304 = vadd.f32 0.0, %v303
    %v305 = vpop.f32.mrf.mxu0
    %306 = vdwg.mxu0
    %307 = vmatpush.bf16.msra.mxu0 0
    %308 = vmatpush.bf16.msra.mxu0 0
    %309 = vmatpush.bf16.msra.mxu0 0
    %310 = vmatpush.bf16.msra.mxu0 0
    %311 = vmatpush.bf16.msra.mxu0 %v208
    %312 = vmatpush.bf16.msra.mxu0 %v201
    %313 = vmatpush.bf16.msra.mxu0 %v194
    %314 = vmatpush.bf16.msra.mxu0 %v187
    %315 = vmatmul.bf16.gmra.mxu0 %v240
    %v316 = vpop.f32.mrf.mxu0
    %v317 = vadd.f32 0.0, %v316
    %v318 = vpop.f32.mrf.mxu0
    %319 = vdwg.mxu0
    %320 = vmatpush.bf16.msra.mxu0 0
    %321 = vmatpush.bf16.msra.mxu0 0
    %322 = vmatpush.bf16.msra.mxu0 0
    %323 = vmatpush.bf16.msra.mxu0 0
    %324 = vmatpush.bf16.msra.mxu0 %v209
    %325 = vmatpush.bf16.msra.mxu0 %v202
    %326 = vmatpush.bf16.msra.mxu0 %v195
    %327 = vmatpush.bf16.msra.mxu0 %v188
    %328 = vmatmul.bf16.gmra.mxu0 %v240
    %v329 = vpop.f32.mrf.mxu0
    %v330 = vadd.f32 0.0, %v329
    %v331 = vpop.f32.mrf.mxu0
    %332 = vdwg.mxu0
    %vm333 = vcmask 1041408
    %v334 = vsel %vm333, %v252, 0.0
    %v335 = vrot.slane %v334, 4
    %v336 = vadd.f32 %v334, %v335
    %v337 = vrot.slane %v336, 2
    %v338 = vadd.f32 %v336, %v337
    %v339 = vrot.slane %v338, 1
    %v340 = vadd.f32 %v338, %v339
    %v341 = vsel %vm333, %v265, 0.0
    %v342 = vrot.slane %v341, 4
    %v343 = vadd.f32 %v341, %v342
    %v344 = vrot.slane %v343, 2
    %v345 = vadd.f32 %v343, %v344
    %v346 = vrot.slane %v345, 1
    %v347 = vadd.f32 %v345, %v346
    %v348 = vsel %vm333, %v278, 0.0
    %v349 = vrot.slane %v348, 4
    %v350 = vadd.f32 %v348, %v349
    %v351 = vrot.slane %v350, 2
    %v352 = vadd.f32 %v350, %v351
    %v353 = vrot.slane %v352, 1
    %v354 = vadd.f32 %v352, %v353
    %v355 = vsel %vm333, %v291, 0.0
    %v356 = vrot.slane %v355, 4
    %v357 = vadd.f32 %v355, %v356
    %v358 = vrot.slane %v357, 2
    %v359 = vadd.f32 %v357, %v358
    %v360 = vrot.slane %v359, 1
    %v361 = vadd.f32 %v359, %v360
    %v362 = vsel %vm333, %v304, 0.0
    %v363 = vrot.slane %v362, 4
    %v364 = vadd.f32 %v362, %v363
    %v365 = vrot.slane %v364, 2
    %v366 = vadd.f32 %v364, %v365
    %v367 = vrot.slane %v366, 1
    %v368 = vadd.f32 %v366, %v367
    %v369 = vsel %vm333, %v317, 0.0
    %v370 = vrot.slane %v369, 4
    %v371 = vadd.f32 %v369, %v370
    %v372 = vrot.slane %v371, 2
    %v373 = vadd.f32 %v371, %v372
    %v374 = vrot.slane %v373, 1
    %v375 = vadd.f32 %v373, %v374
    %vm376 = vcmask 123904
    %v377 = vsel %vm376, %v330, 0.0
    %v378 = vrot.slane %v377, 4
    %v379 = vadd.f32 %v377, %v378
    %v380 = vrot.slane %v379, 2
    %v381 = vadd.f32 %v379, %v380
    %v382 = vrot.slane %v381, 1
    %v383 = vadd.f32 %v381, %v382
    %v384 = vmul.f32 %v340, 0.5
    %v385 = vmul.f32 %v347, 0.5
    %v386 = vmul.f32 %v354, 0.5
    %v387 = vmul.f32 %v361, 0.5
    %v388 = vmul.f32 %v368, 0.5
    %v389 = vmul.f32 %v375, 0.5
    %v390 = vmul.f32 %v383, 0.5
    %v391 = vmul.f32 %v252, %v252
    %v392 = vmul.f32 %v265, %v265
    %v393 = vmul.f32 %v278, %v278
    %v394 = vmul.f32 %v291, %v291
    %v395 = vmul.f32 %v304, %v304
    %v396 = vmul.f32 %v317, %v317
    %v397 = vmul.f32 %v330, %v330
    %v398 = vsel %vm333, %v391, 0.0
    %v399 = vrot.slane %v398, 4
    %v400 = vadd.f32 %v398, %v399
    %v401 = vrot.slane %v400, 2
    %v402 = vadd.f32 %v400, %v401
    %v403 = vrot.slane %v402, 1
    %v404 = vadd.f32 %v402, %v403
    %v405 = vsel %vm333, %v392, 0.0
    %v406 = vrot.slane %v405, 4
    %v407 = vadd.f32 %v405, %v406
    %v408 = vrot.slane %v407, 2
    %v409 = vadd.f32 %v407, %v408
    %v410 = vrot.slane %v409, 1
    %v411 = vadd.f32 %v409, %v410
    %v412 = vsel %vm333, %v393, 0.0
    %v413 = vrot.slane %v412, 4
    %v414 = vadd.f32 %v412, %v413
    %v415 = vrot.slane %v414, 2
    %v416 = vadd.f32 %v414, %v415
    %v417 = vrot.slane %v416, 1
    %v418 = vadd.f32 %v416, %v417
    %v419 = vsel %vm333, %v394, 0.0
    %v420 = vrot.slane %v419, 4
    %v421 = vadd.f32 %v419, %v420
    %v422 = vrot.slane %v421, 2
    %v423 = vadd.f32 %v421, %v422
    %v424 = vrot.slane %v423, 1
    %v425 = vadd.f32 %v423, %v424
    %v426 = vsel %vm333, %v395, 0.0
    %v427 = vrot.slane %v426, 4
    %v428 = vadd.f32 %v426, %v427
    %v429 = vrot.slane %v428, 2
    %v430 = vadd.f32 %v428, %v429
    %v431 = vrot.slane %v430, 1
    %v432 = vadd.f32 %v430, %v431
    %v433 = vsel %vm333, %v396, 0.0
    %v434 = vrot.slane %v433, 4
    %v435 = vadd.f32 %v433, %v434
    %v436 = vrot.slane %v435, 2
    %v437 = vadd.f32 %v435, %v436
    %v438 = vrot.slane %v437, 1
    %v439 = vadd.f32 %v437, %v438
    %v440 = vsel %vm376, %v397, 0.0
    %v441 = vrot.slane %v440, 4
    %v442 = vadd.f32 %v440, %v441
    %v443 = vrot.slane %v442, 2
    %v444 = vadd.f32 %v442, %v443
    %v445 = vrot.slane %v444, 1
    %v446 = vadd.f32 %v444, %v445
    %v447 = vmul.f32 %v404, 0.5
    %v448 = vmul.f32 %v411, 0.5
    %v449 = vmul.f32 %v418, 0.5
    %v450 = vmul.f32 %v425, 0.5
    %v451 = vmul.f32 %v432, 0.5
    %v452 = vmul.f32 %v439, 0.5
    %v453 = vmul.f32 %v446, 0.5
    %v454 = vmul.f32 %v384, %v384
    %v455 = vmul.f32 %v385, %v385
    %v456 = vmul.f32 %v386, %v386
    %v457 = vmul.f32 %v387, %v387
    %v458 = vmul.f32 %v388, %v388
    %v459 = vmul.f32 %v389, %v389
    %v460 = vmul.f32 %v390, %v390
    %v461 = vsub.f32 %v447, %v454
    %v462 = vsub.f32 %v448, %v455
    %v463 = vsub.f32 %v449, %v456
    %v464 = vsub.f32 %v450, %v457
    %v465 = vsub.f32 %v451, %v458
    %v466 = vsub.f32 %v452, %v459
    %v467 = vsub.f32 %v453, %v460
    %v468 = vadd.f32 %v461, 1e-05
    %v469 = vadd.f32 %v462, 1e-05
    %v470 = vadd.f32 %v463, 1e-05
    %v471 = vadd.f32 %v464, 1e-05
    %v472 = vadd.f32 %v465, 1e-05
    %v473 = vadd.f32 %v466, 1e-05
    %v474 = vadd.f32 %v467, 1e-05
    %v475 = vrsqrt.pop %v468
    %v476 = vmul.f32 %v475, %v468
    %v477 = vmul.f32 %v476, %v475
    %v478 = vmul.f32 0.5, %v477
    %v479 = vsub.f32 1.5, %v478
    %v480 = vmul.f32 %v475, %v479
    %vm481 = vweird.f32 %v468
    %vm482 = vweird.f32 %v475
    %vm483 = vmor %vm481, %vm482
    %v484 = vsel %vm483, %v475, %v480
    %v485 = vrsqrt.pop %v469
    %v486 = vmul.f32 %v485, %v469
    %v487 = vmul.f32 %v486, %v485
    %v488 = vmul.f32 0.5, %v487
    %v489 = vsub.f32 1.5, %v488
    %v490 = vmul.f32 %v485, %v489
    %vm491 = vweird.f32 %v469
    %vm492 = vweird.f32 %v485
    %vm493 = vmor %vm491, %vm492
    %v494 = vsel %vm493, %v485, %v490
    %v495 = vrsqrt.pop %v470
    %v496 = vmul.f32 %v495, %v470
    %v497 = vmul.f32 %v496, %v495
    %v498 = vmul.f32 0.5, %v497
    %v499 = vsub.f32 1.5, %v498
    %v500 = vmul.f32 %v495, %v499
    %vm501 = vweird.f32 %v470
    %vm502 = vweird.f32 %v495
    %vm503 = vmor %vm501, %vm502
    %v504 = vsel %vm503, %v495, %v500
    %v505 = vrsqrt.pop %v471
    %v506 = vmul.f32 %v505, %v471
    %v507 = vmul.f32 %v506, %v505
    %v508 = vmul.f32 0.5, %v507
    %v509 = vsub.f32 1.5, %v508
    %v510 = vmul.f32 %v505, %v509
    %vm511 = vweird.f32 %v471
    %vm512 = vweird.f32 %v505
    %vm513 = vmor %vm511, %vm512
    %v514 = vsel %vm513, %v505, %v510
    %v515 = vrsqrt.pop %v472
    %v516 = vmul.f32 %v515, %v472
    %v517 = vmul.f32 %v516, %v515
    %v518 = vmul.f32 0.5, %v517
    %v519 = vsub.f32 1.5, %v518
    %v520 = vmul.f32 %v515, %v519
    %vm521 = vweird.f32 %v472
    %vm522 = vweird.f32 %v515
    %vm523 = vmor %vm521, %vm522
    %v524 = vsel %vm523, %v515, %v520
    %v525 = vrsqrt.pop %v473
    %v526 = vmul.f32 %v525, %v473
    %v527 = vmul.f32 %v526, %v525
    %v528 = vmul.f32 0.5, %v527
    %v529 = vsub.f32 1.5, %v528
    %v530 = vmul.f32 %v525, %v529
    %vm531 = vweird.f32 %v473
    %vm532 = vweird.f32 %v525
    %vm533 = vmor %vm531, %vm532
    %v534 = vsel %vm533, %v525, %v530
    %v535 = vrsqrt.pop %v474
    %v536 = vmul.f32 %v535, %v474
    %v537 = vmul.f32 %v536, %v535
    %v538 = vmul.f32 0.5, %v537
    %v539 = vsub.f32 1.5, %v538
    %v540 = vmul.f32 %v535, %v539
    %vm541 = vweird.f32 %v474
    %vm542 = vweird.f32 %v535
    %vm543 = vmor %vm541, %vm542
    %v544 = vsel %vm543, %v535, %v540
    %v545 = vld [vmem:[#allocation4] sm:$0x7f]
    %v547 = vperm.slane %v545, 0
    %v548 = vperm.slane %v545, 1
    %v549 = vperm.slane %v545, 2
    %v550 = vperm.slane %v545, 3
    %v551 = vperm.slane %v545, 4
    %v552 = vperm.slane %v545, 5
    %v553 = vperm.slane %v545, 6
    %v561 = vmul.f32 %v484, %v547
    %v562 = vmul.f32 %v494, %v548
    %v563 = vmul.f32 %v504, %v549
    %v564 = vmul.f32 %v514, %v550
    %v565 = vmul.f32 %v524, %v551
    %v566 = vmul.f32 %v534, %v552
    %v567 = vmul.f32 %v544, %v553
    %v568 = vsub.f32 %v252, %v384
    %v569 = vsub.f32 %v265, %v385
    %v570 = vsub.f32 %v278, %v386
    %v571 = vsub.f32 %v291, %v387
    %v572 = vsub.f32 %v304, %v388
    %v573 = vsub.f32 %v317, %v389
    %v574 = vsub.f32 %v330, %v390
    %v575 = vperm.slane %v561, 0
    %v576 = vperm.slane %v562, 0
    %v577 = vperm.slane %v563, 0
    %v578 = vperm.slane %v564, 0
    %v579 = vperm.slane %v565, 0
    %v580 = vperm.slane %v566, 0
    %v581 = vperm.slane %v567, 0
    %v582 = vmul.f32 %v568, %v575
    %v583 = vmul.f32 %v569, %v576
    %v584 = vmul.f32 %v570, %v577
    %v585 = vmul.f32 %v571, %v578
    %v586 = vmul.f32 %v572, %v579
    %v587 = vmul.f32 %v573, %v580
    %v588 = vmul.f32 %v574, %v581
    %v589 = vld [vmem:[#allocation6] sm:$0x7f]
    %v591 = vperm.slane %v589, 0
    %v592 = vperm.slane %v589, 1
    %v593 = vperm.slane %v589, 2
    %v594 = vperm.slane %v589, 3
    %v595 = vperm.slane %v589, 4
    %v596 = vperm.slane %v589, 5
    %v597 = vperm.slane %v589, 6
    %v605 = vadd.f32 %v582, %v591
    %v606 = vadd.f32 %v583, %v592
    %v607 = vadd.f32 %v584, %v593
    %v608 = vadd.f32 %v585, %v594
    %v609 = vadd.f32 %v586, %v595
    %v610 = vadd.f32 %v587, %v596
    %v611 = vadd.f32 %v588, %v597
    %vm612 = vcmp.ge.f32.partialorder %v605, 0.0
    %vm613 = vcmp.ge.f32.partialorder %v606, 0.0
    %vm614 = vcmp.ge.f32.partialorder %v607, 0.0
    %vm615 = vcmp.ge.f32.partialorder %v608, 0.0
    %vm616 = vcmp.ge.f32.partialorder %v609, 0.0
    %vm617 = vcmp.ge.f32.partialorder %v610, 0.0
    %vm618 = vcmp.ge.f32.partialorder %v611, 0.0
    %v619 = vmul.f32 %v605, 0.2
    %v620 = vmul.f32 %v606, 0.2
    %v621 = vmul.f32 %v607, 0.2
    %v622 = vmul.f32 %v608, 0.2
    %v623 = vmul.f32 %v609, 0.2
    %v624 = vmul.f32 %v610, 0.2
    %v625 = vmul.f32 %v611, 0.2
    %v626 = vsel %vm612, %v605, %v619
    %v627 = vsel %vm613, %v606, %v620
    %v628 = vsel %vm614, %v607, %v621
    %v629 = vsel %vm615, %v608, %v622
    %v630 = vsel %vm616, %v609, %v623
    %v631 = vsel %vm617, %v610, %v624
    %v632 = vsel %vm618, %v611, %v625
    %v633 = vpack.c.bf16 %v627, %v626
    %v634 = vpack.c.bf16 %v629, %v628
    %v635 = vpack.c.bf16 %v631, %v630
    %v636 = vpack.c.bf16 %v632, %v632
    %v641 = vrot.slane %v633, 3
    %v642 = vrot.slane %v634, 6
    %v643 = vrot.slane %v634, 1
    %v644 = vrot.slane %v635, 4
    %v645 = vrot.slane %v635, 7
    %v646 = vrot.slane %v636, 2
    %v647 = vrot.slane %v636, 5
    %vm648 = vcmask 1040384
    %v651 = vsel %vm648, %v633, %v641
    %vm652 = vcmask 1042434
    %v655 = vsel %vm652, %v642, %v643
    %v656 = vsel %vm333, %v651, %v655
    %vm657 = vcmask 1044484
    %v660 = vsel %vm657, %v644, %v645
    %vm661 = vcmask 1046534
    %v664 = vsel %vm661, %v646, %v647
    %vm665 = vcmask 1045508
    %v666 = vsel %vm665, %v660, %v664
    %vm667 = vcmask 1043456
    %v668 = vsel %vm667, %v656, %v666
    %vm670 = vcmask 1041409
    %vm671 = vmor %vm670, %vm648
    %vm672 = vmor %vm652, %vm671
    %vm673 = vcmask 1043459
    %vm674 = vmor %vm673, %vm672
    %vm675 = vmor %vm657, %vm674
    %vm676 = vcmask 1045509
    %vm677 = vmor %vm676, %vm675
    %vm678 = vcmask 129030
    %vm679 = vmor %vm678, %vm677
    %680 = vst.msk [vmem:[%s4] sm:$0x7f] %vm679, %v668
    // Predicated region
    $region30: #{generator_forward.3} parent=1 // pred_check
      _
    $region31: #{generator_forward.3} parent=1 // pred_check_branch
      %682 = sbr.rel (0) target = $region33
    $region32: #{generator_forward.3} parent=1 // pred_region
      _
    $region33: #{generator_forward.3} parent=1 // pred_fallthru
      _
    // Predicated region
    $region34: #{generator_forward.3} parent=1 // pred_check
      _
    $region35: #{generator_forward.3} parent=1 // pred_check_branch
      %684 = sbr.rel (0) target = $region37
    $region36: #{generator_forward.3} parent=1 // pred_region
      _
    $region37: #{generator_forward.3} parent=1 // pred_fallthru
      _
    %685 = vsyncpa [#allocation3], 1
    %686 = vsyncpa [#allocation5], 1

// kernel: tile.27
$region0: #{tile.27}
  %s0 = inlined_call_operand.vmem [shape: f32[32,14,32], index: 0, kind: input, shape index: {}]
  %s1 = inlined_call_operand.vmem [shape: f32[32,448], index: 1, kind: output, shape index: {}]
  %v2 = vld [vmem:[%s0] ss:$4 sm:$0xff]
  %vm3 = vcmask 261120
  %4 = vst.msk [vmem:[%s1] ss:$8 sm:$0xf] %vm3, %v2
  %s5 = scalar_lea.vmem %s1, 4294967265
  %6 = vst.msk [vmem:[%s5] ss:$8 sm:$0xf0] %vm3, %v2
  %s7 = scalar_lea.vmem %s0, 32
  %v8 = vld [vmem:[%s7] ss:$4 sm:$0xff]
  %vm9 = vcmask 261120
  %s10 = scalar_lea.vmem %s1, 2
  %11 = vst.msk [vmem:[%s10] ss:$8 sm:$0xf] %vm9, %v8
  %s12 = scalar_lea.vmem %s1, 4294967267
  %13 = vst.msk [vmem:[%s12] ss:$8 sm:$0xf0] %vm9, %v8
  %s14 = scalar_lea.vmem %s0, 64
  %v15 = vld [vmem:[%s14] ss:$4 sm:$0xff]
  %vm16 = vcmask 261120
  %s17 = scalar_lea.vmem %s1, 4
  %18 = vst.msk [vmem:[%s17] ss:$8 sm:$0xf] %vm16, %v15
  %s19 = scalar_lea.vmem %s1, 4294967269
  %20 = vst.msk [vmem:[%s19] ss:$8 sm:$0xf0] %vm16, %v15
  %s21 = scalar_lea.vmem %s0, 96
  %v22 = vld [vmem:[%s21] ss:$4 sm:$0xff]
  %vm23 = vcmask 261120
  %s24 = scalar_lea.vmem %s1, 6
  %25 = vst.msk [vmem:[%s24] ss:$8 sm:$0xf] %vm23, %v22
  %s26 = scalar_lea.vmem %s1, 4294967271
  %27 = vst.msk [vmem:[%s26] ss:$8 sm:$0xf0] %vm23, %v22
  %s28 = scalar_lea.vmem %s0, 128
  %v29 = vld [vmem:[%s28] ss:$4 sm:$0xff]
  %vm30 = vcmask 261120
  %s31 = scalar_lea.vmem %s1, 32
  %32 = vst.msk [vmem:[%s31] ss:$8 sm:$0xf] %vm30, %v29
  %s33 = scalar_lea.vmem %s1, 1
  %34 = vst.msk [vmem:[%s33] ss:$8 sm:$0xf0] %vm30, %v29
  %s35 = scalar_lea.vmem %s0, 160
  %v36 = vld [vmem:[%s35] ss:$4 sm:$0xff]
  %vm37 = vcmask 261120
  %s38 = scalar_lea.vmem %s1, 34
  %39 = vst.msk [vmem:[%s38] ss:$8 sm:$0xf] %vm37, %v36
  %s40 = scalar_lea.vmem %s1, 3
  %41 = vst.msk [vmem:[%s40] ss:$8 sm:$0xf0] %vm37, %v36
  %s42 = scalar_lea.vmem %s0, 192
  %v43 = vld [vmem:[%s42] ss:$4 sm:$0xff]
  %vm44 = vcmask 261120
  %s45 = scalar_lea.vmem %s1, 36
  %46 = vst.msk [vmem:[%s45] ss:$8 sm:$0xf] %vm44, %v43
  %s47 = scalar_lea.vmem %s1, 5
  %48 = vst.msk [vmem:[%s47] ss:$8 sm:$0xf0] %vm44, %v43
  %s49 = scalar_lea.vmem %s0, 224
  %v50 = vld [vmem:[%s49] ss:$4 sm:$0xff]
  %vm51 = vcmask 261120
  %s52 = scalar_lea.vmem %s1, 38
  %53 = vst.msk [vmem:[%s52] ss:$8 sm:$0xf] %vm51, %v50
  %s54 = scalar_lea.vmem %s1, 7
  %55 = vst.msk [vmem:[%s54] ss:$8 sm:$0xf0] %vm51, %v50
  %s56 = scalar_lea.vmem %s0, 256
  %v57 = vld [vmem:[%s56] ss:$4 sm:$0xff]
  %vm58 = vcmask 261120
  %s59 = scalar_lea.vmem %s1, 64
  %60 = vst.msk [vmem:[%s59] ss:$8 sm:$0xf] %vm58, %v57
  %s61 = scalar_lea.vmem %s1, 33
  %62 = vst.msk [vmem:[%s61] ss:$8 sm:$0xf0] %vm58, %v57
  %s63 = scalar_lea.vmem %s0, 288
  %v64 = vld [vmem:[%s63] ss:$4 sm:$0xff]
  %vm65 = vcmask 261120
  %s66 = scalar_lea.vmem %s1, 66
  %67 = vst.msk [vmem:[%s66] ss:$8 sm:$0xf] %vm65, %v64
  %s68 = scalar_lea.vmem %s1, 35
  %69 = vst.msk [vmem:[%s68] ss:$8 sm:$0xf0] %vm65, %v64
  %s70 = scalar_lea.vmem %s0, 320
  %v71 = vld [vmem:[%s70] ss:$4 sm:$0xff]
  %vm72 = vcmask 261120
  %s73 = scalar_lea.vmem %s1, 68
  %74 = vst.msk [vmem:[%s73] ss:$8 sm:$0xf] %vm72, %v71
  %s75 = scalar_lea.vmem %s1, 37
  %76 = vst.msk [vmem:[%s75] ss:$8 sm:$0xf0] %vm72, %v71
  %s77 = scalar_lea.vmem %s0, 352
  %v78 = vld [vmem:[%s77] ss:$4 sm:$0xff]
  %vm79 = vcmask 261120
  %s80 = scalar_lea.vmem %s1, 70
  %81 = vst.msk [vmem:[%s80] ss:$8 sm:$0xf] %vm79, %v78
  %s82 = scalar_lea.vmem %s1, 39
  %83 = vst.msk [vmem:[%s82] ss:$8 sm:$0xf0] %vm79, %v78
  %s84 = scalar_lea.vmem %s0, 384
  %v85 = vld [vmem:[%s84] ss:$4 sm:$0xff]
  %vm86 = vcmask 261120
  %s87 = scalar_lea.vmem %s1, 96
  %88 = vst.msk [vmem:[%s87] ss:$8 sm:$0xf] %vm86, %v85
  %s89 = scalar_lea.vmem %s1, 65
  %90 = vst.msk [vmem:[%s89] ss:$8 sm:$0xf0] %vm86, %v85
  %s91 = scalar_lea.vmem %s0, 416
  %v92 = vld [vmem:[%s91] ss:$4 sm:$0xff]
  %vm93 = vcmask 261120
  %s94 = scalar_lea.vmem %s1, 98
  %95 = vst.msk [vmem:[%s94] ss:$8 sm:$0xf] %vm93, %v92
  %s96 = scalar_lea.vmem %s1, 67
  %97 = vst.msk [vmem:[%s96] ss:$8 sm:$0xf0] %vm93, %v92
  %s98 = scalar_lea.vmem %s0, 448
  %v99 = vld [vmem:[%s98] ss:$4 sm:$0xff]
  %vm100 = vcmask 261120
  %s101 = scalar_lea.vmem %s1, 100
  %102 = vst.msk [vmem:[%s101] ss:$8 sm:$0xf] %vm100, %v99
  %s103 = scalar_lea.vmem %s1, 69
  %104 = vst.msk [vmem:[%s103] ss:$8 sm:$0xf0] %vm100, %v99
  %s105 = scalar_lea.vmem %s0, 480
  %v106 = vld [vmem:[%s105] ss:$4 sm:$0xff]
  %vm107 = vcmask 261120
  %s108 = scalar_lea.vmem %s1, 102
  %109 = vst.msk [vmem:[%s108] ss:$8 sm:$0xf] %vm107, %v106
  %s110 = scalar_lea.vmem %s1, 71
  %111 = vst.msk [vmem:[%s110] ss:$8 sm:$0xf0] %vm107, %v106
  %s112 = scalar_lea.vmem %s0, 3
  %s113 = smov 3
  %v114 = vld [vmem:[%s112] ss:$16 sm:%s113]
  %s115 = scalar_lea.vmem %s0, 3
  %s116 = smov 12
  %v117 = vld [vmem:[%s115] ss:$16 sm:%s116]
  %vm118 = vcmask 1043458
  %v119 = vsel %vm118, %v117, %v114
  %s120 = scalar_lea.vmem %s0, 3
  %s121 = smov 48
  %v122 = vld [vmem:[%s120] ss:$16 sm:%s121]
  %vm123 = vcmask 1045508
  %v124 = vsel %vm123, %v122, %v119
  %s125 = scalar_lea.vmem %s0, 3
  %s126 = smov 192
  %v127 = vld [vmem:[%s125] ss:$16 sm:%s126]
  %vm128 = vcmask 1047558
  %v129 = vsel %vm128, %v127, %v124
  %130 = vrot.lane.b32.xlu0 %v129, 96
  %v131 = vpop.permute.xlu0 %130
  %vm132 = vcmask 1048320
  %133 = vst.msk [vmem:[%s1] sm:$0xff] %vm132, %v131
  %s134 = scalar_lea.vmem %s0, 131
  %s135 = smov 3
  %v136 = vld [vmem:[%s134] ss:$16 sm:%s135]
  %s137 = scalar_lea.vmem %s0, 131
  %s138 = smov 12
  %v139 = vld [vmem:[%s137] ss:$16 sm:%s138]
  %vm140 = vcmask 1043458
  %v141 = vsel %vm140, %v139, %v136
  %s142 = scalar_lea.vmem %s0, 131
  %s143 = smov 48
  %v144 = vld [vmem:[%s142] ss:$16 sm:%s143]
  %vm145 = vcmask 1045508
  %v146 = vsel %vm145, %v144, %v141
  %s147 = scalar_lea.vmem %s0, 131
  %s148 = smov 192
  %v149 = vld [vmem:[%s147] ss:$16 sm:%s148]
  %vm150 = vcmask 1047558
  %v151 = vsel %vm150, %v149, %v146
  %152 = vrot.lane.b32.xlu0 %v151, 96
  %v153 = vpop.permute.xlu0 %152
  %vm154 = vcmask 1048320
  %s155 = scalar_lea.vmem %s1, 32
  %156 = vst.msk [vmem:[%s155] sm:$0xff] %vm154, %v153
  %s157 = scalar_lea.vmem %s0, 259
  %s158 = smov 3
  %v159 = vld [vmem:[%s157] ss:$16 sm:%s158]
  %s160 = scalar_lea.vmem %s0, 259
  %s161 = smov 12
  %v162 = vld [vmem:[%s160] ss:$16 sm:%s161]
  %vm163 = vcmask 1043458
  %v164 = vsel %vm163, %v162, %v159
  %s165 = scalar_lea.vmem %s0, 259
  %s166 = smov 48
  %v167 = vld [vmem:[%s165] ss:$16 sm:%s166]
  %vm168 = vcmask 1045508
  %v169 = vsel %vm168, %v167, %v164
  %s170 = scalar_lea.vmem %s0, 259
  %s171 = smov 192
  %v172 = vld [vmem:[%s170] ss:$16 sm:%s171]
  %vm173 = vcmask 1047558
  %v174 = vsel %vm173, %v172, %v169
  %175 = vrot.lane.b32.xlu0 %v174, 96
  %v176 = vpop.permute.xlu0 %175
  %vm177 = vcmask 1048320
  %s178 = scalar_lea.vmem %s1, 64
  %179 = vst.msk [vmem:[%s178] sm:$0xff] %vm177, %v176
  %s180 = scalar_lea.vmem %s0, 387
  %s181 = smov 3
  %v182 = vld [vmem:[%s180] ss:$16 sm:%s181]
  %s183 = scalar_lea.vmem %s0, 387
  %s184 = smov 12
  %v185 = vld [vmem:[%s183] ss:$16 sm:%s184]
  %vm186 = vcmask 1043458
  %v187 = vsel %vm186, %v185, %v182
  %s188 = scalar_lea.vmem %s0, 387
  %s189 = smov 48
  %v190 = vld [vmem:[%s188] ss:$16 sm:%s189]
  %vm191 = vcmask 1045508
  %v192 = vsel %vm191, %v190, %v187
  %s193 = scalar_lea.vmem %s0, 387
  %s194 = smov 192
  %v195 = vld [vmem:[%s193] ss:$16 sm:%s194]
  %vm196 = vcmask 1047558
  %v197 = vsel %vm196, %v195, %v192
  %198 = vrot.lane.b32.xlu0 %v197, 96
  %v199 = vpop.permute.xlu0 %198
  %vm200 = vcmask 1048320
  %s201 = scalar_lea.vmem %s1, 96
  %202 = vst.msk [vmem:[%s201] sm:$0xff] %vm200, %v199
  %s203 = scalar_lea.vmem %s0, 7
  %s204 = smov 3
  %v205 = vld [vmem:[%s203] ss:$16 sm:%s204]
  %s206 = scalar_lea.vmem %s0, 7
  %s207 = smov 12
  %v208 = vld [vmem:[%s206] ss:$16 sm:%s207]
  %vm209 = vcmask 1043458
  %v210 = vsel %vm209, %v208, %v205
  %s211 = scalar_lea.vmem %s0, 7
  %s212 = smov 48
  %v213 = vld [vmem:[%s211] ss:$16 sm:%s212]
  %vm214 = vcmask 1045508
  %v215 = vsel %vm214, %v213, %v210
  %s216 = scalar_lea.vmem %s0, 7
  %s217 = smov 192
  %v218 = vld [vmem:[%s216] ss:$16 sm:%s217]
  %vm219 = vcmask 1047558
  %v220 = vsel %vm219, %v218, %v215
  %221 = vrot.lane.b32.xlu0 %v220, 96
  %v222 = vpop.permute.xlu0 %221
  %vm223 = vcmask 1048320
  %s224 = scalar_lea.vmem %s1, 8
  %225 = vst.msk [vmem:[%s224] sm:$0xff] %vm223, %v222
  %s226 = scalar_lea.vmem %s0, 135
  %s227 = smov 3
  %v228 = vld [vmem:[%s226] ss:$16 sm:%s227]
  %s229 = scalar_lea.vmem %s0, 135
  %s230 = smov 12
  %v231 = vld [vmem:[%s229] ss:$16 sm:%s230]
  %vm232 = vcmask 1043458
  %v233 = vsel %vm232, %v231, %v228
  %s234 = scalar_lea.vmem %s0, 135
  %s235 = smov 48
  %v236 = vld [vmem:[%s234] ss:$16 sm:%s235]
  %vm237 = vcmask 1045508
  %v238 = vsel %vm237, %v236, %v233
  %s239 = scalar_lea.vmem %s0, 135
  %s240 = smov 192
  %v241 = vld [vmem:[%s239] ss:$16 sm:%s240]
  %vm242 = vcmask 1047558
  %v243 = vsel %vm242, %v241, %v238
  %244 = vrot.lane.b32.xlu0 %v243, 96
  %v245 = vpop.permute.xlu0 %244
  %vm246 = vcmask 1048320
  %s247 = scalar_lea.vmem %s1, 40
  %248 = vst.msk [vmem:[%s247] sm:$0xff] %vm246, %v245
  %s249 = scalar_lea.vmem %s0, 263
  %s250 = smov 3
  %v251 = vld [vmem:[%s249] ss:$16 sm:%s250]
  %s252 = scalar_lea.vmem %s0, 263
  %s253 = smov 12
  %v254 = vld [vmem:[%s252] ss:$16 sm:%s253]
  %vm255 = vcmask 1043458
  %v256 = vsel %vm255, %v254, %v251
  %s257 = scalar_lea.vmem %s0, 263
  %s258 = smov 48
  %v259 = vld [vmem:[%s257] ss:$16 sm:%s258]
  %vm260 = vcmask 1045508
  %v261 = vsel %vm260, %v259, %v256
  %s262 = scalar_lea.vmem %s0, 263
  %s263 = smov 192
  %v264 = vld [vmem:[%s262] ss:$16 sm:%s263]
  %vm265 = vcmask 1047558
  %v266 = vsel %vm265, %v264, %v261
  %267 = vrot.lane.b32.xlu0 %v266, 96
  %v268 = vpop.permute.xlu0 %267
  %vm269 = vcmask 1048320
  %s270 = scalar_lea.vmem %s1, 72
  %271 = vst.msk [vmem:[%s270] sm:$0xff] %vm269, %v268
  %s272 = scalar_lea.vmem %s0, 391
  %s273 = smov 3
  %v274 = vld [vmem:[%s272] ss:$16 sm:%s273]
  %s275 = scalar_lea.vmem %s0, 391
  %s276 = smov 12
  %v277 = vld [vmem:[%s275] ss:$16 sm:%s276]
  %vm278 = vcmask 1043458
  %v279 = vsel %vm278, %v277, %v274
  %s280 = scalar_lea.vmem %s0, 391
  %s281 = smov 48
  %v282 = vld [vmem:[%s280] ss:$16 sm:%s281]
  %vm283 = vcmask 1045508
  %v284 = vsel %vm283, %v282, %v279
  %s285 = scalar_lea.vmem %s0, 391
  %s286 = smov 192
  %v287 = vld [vmem:[%s285] ss:$16 sm:%s286]
  %vm288 = vcmask 1047558
  %v289 = vsel %vm288, %v287, %v284
  %290 = vrot.lane.b32.xlu0 %v289, 96
  %v291 = vpop.permute.xlu0 %290
  %vm292 = vcmask 1048320
  %s293 = scalar_lea.vmem %s1, 104
  %294 = vst.msk [vmem:[%s293] sm:$0xff] %vm292, %v291
  %s295 = scalar_lea.vmem %s0, 11
  %s296 = smov 3
  %v297 = vld [vmem:[%s295] ss:$16 sm:%s296]
  %s298 = scalar_lea.vmem %s0, 11
  %s299 = smov 12
  %v300 = vld [vmem:[%s298] ss:$16 sm:%s299]
  %vm301 = vcmask 1043458
  %v302 = vsel %vm301, %v300, %v297
  %s303 = scalar_lea.vmem %s0, 11
  %s304 = smov 48
  %v305 = vld [vmem:[%s303] ss:$16 sm:%s304]
  %vm306 = vcmask 1045508
  %v307 = vsel %vm306, %v305, %v302
  %s308 = scalar_lea.vmem %s0, 11
  %s309 = smov 192
  %v310 = vld [vmem:[%s308] ss:$16 sm:%s309]
  %vm311 = vcmask 1047558
  %v312 = vsel %vm311, %v310, %v307
  %313 = vrot.lane.b32.xlu0 %v312, 96
  %v314 = vpop.permute.xlu0 %313
  %vm315 = vcmask 1048320
  %s316 = scalar_lea.vmem %s1, 16
  %317 = vst.msk [vmem:[%s316] sm:$0xff] %vm315, %v314
  %s318 = scalar_lea.vmem %s0, 139
  %s319 = smov 3
  %v320 = vld [vmem:[%s318] ss:$16 sm:%s319]
  %s321 = scalar_lea.vmem %s0, 139
  %s322 = smov 12
  %v323 = vld [vmem:[%s321] ss:$16 sm:%s322]
  %vm324 = vcmask 1043458
  %v325 = vsel %vm324, %v323, %v320
  %s326 = scalar_lea.vmem %s0, 139
  %s327 = smov 48
  %v328 = vld [vmem:[%s326] ss:$16 sm:%s327]
  %vm329 = vcmask 1045508
  %v330 = vsel %vm329, %v328, %v325
  %s331 = scalar_lea.vmem %s0, 139
  %s332 = smov 192
  %v333 = vld [vmem:[%s331] ss:$16 sm:%s332]
  %vm334 = vcmask 1047558
  %v335 = vsel %vm334, %v333, %v330
  %336 = vrot.lane.b32.xlu0 %v335, 96
  %v337 = vpop.permute.xlu0 %336
  %vm338 = vcmask 1048320
  %s339 = scalar_lea.vmem %s1, 48
  %340 = vst.msk [vmem:[%s339] sm:$0xff] %vm338, %v337
  %s341 = scalar_lea.vmem %s0, 267
  %s342 = smov 3
  %v343 = vld [vmem:[%s341] ss:$16 sm:%s342]
  %s344 = scalar_lea.vmem %s0, 267
  %s345 = smov 12
  %v346 = vld [vmem:[%s344] ss:$16 sm:%s345]
  %vm347 = vcmask 1043458
  %v348 = vsel %vm347, %v346, %v343
  %s349 = scalar_lea.vmem %s0, 267
  %s350 = smov 48
  %v351 = vld [vmem:[%s349] ss:$16 sm:%s350]
  %vm352 = vcmask 1045508
  %v353 = vsel %vm352, %v351, %v348
  %s354 = scalar_lea.vmem %s0, 267
  %s355 = smov 192
  %v356 = vld [vmem:[%s354] ss:$16 sm:%s355]
  %vm357 = vcmask 1047558
  %v358 = vsel %vm357, %v356, %v353
  %359 = vrot.lane.b32.xlu0 %v358, 96
  %v360 = vpop.permute.xlu0 %359
  %vm361 = vcmask 1048320
  %s362 = scalar_lea.vmem %s1, 80
  %363 = vst.msk [vmem:[%s362] sm:$0xff] %vm361, %v360
  %s364 = scalar_lea.vmem %s0, 395
  %s365 = smov 3
  %v366 = vld [vmem:[%s364] ss:$16 sm:%s365]
  %s367 = scalar_lea.vmem %s0, 395
  %s368 = smov 12
  %v369 = vld [vmem:[%s367] ss:$16 sm:%s368]
  %vm370 = vcmask 1043458
  %v371 = vsel %vm370, %v369, %v366
  %s372 = scalar_lea.vmem %s0, 395
  %s373 = smov 48
  %v374 = vld [vmem:[%s372] ss:$16 sm:%s373]
  %vm375 = vcmask 1045508
  %v376 = vsel %vm375, %v374, %v371
  %s377 = scalar_lea.vmem %s0, 395
  %s378 = smov 192
  %v379 = vld [vmem:[%s377] ss:$16 sm:%s378]
  %vm380 = vcmask 1047558
  %v381 = vsel %vm380, %v379, %v376
  %382 = vrot.lane.b32.xlu0 %v381, 96
  %v383 = vpop.permute.xlu0 %382
  %vm384 = vcmask 1048320
  %s385 = scalar_lea.vmem %s1, 112
  %386 = vst.msk [vmem:[%s385] sm:$0xff] %vm384, %v383
  %s387 = scalar_lea.vmem %s0, 2
  %s388 = smov 3
  %v389 = vld [vmem:[%s387] ss:$16 sm:%s388]
  %s390 = scalar_lea.vmem %s0, 2
  %s391 = smov 12
  %v392 = vld [vmem:[%s390] ss:$16 sm:%s391]
  %vm393 = vcmask 1043458
  %v394 = vsel %vm393, %v392, %v389
  %s395 = scalar_lea.vmem %s0, 2
  %s396 = smov 48
  %v397 = vld [vmem:[%s395] ss:$16 sm:%s396]
  %vm398 = vcmask 1045508
  %v399 = vsel %vm398, %v397, %v394
  %s400 = scalar_lea.vmem %s0, 2
  %s401 = smov 192
  %v402 = vld [vmem:[%s400] ss:$16 sm:%s401]
  %vm403 = vcmask 1047558
  %v404 = vsel %vm403, %v402, %v399
  %405 = vrot.lane.b32.xlu0 %v404, 64
  %v406 = vpop.permute.xlu0 %405
  %vm407 = vcmask 785920
  %408 = vst.msk [vmem:[%s1] sm:$0xff] %vm407, %v406
  %s409 = scalar_lea.vmem %s0, 130
  %s410 = smov 3
  %v411 = vld [vmem:[%s409] ss:$16 sm:%s410]
  %s412 = scalar_lea.vmem %s0, 130
  %s413 = smov 12
  %v414 = vld [vmem:[%s412] ss:$16 sm:%s413]
  %vm415 = vcmask 1043458
  %v416 = vsel %vm415, %v414, %v411
  %s417 = scalar_lea.vmem %s0, 130
  %s418 = smov 48
  %v419 = vld [vmem:[%s417] ss:$16 sm:%s418]
  %vm420 = vcmask 1045508
  %v421 = vsel %vm420, %v419, %v416
  %s422 = scalar_lea.vmem %s0, 130
  %s423 = smov 192
  %v424 = vld [vmem:[%s422] ss:$16 sm:%s423]
  %vm425 = vcmask 1047558
  %v426 = vsel %vm425, %v424, %v421
  %427 = vrot.lane.b32.xlu0 %v426, 64
  %v428 = vpop.permute.xlu0 %427
  %vm429 = vcmask 785920
  %s430 = scalar_lea.vmem %s1, 32
  %431 = vst.msk [vmem:[%s430] sm:$0xff] %vm429, %v428
  %s432 = scalar_lea.vmem %s0, 258
  %s433 = smov 3
  %v434 = vld [vmem:[%s432] ss:$16 sm:%s433]
  %s435 = scalar_lea.vmem %s0, 258
  %s436 = smov 12
  %v437 = vld [vmem:[%s435] ss:$16 sm:%s436]
  %vm438 = vcmask 1043458
  %v439 = vsel %vm438, %v437, %v434
  %s440 = scalar_lea.vmem %s0, 258
  %s441 = smov 48
  %v442 = vld [vmem:[%s440] ss:$16 sm:%s441]
  %vm443 = vcmask 1045508
  %v444 = vsel %vm443, %v442, %v439
  %s445 = scalar_lea.vmem %s0, 258
  %s446 = smov 192
  %v447 = vld [vmem:[%s445] ss:$16 sm:%s446]
  %vm448 = vcmask 1047558
  %v449 = vsel %vm448, %v447, %v444
  %450 = vrot.lane.b32.xlu0 %v449, 64
  %v451 = vpop.permute.xlu0 %450
  %vm452 = vcmask 785920
  %s453 = scalar_lea.vmem %s1, 64
  %454 = vst.msk [vmem:[%s453] sm:$0xff] %vm452, %v451
  %s455 = scalar_lea.vmem %s0, 386
  %s456 = smov 3
  %v457 = vld [vmem:[%s455] ss:$16 sm:%s456]
  %s458 = scalar_lea.vmem %s0, 386
  %s459 = smov 12
  %v460 = vld [vmem:[%s458] ss:$16 sm:%s459]
  %vm461 = vcmask 1043458
  %v462 = vsel %vm461, %v460, %v457
  %s463 = scalar_lea.vmem %s0, 386
  %s464 = smov 48
  %v465 = vld [vmem:[%s463] ss:$16 sm:%s464]
  %vm466 = vcmask 1045508
  %v467 = vsel %vm466, %v465, %v462
  %s468 = scalar_lea.vmem %s0, 386
  %s469 = smov 192
  %v470 = vld [vmem:[%s468] ss:$16 sm:%s469]
  %vm471 = vcmask 1047558
  %v472 = vsel %vm471, %v470, %v467
  %473 = vrot.lane.b32.xlu0 %v472, 64
  %v474 = vpop.permute.xlu0 %473
  %vm475 = vcmask 785920
  %s476 = scalar_lea.vmem %s1, 96
  %477 = vst.msk [vmem:[%s476] sm:$0xff] %vm475, %v474
  %s478 = scalar_lea.vmem %s0, 6
  %s479 = smov 3
  %v480 = vld [vmem:[%s478] ss:$16 sm:%s479]
  %s481 = scalar_lea.vmem %s0, 6
  %s482 = smov 12
  %v483 = vld [vmem:[%s481] ss:$16 sm:%s482]
  %vm484 = vcmask 1043458
  %v485 = vsel %vm484, %v483, %v480
  %s486 = scalar_lea.vmem %s0, 6
  %s487 = smov 48
  %v488 = vld [vmem:[%s486] ss:$16 sm:%s487]
  %vm489 = vcmask 1045508
  %v490 = vsel %vm489, %v488, %v485
  %s491 = scalar_lea.vmem %s0, 6
  %s492 = smov 192
  %v493 = vld [vmem:[%s491] ss:$16 sm:%s492]
  %vm494 = vcmask 1047558
  %v495 = vsel %vm494, %v493, %v490
  %496 = vrot.lane.b32.xlu0 %v495, 64
  %v497 = vpop.permute.xlu0 %496
  %vm498 = vcmask 785920
  %s499 = scalar_lea.vmem %s1, 8
  %500 = vst.msk [vmem:[%s499] sm:$0xff] %vm498, %v497
  %s501 = scalar_lea.vmem %s0, 134
  %s502 = smov 3
  %v503 = vld [vmem:[%s501] ss:$16 sm:%s502]
  %s504 = scalar_lea.vmem %s0, 134
  %s505 = smov 12
  %v506 = vld [vmem:[%s504] ss:$16 sm:%s505]
  %vm507 = vcmask 1043458
  %v508 = vsel %vm507, %v506, %v503
  %s509 = scalar_lea.vmem %s0, 134
  %s510 = smov 48
  %v511 = vld [vmem:[%s509] ss:$16 sm:%s510]
  %vm512 = vcmask 1045508
  %v513 = vsel %vm512, %v511, %v508
  %s514 = scalar_lea.vmem %s0, 134
  %s515 = smov 192
  %v516 = vld [vmem:[%s514] ss:$16 sm:%s515]
  %vm517 = vcmask 1047558
  %v518 = vsel %vm517, %v516, %v513
  %519 = vrot.lane.b32.xlu0 %v518, 64
  %v520 = vpop.permute.xlu0 %519
  %vm521 = vcmask 785920
  %s522 = scalar_lea.vmem %s1, 40
  %523 = vst.msk [vmem:[%s522] sm:$0xff] %vm521, %v520
  %s524 = scalar_lea.vmem %s0, 262
  %s525 = smov 3
  %v526 = vld [vmem:[%s524] ss:$16 sm:%s525]
  %s527 = scalar_lea.vmem %s0, 262
  %s528 = smov 12
  %v529 = vld [vmem:[%s527] ss:$16 sm:%s528]
  %vm530 = vcmask 1043458
  %v531 = vsel %vm530, %v529, %v526
  %s532 = scalar_lea.vmem %s0, 262
  %s533 = smov 48
  %v534 = vld [vmem:[%s532] ss:$16 sm:%s533]
  %vm535 = vcmask 1045508
  %v536 = vsel %vm535, %v534, %v531
  %s537 = scalar_lea.vmem %s0, 262
  %s538 = smov 192
  %v539 = vld [vmem:[%s537] ss:$16 sm:%s538]
  %vm540 = vcmask 1047558
  %v541 = vsel %vm540, %v539, %v536
  %542 = vrot.lane.b32.xlu0 %v541, 64
  %v543 = vpop.permute.xlu0 %542
  %vm544 = vcmask 785920
  %s545 = scalar_lea.vmem %s1, 72
  %546 = vst.msk [vmem:[%s545] sm:$0xff] %vm544, %v543
  %s547 = scalar_lea.vmem %s0, 390
  %s548 = smov 3
  %v549 = vld [vmem:[%s547] ss:$16 sm:%s548]
  %s550 = scalar_lea.vmem %s0, 390
  %s551 = smov 12
  %v552 = vld [vmem:[%s550] ss:$16 sm:%s551]
  %vm553 = vcmask 1043458
  %v554 = vsel %vm553, %v552, %v549
  %s555 = scalar_lea.vmem %s0, 390
  %s556 = smov 48
  %v557 = vld [vmem:[%s555] ss:$16 sm:%s556]
  %vm558 = vcmask 1045508
  %v559 = vsel %vm558, %v557, %v554
  %s560 = scalar_lea.vmem %s0, 390
  %s561 = smov 192
  %v562 = vld [vmem:[%s560] ss:$16 sm:%s561]
  %vm563 = vcmask 1047558
  %v564 = vsel %vm563, %v562, %v559
  %565 = vrot.lane.b32.xlu0 %v564, 64
  %v566 = vpop.permute.xlu0 %565
  %vm567 = vcmask 785920
  %s568 = scalar_lea.vmem %s1, 104
  %569 = vst.msk [vmem:[%s568] sm:$0xff] %vm567, %v566
  %s570 = scalar_lea.vmem %s0, 10
  %s571 = smov 3
  %v572 = vld [vmem:[%s570] ss:$16 sm:%s571]
  %s573 = scalar_lea.vmem %s0, 10
  %s574 = smov 12
  %v575 = vld [vmem:[%s573] ss:$16 sm:%s574]
  %vm576 = vcmask 1043458
  %v577 = vsel %vm576, %v575, %v572
  %s578 = scalar_lea.vmem %s0, 10
  %s579 = smov 48
  %v580 = vld [vmem:[%s578] ss:$16 sm:%s579]
  %vm581 = vcmask 1045508
  %v582 = vsel %vm581, %v580, %v577
  %s583 = scalar_lea.vmem %s0, 10
  %s584 = smov 192
  %v585 = vld [vmem:[%s583] ss:$16 sm:%s584]
  %vm586 = vcmask 1047558
  %v587 = vsel %vm586, %v585, %v582
  %588 = vrot.lane.b32.xlu0 %v587, 64
  %v589 = vpop.permute.xlu0 %588
  %vm590 = vcmask 785920
  %s591 = scalar_lea.vmem %s1, 16
  %592 = vst.msk [vmem:[%s591] sm:$0xff] %vm590, %v589
  %s593 = scalar_lea.vmem %s0, 138
  %s594 = smov 3
  %v595 = vld [vmem:[%s593] ss:$16 sm:%s594]
  %s596 = scalar_lea.vmem %s0, 138
  %s597 = smov 12
  %v598 = vld [vmem:[%s596] ss:$16 sm:%s597]
  %vm599 = vcmask 1043458
  %v600 = vsel %vm599, %v598, %v595
  %s601 = scalar_lea.vmem %s0, 138
  %s602 = smov 48
  %v603 = vld [vmem:[%s601] ss:$16 sm:%s602]
  %vm604 = vcmask 1045508
  %v605 = vsel %vm604, %v603, %v600
  %s606 = scalar_lea.vmem %s0, 138
  %s607 = smov 192
  %v608 = vld [vmem:[%s606] ss:$16 sm:%s607]
  %vm609 = vcmask 1047558
  %v610 = vsel %vm609, %v608, %v605
  %611 = vrot.lane.b32.xlu0 %v610, 64
  %v612 = vpop.permute.xlu0 %611
  %vm613 = vcmask 785920
  %s614 = scalar_lea.vmem %s1, 48
  %615 = vst.msk [vmem:[%s614] sm:$0xff] %vm613, %v612
  %s616 = scalar_lea.vmem %s0, 266
  %s617 = smov 3
  %v618 = vld [vmem:[%s616] ss:$16 sm:%s617]
  %s619 = scalar_lea.vmem %s0, 266
  %s620 = smov 12
  %v621 = vld [vmem:[%s619] ss:$16 sm:%s620]
  %vm622 = vcmask 1043458
  %v623 = vsel %vm622, %v621, %v618
  %s624 = scalar_lea.vmem %s0, 266
  %s625 = smov 48
  %v626 = vld [vmem:[%s624] ss:$16 sm:%s625]
  %vm627 = vcmask 1045508
  %v628 = vsel %vm627, %v626, %v623
  %s629 = scalar_lea.vmem %s0, 266
  %s630 = smov 192
  %v631 = vld [vmem:[%s629] ss:$16 sm:%s630]
  %vm632 = vcmask 1047558
  %v633 = vsel %vm632, %v631, %v628
  %634 = vrot.lane.b32.xlu0 %v633, 64
  %v635 = vpop.permute.xlu0 %634
  %vm636 = vcmask 785920
  %s637 = scalar_lea.vmem %s1, 80
  %638 = vst.msk [vmem:[%s637] sm:$0xff] %vm636, %v635
  %s639 = scalar_lea.vmem %s0, 394
  %s640 = smov 3
  %v641 = vld [vmem:[%s639] ss:$16 sm:%s640]
  %s642 = scalar_lea.vmem %s0, 394
  %s643 = smov 12
  %v644 = vld [vmem:[%s642] ss:$16 sm:%s643]
  %vm645 = vcmask 1043458
  %v646 = vsel %vm645, %v644, %v641
  %s647 = scalar_lea.vmem %s0, 394
  %s648 = smov 48
  %v649 = vld [vmem:[%s647] ss:$16 sm:%s648]
  %vm650 = vcmask 1045508
  %v651 = vsel %vm650, %v649, %v646
  %s652 = scalar_lea.vmem %s0, 394
  %s653 = smov 192
  %v654 = vld [vmem:[%s652] ss:$16 sm:%s653]
  %vm655 = vcmask 1047558
  %v656 = vsel %vm655, %v654, %v651
  %657 = vrot.lane.b32.xlu0 %v656, 64
  %v658 = vpop.permute.xlu0 %657
  %vm659 = vcmask 785920
  %s660 = scalar_lea.vmem %s1, 112
  %661 = vst.msk [vmem:[%s660] sm:$0xff] %vm659, %v658
  %s662 = scalar_lea.vmem %s0, 1
  %s663 = smov 3
  %v664 = vld [vmem:[%s662] ss:$16 sm:%s663]
  %s665 = scalar_lea.vmem %s0, 1
  %s666 = smov 12
  %v667 = vld [vmem:[%s665] ss:$16 sm:%s666]
  %vm668 = vcmask 1043458
  %v669 = vsel %vm668, %v667, %v664
  %s670 = scalar_lea.vmem %s0, 1
  %s671 = smov 48
  %v672 = vld [vmem:[%s670] ss:$16 sm:%s671]
  %vm673 = vcmask 1045508
  %v674 = vsel %vm673, %v672, %v669
  %s675 = scalar_lea.vmem %s0, 1
  %s676 = smov 192
  %v677 = vld [vmem:[%s675] ss:$16 sm:%s676]
  %vm678 = vcmask 1047558
  %v679 = vsel %vm678, %v677, %v674
  %680 = vrot.lane.b32.xlu0 %v679, 32
  %v681 = vpop.permute.xlu0 %680
  %vm682 = vcmask 523520
  %683 = vst.msk [vmem:[%s1] sm:$0xff] %vm682, %v681
  %s684 = scalar_lea.vmem %s0, 129
  %s685 = smov 3
  %v686 = vld [vmem:[%s684] ss:$16 sm:%s685]
  %s687 = scalar_lea.vmem %s0, 129
  %s688 = smov 12
  %v689 = vld [vmem:[%s687] ss:$16 sm:%s688]
  %vm690 = vcmask 1043458
  %v691 = vsel %vm690, %v689, %v686
  %s692 = scalar_lea.vmem %s0, 129
  %s693 = smov 48
  %v694 = vld [vmem:[%s692] ss:$16 sm:%s693]
  %vm695 = vcmask 1045508
  %v696 = vsel %vm695, %v694, %v691
  %s697 = scalar_lea.vmem %s0, 129
  %s698 = smov 192
  %v699 = vld [vmem:[%s697] ss:$16 sm:%s698]
  %vm700 = vcmask 1047558
  %v701 = vsel %vm700, %v699, %v696
  %702 = vrot.lane.b32.xlu0 %v701, 32
  %v703 = vpop.permute.xlu0 %702
  %vm704 = vcmask 523520
  %s705 = scalar_lea.vmem %s1, 32
  %706 = vst.msk [vmem:[%s705] sm:$0xff] %vm704, %v703
  %s707 = scalar_lea.vmem %s0, 257
  %s708 = smov 3
  %v709 = vld [vmem:[%s707] ss:$16 sm:%s708]
  %s710 = scalar_lea.vmem %s0, 257
  %s711 = smov 12
  %v712 = vld [vmem:[%s710] ss:$16 sm:%s711]
  %vm713 = vcmask 1043458
  %v714 = vsel %vm713, %v712, %v709
  %s715 = scalar_lea.vmem %s0, 257
  %s716 = smov 48
  %v717 = vld [vmem:[%s715] ss:$16 sm:%s716]
  %vm718 = vcmask 1045508
  %v719 = vsel %vm718, %v717, %v714
  %s720 = scalar_lea.vmem %s0, 257
  %s721 = smov 192
  %v722 = vld [vmem:[%s720] ss:$16 sm:%s721]
  %vm723 = vcmask 1047558
  %v724 = vsel %vm723, %v722, %v719
  %725 = vrot.lane.b32.xlu0 %v724, 32
  %v726 = vpop.permute.xlu0 %725
  %vm727 = vcmask 523520
  %s728 = scalar_lea.vmem %s1, 64
  %729 = vst.msk [vmem:[%s728] sm:$0xff] %vm727, %v726
  %s730 = scalar_lea.vmem %s0, 385
  %s731 = smov 3
  %v732 = vld [vmem:[%s730] ss:$16 sm:%s731]
  %s733 = scalar_lea.vmem %s0, 385
  %s734 = smov 12
  %v735 = vld [vmem:[%s733] ss:$16 sm:%s734]
  %vm736 = vcmask 1043458
  %v737 = vsel %vm736, %v735, %v732
  %s738 = scalar_lea.vmem %s0, 385
  %s739 = smov 48
  %v740 = vld [vmem:[%s738] ss:$16 sm:%s739]
  %vm741 = vcmask 1045508
  %v742 = vsel %vm741, %v740, %v737
  %s743 = scalar_lea.vmem %s0, 385
  %s744 = smov 192
  %v745 = vld [vmem:[%s743] ss:$16 sm:%s744]
  %vm746 = vcmask 1047558
  %v747 = vsel %vm746, %v745, %v742
  %748 = vrot.lane.b32.xlu0 %v747, 32
  %v749 = vpop.permute.xlu0 %748
  %vm750 = vcmask 523520
  %s751 = scalar_lea.vmem %s1, 96
  %752 = vst.msk [vmem:[%s751] sm:$0xff] %vm750, %v749
  %s753 = scalar_lea.vmem %s0, 5
  %s754 = smov 3
  %v755 = vld [vmem:[%s753] ss:$16 sm:%s754]
  %s756 = scalar_lea.vmem %s0, 5
  %s757 = smov 12
  %v758 = vld [vmem:[%s756] ss:$16 sm:%s757]
  %vm759 = vcmask 1043458
  %v760 = vsel %vm759, %v758, %v755
  %s761 = scalar_lea.vmem %s0, 5
  %s762 = smov 48
  %v763 = vld [vmem:[%s761] ss:$16 sm:%s762]
  %vm764 = vcmask 1045508
  %v765 = vsel %vm764, %v763, %v760
  %s766 = scalar_lea.vmem %s0, 5
  %s767 = smov 192
  %v768 = vld [vmem:[%s766] ss:$16 sm:%s767]
  %vm769 = vcmask 1047558
  %v770 = vsel %vm769, %v768, %v765
  %771 = vrot.lane.b32.xlu0 %v770, 32
  %v772 = vpop.permute.xlu0 %771
  %vm773 = vcmask 523520
  %s774 = scalar_lea.vmem %s1, 8
  %775 = vst.msk [vmem:[%s774] sm:$0xff] %vm773, %v772
  %s776 = scalar_lea.vmem %s0, 133
  %s777 = smov 3
  %v778 = vld [vmem:[%s776] ss:$16 sm:%s777]
  %s779 = scalar_lea.vmem %s0, 133
  %s780 = smov 12
  %v781 = vld [vmem:[%s779] ss:$16 sm:%s780]
  %vm782 = vcmask 1043458
  %v783 = vsel %vm782, %v781, %v778
  %s784 = scalar_lea.vmem %s0, 133
  %s785 = smov 48
  %v786 = vld [vmem:[%s784] ss:$16 sm:%s785]
  %vm787 = vcmask 1045508
  %v788 = vsel %vm787, %v786, %v783
  %s789 = scalar_lea.vmem %s0, 133
  %s790 = smov 192
  %v791 = vld [vmem:[%s789] ss:$16 sm:%s790]
  %vm792 = vcmask 1047558
  %v793 = vsel %vm792, %v791, %v788
  %794 = vrot.lane.b32.xlu0 %v793, 32
  %v795 = vpop.permute.xlu0 %794
  %vm796 = vcmask 523520
  %s797 = scalar_lea.vmem %s1, 40
  %798 = vst.msk [vmem:[%s797] sm:$0xff] %vm796, %v795
  %s799 = scalar_lea.vmem %s0, 261
  %s800 = smov 3
  %v801 = vld [vmem:[%s799] ss:$16 sm:%s800]
  %s802 = scalar_lea.vmem %s0, 261
  %s803 = smov 12
  %v804 = vld [vmem:[%s802] ss:$16 sm:%s803]
  %vm805 = vcmask 1043458
  %v806 = vsel %vm805, %v804, %v801
  %s807 = scalar_lea.vmem %s0, 261
  %s808 = smov 48
  %v809 = vld [vmem:[%s807] ss:$16 sm:%s808]
  %vm810 = vcmask 1045508
  %v811 = vsel %vm810, %v809, %v806
  %s812 = scalar_lea.vmem %s0, 261
  %s813 = smov 192
  %v814 = vld [vmem:[%s812] ss:$16 sm:%s813]
  %vm815 = vcmask 1047558
  %v816 = vsel %vm815, %v814, %v811
  %817 = vrot.lane.b32.xlu0 %v816, 32
  %v818 = vpop.permute.xlu0 %817
  %vm819 = vcmask 523520
  %s820 = scalar_lea.vmem %s1, 72
  %821 = vst.msk [vmem:[%s820] sm:$0xff] %vm819, %v818
  %s822 = scalar_lea.vmem %s0, 389
  %s823 = smov 3
  %v824 = vld [vmem:[%s822] ss:$16 sm:%s823]
  %s825 = scalar_lea.vmem %s0, 389
  %s826 = smov 12
  %v827 = vld [vmem:[%s825] ss:$16 sm:%s826]
  %vm828 = vcmask 1043458
  %v829 = vsel %vm828, %v827, %v824
  %s830 = scalar_lea.vmem %s0, 389
  %s831 = smov 48
  %v832 = vld [vmem:[%s830] ss:$16 sm:%s831]
  %vm833 = vcmask 1045508
  %v834 = vsel %vm833, %v832, %v829
  %s835 = scalar_lea.vmem %s0, 389
  %s836 = smov 192
  %v837 = vld [vmem:[%s835] ss:$16 sm:%s836]
  %vm838 = vcmask 1047558
  %v839 = vsel %vm838, %v837, %v834
  %840 = vrot.lane.b32.xlu0 %v839, 32
  %v841 = vpop.permute.xlu0 %840
  %vm842 = vcmask 523520
  %s843 = scalar_lea.vmem %s1, 104
  %844 = vst.msk [vmem:[%s843] sm:$0xff] %vm842, %v841
  %s845 = scalar_lea.vmem %s0, 9
  %s846 = smov 3
  %v847 = vld [vmem:[%s845] ss:$16 sm:%s846]
  %s848 = scalar_lea.vmem %s0, 9
  %s849 = smov 12
  %v850 = vld [vmem:[%s848] ss:$16 sm:%s849]
  %vm851 = vcmask 1043458
  %v852 = vsel %vm851, %v850, %v847
  %s853 = scalar_lea.vmem %s0, 9
  %s854 = smov 48
  %v855 = vld [vmem:[%s853] ss:$16 sm:%s854]
  %vm856 = vcmask 1045508
  %v857 = vsel %vm856, %v855, %v852
  %s858 = scalar_lea.vmem %s0, 9
  %s859 = smov 192
  %v860 = vld [vmem:[%s858] ss:$16 sm:%s859]
  %vm861 = vcmask 1047558
  %v862 = vsel %vm861, %v860, %v857
  %863 = vrot.lane.b32.xlu0 %v862, 32
  %v864 = vpop.permute.xlu0 %863
  %vm865 = vcmask 523520
  %s866 = scalar_lea.vmem %s1, 16
  %867 = vst.msk [vmem:[%s866] sm:$0xff] %vm865, %v864
  %s868 = scalar_lea.vmem %s0, 137
  %s869 = smov 3
  %v870 = vld [vmem:[%s868] ss:$16 sm:%s869]
  %s871 = scalar_lea.vmem %s0, 137
  %s872 = smov 12
  %v873 = vld [vmem:[%s871] ss:$16 sm:%s872]
  %vm874 = vcmask 1043458
  %v875 = vsel %vm874, %v873, %v870
  %s876 = scalar_lea.vmem %s0, 137
  %s877 = smov 48
  %v878 = vld [vmem:[%s876] ss:$16 sm:%s877]
  %vm879 = vcmask 1045508
  %v880 = vsel %vm879, %v878, %v875
  %s881 = scalar_lea.vmem %s0, 137
  %s882 = smov 192
  %v883 = vld [vmem:[%s881] ss:$16 sm:%s882]
  %vm884 = vcmask 1047558
  %v885 = vsel %vm884, %v883, %v880
  %886 = vrot.lane.b32.xlu0 %v885, 32
  %v887 = vpop.permute.xlu0 %886
  %vm888 = vcmask 523520
  %s889 = scalar_lea.vmem %s1, 48
  %890 = vst.msk [vmem:[%s889] sm:$0xff] %vm888, %v887
  %s891 = scalar_lea.vmem %s0, 265
  %s892 = smov 3
  %v893 = vld [vmem:[%s891] ss:$16 sm:%s892]
  %s894 = scalar_lea.vmem %s0, 265
  %s895 = smov 12
  %v896 = vld [vmem:[%s894] ss:$16 sm:%s895]
  %vm897 = vcmask 1043458
  %v898 = vsel %vm897, %v896, %v893
  %s899 = scalar_lea.vmem %s0, 265
  %s900 = smov 48
  %v901 = vld [vmem:[%s899] ss:$16 sm:%s900]
  %vm902 = vcmask 1045508
  %v903 = vsel %vm902, %v901, %v898
  %s904 = scalar_lea.vmem %s0, 265
  %s905 = smov 192
  %v906 = vld [vmem:[%s904] ss:$16 sm:%s905]
  %vm907 = vcmask 1047558
  %v908 = vsel %vm907, %v906, %v903
  %909 = vrot.lane.b32.xlu0 %v908, 32
  %v910 = vpop.permute.xlu0 %909
  %vm911 = vcmask 523520
  %s912 = scalar_lea.vmem %s1, 80
  %913 = vst.msk [vmem:[%s912] sm:$0xff] %vm911, %v910
  %s914 = scalar_lea.vmem %s0, 393
  %s915 = smov 3
  %v916 = vld [vmem:[%s914] ss:$16 sm:%s915]
  %s917 = scalar_lea.vmem %s0, 393
  %s918 = smov 12
  %v919 = vld [vmem:[%s917] ss:$16 sm:%s918]
  %vm920 = vcmask 1043458
  %v921 = vsel %vm920, %v919, %v916
  %s922 = scalar_lea.vmem %s0, 393
  %s923 = smov 48
  %v924 = vld [vmem:[%s922] ss:$16 sm:%s923]
  %vm925 = vcmask 1045508
  %v926 = vsel %vm925, %v924, %v921
  %s927 = scalar_lea.vmem %s0, 393
  %s928 = smov 192
  %v929 = vld [vmem:[%s927] ss:$16 sm:%s928]
  %vm930 = vcmask 1047558
  %v931 = vsel %vm930, %v929, %v926
  %932 = vrot.lane.b32.xlu0 %v931, 32
  %v933 = vpop.permute.xlu0 %932
  %vm934 = vcmask 523520
  %s935 = scalar_lea.vmem %s1, 112
  %936 = vst.msk [vmem:[%s935] sm:$0xff] %vm934, %v933
  %s937 = scalar_lea.vmem %s0, 13
  %s938 = smov 3
  %v939 = vld [vmem:[%s937] ss:$16 sm:%s938]
  %s940 = scalar_lea.vmem %s0, 13
  %s941 = smov 12
  %v942 = vld [vmem:[%s940] ss:$16 sm:%s941]
  %vm943 = vcmask 1043458
  %v944 = vsel %vm943, %v942, %v939
  %s945 = scalar_lea.vmem %s0, 13
  %s946 = smov 48
  %v947 = vld [vmem:[%s945] ss:$16 sm:%s946]
  %vm948 = vcmask 1045508
  %v949 = vsel %vm948, %v947, %v944
  %s950 = scalar_lea.vmem %s0, 13
  %s951 = smov 192
  %v952 = vld [vmem:[%s950] ss:$16 sm:%s951]
  %vm953 = vcmask 1047558
  %v954 = vsel %vm953, %v952, %v949
  %955 = vrot.lane.b32.xlu0 %v954, 32
  %v956 = vpop.permute.xlu0 %955
  %vm957 = vcmask 523520
  %s958 = scalar_lea.vmem %s1, 24
  %959 = vst.msk [vmem:[%s958] sm:$0xff] %vm957, %v956
  %s960 = scalar_lea.vmem %s0, 141
  %s961 = smov 3
  %v962 = vld [vmem:[%s960] ss:$16 sm:%s961]
  %s963 = scalar_lea.vmem %s0, 141
  %s964 = smov 12
  %v965 = vld [vmem:[%s963] ss:$16 sm:%s964]
  %vm966 = vcmask 1043458
  %v967 = vsel %vm966, %v965, %v962
  %s968 = scalar_lea.vmem %s0, 141
  %s969 = smov 48
  %v970 = vld [vmem:[%s968] ss:$16 sm:%s969]
  %vm971 = vcmask 1045508
  %v972 = vsel %vm971, %v970, %v967
  %s973 = scalar_lea.vmem %s0, 141
  %s974 = smov 192
  %v975 = vld [vmem:[%s973] ss:$16 sm:%s974]
  %vm976 = vcmask 1047558
  %v977 = vsel %vm976, %v975, %v972
  %978 = vrot.lane.b32.xlu0 %v977, 32
  %v979 = vpop.permute.xlu0 %978
  %vm980 = vcmask 523520
  %s981 = scalar_lea.vmem %s1, 56
  %982 = vst.msk [vmem:[%s981] sm:$0xff] %vm980, %v979
  %s983 = scalar_lea.vmem %s0, 269
  %s984 = smov 3
  %v985 = vld [vmem:[%s983] ss:$16 sm:%s984]
  %s986 = scalar_lea.vmem %s0, 269
  %s987 = smov 12
  %v988 = vld [vmem:[%s986] ss:$16 sm:%s987]
  %vm989 = vcmask 1043458
  %v990 = vsel %vm989, %v988, %v985
  %s991 = scalar_lea.vmem %s0, 269
  %s992 = smov 48
  %v993 = vld [vmem:[%s991] ss:$16 sm:%s992]
  %vm994 = vcmask 1045508
  %v995 = vsel %vm994, %v993, %v990
  %s996 = scalar_lea.vmem %s0, 269
  %s997 = smov 192
  %v998 = vld [vmem:[%s996] ss:$16 sm:%s997]
  %vm999 = vcmask 1047558
  %v1000 = vsel %vm999, %v998, %v995
  %1001 = vrot.lane.b32.xlu0 %v1000, 32
  %v1002 = vpop.permute.xlu0 %1001
  %vm1003 = vcmask 523520
  %s1004 = scalar_lea.vmem %s1, 88
  %1005 = vst.msk [vmem:[%s1004] sm:$0xff] %vm1003, %v1002
  %s1006 = scalar_lea.vmem %s0, 397
  %s1007 = smov 3
  %v1008 = vld [vmem:[%s1006] ss:$16 sm:%s1007]
  %s1009 = scalar_lea.vmem %s0, 397
  %s1010 = smov 12
  %v1011 = vld [vmem:[%s1009] ss:$16 sm:%s1010]
  %vm1012 = vcmask 1043458
  %v1013 = vsel %vm1012, %v1011, %v1008
  %s1014 = scalar_lea.vmem %s0, 397
  %s1015 = smov 48
  %v1016 = vld [vmem:[%s1014] ss:$16 sm:%s1015]
  %vm1017 = vcmask 1045508
  %v1018 = vsel %vm1017, %v1016, %v1013
  %s1019 = scalar_lea.vmem %s0, 397
  %s1020 = smov 192
  %v1021 = vld [vmem:[%s1019] ss:$16 sm:%s1020]
  %vm1022 = vcmask 1047558
  %v1023 = vsel %vm1022, %v1021, %v1018
  %1024 = vrot.lane.b32.xlu0 %v1023, 32
  %v1025 = vpop.permute.xlu0 %1024
  %vm1026 = vcmask 523520
  %s1027 = scalar_lea.vmem %s1, 120
  %1028 = vst.msk [vmem:[%s1027] sm:$0xff] %vm1026, %v1025

// kernel: generator_forward.4
$region0: #{generator_forward.4}
  #allocation0 [shape = 'u32[]', space=smem, size = 0x4, offset = 0x4, fixed_abs, tag = 'smem constant byte address 0x4 - core index']
  #allocation1 [shape = 'u32[72,128]{1,0:T(1,128)}', space=vmem, size = 0x9000, scoped, tag = 'internal scratch']
  %s0 = inlined_call_operand.vmem [shape: bf16[2,18,288], index: 0, kind: input, shape index: {}]
  %s1 = inlined_call_operand.vmem [shape: bf16[5,288,448], index: 1, kind: input, shape index: {}]
  %s2 = inlined_call_operand.vmem [shape: f32[448,32], index: 2, kind: input, shape index: {}]
  %s3 = inlined_call_operand.vmem [shape: f32[32,448], index: 3, kind: input, shape index: {}]
  %s4 = inlined_call_operand.vmem [shape: f32[1,448], index: 4, kind: input, shape index: {}]
  %s5 = inlined_call_operand.vmem [shape: f32[1,448], index: 5, kind: input, shape index: {}]
  %s6 = inlined_call_operand.vmem [shape: bf16[2,14,448], index: 6, kind: output, shape index: {}]
  %s7 = sld [smem:[#allocation0]]
  $region34: #{generator_forward.4} parent=0
    _
  %s9 = ssub.s32 1, %s7
  %s10 = scalar_select 0, %s9, %s7
  // Predicated region
  $region2: #{generator_forward.4} parent=0 // pred_check
    _
  $region3: #{generator_forward.4} parent=0 // pred_check_branch
    %12 = sbr.rel (0) target = $region5
  $region4: #{generator_forward.4} parent=0 // pred_region
    _
  $region5: #{generator_forward.4} parent=0 // pred_fallthru
    _
  // Predicated region
  $region6: #{generator_forward.4} parent=0 // pred_check
    _
  $region7: #{generator_forward.4} parent=0 // pred_check_branch
    %14 = sbr.rel (0) target = $region9
  $region8: #{generator_forward.4} parent=0 // pred_region
    _
  $region9: #{generator_forward.4} parent=0 // pred_fallthru
    _
  // Predicated region
  $region10: #{generator_forward.4} parent=0 // pred_check
    _
  $region11: #{generator_forward.4} parent=0 // pred_check_branch
    %16 = sbr.rel (0) target = $region13
  $region12: #{generator_forward.4} parent=0 // pred_region
    _
  $region13: #{generator_forward.4} parent=0 // pred_fallthru
    _
  // Predicated region
  $region14: #{generator_forward.4} parent=0 // pred_check
    _
  $region15: #{generator_forward.4} parent=0 // pred_check_branch
    %18 = sbr.rel (0) target = $region17
  $region16: #{generator_forward.4} parent=0 // pred_region
    _
  $region17: #{generator_forward.4} parent=0 // pred_fallthru
    _
  // Predicated region
  $region18: #{generator_forward.4} parent=0 // pred_check
    _
  $region19: #{generator_forward.4} parent=0 // pred_check_branch
    %20 = sbr.rel (0) target = $region21
  $region20: #{generator_forward.4} parent=0 // pred_region
    _
  $region21: #{generator_forward.4} parent=0 // pred_fallthru
    _
  // Predicated region
  $region22: #{generator_forward.4} parent=0 // pred_check
    _
  $region23: #{generator_forward.4} parent=0 // pred_check_branch
    %22 = sbr.rel (0) target = $region25
  $region24: #{generator_forward.4} parent=0 // pred_region
    _
  $region25: #{generator_forward.4} parent=0 // pred_fallthru
    _
  %v24 = vld [vmem:[%s0] sm:$0xff]
  %v25 = vld [vmem:[%s0 + $0x8] sm:$0xf]
  %v26 = vld [vmem:[%s0 + $0xc] sm:$0x77]
  %v27 = vld [vmem:[%s0 + $0x14] sm:$0x7]
  %v28 = vld [vmem:[%s1] sm:$0xff]
  %v29 = vld [vmem:[%s1 + $0x8] sm:$0xff]
  %v30 = vld [vmem:[%s1 + $0x10] sm:$0xff]
  %v31 = vld [vmem:[%s1 + $0x18] sm:$0xff]
  %v32 = vld [vmem:[%s1 + $0x20] sm:$0xff]
  %v33 = vld [vmem:[%s1 + $0x28] sm:$0xff]
  %v34 = vld [vmem:[%s1 + $0x30] sm:$0xff]
  %v35 = vld [vmem:[%s1 + $0x38] sm:$0xff]
  %v36 = vld [vmem:[%s1 + $0x40] sm:$0xff]
  %v37 = vld [vmem:[%s1 + $0x48] sm:$0xff]
  %v38 = vld [vmem:[%s1 + $0x50] sm:$0xff]
  %v39 = vld [vmem:[%s1 + $0x58] sm:$0xff]
  %v40 = vld [vmem:[%s1 + $0x60] sm:$0xff]
  %v41 = vld [vmem:[%s1 + $0x68] sm:$0xff]
  %v42 = vld [vmem:[%s1 + $0x70] sm:$0xff]
  %v43 = vld [vmem:[%s1 + $0x78] sm:$0xff]
  %v44 = vld [vmem:[%s1 + $0x80] sm:$0xff]
  %v45 = vld [vmem:[%s1 + $0x88] sm:$0xff]
  %v46 = vld [vmem:[%s1 + $0x90] sm:$0xff]
  %v47 = vld [vmem:[%s1 + $0x98] sm:$0xff]
  %v48 = vld [vmem:[%s1 + $0xa0] sm:$0xff]
  %v49 = vld [vmem:[%s1 + $0xa8] sm:$0xff]
  %v50 = vld [vmem:[%s1 + $0xb0] sm:$0xff]
  %v51 = vld [vmem:[%s1 + $0xb8] sm:$0xff]
  %v52 = vld [vmem:[%s1 + $0xc0] sm:$0xff]
  %v53 = vld [vmem:[%s1 + $0xc8] sm:$0xff]
  %v54 = vld [vmem:[%s1 + $0xd0] sm:$0xff]
  %v55 = vld [vmem:[%s1 + $0xd8] sm:$0xff]
  %v56 = vld [vmem:[%s1 + $0xe0] sm:$0xff]
  %v57 = vld [vmem:[%s1 + $0xe8] sm:$0xff]
  %v58 = vld [vmem:[%s1 + $0xf0] sm:$0xff]
  %v59 = vld [vmem:[%s1 + $0xf8] sm:$0xff]
  %v60 = vld [vmem:[%s1 + $0x100] sm:$0xff]
  %v61 = vld [vmem:[%s1 + $0x108] sm:$0xff]
  %v62 = vld [vmem:[%s1 + $0x110] sm:$0xff]
  %v63 = vld [vmem:[%s1 + $0x118] sm:$0xff]
  %v64 = vld [vmem:[%s1 + $0x120] sm:$0xff]
  %v65 = vld [vmem:[%s1 + $0x128] sm:$0xff]
  %v66 = vld [vmem:[%s1 + $0x130] sm:$0xff]
  %v67 = vld [vmem:[%s1 + $0x138] sm:$0xff]
  %v68 = vld [vmem:[%s1 + $0x140] sm:$0xff]
  %v69 = vld [vmem:[%s1 + $0x148] sm:$0xff]
  %v70 = vld [vmem:[%s1 + $0x150] sm:$0xff]
  %v71 = vld [vmem:[%s1 + $0x158] sm:$0xff]
  %v72 = vld [vmem:[%s1 + $0x160] sm:$0xff]
  %v73 = vld [vmem:[%s1 + $0x168] sm:$0xff]
  %v74 = vld [vmem:[%s1 + $0x170] sm:$0xff]
  %v75 = vld [vmem:[%s1 + $0x178] sm:$0xff]
  %v76 = vld [vmem:[%s1 + $0x180] sm:$0xff]
  %v77 = vld [vmem:[%s1 + $0x188] sm:$0xff]
  %v78 = vld [vmem:[%s1 + $0x190] sm:$0xff]
  %v79 = vld [vmem:[%s1 + $0x198] sm:$0xff]
  %v80 = vld [vmem:[%s1 + $0x1a0] sm:$0xff]
  %v81 = vld [vmem:[%s1 + $0x1a8] sm:$0xff]
  %v82 = vld [vmem:[%s1 + $0x1b0] sm:$0xff]
  %v83 = vld [vmem:[%s1 + $0x1b8] sm:$0xff]
  %v84 = vld [vmem:[%s1 + $0x1c0] sm:$0xff]
  %v85 = vld [vmem:[%s1 + $0x1c8] sm:$0xff]
  %v86 = vld [vmem:[%s1 + $0x1d0] sm:$0xff]
  %v87 = vld [vmem:[%s1 + $0x1d8] sm:$0xff]
  %v88 = vld [vmem:[%s1 + $0x1e0] sm:$0xff]
  %v89 = vld [vmem:[%s1 + $0x1e8] sm:$0xff]
  %v90 = vld [vmem:[%s1 + $0x1f0] sm:$0xff]
  %v91 = vld [vmem:[%s1 + $0x1f8] sm:$0xff]
  %v92 = vld [vmem:[%s1 + $0x200] sm:$0xff]
  %v93 = vld [vmem:[%s1 + $0x208] sm:$0xff]
  %v94 = vld [vmem:[%s1 + $0x210] sm:$0xff]
  %v95 = vld [vmem:[%s1 + $0x218] sm:$0xff]
  %v96 = vld [vmem:[%s1 + $0x220] sm:$0xff]
  %v97 = vld [vmem:[%s1 + $0x228] sm:$0xff]
  %v98 = vld [vmem:[%s1 + $0x230] sm:$0xff]
  %v99 = vld [vmem:[%s1 + $0x238] sm:$0xff]
  %v100 = vld [vmem:[%s0 + $0xc] sm:$0xff]
  %v101 = vld [vmem:[%s0 + $0x14] sm:$0xf]
  %s102 = scalar_lea.vmem %s1, 576
  %v103 = vld [vmem:[%s102] sm:$0xff]
  %v104 = vld [vmem:[%s102 + $0x8] sm:$0xff]
  %v105 = vld [vmem:[%s102 + $0x10] sm:$0xff]
  %v106 = vld [vmem:[%s102 + $0x18] sm:$0xff]
  %v107 = vld [vmem:[%s102 + $0x20] sm:$0xff]
  %v108 = vld [vmem:[%s102 + $0x28] sm:$0xff]
  %v109 = vld [vmem:[%s102 + $0x30] sm:$0xff]
  %v110 = vld [vmem:[%s102 + $0x38] sm:$0xff]
  %v111 = vld [vmem:[%s102 + $0x40] sm:$0xff]
  %v112 = vld [vmem:[%s102 + $0x48] sm:$0xff]
  %v113 = vld [vmem:[%s102 + $0x50] sm:$0xff]
  %v114 = vld [vmem:[%s102 + $0x58] sm:$0xff]
  %v115 = vld [vmem:[%s102 + $0x60] sm:$0xff]
  %v116 = vld [vmem:[%s102 + $0x68] sm:$0xff]
  %v117 = vld [vmem:[%s102 + $0x70] sm:$0xff]
  %v118 = vld [vmem:[%s102 + $0x78] sm:$0xff]
  %v119 = vld [vmem:[%s102 + $0x80] sm:$0xff]
  %v120 = vld [vmem:[%s102 + $0x88] sm:$0xff]
  %v121 = vld [vmem:[%s102 + $0x90] sm:$0xff]
  %v122 = vld [vmem:[%s102 + $0x98] sm:$0xff]
  %v123 = vld [vmem:[%s102 + $0xa0] sm:$0xff]
  %v124 = vld [vmem:[%s102 + $0xa8] sm:$0xff]
  %v125 = vld [vmem:[%s102 + $0xb0] sm:$0xff]
  %v126 = vld [vmem:[%s102 + $0xb8] sm:$0xff]
  %v127 = vld [vmem:[%s102 + $0xc0] sm:$0xff]
  %v128 = vld [vmem:[%s102 + $0xc8] sm:$0xff]
  %v129 = vld [vmem:[%s102 + $0xd0] sm:$0xff]
  %v130 = vld [vmem:[%s102 + $0xd8] sm:$0xff]
  %v131 = vld [vmem:[%s102 + $0xe0] sm:$0xff]
  %v132 = vld [vmem:[%s102 + $0xe8] sm:$0xff]
  %v133 = vld [vmem:[%s102 + $0xf0] sm:$0xff]
  %v134 = vld [vmem:[%s102 + $0xf8] sm:$0xff]
  %v135 = vld [vmem:[%s102 + $0x100] sm:$0xff]
  %v136 = vld [vmem:[%s102 + $0x108] sm:$0xff]
  %v137 = vld [vmem:[%s102 + $0x110] sm:$0xff]
  %v138 = vld [vmem:[%s102 + $0x118] sm:$0xff]
  %v139 = vld [vmem:[%s102 + $0x120] sm:$0xff]
  %v140 = vld [vmem:[%s102 + $0x128] sm:$0xff]
  %v141 = vld [vmem:[%s102 + $0x130] sm:$0xff]
  %v142 = vld [vmem:[%s102 + $0x138] sm:$0xff]
  %v143 = vld [vmem:[%s102 + $0x140] sm:$0xff]
  %v144 = vld [vmem:[%s102 + $0x148] sm:$0xff]
  %v145 = vld [vmem:[%s102 + $0x150] sm:$0xff]
  %v146 = vld [vmem:[%s102 + $0x158] sm:$0xff]
  %v147 = vld [vmem:[%s102 + $0x160] sm:$0xff]
  %v148 = vld [vmem:[%s102 + $0x168] sm:$0xff]
  %v149 = vld [vmem:[%s102 + $0x170] sm:$0xff]
  %v150 = vld [vmem:[%s102 + $0x178] sm:$0xff]
  %v151 = vld [vmem:[%s102 + $0x180] sm:$0xff]
  %v152 = vld [vmem:[%s102 + $0x188] sm:$0xff]
  %v153 = vld [vmem:[%s102 + $0x190] sm:$0xff]
  %v154 = vld [vmem:[%s102 + $0x198] sm:$0xff]
  %v155 = vld [vmem:[%s102 + $0x1a0] sm:$0xff]
  %v156 = vld [vmem:[%s102 + $0x1a8] sm:$0xff]
  %v157 = vld [vmem:[%s102 + $0x1b0] sm:$0xff]
  %v158 = vld [vmem:[%s102 + $0x1b8] sm:$0xff]
  %v159 = vld [vmem:[%s102 + $0x1c0] sm:$0xff]
  %v160 = vld [vmem:[%s102 + $0x1c8] sm:$0xff]
  %v161 = vld [vmem:[%s102 + $0x1d0] sm:$0xff]
  %v162 = vld [vmem:[%s102 + $0x1d8] sm:$0xff]
  %v163 = vld [vmem:[%s102 + $0x1e0] sm:$0xff]
  %v164 = vld [vmem:[%s102 + $0x1e8] sm:$0xff]
  %v165 = vld [vmem:[%s102 + $0x1f0] sm:$0xff]
  %v166 = vld [vmem:[%s102 + $0x1f8] sm:$0xff]
  %v167 = vld [vmem:[%s102 + $0x200] sm:$0xff]
  %v168 = vld [vmem:[%s102 + $0x208] sm:$0xff]
  %v169 = vld [vmem:[%s102 + $0x210] sm:$0xff]
  %v170 = vld [vmem:[%s102 + $0x218] sm:$0xff]
  %v171 = vld [vmem:[%s102 + $0x220] sm:$0xff]
  %v172 = vld [vmem:[%s102 + $0x228] sm:$0xff]
  %v173 = vld [vmem:[%s102 + $0x230] sm:$0xff]
  %v174 = vld [vmem:[%s102 + $0x238] sm:$0xff]
  %v179 = vunpack.c.l.b16 %v24
  %v180 = vunpack.c.h.b16 %v24
  %v181 = vunpack.c.l.b16 %v25
  %v182 = vunpack.c.l.b16 %v100
  %v183 = vunpack.c.h.b16 %v100
  %v184 = vunpack.c.l.b16 %v101
  %v185 = vpack.c.b16 %v182, %v179
  %v186 = vpack.c.b16 %v183, %v180
  %v187 = vpack.c.b16 %v184, %v181
  %v189 = vshrl.u32 %v185, 16
  %v191 = vshll.u32 %v185, 16
  %v193 = vrot.slane %v191, 1
  %v194 = vor.u32 %v189, %v193
  %v196 = vshrl.u32 %v186, 16
  %v198 = vshll.u32 %v186, 16
  %v200 = vrot.slane %v198, 1
  %v201 = vor.u32 %v196, %v200
  %v203 = vshrl.u32 %v187, 16
  %v205 = vshll.u32 %v187, 16
  %v207 = vrot.slane %v205, 1
  %v208 = vor.u32 %v203, %v207
  %v283 = vunpack.c.l.b16 %v103
  %v284 = vunpack.c.h.b16 %v103
  %v285 = vunpack.c.l.b16 %v104
  %v286 = vunpack.c.h.b16 %v104
  %v287 = vunpack.c.l.b16 %v105
  %v288 = vunpack.c.h.b16 %v105
  %v289 = vunpack.c.l.b16 %v106
  %v290 = vunpack.c.h.b16 %v106
  %v291 = vunpack.c.l.b16 %v107
  %v292 = vunpack.c.h.b16 %v107
  %v293 = vunpack.c.l.b16 %v108
  %v294 = vunpack.c.h.b16 %v108
  %v295 = vunpack.c.l.b16 %v109
  %v296 = vunpack.c.h.b16 %v109
  %v297 = vunpack.c.l.b16 %v110
  %v298 = vunpack.c.h.b16 %v110
  %v299 = vunpack.c.l.b16 %v111
  %v300 = vunpack.c.h.b16 %v111
  %v301 = vunpack.c.l.b16 %v112
  %v302 = vunpack.c.h.b16 %v112
  %v303 = vunpack.c.l.b16 %v113
  %v304 = vunpack.c.h.b16 %v113
  %v305 = vunpack.c.l.b16 %v114
  %v306 = vunpack.c.h.b16 %v114
  %v307 = vunpack.c.l.b16 %v115
  %v308 = vunpack.c.h.b16 %v115
  %v309 = vunpack.c.l.b16 %v116
  %v310 = vunpack.c.h.b16 %v116
  %v311 = vunpack.c.l.b16 %v117
  %v312 = vunpack.c.h.b16 %v117
  %v313 = vunpack.c.l.b16 %v118
  %v314 = vunpack.c.h.b16 %v118
  %v315 = vunpack.c.l.b16 %v119
  %v316 = vunpack.c.h.b16 %v119
  %v317 = vunpack.c.l.b16 %v120
  %v318 = vunpack.c.h.b16 %v120
  %v319 = vunpack.c.l.b16 %v121
  %v320 = vunpack.c.h.b16 %v121
  %v321 = vunpack.c.l.b16 %v122
  %v322 = vunpack.c.h.b16 %v122
  %v323 = vunpack.c.l.b16 %v123
  %v324 = vunpack.c.h.b16 %v123
  %v325 = vunpack.c.l.b16 %v124
  %v326 = vunpack.c.h.b16 %v124
  %v327 = vunpack.c.l.b16 %v125
  %v328 = vunpack.c.h.b16 %v125
  %v329 = vunpack.c.l.b16 %v126
  %v330 = vunpack.c.h.b16 %v126
  %v331 = vunpack.c.l.b16 %v127
  %v332 = vunpack.c.h.b16 %v127
  %v333 = vunpack.c.l.b16 %v128
  %v334 = vunpack.c.h.b16 %v128
  %v335 = vunpack.c.l.b16 %v129
  %v336 = vunpack.c.h.b16 %v129
  %v337 = vunpack.c.l.b16 %v130
  %v338 = vunpack.c.h.b16 %v130
  %v339 = vunpack.c.l.b16 %v131
  %v340 = vunpack.c.h.b16 %v131
  %v341 = vunpack.c.l.b16 %v132
  %v342 = vunpack.c.h.b16 %v132
  %v343 = vunpack.c.l.b16 %v133
  %v344 = vunpack.c.h.b16 %v133
  %v345 = vunpack.c.l.b16 %v134
  %v346 = vunpack.c.h.b16 %v134
  %v347 = vunpack.c.l.b16 %v135
  %v348 = vunpack.c.h.b16 %v135
  %v349 = vunpack.c.l.b16 %v136
  %v350 = vunpack.c.h.b16 %v136
  %v351 = vunpack.c.l.b16 %v137
  %v352 = vunpack.c.h.b16 %v137
  %v353 = vunpack.c.l.b16 %v138
  %v354 = vunpack.c.h.b16 %v138
  %v355 = vunpack.c.l.b16 %v139
  %v356 = vunpack.c.h.b16 %v139
  %v357 = vunpack.c.l.b16 %v140
  %v358 = vunpack.c.h.b16 %v140
  %v359 = vunpack.c.l.b16 %v141
  %v360 = vunpack.c.h.b16 %v141
  %v361 = vunpack.c.l.b16 %v142
  %v362 = vunpack.c.h.b16 %v142
  %v363 = vunpack.c.l.b16 %v143
  %v364 = vunpack.c.h.b16 %v143
  %v365 = vunpack.c.l.b16 %v144
  %v366 = vunpack.c.h.b16 %v144
  %v367 = vunpack.c.l.b16 %v145
  %v368 = vunpack.c.h.b16 %v145
  %v369 = vunpack.c.l.b16 %v146
  %v370 = vunpack.c.h.b16 %v146
  %v371 = vunpack.c.l.b16 %v147
  %v372 = vunpack.c.h.b16 %v147
  %v373 = vunpack.c.l.b16 %v148
  %v374 = vunpack.c.h.b16 %v148
  %v375 = vunpack.c.l.b16 %v149
  %v376 = vunpack.c.h.b16 %v149
  %v377 = vunpack.c.l.b16 %v150
  %v378 = vunpack.c.h.b16 %v150
  %v379 = vunpack.c.l.b16 %v151
  %v380 = vunpack.c.h.b16 %v151
  %v381 = vunpack.c.l.b16 %v152
  %v382 = vunpack.c.h.b16 %v152
  %v383 = vunpack.c.l.b16 %v153
  %v384 = vunpack.c.h.b16 %v153
  %v385 = vunpack.c.l.b16 %v154
  %v386 = vunpack.c.h.b16 %v154
  %v387 = vunpack.c.l.b16 %v155
  %v388 = vunpack.c.h.b16 %v155
  %v389 = vunpack.c.l.b16 %v156
  %v390 = vunpack.c.h.b16 %v156
  %v391 = vunpack.c.l.b16 %v157
  %v392 = vunpack.c.h.b16 %v157
  %v393 = vunpack.c.l.b16 %v158
  %v394 = vunpack.c.h.b16 %v158
  %v395 = vunpack.c.l.b16 %v159
  %v396 = vunpack.c.h.b16 %v159
  %v397 = vunpack.c.l.b16 %v160
  %v398 = vunpack.c.h.b16 %v160
  %v399 = vunpack.c.l.b16 %v161
  %v400 = vunpack.c.h.b16 %v161
  %v401 = vunpack.c.l.b16 %v162
  %v402 = vunpack.c.h.b16 %v162
  %v403 = vunpack.c.l.b16 %v163
  %v404 = vunpack.c.h.b16 %v163
  %v405 = vunpack.c.l.b16 %v164
  %v406 = vunpack.c.h.b16 %v164
  %v407 = vunpack.c.l.b16 %v165
  %v408 = vunpack.c.h.b16 %v165
  %v409 = vunpack.c.l.b16 %v166
  %v410 = vunpack.c.h.b16 %v166
  %v411 = vunpack.c.l.b16 %v167
  %v412 = vunpack.c.h.b16 %v167
  %v413 = vunpack.c.l.b16 %v168
  %v414 = vunpack.c.h.b16 %v168
  %v415 = vunpack.c.l.b16 %v169
  %v416 = vunpack.c.h.b16 %v169
  %v417 = vunpack.c.l.b16 %v170
  %v418 = vunpack.c.h.b16 %v170
  %v419 = vunpack.c.l.b16 %v171
  %v420 = vunpack.c.h.b16 %v171
  %v421 = vunpack.c.l.b16 %v172
  %v422 = vunpack.c.h.b16 %v172
  %v423 = vunpack.c.l.b16 %v173
  %v424 = vunpack.c.h.b16 %v173
  %v425 = vunpack.c.l.b16 %v174
  %v426 = vunpack.c.h.b16 %v174
  %v427 = vpack.c.b16 %v287, %v283
  %v428 = vpack.c.b16 %v288, %v284
  %v429 = vpack.c.b16 %v289, %v285
  %v430 = vpack.c.b16 %v290, %v286
  %v431 = vpack.c.b16 %v295, %v291
  %v432 = vpack.c.b16 %v296, %v292
  %v433 = vpack.c.b16 %v297, %v293
  %v434 = vpack.c.b16 %v298, %v294
  %v435 = vpack.c.b16 %v303, %v299
  %v436 = vpack.c.b16 %v304, %v300
  %v437 = vpack.c.b16 %v305, %v301
  %v438 = vpack.c.b16 %v306, %v302
  %v439 = vpack.c.b16 %v311, %v307
  %v440 = vpack.c.b16 %v312, %v308
  %v441 = vpack.c.b16 %v313, %v309
  %v442 = vpack.c.b16 %v314, %v310
  %v443 = vpack.c.b16 %v319, %v315
  %v444 = vpack.c.b16 %v320, %v316
  %v445 = vpack.c.b16 %v321, %v317
  %v446 = vpack.c.b16 %v322, %v318
  %v447 = vpack.c.b16 %v327, %v323
  %v448 = vpack.c.b16 %v328, %v324
  %v449 = vpack.c.b16 %v329, %v325
  %v450 = vpack.c.b16 %v330, %v326
  %v451 = vpack.c.b16 %v335, %v331
  %v452 = vpack.c.b16 %v336, %v332
  %v453 = vpack.c.b16 %v337, %v333
  %v454 = vpack.c.b16 %v338, %v334
  %v455 = vpack.c.b16 %v343, %v339
  %v456 = vpack.c.b16 %v344, %v340
  %v457 = vpack.c.b16 %v345, %v341
  %v458 = vpack.c.b16 %v346, %v342
  %v459 = vpack.c.b16 %v351, %v347
  %v460 = vpack.c.b16 %v352, %v348
  %v461 = vpack.c.b16 %v353, %v349
  %v462 = vpack.c.b16 %v354, %v350
  %v463 = vpack.c.b16 %v359, %v355
  %v464 = vpack.c.b16 %v360, %v356
  %v465 = vpack.c.b16 %v361, %v357
  %v466 = vpack.c.b16 %v362, %v358
  %v467 = vpack.c.b16 %v367, %v363
  %v468 = vpack.c.b16 %v368, %v364
  %v469 = vpack.c.b16 %v369, %v365
  %v470 = vpack.c.b16 %v370, %v366
  %v471 = vpack.c.b16 %v375, %v371
  %v472 = vpack.c.b16 %v376, %v372
  %v473 = vpack.c.b16 %v377, %v373
  %v474 = vpack.c.b16 %v378, %v374
  %v475 = vpack.c.b16 %v383, %v379
  %v476 = vpack.c.b16 %v384, %v380
  %v477 = vpack.c.b16 %v385, %v381
  %v478 = vpack.c.b16 %v386, %v382
  %v479 = vpack.c.b16 %v391, %v387
  %v480 = vpack.c.b16 %v392, %v388
  %v481 = vpack.c.b16 %v393, %v389
  %v482 = vpack.c.b16 %v394, %v390
  %v483 = vpack.c.b16 %v399, %v395
  %v484 = vpack.c.b16 %v400, %v396
  %v485 = vpack.c.b16 %v401, %v397
  %v486 = vpack.c.b16 %v402, %v398
  %v487 = vpack.c.b16 %v407, %v403
  %v488 = vpack.c.b16 %v408, %v404
  %v489 = vpack.c.b16 %v409, %v405
  %v490 = vpack.c.b16 %v410, %v406
  %v491 = vpack.c.b16 %v415, %v411
  %v492 = vpack.c.b16 %v416, %v412
  %v493 = vpack.c.b16 %v417, %v413
  %v494 = vpack.c.b16 %v418, %v414
  %v495 = vpack.c.b16 %v423, %v419
  %v496 = vpack.c.b16 %v424, %v420
  %v497 = vpack.c.b16 %v425, %v421
  %v498 = vpack.c.b16 %v426, %v422
  %vm571 = vcmask 261120
  %v573 = vsel %vm571, %v208, 0
  %575 = vmatpush.bf16.msra.mxu0 %v455
  %576 = vmatpush.bf16.msra.mxu0 %v451
  %577 = vmatpush.bf16.msra.mxu0 %v447
  %578 = vmatpush.bf16.msra.mxu0 %v443
  %579 = vmatpush.bf16.msra.mxu0 %v439
  %580 = vmatpush.bf16.msra.mxu0 %v435
  %581 = vmatpush.bf16.msra.mxu0 %v431
  %582 = vmatpush.bf16.msra.mxu0 %v427
  %583 = vmatmul.bf16.gmra.mxu0 %v194
  %v584 = vpop.f32.mrf.mxu0
  %v585 = vadd.f32 0.0, %v584
  %v586 = vpop.f32.mrf.mxu0
  %v587 = vadd.f32 0.0, %v586
  %588 = vdwg.mxu0
  %589 = vmatpush.bf16.msra.mxu0 %v487
  %590 = vmatpush.bf16.msra.mxu0 %v483
  %591 = vmatpush.bf16.msra.mxu0 %v479
  %592 = vmatpush.bf16.msra.mxu0 %v475
  %593 = vmatpush.bf16.msra.mxu0 %v471
  %594 = vmatpush.bf16.msra.mxu0 %v467
  %595 = vmatpush.bf16.msra.mxu0 %v463
  %596 = vmatpush.bf16.msra.mxu0 %v459
  %597 = vmatmul.bf16.gmra.mxu0 %v201
  %v598 = vpop.f32.mrf.mxu0
  %v599 = vadd.f32 %v585, %v598
  %v600 = vpop.f32.mrf.mxu0
  %v601 = vadd.f32 %v587, %v600
  %602 = vdwg.mxu0
  %603 = vmatpush.bf16.msra.mxu0 0
  %604 = vmatpush.bf16.msra.mxu0 0
  %605 = vmatpush.bf16.msra.mxu0 0
  %606 = vmatpush.bf16.msra.mxu0 0
  %607 = vmatpush.bf16.msra.mxu0 0
  %608 = vmatpush.bf16.msra.mxu0 0
  %609 = vmatpush.bf16.msra.mxu0 %v495
  %610 = vmatpush.bf16.msra.mxu0 %v491
  %611 = vmatmul.bf16.gmra.mxu0 %v573
  %v612 = vpop.f32.mrf.mxu0
  %v613 = vadd.f32 %v599, %v612
  %v614 = vpop.f32.mrf.mxu0
  %v615 = vadd.f32 %v601, %v614
  %616 = vdwg.mxu0
  %617 = vmatpush.bf16.msra.mxu0 %v456
  %618 = vmatpush.bf16.msra.mxu0 %v452
  %619 = vmatpush.bf16.msra.mxu0 %v448
  %620 = vmatpush.bf16.msra.mxu0 %v444
  %621 = vmatpush.bf16.msra.mxu0 %v440
  %622 = vmatpush.bf16.msra.mxu0 %v436
  %623 = vmatpush.bf16.msra.mxu0 %v432
  %624 = vmatpush.bf16.msra.mxu0 %v428
  %625 = vmatmul.bf16.gmra.mxu0 %v194
  %v626 = vpop.f32.mrf.mxu0
  %v627 = vadd.f32 0.0, %v626
  %v628 = vpop.f32.mrf.mxu0
  %v629 = vadd.f32 0.0, %v628
  %630 = vdwg.mxu0
  %631 = vmatpush.bf16.msra.mxu0 %v488
  %632 = vmatpush.bf16.msra.mxu0 %v484
  %633 = vmatpush.bf16.msra.mxu0 %v480
  %634 = vmatpush.bf16.msra.mxu0 %v476
  %635 = vmatpush.bf16.msra.mxu0 %v472
  %636 = vmatpush.bf16.msra.mxu0 %v468
  %637 = vmatpush.bf16.msra.mxu0 %v464
  %638 = vmatpush.bf16.msra.mxu0 %v460
  %639 = vmatmul.bf16.gmra.mxu0 %v201
  %v640 = vpop.f32.mrf.mxu0
  %v641 = vadd.f32 %v627, %v640
  %v642 = vpop.f32.mrf.mxu0
  %v643 = vadd.f32 %v629, %v642
  %644 = vdwg.mxu0
  %645 = vmatpush.bf16.msra.mxu0 0
  %646 = vmatpush.bf16.msra.mxu0 0
  %647 = vmatpush.bf16.msra.mxu0 0
  %648 = vmatpush.bf16.msra.mxu0 0
  %649 = vmatpush.bf16.msra.mxu0 0
  %650 = vmatpush.bf16.msra.mxu0 0
  %651 = vmatpush.bf16.msra.mxu0 %v496
  %652 = vmatpush.bf16.msra.mxu0 %v492
  %653 = vmatmul.bf16.gmra.mxu0 %v573
  %v654 = vpop.f32.mrf.mxu0
  %v655 = vadd.f32 %v641, %v654
  %v656 = vpop.f32.mrf.mxu0
  %v657 = vadd.f32 %v643, %v656
  %658 = vdwg.mxu0
  %659 = vmatpush.bf16.msra.mxu0 %v457
  %660 = vmatpush.bf16.msra.mxu0 %v453
  %661 = vmatpush.bf16.msra.mxu0 %v449
  %662 = vmatpush.bf16.msra.mxu0 %v445
  %663 = vmatpush.bf16.msra.mxu0 %v441
  %664 = vmatpush.bf16.msra.mxu0 %v437
  %665 = vmatpush.bf16.msra.mxu0 %v433
  %666 = vmatpush.bf16.msra.mxu0 %v429
  %667 = vmatmul.bf16.gmra.mxu0 %v194
  %v668 = vpop.f32.mrf.mxu0
  %v669 = vadd.f32 0.0, %v668
  %v670 = vpop.f32.mrf.mxu0
  %v671 = vadd.f32 0.0, %v670
  %672 = vdwg.mxu0
  %673 = vmatpush.bf16.msra.mxu0 %v489
  %674 = vmatpush.bf16.msra.mxu0 %v485
  %675 = vmatpush.bf16.msra.mxu0 %v481
  %676 = vmatpush.bf16.msra.mxu0 %v477
  %677 = vmatpush.bf16.msra.mxu0 %v473
  %678 = vmatpush.bf16.msra.mxu0 %v469
  %679 = vmatpush.bf16.msra.mxu0 %v465
  %680 = vmatpush.bf16.msra.mxu0 %v461
  %681 = vmatmul.bf16.gmra.mxu0 %v201
  %v682 = vpop.f32.mrf.mxu0
  %v683 = vadd.f32 %v669, %v682
  %v684 = vpop.f32.mrf.mxu0
  %v685 = vadd.f32 %v671, %v684
  %686 = vdwg.mxu0
  %687 = vmatpush.bf16.msra.mxu0 0
  %688 = vmatpush.bf16.msra.mxu0 0
  %689 = vmatpush.bf16.msra.mxu0 0
  %690 = vmatpush.bf16.msra.mxu0 0
  %691 = vmatpush.bf16.msra.mxu0 0
  %692 = vmatpush.bf16.msra.mxu0 0
  %693 = vmatpush.bf16.msra.mxu0 %v497
  %694 = vmatpush.bf16.msra.mxu0 %v493
  %695 = vmatmul.bf16.gmra.mxu0 %v573
  %v696 = vpop.f32.mrf.mxu0
  %v697 = vadd.f32 %v683, %v696
  %v698 = vpop.f32.mrf.mxu0
  %v699 = vadd.f32 %v685, %v698
  %700 = vdwg.mxu0
  %701 = vmatpush.bf16.msra.mxu0 %v458
  %702 = vmatpush.bf16.msra.mxu0 %v454
  %703 = vmatpush.bf16.msra.mxu0 %v450
  %704 = vmatpush.bf16.msra.mxu0 %v446
  %705 = vmatpush.bf16.msra.mxu0 %v442
  %706 = vmatpush.bf16.msra.mxu0 %v438
  %707 = vmatpush.bf16.msra.mxu0 %v434
  %708 = vmatpush.bf16.msra.mxu0 %v430
  %709 = vmatmul.bf16.gmra.mxu0 %v194
  %v710 = vpop.f32.mrf.mxu0
  %v711 = vadd.f32 0.0, %v710
  %v712 = vpop.f32.mrf.mxu0
  %v713 = vadd.f32 0.0, %v712
  %714 = vdwg.mxu0
  %715 = vmatpush.bf16.msra.mxu0 %v490
  %716 = vmatpush.bf16.msra.mxu0 %v486
  %717 = vmatpush.bf16.msra.mxu0 %v482
  %718 = vmatpush.bf16.msra.mxu0 %v478
  %719 = vmatpush.bf16.msra.mxu0 %v474
  %720 = vmatpush.bf16.msra.mxu0 %v470
  %721 = vmatpush.bf16.msra.mxu0 %v466
  %722 = vmatpush.bf16.msra.mxu0 %v462
  %723 = vmatmul.bf16.gmra.mxu0 %v201
  %v724 = vpop.f32.mrf.mxu0
  %v725 = vadd.f32 %v711, %v724
  %v726 = vpop.f32.mrf.mxu0
  %v727 = vadd.f32 %v713, %v726
  %728 = vdwg.mxu0
  %729 = vmatpush.bf16.msra.mxu0 0
  %730 = vmatpush.bf16.msra.mxu0 0
  %731 = vmatpush.bf16.msra.mxu0 0
  %732 = vmatpush.bf16.msra.mxu0 0
  %733 = vmatpush.bf16.msra.mxu0 0
  %734 = vmatpush.bf16.msra.mxu0 0
  %735 = vmatpush.bf16.msra.mxu0 %v498
  %736 = vmatpush.bf16.msra.mxu0 %v494
  %737 = vmatmul.bf16.gmra.mxu0 %v573
  %v738 = vpop.f32.mrf.mxu0
  %v739 = vadd.f32 %v725, %v738
  %v740 = vpop.f32.mrf.mxu0
  %v741 = vadd.f32 %v727, %v740
  %742 = vdwg.mxu0
  %v745 = vunpack.c.l.b16 %v26
  %v746 = vunpack.c.h.b16 %v26
  %v747 = vunpack.c.l.b16 %v27
  %v748 = vpack.c.b16 %v745, %v179
  %v749 = vpack.c.b16 %v746, %v180
  %v750 = vpack.c.b16 %v747, %v181
  %v825 = vunpack.c.l.b16 %v28
  %v826 = vunpack.c.h.b16 %v28
  %v827 = vunpack.c.l.b16 %v29
  %v828 = vunpack.c.h.b16 %v29
  %v829 = vunpack.c.l.b16 %v30
  %v830 = vunpack.c.h.b16 %v30
  %v831 = vunpack.c.l.b16 %v31
  %v832 = vunpack.c.h.b16 %v31
  %v833 = vunpack.c.l.b16 %v32
  %v834 = vunpack.c.h.b16 %v32
  %v835 = vunpack.c.l.b16 %v33
  %v836 = vunpack.c.h.b16 %v33
  %v837 = vunpack.c.l.b16 %v34
  %v838 = vunpack.c.h.b16 %v34
  %v839 = vunpack.c.l.b16 %v35
  %v840 = vunpack.c.h.b16 %v35
  %v841 = vunpack.c.l.b16 %v36
  %v842 = vunpack.c.h.b16 %v36
  %v843 = vunpack.c.l.b16 %v37
  %v844 = vunpack.c.h.b16 %v37
  %v845 = vunpack.c.l.b16 %v38
  %v846 = vunpack.c.h.b16 %v38
  %v847 = vunpack.c.l.b16 %v39
  %v848 = vunpack.c.h.b16 %v39
  %v849 = vunpack.c.l.b16 %v40
  %v850 = vunpack.c.h.b16 %v40
  %v851 = vunpack.c.l.b16 %v41
  %v852 = vunpack.c.h.b16 %v41
  %v853 = vunpack.c.l.b16 %v42
  %v854 = vunpack.c.h.b16 %v42
  %v855 = vunpack.c.l.b16 %v43
  %v856 = vunpack.c.h.b16 %v43
  %v857 = vunpack.c.l.b16 %v44
  %v858 = vunpack.c.h.b16 %v44
  %v859 = vunpack.c.l.b16 %v45
  %v860 = vunpack.c.h.b16 %v45
  %v861 = vunpack.c.l.b16 %v46
  %v862 = vunpack.c.h.b16 %v46
  %v863 = vunpack.c.l.b16 %v47
  %v864 = vunpack.c.h.b16 %v47
  %v865 = vunpack.c.l.b16 %v48
  %v866 = vunpack.c.h.b16 %v48
  %v867 = vunpack.c.l.b16 %v49
  %v868 = vunpack.c.h.b16 %v49
  %v869 = vunpack.c.l.b16 %v50
  %v870 = vunpack.c.h.b16 %v50
  %v871 = vunpack.c.l.b16 %v51
  %v872 = vunpack.c.h.b16 %v51
  %v873 = vunpack.c.l.b16 %v52
  %v874 = vunpack.c.h.b16 %v52
  %v875 = vunpack.c.l.b16 %v53
  %v876 = vunpack.c.h.b16 %v53
  %v877 = vunpack.c.l.b16 %v54
  %v878 = vunpack.c.h.b16 %v54
  %v879 = vunpack.c.l.b16 %v55
  %v880 = vunpack.c.h.b16 %v55
  %v881 = vunpack.c.l.b16 %v56
  %v882 = vunpack.c.h.b16 %v56
  %v883 = vunpack.c.l.b16 %v57
  %v884 = vunpack.c.h.b16 %v57
  %v885 = vunpack.c.l.b16 %v58
  %v886 = vunpack.c.h.b16 %v58
  %v887 = vunpack.c.l.b16 %v59
  %v888 = vunpack.c.h.b16 %v59
  %v889 = vunpack.c.l.b16 %v60
  %v890 = vunpack.c.h.b16 %v60
  %v891 = vunpack.c.l.b16 %v61
  %v892 = vunpack.c.h.b16 %v61
  %v893 = vunpack.c.l.b16 %v62
  %v894 = vunpack.c.h.b16 %v62
  %v895 = vunpack.c.l.b16 %v63
  %v896 = vunpack.c.h.b16 %v63
  %v897 = vunpack.c.l.b16 %v64
  %v898 = vunpack.c.h.b16 %v64
  %v899 = vunpack.c.l.b16 %v65
  %v900 = vunpack.c.h.b16 %v65
  %v901 = vunpack.c.l.b16 %v66
  %v902 = vunpack.c.h.b16 %v66
  %v903 = vunpack.c.l.b16 %v67
  %v904 = vunpack.c.h.b16 %v67
  %v905 = vunpack.c.l.b16 %v68
  %v906 = vunpack.c.h.b16 %v68
  %v907 = vunpack.c.l.b16 %v69
  %v908 = vunpack.c.h.b16 %v69
  %v909 = vunpack.c.l.b16 %v70
  %v910 = vunpack.c.h.b16 %v70
  %v911 = vunpack.c.l.b16 %v71
  %v912 = vunpack.c.h.b16 %v71
  %v913 = vunpack.c.l.b16 %v72
  %v914 = vunpack.c.h.b16 %v72
  %v915 = vunpack.c.l.b16 %v73
  %v916 = vunpack.c.h.b16 %v73
  %v917 = vunpack.c.l.b16 %v74
  %v918 = vunpack.c.h.b16 %v74
  %v919 = vunpack.c.l.b16 %v75
  %v920 = vunpack.c.h.b16 %v75
  %v921 = vunpack.c.l.b16 %v76
  %v922 = vunpack.c.h.b16 %v76
  %v923 = vunpack.c.l.b16 %v77
  %v924 = vunpack.c.h.b16 %v77
  %v925 = vunpack.c.l.b16 %v78
  %v926 = vunpack.c.h.b16 %v78
  %v927 = vunpack.c.l.b16 %v79
  %v928 = vunpack.c.h.b16 %v79
  %v929 = vunpack.c.l.b16 %v80
  %v930 = vunpack.c.h.b16 %v80
  %v931 = vunpack.c.l.b16 %v81
  %v932 = vunpack.c.h.b16 %v81
  %v933 = vunpack.c.l.b16 %v82
  %v934 = vunpack.c.h.b16 %v82
  %v935 = vunpack.c.l.b16 %v83
  %v936 = vunpack.c.h.b16 %v83
  %v937 = vunpack.c.l.b16 %v84
  %v938 = vunpack.c.h.b16 %v84
  %v939 = vunpack.c.l.b16 %v85
  %v940 = vunpack.c.h.b16 %v85
  %v941 = vunpack.c.l.b16 %v86
  %v942 = vunpack.c.h.b16 %v86
  %v943 = vunpack.c.l.b16 %v87
  %v944 = vunpack.c.h.b16 %v87
  %v945 = vunpack.c.l.b16 %v88
  %v946 = vunpack.c.h.b16 %v88
  %v947 = vunpack.c.l.b16 %v89
  %v948 = vunpack.c.h.b16 %v89
  %v949 = vunpack.c.l.b16 %v90
  %v950 = vunpack.c.h.b16 %v90
  %v951 = vunpack.c.l.b16 %v91
  %v952 = vunpack.c.h.b16 %v91
  %v953 = vunpack.c.l.b16 %v92
  %v954 = vunpack.c.h.b16 %v92
  %v955 = vunpack.c.l.b16 %v93
  %v956 = vunpack.c.h.b16 %v93
  %v957 = vunpack.c.l.b16 %v94
  %v958 = vunpack.c.h.b16 %v94
  %v959 = vunpack.c.l.b16 %v95
  %v960 = vunpack.c.h.b16 %v95
  %v961 = vunpack.c.l.b16 %v96
  %v962 = vunpack.c.h.b16 %v96
  %v963 = vunpack.c.l.b16 %v97
  %v964 = vunpack.c.h.b16 %v97
  %v965 = vunpack.c.l.b16 %v98
  %v966 = vunpack.c.h.b16 %v98
  %v967 = vunpack.c.l.b16 %v99
  %v968 = vunpack.c.h.b16 %v99
  %v969 = vpack.c.b16 %v829, %v825
  %v970 = vpack.c.b16 %v830, %v826
  %v971 = vpack.c.b16 %v831, %v827
  %v972 = vpack.c.b16 %v832, %v828
  %v973 = vpack.c.b16 %v837, %v833
  %v974 = vpack.c.b16 %v838, %v834
  %v975 = vpack.c.b16 %v839, %v835
  %v976 = vpack.c.b16 %v840, %v836
  %v977 = vpack.c.b16 %v845, %v841
  %v978 = vpack.c.b16 %v846, %v842
  %v979 = vpack.c.b16 %v847, %v843
  %v980 = vpack.c.b16 %v848, %v844
  %v981 = vpack.c.b16 %v853, %v849
  %v982 = vpack.c.b16 %v854, %v850
  %v983 = vpack.c.b16 %v855, %v851
  %v984 = vpack.c.b16 %v856, %v852
  %v985 = vpack.c.b16 %v861, %v857
  %v986 = vpack.c.b16 %v862, %v858
  %v987 = vpack.c.b16 %v863, %v859
  %v988 = vpack.c.b16 %v864, %v860
  %v989 = vpack.c.b16 %v869, %v865
  %v990 = vpack.c.b16 %v870, %v866
  %v991 = vpack.c.b16 %v871, %v867
  %v992 = vpack.c.b16 %v872, %v868
  %v993 = vpack.c.b16 %v877, %v873
  %v994 = vpack.c.b16 %v878, %v874
  %v995 = vpack.c.b16 %v879, %v875
  %v996 = vpack.c.b16 %v880, %v876
  %v997 = vpack.c.b16 %v885, %v881
  %v998 = vpack.c.b16 %v886, %v882
  %v999 = vpack.c.b16 %v887, %v883
  %v1000 = vpack.c.b16 %v888, %v884
  %v1001 = vpack.c.b16 %v893, %v889
  %v1002 = vpack.c.b16 %v894, %v890
  %v1003 = vpack.c.b16 %v895, %v891
  %v1004 = vpack.c.b16 %v896, %v892
  %v1005 = vpack.c.b16 %v901, %v897
  %v1006 = vpack.c.b16 %v902, %v898
  %v1007 = vpack.c.b16 %v903, %v899
  %v1008 = vpack.c.b16 %v904, %v900
  %v1009 = vpack.c.b16 %v909, %v905
  %v1010 = vpack.c.b16 %v910, %v906
  %v1011 = vpack.c.b16 %v911, %v907
  %v1012 = vpack.c.b16 %v912, %v908
  %v1013 = vpack.c.b16 %v917, %v913
  %v1014 = vpack.c.b16 %v918, %v914
  %v1015 = vpack.c.b16 %v919, %v915
  %v1016 = vpack.c.b16 %v920, %v916
  %v1017 = vpack.c.b16 %v925, %v921
  %v1018 = vpack.c.b16 %v926, %v922
  %v1019 = vpack.c.b16 %v927, %v923
  %v1020 = vpack.c.b16 %v928, %v924
  %v1021 = vpack.c.b16 %v933, %v929
  %v1022 = vpack.c.b16 %v934, %v930
  %v1023 = vpack.c.b16 %v935, %v931
  %v1024 = vpack.c.b16 %v936, %v932
  %v1025 = vpack.c.b16 %v941, %v937
  %v1026 = vpack.c.b16 %v942, %v938
  %v1027 = vpack.c.b16 %v943, %v939
  %v1028 = vpack.c.b16 %v944, %v940
  %v1029 = vpack.c.b16 %v949, %v945
  %v1030 = vpack.c.b16 %v950, %v946
  %v1031 = vpack.c.b16 %v951, %v947
  %v1032 = vpack.c.b16 %v952, %v948
  %v1033 = vpack.c.b16 %v957, %v953
  %v1034 = vpack.c.b16 %v958, %v954
  %v1035 = vpack.c.b16 %v959, %v955
  %v1036 = vpack.c.b16 %v960, %v956
  %v1037 = vpack.c.b16 %v965, %v961
  %v1038 = vpack.c.b16 %v966, %v962
  %v1039 = vpack.c.b16 %v967, %v963
  %v1040 = vpack.c.b16 %v968, %v964
  %v1114 = vsel %vm571, %v750, 0
  %1116 = vmatpush.bf16.msra.mxu0 %v997
  %1117 = vmatpush.bf16.msra.mxu0 %v993
  %1118 = vmatpush.bf16.msra.mxu0 %v989
  %1119 = vmatpush.bf16.msra.mxu0 %v985
  %1120 = vmatpush.bf16.msra.mxu0 %v981
  %1121 = vmatpush.bf16.msra.mxu0 %v977
  %1122 = vmatpush.bf16.msra.mxu0 %v973
  %1123 = vmatpush.bf16.msra.mxu0 %v969
  %1124 = vmatmul.bf16.gmra.mxu0 %v748
  %v1125 = vpop.f32.mrf.mxu0
  %v1126 = vadd.f32 %v613, %v1125
  %v1127 = vpop.f32.mrf.mxu0
  %v1128 = vadd.f32 %v615, %v1127
  %1129 = vdwg.mxu0
  %1130 = vmatpush.bf16.msra.mxu0 %v1029
  %1131 = vmatpush.bf16.msra.mxu0 %v1025
  %1132 = vmatpush.bf16.msra.mxu0 %v1021
  %1133 = vmatpush.bf16.msra.mxu0 %v1017
  %1134 = vmatpush.bf16.msra.mxu0 %v1013
  %1135 = vmatpush.bf16.msra.mxu0 %v1009
  %1136 = vmatpush.bf16.msra.mxu0 %v1005
  %1137 = vmatpush.bf16.msra.mxu0 %v1001
  %1138 = vmatmul.bf16.gmra.mxu0 %v749
  %v1139 = vpop.f32.mrf.mxu0
  %v1140 = vadd.f32 %v1126, %v1139
  %v1141 = vpop.f32.mrf.mxu0
  %v1142 = vadd.f32 %v1128, %v1141
  %1143 = vdwg.mxu0
  %1144 = vmatpush.bf16.msra.mxu0 0
  %1145 = vmatpush.bf16.msra.mxu0 0
  %1146 = vmatpush.bf16.msra.mxu0 0
  %1147 = vmatpush.bf16.msra.mxu0 0
  %1148 = vmatpush.bf16.msra.mxu0 0
  %1149 = vmatpush.bf16.msra.mxu0 0
  %1150 = vmatpush.bf16.msra.mxu0 %v1037
  %1151 = vmatpush.bf16.msra.mxu0 %v1033
  %1152 = vmatmul.bf16.gmra.mxu0 %v1114
  %v1153 = vpop.f32.mrf.mxu0
  %v1154 = vadd.f32 %v1140, %v1153
  %v1155 = vpop.f32.mrf.mxu0
  %v1156 = vadd.f32 %v1142, %v1155
  %1157 = vdwg.mxu0
  %1158 = vmatpush.bf16.msra.mxu0 %v998
  %1159 = vmatpush.bf16.msra.mxu0 %v994
  %1160 = vmatpush.bf16.msra.mxu0 %v990
  %1161 = vmatpush.bf16.msra.mxu0 %v986
  %1162 = vmatpush.bf16.msra.mxu0 %v982
  %1163 = vmatpush.bf16.msra.mxu0 %v978
  %1164 = vmatpush.bf16.msra.mxu0 %v974
  %1165 = vmatpush.bf16.msra.mxu0 %v970
  %1166 = vmatmul.bf16.gmra.mxu0 %v748
  %v1167 = vpop.f32.mrf.mxu0
  %v1168 = vadd.f32 %v655, %v1167
  %v1169 = vpop.f32.mrf.mxu0
  %v1170 = vadd.f32 %v657, %v1169
  %1171 = vdwg.mxu0
  %1172 = vmatpush.bf16.msra.mxu0 %v1030
  %1173 = vmatpush.bf16.msra.mxu0 %v1026
  %1174 = vmatpush.bf16.msra.mxu0 %v1022
  %1175 = vmatpush.bf16.msra.mxu0 %v1018
  %1176 = vmatpush.bf16.msra.mxu0 %v1014
  %1177 = vmatpush.bf16.msra.mxu0 %v1010
  %1178 = vmatpush.bf16.msra.mxu0 %v1006
  %1179 = vmatpush.bf16.msra.mxu0 %v1002
  %1180 = vmatmul.bf16.gmra.mxu0 %v749
  %v1181 = vpop.f32.mrf.mxu0
  %v1182 = vadd.f32 %v1168, %v1181
  %v1183 = vpop.f32.mrf.mxu0
  %v1184 = vadd.f32 %v1170, %v1183
  %1185 = vdwg.mxu0
  %1186 = vmatpush.bf16.msra.mxu0 0
  %1187 = vmatpush.bf16.msra.mxu0 0
  %1188 = vmatpush.bf16.msra.mxu0 0
  %1189 = vmatpush.bf16.msra.mxu0 0
  %1190 = vmatpush.bf16.msra.mxu0 0
  %1191 = vmatpush.bf16.msra.mxu0 0
  %1192 = vmatpush.bf16.msra.mxu0 %v1038
  %1193 = vmatpush.bf16.msra.mxu0 %v1034
  %1194 = vmatmul.bf16.gmra.mxu0 %v1114
  %v1195 = vpop.f32.mrf.mxu0
  %v1196 = vadd.f32 %v1182, %v1195
  %v1197 = vpop.f32.mrf.mxu0
  %v1198 = vadd.f32 %v1184, %v1197
  %1199 = vdwg.mxu0
  %1200 = vmatpush.bf16.msra.mxu0 %v999
  %1201 = vmatpush.bf16.msra.mxu0 %v995
  %1202 = vmatpush.bf16.msra.mxu0 %v991
  %1203 = vmatpush.bf16.msra.mxu0 %v987
  %1204 = vmatpush.bf16.msra.mxu0 %v983
  %1205 = vmatpush.bf16.msra.mxu0 %v979
  %1206 = vmatpush.bf16.msra.mxu0 %v975
  %1207 = vmatpush.bf16.msra.mxu0 %v971
  %1208 = vmatmul.bf16.gmra.mxu0 %v748
  %v1209 = vpop.f32.mrf.mxu0
  %v1210 = vadd.f32 %v697, %v1209
  %v1211 = vpop.f32.mrf.mxu0
  %v1212 = vadd.f32 %v699, %v1211
  %1213 = vdwg.mxu0
  %1214 = vmatpush.bf16.msra.mxu0 %v1031
  %1215 = vmatpush.bf16.msra.mxu0 %v1027
  %1216 = vmatpush.bf16.msra.mxu0 %v1023
  %1217 = vmatpush.bf16.msra.mxu0 %v1019
  %1218 = vmatpush.bf16.msra.mxu0 %v1015
  %1219 = vmatpush.bf16.msra.mxu0 %v1011
  %1220 = vmatpush.bf16.msra.mxu0 %v1007
  %1221 = vmatpush.bf16.msra.mxu0 %v1003
  %1222 = vmatmul.bf16.gmra.mxu0 %v749
  %v1223 = vpop.f32.mrf.mxu0
  %v1224 = vadd.f32 %v1210, %v1223
  %v1225 = vpop.f32.mrf.mxu0
  %v1226 = vadd.f32 %v1212, %v1225
  %1227 = vdwg.mxu0
  %1228 = vmatpush.bf16.msra.mxu0 0
  %1229 = vmatpush.bf16.msra.mxu0 0
  %1230 = vmatpush.bf16.msra.mxu0 0
  %1231 = vmatpush.bf16.msra.mxu0 0
  %1232 = vmatpush.bf16.msra.mxu0 0
  %1233 = vmatpush.bf16.msra.mxu0 0
  %1234 = vmatpush.bf16.msra.mxu0 %v1039
  %1235 = vmatpush.bf16.msra.mxu0 %v1035
  %1236 = vmatmul.bf16.gmra.mxu0 %v1114
  %v1237 = vpop.f32.mrf.mxu0
  %v1238 = vadd.f32 %v1224, %v1237
  %v1239 = vpop.f32.mrf.mxu0
  %v1240 = vadd.f32 %v1226, %v1239
  %1241 = vdwg.mxu0
  %1242 = vmatpush.bf16.msra.mxu0 %v1000
  %1243 = vmatpush.bf16.msra.mxu0 %v996
  %1244 = vmatpush.bf16.msra.mxu0 %v992
  %1245 = vmatpush.bf16.msra.mxu0 %v988
  %1246 = vmatpush.bf16.msra.mxu0 %v984
  %1247 = vmatpush.bf16.msra.mxu0 %v980
  %1248 = vmatpush.bf16.msra.mxu0 %v976
  %1249 = vmatpush.bf16.msra.mxu0 %v972
  %1250 = vmatmul.bf16.gmra.mxu0 %v748
  %v1251 = vpop.f32.mrf.mxu0
  %v1252 = vadd.f32 %v739, %v1251
  %v1253 = vpop.f32.mrf.mxu0
  %v1254 = vadd.f32 %v741, %v1253
  %1255 = vdwg.mxu0
  %1256 = vmatpush.bf16.msra.mxu0 %v1032
  %1257 = vmatpush.bf16.msra.mxu0 %v1028
  %1258 = vmatpush.bf16.msra.mxu0 %v1024
  %1259 = vmatpush.bf16.msra.mxu0 %v1020
  %1260 = vmatpush.bf16.msra.mxu0 %v1016
  %1261 = vmatpush.bf16.msra.mxu0 %v1012
  %1262 = vmatpush.bf16.msra.mxu0 %v1008
  %1263 = vmatpush.bf16.msra.mxu0 %v1004
  %1264 = vmatmul.bf16.gmra.mxu0 %v749
  %v1265 = vpop.f32.mrf.mxu0
  %v1266 = vadd.f32 %v1252, %v1265
  %v1267 = vpop.f32.mrf.mxu0
  %v1268 = vadd.f32 %v1254, %v1267
  %1269 = vdwg.mxu0
  %1270 = vmatpush.bf16.msra.mxu0 0
  %1271 = vmatpush.bf16.msra.mxu0 0
  %1272 = vmatpush.bf16.msra.mxu0 0
  %1273 = vmatpush.bf16.msra.mxu0 0
  %1274 = vmatpush.bf16.msra.mxu0 0
  %1275 = vmatpush.bf16.msra.mxu0 0
  %1276 = vmatpush.bf16.msra.mxu0 %v1040
  %1277 = vmatpush.bf16.msra.mxu0 %v1036
  %1278 = vmatmul.bf16.gmra.mxu0 %v1114
  %v1279 = vpop.f32.mrf.mxu0
  %v1280 = vadd.f32 %v1266, %v1279
  %v1281 = vpop.f32.mrf.mxu0
  %v1282 = vadd.f32 %v1268, %v1281
  %1283 = vdwg.mxu0
  %v1284 = vld [vmem:[%s0] sm:$0xee]
  %v1285 = vld [vmem:[%s0 + $0x8] sm:$0xe]
  %s1286 = scalar_lea.vmem %s1, 1152
  %v1287 = vld [vmem:[%s1286] sm:$0xff]
  %v1288 = vld [vmem:[%s1286 + $0x8] sm:$0xff]
  %v1289 = vld [vmem:[%s1286 + $0x10] sm:$0xff]
  %v1290 = vld [vmem:[%s1286 + $0x18] sm:$0xff]
  %v1291 = vld [vmem:[%s1286 + $0x20] sm:$0xff]
  %v1292 = vld [vmem:[%s1286 + $0x28] sm:$0xff]
  %v1293 = vld [vmem:[%s1286 + $0x30] sm:$0xff]
  %v1294 = vld [vmem:[%s1286 + $0x38] sm:$0xff]
  %v1295 = vld [vmem:[%s1286 + $0x40] sm:$0xff]
  %v1296 = vld [vmem:[%s1286 + $0x48] sm:$0xff]
  %v1297 = vld [vmem:[%s1286 + $0x50] sm:$0xff]
  %v1298 = vld [vmem:[%s1286 + $0x58] sm:$0xff]
  %v1299 = vld [vmem:[%s1286 + $0x60] sm:$0xff]
  %v1300 = vld [vmem:[%s1286 + $0x68] sm:$0xff]
  %v1301 = vld [vmem:[%s1286 + $0x70] sm:$0xff]
  %v1302 = vld [vmem:[%s1286 + $0x78] sm:$0xff]
  %v1303 = vld [vmem:[%s1286 + $0x80] sm:$0xff]
  %v1304 = vld [vmem:[%s1286 + $0x88] sm:$0xff]
  %v1305 = vld [vmem:[%s1286 + $0x90] sm:$0xff]
  %v1306 = vld [vmem:[%s1286 + $0x98] sm:$0xff]
  %v1307 = vld [vmem:[%s1286 + $0xa0] sm:$0xff]
  %v1308 = vld [vmem:[%s1286 + $0xa8] sm:$0xff]
  %v1309 = vld [vmem:[%s1286 + $0xb0] sm:$0xff]
  %v1310 = vld [vmem:[%s1286 + $0xb8] sm:$0xff]
  %v1311 = vld [vmem:[%s1286 + $0xc0] sm:$0xff]
  %v1312 = vld [vmem:[%s1286 + $0xc8] sm:$0xff]
  %v1313 = vld [vmem:[%s1286 + $0xd0] sm:$0xff]
  %v1314 = vld [vmem:[%s1286 + $0xd8] sm:$0xff]
  %v1315 = vld [vmem:[%s1286 + $0xe0] sm:$0xff]
  %v1316 = vld [vmem:[%s1286 + $0xe8] sm:$0xff]
  %v1317 = vld [vmem:[%s1286 + $0xf0] sm:$0xff]
  %v1318 = vld [vmem:[%s1286 + $0xf8] sm:$0xff]
  %v1319 = vld [vmem:[%s1286 + $0x100] sm:$0xff]
  %v1320 = vld [vmem:[%s1286 + $0x108] sm:$0xff]
  %v1321 = vld [vmem:[%s1286 + $0x110] sm:$0xff]
  %v1322 = vld [vmem:[%s1286 + $0x118] sm:$0xff]
  %v1323 = vld [vmem:[%s1286 + $0x120] sm:$0xff]
  %v1324 = vld [vmem:[%s1286 + $0x128] sm:$0xff]
  %v1325 = vld [vmem:[%s1286 + $0x130] sm:$0xff]
  %v1326 = vld [vmem:[%s1286 + $0x138] sm:$0xff]
  %v1327 = vld [vmem:[%s1286 + $0x140] sm:$0xff]
  %v1328 = vld [vmem:[%s1286 + $0x148] sm:$0xff]
  %v1329 = vld [vmem:[%s1286 + $0x150] sm:$0xff]
  %v1330 = vld [vmem:[%s1286 + $0x158] sm:$0xff]
  %v1331 = vld [vmem:[%s1286 + $0x160] sm:$0xff]
  %v1332 = vld [vmem:[%s1286 + $0x168] sm:$0xff]
  %v1333 = vld [vmem:[%s1286 + $0x170] sm:$0xff]
  %v1334 = vld [vmem:[%s1286 + $0x178] sm:$0xff]
  %v1335 = vld [vmem:[%s1286 + $0x180] sm:$0xff]
  %v1336 = vld [vmem:[%s1286 + $0x188] sm:$0xff]
  %v1337 = vld [vmem:[%s1286 + $0x190] sm:$0xff]
  %v1338 = vld [vmem:[%s1286 + $0x198] sm:$0xff]
  %v1339 = vld [vmem:[%s1286 + $0x1a0] sm:$0xff]
  %v1340 = vld [vmem:[%s1286 + $0x1a8] sm:$0xff]
  %v1341 = vld [vmem:[%s1286 + $0x1b0] sm:$0xff]
  %v1342 = vld [vmem:[%s1286 + $0x1b8] sm:$0xff]
  %v1343 = vld [vmem:[%s1286 + $0x1c0] sm:$0xff]
  %v1344 = vld [vmem:[%s1286 + $0x1c8] sm:$0xff]
  %v1345 = vld [vmem:[%s1286 + $0x1d0] sm:$0xff]
  %v1346 = vld [vmem:[%s1286 + $0x1d8] sm:$0xff]
  %v1347 = vld [vmem:[%s1286 + $0x1e0] sm:$0xff]
  %v1348 = vld [vmem:[%s1286 + $0x1e8] sm:$0xff]
  %v1349 = vld [vmem:[%s1286 + $0x1f0] sm:$0xff]
  %v1350 = vld [vmem:[%s1286 + $0x1f8] sm:$0xff]
  %v1351 = vld [vmem:[%s1286 + $0x200] sm:$0xff]
  %v1352 = vld [vmem:[%s1286 + $0x208] sm:$0xff]
  %v1353 = vld [vmem:[%s1286 + $0x210] sm:$0xff]
  %v1354 = vld [vmem:[%s1286 + $0x218] sm:$0xff]
  %v1355 = vld [vmem:[%s1286 + $0x220] sm:$0xff]
  %v1356 = vld [vmem:[%s1286 + $0x228] sm:$0xff]
  %v1357 = vld [vmem:[%s1286 + $0x230] sm:$0xff]
  %v1358 = vld [vmem:[%s1286 + $0x238] sm:$0xff]
  %v1361 = vunpack.c.l.b16 %v1284
  %v1362 = vunpack.c.h.b16 %v1284
  %v1363 = vunpack.c.l.b16 %v1285
  %v1364 = vpack.c.b16 %v182, %v1361
  %v1365 = vpack.c.b16 %v183, %v1362
  %v1366 = vpack.c.b16 %v184, %v1363
  %v1367 = vrot.slane %v1364, 1
  %v1368 = vrot.slane %v1365, 1
  %v1369 = vrot.slane %v1366, 1
  %v1444 = vunpack.c.l.b16 %v1287
  %v1445 = vunpack.c.h.b16 %v1287
  %v1446 = vunpack.c.l.b16 %v1288
  %v1447 = vunpack.c.h.b16 %v1288
  %v1448 = vunpack.c.l.b16 %v1289
  %v1449 = vunpack.c.h.b16 %v1289
  %v1450 = vunpack.c.l.b16 %v1290
  %v1451 = vunpack.c.h.b16 %v1290
  %v1452 = vunpack.c.l.b16 %v1291
  %v1453 = vunpack.c.h.b16 %v1291
  %v1454 = vunpack.c.l.b16 %v1292
  %v1455 = vunpack.c.h.b16 %v1292
  %v1456 = vunpack.c.l.b16 %v1293
  %v1457 = vunpack.c.h.b16 %v1293
  %v1458 = vunpack.c.l.b16 %v1294
  %v1459 = vunpack.c.h.b16 %v1294
  %v1460 = vunpack.c.l.b16 %v1295
  %v1461 = vunpack.c.h.b16 %v1295
  %v1462 = vunpack.c.l.b16 %v1296
  %v1463 = vunpack.c.h.b16 %v1296
  %v1464 = vunpack.c.l.b16 %v1297
  %v1465 = vunpack.c.h.b16 %v1297
  %v1466 = vunpack.c.l.b16 %v1298
  %v1467 = vunpack.c.h.b16 %v1298
  %v1468 = vunpack.c.l.b16 %v1299
  %v1469 = vunpack.c.h.b16 %v1299
  %v1470 = vunpack.c.l.b16 %v1300
  %v1471 = vunpack.c.h.b16 %v1300
  %v1472 = vunpack.c.l.b16 %v1301
  %v1473 = vunpack.c.h.b16 %v1301
  %v1474 = vunpack.c.l.b16 %v1302
  %v1475 = vunpack.c.h.b16 %v1302
  %v1476 = vunpack.c.l.b16 %v1303
  %v1477 = vunpack.c.h.b16 %v1303
  %v1478 = vunpack.c.l.b16 %v1304
  %v1479 = vunpack.c.h.b16 %v1304
  %v1480 = vunpack.c.l.b16 %v1305
  %v1481 = vunpack.c.h.b16 %v1305
  %v1482 = vunpack.c.l.b16 %v1306
  %v1483 = vunpack.c.h.b16 %v1306
  %v1484 = vunpack.c.l.b16 %v1307
  %v1485 = vunpack.c.h.b16 %v1307
  %v1486 = vunpack.c.l.b16 %v1308
  %v1487 = vunpack.c.h.b16 %v1308
  %v1488 = vunpack.c.l.b16 %v1309
  %v1489 = vunpack.c.h.b16 %v1309
  %v1490 = vunpack.c.l.b16 %v1310
  %v1491 = vunpack.c.h.b16 %v1310
  %v1492 = vunpack.c.l.b16 %v1311
  %v1493 = vunpack.c.h.b16 %v1311
  %v1494 = vunpack.c.l.b16 %v1312
  %v1495 = vunpack.c.h.b16 %v1312
  %v1496 = vunpack.c.l.b16 %v1313
  %v1497 = vunpack.c.h.b16 %v1313
  %v1498 = vunpack.c.l.b16 %v1314
  %v1499 = vunpack.c.h.b16 %v1314
  %v1500 = vunpack.c.l.b16 %v1315
  %v1501 = vunpack.c.h.b16 %v1315
  %v1502 = vunpack.c.l.b16 %v1316
  %v1503 = vunpack.c.h.b16 %v1316
  %v1504 = vunpack.c.l.b16 %v1317
  %v1505 = vunpack.c.h.b16 %v1317
  %v1506 = vunpack.c.l.b16 %v1318
  %v1507 = vunpack.c.h.b16 %v1318
  %v1508 = vunpack.c.l.b16 %v1319
  %v1509 = vunpack.c.h.b16 %v1319
  %v1510 = vunpack.c.l.b16 %v1320
  %v1511 = vunpack.c.h.b16 %v1320
  %v1512 = vunpack.c.l.b16 %v1321
  %v1513 = vunpack.c.h.b16 %v1321
  %v1514 = vunpack.c.l.b16 %v1322
  %v1515 = vunpack.c.h.b16 %v1322
  %v1516 = vunpack.c.l.b16 %v1323
  %v1517 = vunpack.c.h.b16 %v1323
  %v1518 = vunpack.c.l.b16 %v1324
  %v1519 = vunpack.c.h.b16 %v1324
  %v1520 = vunpack.c.l.b16 %v1325
  %v1521 = vunpack.c.h.b16 %v1325
  %v1522 = vunpack.c.l.b16 %v1326
  %v1523 = vunpack.c.h.b16 %v1326
  %v1524 = vunpack.c.l.b16 %v1327
  %v1525 = vunpack.c.h.b16 %v1327
  %v1526 = vunpack.c.l.b16 %v1328
  %v1527 = vunpack.c.h.b16 %v1328
  %v1528 = vunpack.c.l.b16 %v1329
  %v1529 = vunpack.c.h.b16 %v1329
  %v1530 = vunpack.c.l.b16 %v1330
  %v1531 = vunpack.c.h.b16 %v1330
  %v1532 = vunpack.c.l.b16 %v1331
  %v1533 = vunpack.c.h.b16 %v1331
  %v1534 = vunpack.c.l.b16 %v1332
  %v1535 = vunpack.c.h.b16 %v1332
  %v1536 = vunpack.c.l.b16 %v1333
  %v1537 = vunpack.c.h.b16 %v1333
  %v1538 = vunpack.c.l.b16 %v1334
  %v1539 = vunpack.c.h.b16 %v1334
  %v1540 = vunpack.c.l.b16 %v1335
  %v1541 = vunpack.c.h.b16 %v1335
  %v1542 = vunpack.c.l.b16 %v1336
  %v1543 = vunpack.c.h.b16 %v1336
  %v1544 = vunpack.c.l.b16 %v1337
  %v1545 = vunpack.c.h.b16 %v1337
  %v1546 = vunpack.c.l.b16 %v1338
  %v1547 = vunpack.c.h.b16 %v1338
  %v1548 = vunpack.c.l.b16 %v1339
  %v1549 = vunpack.c.h.b16 %v1339
  %v1550 = vunpack.c.l.b16 %v1340
  %v1551 = vunpack.c.h.b16 %v1340
  %v1552 = vunpack.c.l.b16 %v1341
  %v1553 = vunpack.c.h.b16 %v1341
  %v1554 = vunpack.c.l.b16 %v1342
  %v1555 = vunpack.c.h.b16 %v1342
  %v1556 = vunpack.c.l.b16 %v1343
  %v1557 = vunpack.c.h.b16 %v1343
  %v1558 = vunpack.c.l.b16 %v1344
  %v1559 = vunpack.c.h.b16 %v1344
  %v1560 = vunpack.c.l.b16 %v1345
  %v1561 = vunpack.c.h.b16 %v1345
  %v1562 = vunpack.c.l.b16 %v1346
  %v1563 = vunpack.c.h.b16 %v1346
  %v1564 = vunpack.c.l.b16 %v1347
  %v1565 = vunpack.c.h.b16 %v1347
  %v1566 = vunpack.c.l.b16 %v1348
  %v1567 = vunpack.c.h.b16 %v1348
  %v1568 = vunpack.c.l.b16 %v1349
  %v1569 = vunpack.c.h.b16 %v1349
  %v1570 = vunpack.c.l.b16 %v1350
  %v1571 = vunpack.c.h.b16 %v1350
  %v1572 = vunpack.c.l.b16 %v1351
  %v1573 = vunpack.c.h.b16 %v1351
  %v1574 = vunpack.c.l.b16 %v1352
  %v1575 = vunpack.c.h.b16 %v1352
  %v1576 = vunpack.c.l.b16 %v1353
  %v1577 = vunpack.c.h.b16 %v1353
  %v1578 = vunpack.c.l.b16 %v1354
  %v1579 = vunpack.c.h.b16 %v1354
  %v1580 = vunpack.c.l.b16 %v1355
  %v1581 = vunpack.c.h.b16 %v1355
  %v1582 = vunpack.c.l.b16 %v1356
  %v1583 = vunpack.c.h.b16 %v1356
  %v1584 = vunpack.c.l.b16 %v1357
  %v1585 = vunpack.c.h.b16 %v1357
  %v1586 = vunpack.c.l.b16 %v1358
  %v1587 = vunpack.c.h.b16 %v1358
  %v1588 = vpack.c.b16 %v1448, %v1444
  %v1589 = vpack.c.b16 %v1449, %v1445
  %v1590 = vpack.c.b16 %v1450, %v1446
  %v1591 = vpack.c.b16 %v1451, %v1447
  %v1592 = vpack.c.b16 %v1456, %v1452
  %v1593 = vpack.c.b16 %v1457, %v1453
  %v1594 = vpack.c.b16 %v1458, %v1454
  %v1595 = vpack.c.b16 %v1459, %v1455
  %v1596 = vpack.c.b16 %v1464, %v1460
  %v1597 = vpack.c.b16 %v1465, %v1461
  %v1598 = vpack.c.b16 %v1466, %v1462
  %v1599 = vpack.c.b16 %v1467, %v1463
  %v1600 = vpack.c.b16 %v1472, %v1468
  %v1601 = vpack.c.b16 %v1473, %v1469
  %v1602 = vpack.c.b16 %v1474, %v1470
  %v1603 = vpack.c.b16 %v1475, %v1471
  %v1604 = vpack.c.b16 %v1480, %v1476
  %v1605 = vpack.c.b16 %v1481, %v1477
  %v1606 = vpack.c.b16 %v1482, %v1478
  %v1607 = vpack.c.b16 %v1483, %v1479
  %v1608 = vpack.c.b16 %v1488, %v1484
  %v1609 = vpack.c.b16 %v1489, %v1485
  %v1610 = vpack.c.b16 %v1490, %v1486
  %v1611 = vpack.c.b16 %v1491, %v1487
  %v1612 = vpack.c.b16 %v1496, %v1492
  %v1613 = vpack.c.b16 %v1497, %v1493
  %v1614 = vpack.c.b16 %v1498, %v1494
  %v1615 = vpack.c.b16 %v1499, %v1495
  %v1616 = vpack.c.b16 %v1504, %v1500
  %v1617 = vpack.c.b16 %v1505, %v1501
  %v1618 = vpack.c.b16 %v1506, %v1502
  %v1619 = vpack.c.b16 %v1507, %v1503
  %v1620 = vpack.c.b16 %v1512, %v1508
  %v1621 = vpack.c.b16 %v1513, %v1509
  %v1622 = vpack.c.b16 %v1514, %v1510
  %v1623 = vpack.c.b16 %v1515, %v1511
  %v1624 = vpack.c.b16 %v1520, %v1516
  %v1625 = vpack.c.b16 %v1521, %v1517
  %v1626 = vpack.c.b16 %v1522, %v1518
  %v1627 = vpack.c.b16 %v1523, %v1519
  %v1628 = vpack.c.b16 %v1528, %v1524
  %v1629 = vpack.c.b16 %v1529, %v1525
  %v1630 = vpack.c.b16 %v1530, %v1526
  %v1631 = vpack.c.b16 %v1531, %v1527
  %v1632 = vpack.c.b16 %v1536, %v1532
  %v1633 = vpack.c.b16 %v1537, %v1533
  %v1634 = vpack.c.b16 %v1538, %v1534
  %v1635 = vpack.c.b16 %v1539, %v1535
  %v1636 = vpack.c.b16 %v1544, %v1540
  %v1637 = vpack.c.b16 %v1545, %v1541
  %v1638 = vpack.c.b16 %v1546, %v1542
  %v1639 = vpack.c.b16 %v1547, %v1543
  %v1640 = vpack.c.b16 %v1552, %v1548
  %v1641 = vpack.c.b16 %v1553, %v1549
  %v1642 = vpack.c.b16 %v1554, %v1550
  %v1643 = vpack.c.b16 %v1555, %v1551
  %v1644 = vpack.c.b16 %v1560, %v1556
  %v1645 = vpack.c.b16 %v1561, %v1557
  %v1646 = vpack.c.b16 %v1562, %v1558
  %v1647 = vpack.c.b16 %v1563, %v1559
  %v1648 = vpack.c.b16 %v1568, %v1564
  %v1649 = vpack.c.b16 %v1569, %v1565
  %v1650 = vpack.c.b16 %v1570, %v1566
  %v1651 = vpack.c.b16 %v1571, %v1567
  %v1652 = vpack.c.b16 %v1576, %v1572
  %v1653 = vpack.c.b16 %v1577, %v1573
  %v1654 = vpack.c.b16 %v1578, %v1574
  %v1655 = vpack.c.b16 %v1579, %v1575
  %v1656 = vpack.c.b16 %v1584, %v1580
  %v1657 = vpack.c.b16 %v1585, %v1581
  %v1658 = vpack.c.b16 %v1586, %v1582
  %v1659 = vpack.c.b16 %v1587, %v1583
  %v1733 = vsel %vm571, %v1369, 0
  %1735 = vmatpush.bf16.msra.mxu0 %v1616
  %1736 = vmatpush.bf16.msra.mxu0 %v1612
  %1737 = vmatpush.bf16.msra.mxu0 %v1608
  %1738 = vmatpush.bf16.msra.mxu0 %v1604
  %1739 = vmatpush.bf16.msra.mxu0 %v1600
  %1740 = vmatpush.bf16.msra.mxu0 %v1596
  %1741 = vmatpush.bf16.msra.mxu0 %v1592
  %1742 = vmatpush.bf16.msra.mxu0 %v1588
  %1743 = vmatmul.bf16.gmra.mxu0 %v1367
  %v1744 = vpop.f32.mrf.mxu0
  %v1745 = vadd.f32 0.0, %v1744
  %v1746 = vpop.f32.mrf.mxu0
  %v1747 = vadd.f32 0.0, %v1746
  %1748 = vdwg.mxu0
  %1749 = vmatpush.bf16.msra.mxu0 %v1648
  %1750 = vmatpush.bf16.msra.mxu0 %v1644
  %1751 = vmatpush.bf16.msra.mxu0 %v1640
  %1752 = vmatpush.bf16.msra.mxu0 %v1636
  %1753 = vmatpush.bf16.msra.mxu0 %v1632
  %1754 = vmatpush.bf16.msra.mxu0 %v1628
  %1755 = vmatpush.bf16.msra.mxu0 %v1624
  %1756 = vmatpush.bf16.msra.mxu0 %v1620
  %1757 = vmatmul.bf16.gmra.mxu0 %v1368
  %v1758 = vpop.f32.mrf.mxu0
  %v1759 = vadd.f32 %v1745, %v1758
  %v1760 = vpop.f32.mrf.mxu0
  %v1761 = vadd.f32 %v1747, %v1760
  %1762 = vdwg.mxu0
  %1763 = vmatpush.bf16.msra.mxu0 0
  %1764 = vmatpush.bf16.msra.mxu0 0
  %1765 = vmatpush.bf16.msra.mxu0 0
  %1766 = vmatpush.bf16.msra.mxu0 0
  %1767 = vmatpush.bf16.msra.mxu0 0
  %1768 = vmatpush.bf16.msra.mxu0 0
  %1769 = vmatpush.bf16.msra.mxu0 %v1656
  %1770 = vmatpush.bf16.msra.mxu0 %v1652
  %1771 = vmatmul.bf16.gmra.mxu0 %v1733
  %v1772 = vpop.f32.mrf.mxu0
  %v1773 = vadd.f32 %v1759, %v1772
  %v1774 = vpop.f32.mrf.mxu0
  %v1775 = vadd.f32 %v1761, %v1774
  %1776 = vdwg.mxu0
  %1777 = vmatpush.bf16.msra.mxu0 %v1617
  %1778 = vmatpush.bf16.msra.mxu0 %v1613
  %1779 = vmatpush.bf16.msra.mxu0 %v1609
  %1780 = vmatpush.bf16.msra.mxu0 %v1605
  %1781 = vmatpush.bf16.msra.mxu0 %v1601
  %1782 = vmatpush.bf16.msra.mxu0 %v1597
  %1783 = vmatpush.bf16.msra.mxu0 %v1593
  %1784 = vmatpush.bf16.msra.mxu0 %v1589
  %1785 = vmatmul.bf16.gmra.mxu0 %v1367
  %v1786 = vpop.f32.mrf.mxu0
  %v1787 = vadd.f32 0.0, %v1786
  %v1788 = vpop.f32.mrf.mxu0
  %v1789 = vadd.f32 0.0, %v1788
  %1790 = vdwg.mxu0
  %1791 = vmatpush.bf16.msra.mxu0 %v1649
  %1792 = vmatpush.bf16.msra.mxu0 %v1645
  %1793 = vmatpush.bf16.msra.mxu0 %v1641
  %1794 = vmatpush.bf16.msra.mxu0 %v1637
  %1795 = vmatpush.bf16.msra.mxu0 %v1633
  %1796 = vmatpush.bf16.msra.mxu0 %v1629
  %1797 = vmatpush.bf16.msra.mxu0 %v1625
  %1798 = vmatpush.bf16.msra.mxu0 %v1621
  %1799 = vmatmul.bf16.gmra.mxu0 %v1368
  %v1800 = vpop.f32.mrf.mxu0
  %v1801 = vadd.f32 %v1787, %v1800
  %v1802 = vpop.f32.mrf.mxu0
  %v1803 = vadd.f32 %v1789, %v1802
  %1804 = vdwg.mxu0
  %1805 = vmatpush.bf16.msra.mxu0 0
  %1806 = vmatpush.bf16.msra.mxu0 0
  %1807 = vmatpush.bf16.msra.mxu0 0
  %1808 = vmatpush.bf16.msra.mxu0 0
  %1809 = vmatpush.bf16.msra.mxu0 0
  %1810 = vmatpush.bf16.msra.mxu0 0
  %1811 = vmatpush.bf16.msra.mxu0 %v1657
  %1812 = vmatpush.bf16.msra.mxu0 %v1653
  %1813 = vmatmul.bf16.gmra.mxu0 %v1733
  %v1814 = vpop.f32.mrf.mxu0
  %v1815 = vadd.f32 %v1801, %v1814
  %v1816 = vpop.f32.mrf.mxu0
  %v1817 = vadd.f32 %v1803, %v1816
  %1818 = vdwg.mxu0
  %1819 = vmatpush.bf16.msra.mxu0 %v1618
  %1820 = vmatpush.bf16.msra.mxu0 %v1614
  %1821 = vmatpush.bf16.msra.mxu0 %v1610
  %1822 = vmatpush.bf16.msra.mxu0 %v1606
  %1823 = vmatpush.bf16.msra.mxu0 %v1602
  %1824 = vmatpush.bf16.msra.mxu0 %v1598
  %1825 = vmatpush.bf16.msra.mxu0 %v1594
  %1826 = vmatpush.bf16.msra.mxu0 %v1590
  %1827 = vmatmul.bf16.gmra.mxu0 %v1367
  %v1828 = vpop.f32.mrf.mxu0
  %v1829 = vadd.f32 0.0, %v1828
  %v1830 = vpop.f32.mrf.mxu0
  %v1831 = vadd.f32 0.0, %v1830
  %1832 = vdwg.mxu0
  %1833 = vmatpush.bf16.msra.mxu0 %v1650
  %1834 = vmatpush.bf16.msra.mxu0 %v1646
  %1835 = vmatpush.bf16.msra.mxu0 %v1642
  %1836 = vmatpush.bf16.msra.mxu0 %v1638
  %1837 = vmatpush.bf16.msra.mxu0 %v1634
  %1838 = vmatpush.bf16.msra.mxu0 %v1630
  %1839 = vmatpush.bf16.msra.mxu0 %v1626
  %1840 = vmatpush.bf16.msra.mxu0 %v1622
  %1841 = vmatmul.bf16.gmra.mxu0 %v1368
  %v1842 = vpop.f32.mrf.mxu0
  %v1843 = vadd.f32 %v1829, %v1842
  %v1844 = vpop.f32.mrf.mxu0
  %v1845 = vadd.f32 %v1831, %v1844
  %1846 = vdwg.mxu0
  %1847 = vmatpush.bf16.msra.mxu0 0
  %1848 = vmatpush.bf16.msra.mxu0 0
  %1849 = vmatpush.bf16.msra.mxu0 0
  %1850 = vmatpush.bf16.msra.mxu0 0
  %1851 = vmatpush.bf16.msra.mxu0 0
  %1852 = vmatpush.bf16.msra.mxu0 0
  %1853 = vmatpush.bf16.msra.mxu0 %v1658
  %1854 = vmatpush.bf16.msra.mxu0 %v1654
  %1855 = vmatmul.bf16.gmra.mxu0 %v1733
  %v1856 = vpop.f32.mrf.mxu0
  %v1857 = vadd.f32 %v1843, %v1856
  %v1858 = vpop.f32.mrf.mxu0
  %v1859 = vadd.f32 %v1845, %v1858
  %1860 = vdwg.mxu0
  %1861 = vmatpush.bf16.msra.mxu0 %v1619
  %1862 = vmatpush.bf16.msra.mxu0 %v1615
  %1863 = vmatpush.bf16.msra.mxu0 %v1611
  %1864 = vmatpush.bf16.msra.mxu0 %v1607
  %1865 = vmatpush.bf16.msra.mxu0 %v1603
  %1866 = vmatpush.bf16.msra.mxu0 %v1599
  %1867 = vmatpush.bf16.msra.mxu0 %v1595
  %1868 = vmatpush.bf16.msra.mxu0 %v1591
  %1869 = vmatmul.bf16.gmra.mxu0 %v1367
  %v1870 = vpop.f32.mrf.mxu0
  %v1871 = vadd.f32 0.0, %v1870
  %v1872 = vpop.f32.mrf.mxu0
  %v1873 = vadd.f32 0.0, %v1872
  %1874 = vdwg.mxu0
  %1875 = vmatpush.bf16.msra.mxu0 %v1651
  %1876 = vmatpush.bf16.msra.mxu0 %v1647
  %1877 = vmatpush.bf16.msra.mxu0 %v1643
  %1878 = vmatpush.bf16.msra.mxu0 %v1639
  %1879 = vmatpush.bf16.msra.mxu0 %v1635
  %1880 = vmatpush.bf16.msra.mxu0 %v1631
  %1881 = vmatpush.bf16.msra.mxu0 %v1627
  %1882 = vmatpush.bf16.msra.mxu0 %v1623
  %1883 = vmatmul.bf16.gmra.mxu0 %v1368
  %v1884 = vpop.f32.mrf.mxu0
  %v1885 = vadd.f32 %v1871, %v1884
  %v1886 = vpop.f32.mrf.mxu0
  %v1887 = vadd.f32 %v1873, %v1886
  %1888 = vdwg.mxu0
  %1889 = vmatpush.bf16.msra.mxu0 0
  %1890 = vmatpush.bf16.msra.mxu0 0
  %1891 = vmatpush.bf16.msra.mxu0 0
  %1892 = vmatpush.bf16.msra.mxu0 0
  %1893 = vmatpush.bf16.msra.mxu0 0
  %1894 = vmatpush.bf16.msra.mxu0 0
  %1895 = vmatpush.bf16.msra.mxu0 %v1659
  %1896 = vmatpush.bf16.msra.mxu0 %v1655
  %1897 = vmatmul.bf16.gmra.mxu0 %v1733
  %v1898 = vpop.f32.mrf.mxu0
  %v1899 = vadd.f32 %v1885, %v1898
  %v1900 = vpop.f32.mrf.mxu0
  %v1901 = vadd.f32 %v1887, %v1900
  %1902 = vdwg.mxu0
  %v1903 = vadd.f32 %v1154, %v1773
  %v1904 = vadd.f32 %v1196, %v1815
  %v1905 = vadd.f32 %v1238, %v1857
  %v1906 = vadd.f32 %v1280, %v1899
  %v1907 = vadd.f32 %v1156, %v1775
  %v1908 = vadd.f32 %v1198, %v1817
  %v1909 = vadd.f32 %v1240, %v1859
  %v1910 = vadd.f32 %v1282, %v1901
  %v1911 = vld [vmem:[%s0] sm:$0xee]
  %v1912 = vld [vmem:[%s0 + $0x8] sm:$0xe]
  %v1913 = vld [vmem:[%s0 + $0xc] sm:$0xff]
  %v1914 = vld [vmem:[%s0 + $0x14] sm:$0xf]
  %v1915 = vld [vmem:[%s0 + $0x18] sm:$0x11]
  %v1916 = vld [vmem:[%s0 + $0x20] sm:$0x1]
  %s1917 = scalar_lea.vmem %s1, 1728
  %v1918 = vld [vmem:[%s1917] sm:$0xff]
  %v1919 = vld [vmem:[%s1917 + $0x8] sm:$0xff]
  %v1920 = vld [vmem:[%s1917 + $0x10] sm:$0xff]
  %v1921 = vld [vmem:[%s1917 + $0x18] sm:$0xff]
  %v1922 = vld [vmem:[%s1917 + $0x20] sm:$0xff]
  %v1923 = vld [vmem:[%s1917 + $0x28] sm:$0xff]
  %v1924 = vld [vmem:[%s1917 + $0x30] sm:$0xff]
  %v1925 = vld [vmem:[%s1917 + $0x38] sm:$0xff]
  %v1926 = vld [vmem:[%s1917 + $0x40] sm:$0xff]
  %v1927 = vld [vmem:[%s1917 + $0x48] sm:$0xff]
  %v1928 = vld [vmem:[%s1917 + $0x50] sm:$0xff]
  %v1929 = vld [vmem:[%s1917 + $0x58] sm:$0xff]
  %v1930 = vld [vmem:[%s1917 + $0x60] sm:$0xff]
  %v1931 = vld [vmem:[%s1917 + $0x68] sm:$0xff]
  %v1932 = vld [vmem:[%s1917 + $0x70] sm:$0xff]
  %v1933 = vld [vmem:[%s1917 + $0x78] sm:$0xff]
  %v1934 = vld [vmem:[%s1917 + $0x80] sm:$0xff]
  %v1935 = vld [vmem:[%s1917 + $0x88] sm:$0xff]
  %v1936 = vld [vmem:[%s1917 + $0x90] sm:$0xff]
  %v1937 = vld [vmem:[%s1917 + $0x98] sm:$0xff]
  %v1938 = vld [vmem:[%s1917 + $0xa0] sm:$0xff]
  %v1939 = vld [vmem:[%s1917 + $0xa8] sm:$0xff]
  %v1940 = vld [vmem:[%s1917 + $0xb0] sm:$0xff]
  %v1941 = vld [vmem:[%s1917 + $0xb8] sm:$0xff]
  %v1942 = vld [vmem:[%s1917 + $0xc0] sm:$0xff]
  %v1943 = vld [vmem:[%s1917 + $0xc8] sm:$0xff]
  %v1944 = vld [vmem:[%s1917 + $0xd0] sm:$0xff]
  %v1945 = vld [vmem:[%s1917 + $0xd8] sm:$0xff]
  %v1946 = vld [vmem:[%s1917 + $0xe0] sm:$0xff]
  %v1947 = vld [vmem:[%s1917 + $0xe8] sm:$0xff]
  %v1948 = vld [vmem:[%s1917 + $0xf0] sm:$0xff]
  %v1949 = vld [vmem:[%s1917 + $0xf8] sm:$0xff]
  %v1950 = vld [vmem:[%s1917 + $0x100] sm:$0xff]
  %v1951 = vld [vmem:[%s1917 + $0x108] sm:$0xff]
  %v1952 = vld [vmem:[%s1917 + $0x110] sm:$0xff]
  %v1953 = vld [vmem:[%s1917 + $0x118] sm:$0xff]
  %v1954 = vld [vmem:[%s1917 + $0x120] sm:$0xff]
  %v1955 = vld [vmem:[%s1917 + $0x128] sm:$0xff]
  %v1956 = vld [vmem:[%s1917 + $0x130] sm:$0xff]
  %v1957 = vld [vmem:[%s1917 + $0x138] sm:$0xff]
  %v1958 = vld [vmem:[%s1917 + $0x140] sm:$0xff]
  %v1959 = vld [vmem:[%s1917 + $0x148] sm:$0xff]
  %v1960 = vld [vmem:[%s1917 + $0x150] sm:$0xff]
  %v1961 = vld [vmem:[%s1917 + $0x158] sm:$0xff]
  %v1962 = vld [vmem:[%s1917 + $0x160] sm:$0xff]
  %v1963 = vld [vmem:[%s1917 + $0x168] sm:$0xff]
  %v1964 = vld [vmem:[%s1917 + $0x170] sm:$0xff]
  %v1965 = vld [vmem:[%s1917 + $0x178] sm:$0xff]
  %v1966 = vld [vmem:[%s1917 + $0x180] sm:$0xff]
  %v1967 = vld [vmem:[%s1917 + $0x188] sm:$0xff]
  %v1968 = vld [vmem:[%s1917 + $0x190] sm:$0xff]
  %v1969 = vld [vmem:[%s1917 + $0x198] sm:$0xff]
  %v1970 = vld [vmem:[%s1917 + $0x1a0] sm:$0xff]
  %v1971 = vld [vmem:[%s1917 + $0x1a8] sm:$0xff]
  %v1972 = vld [vmem:[%s1917 + $0x1b0] sm:$0xff]
  %v1973 = vld [vmem:[%s1917 + $0x1b8] sm:$0xff]
  %v1974 = vld [vmem:[%s1917 + $0x1c0] sm:$0xff]
  %v1975 = vld [vmem:[%s1917 + $0x1c8] sm:$0xff]
  %v1976 = vld [vmem:[%s1917 + $0x1d0] sm:$0xff]
  %v1977 = vld [vmem:[%s1917 + $0x1d8] sm:$0xff]
  %v1978 = vld [vmem:[%s1917 + $0x1e0] sm:$0xff]
  %v1979 = vld [vmem:[%s1917 + $0x1e8] sm:$0xff]
  %v1980 = vld [vmem:[%s1917 + $0x1f0] sm:$0xff]
  %v1981 = vld [vmem:[%s1917 + $0x1f8] sm:$0xff]
  %v1982 = vld [vmem:[%s1917 + $0x200] sm:$0xff]
  %v1983 = vld [vmem:[%s1917 + $0x208] sm:$0xff]
  %v1984 = vld [vmem:[%s1917 + $0x210] sm:$0xff]
  %v1985 = vld [vmem:[%s1917 + $0x218] sm:$0xff]
  %v1986 = vld [vmem:[%s1917 + $0x220] sm:$0xff]
  %v1987 = vld [vmem:[%s1917 + $0x228] sm:$0xff]
  %v1988 = vld [vmem:[%s1917 + $0x230] sm:$0xff]
  %v1989 = vld [vmem:[%s1917 + $0x238] sm:$0xff]
  %v1996 = vunpack.c.l.b16 %v1911
  %v1997 = vunpack.c.h.b16 %v1911
  %v1998 = vunpack.c.l.b16 %v1912
  %v1999 = vunpack.c.l.b16 %v1913
  %v2000 = vunpack.c.h.b16 %v1913
  %v2001 = vunpack.c.l.b16 %v1914
  %v2002 = vunpack.c.l.b16 %v1915
  %v2003 = vunpack.c.h.b16 %v1915
  %v2004 = vunpack.c.l.b16 %v1916
  %v2005 = vpack.c.b16 %v1999, %v1996
  %v2006 = vpack.c.b16 %v2000, %v1997
  %v2007 = vpack.c.b16 %v2001, %v1998
  %v2008 = vpack.c.b16 %v2002, %v2002
  %v2009 = vpack.c.b16 %v2003, %v2003
  %v2010 = vpack.c.b16 %v2004, %v2004
  %vm2011 = vsmask.f32 6400
  %v2013 = vshrl.u32 %v2005, 16
  %v2015 = vrot.slane %v2013, 1
  %v2016 = vshll.u32 %v2005, 16
  %v2018 = vrot.slane %v2016, 2
  %v2019 = vor.u32 %v2015, %v2018
  %v2021 = vshll.u32 %v2008, 16
  %v2023 = vrot.slane %v2021, 2
  %v2024 = vsel %vm2011, %v2019, %v2023
  %v2026 = vshrl.u32 %v2006, 16
  %v2028 = vrot.slane %v2026, 1
  %v2029 = vshll.u32 %v2006, 16
  %v2031 = vrot.slane %v2029, 2
  %v2032 = vor.u32 %v2028, %v2031
  %v2034 = vshll.u32 %v2009, 16
  %v2036 = vrot.slane %v2034, 2
  %v2037 = vsel %vm2011, %v2032, %v2036
  %v2039 = vshrl.u32 %v2007, 16
  %v2041 = vrot.slane %v2039, 1
  %v2042 = vshll.u32 %v2007, 16
  %v2044 = vrot.slane %v2042, 2
  %v2045 = vor.u32 %v2041, %v2044
  %v2047 = vshll.u32 %v2010, 16
  %v2049 = vrot.slane %v2047, 2
  %v2050 = vsel %vm2011, %v2045, %v2049
  %v2125 = vunpack.c.l.b16 %v1918
  %v2126 = vunpack.c.h.b16 %v1918
  %v2127 = vunpack.c.l.b16 %v1919
  %v2128 = vunpack.c.h.b16 %v1919
  %v2129 = vunpack.c.l.b16 %v1920
  %v2130 = vunpack.c.h.b16 %v1920
  %v2131 = vunpack.c.l.b16 %v1921
  %v2132 = vunpack.c.h.b16 %v1921
  %v2133 = vunpack.c.l.b16 %v1922
  %v2134 = vunpack.c.h.b16 %v1922
  %v2135 = vunpack.c.l.b16 %v1923
  %v2136 = vunpack.c.h.b16 %v1923
  %v2137 = vunpack.c.l.b16 %v1924
  %v2138 = vunpack.c.h.b16 %v1924
  %v2139 = vunpack.c.l.b16 %v1925
  %v2140 = vunpack.c.h.b16 %v1925
  %v2141 = vunpack.c.l.b16 %v1926
  %v2142 = vunpack.c.h.b16 %v1926
  %v2143 = vunpack.c.l.b16 %v1927
  %v2144 = vunpack.c.h.b16 %v1927
  %v2145 = vunpack.c.l.b16 %v1928
  %v2146 = vunpack.c.h.b16 %v1928
  %v2147 = vunpack.c.l.b16 %v1929
  %v2148 = vunpack.c.h.b16 %v1929
  %v2149 = vunpack.c.l.b16 %v1930
  %v2150 = vunpack.c.h.b16 %v1930
  %v2151 = vunpack.c.l.b16 %v1931
  %v2152 = vunpack.c.h.b16 %v1931
  %v2153 = vunpack.c.l.b16 %v1932
  %v2154 = vunpack.c.h.b16 %v1932
  %v2155 = vunpack.c.l.b16 %v1933
  %v2156 = vunpack.c.h.b16 %v1933
  %v2157 = vunpack.c.l.b16 %v1934
  %v2158 = vunpack.c.h.b16 %v1934
  %v2159 = vunpack.c.l.b16 %v1935
  %v2160 = vunpack.c.h.b16 %v1935
  %v2161 = vunpack.c.l.b16 %v1936
  %v2162 = vunpack.c.h.b16 %v1936
  %v2163 = vunpack.c.l.b16 %v1937
  %v2164 = vunpack.c.h.b16 %v1937
  %v2165 = vunpack.c.l.b16 %v1938
  %v2166 = vunpack.c.h.b16 %v1938
  %v2167 = vunpack.c.l.b16 %v1939
  %v2168 = vunpack.c.h.b16 %v1939
  %v2169 = vunpack.c.l.b16 %v1940
  %v2170 = vunpack.c.h.b16 %v1940
  %v2171 = vunpack.c.l.b16 %v1941
  %v2172 = vunpack.c.h.b16 %v1941
  %v2173 = vunpack.c.l.b16 %v1942
  %v2174 = vunpack.c.h.b16 %v1942
  %v2175 = vunpack.c.l.b16 %v1943
  %v2176 = vunpack.c.h.b16 %v1943
  %v2177 = vunpack.c.l.b16 %v1944
  %v2178 = vunpack.c.h.b16 %v1944
  %v2179 = vunpack.c.l.b16 %v1945
  %v2180 = vunpack.c.h.b16 %v1945
  %v2181 = vunpack.c.l.b16 %v1946
  %v2182 = vunpack.c.h.b16 %v1946
  %v2183 = vunpack.c.l.b16 %v1947
  %v2184 = vunpack.c.h.b16 %v1947
  %v2185 = vunpack.c.l.b16 %v1948
  %v2186 = vunpack.c.h.b16 %v1948
  %v2187 = vunpack.c.l.b16 %v1949
  %v2188 = vunpack.c.h.b16 %v1949
  %v2189 = vunpack.c.l.b16 %v1950
  %v2190 = vunpack.c.h.b16 %v1950
  %v2191 = vunpack.c.l.b16 %v1951
  %v2192 = vunpack.c.h.b16 %v1951
  %v2193 = vunpack.c.l.b16 %v1952
  %v2194 = vunpack.c.h.b16 %v1952
  %v2195 = vunpack.c.l.b16 %v1953
  %v2196 = vunpack.c.h.b16 %v1953
  %v2197 = vunpack.c.l.b16 %v1954
  %v2198 = vunpack.c.h.b16 %v1954
  %v2199 = vunpack.c.l.b16 %v1955
  %v2200 = vunpack.c.h.b16 %v1955
  %v2201 = vunpack.c.l.b16 %v1956
  %v2202 = vunpack.c.h.b16 %v1956
  %v2203 = vunpack.c.l.b16 %v1957
  %v2204 = vunpack.c.h.b16 %v1957
  %v2205 = vunpack.c.l.b16 %v1958
  %v2206 = vunpack.c.h.b16 %v1958
  %v2207 = vunpack.c.l.b16 %v1959
  %v2208 = vunpack.c.h.b16 %v1959
  %v2209 = vunpack.c.l.b16 %v1960
  %v2210 = vunpack.c.h.b16 %v1960
  %v2211 = vunpack.c.l.b16 %v1961
  %v2212 = vunpack.c.h.b16 %v1961
  %v2213 = vunpack.c.l.b16 %v1962
  %v2214 = vunpack.c.h.b16 %v1962
  %v2215 = vunpack.c.l.b16 %v1963
  %v2216 = vunpack.c.h.b16 %v1963
  %v2217 = vunpack.c.l.b16 %v1964
  %v2218 = vunpack.c.h.b16 %v1964
  %v2219 = vunpack.c.l.b16 %v1965
  %v2220 = vunpack.c.h.b16 %v1965
  %v2221 = vunpack.c.l.b16 %v1966
  %v2222 = vunpack.c.h.b16 %v1966
  %v2223 = vunpack.c.l.b16 %v1967
  %v2224 = vunpack.c.h.b16 %v1967
  %v2225 = vunpack.c.l.b16 %v1968
  %v2226 = vunpack.c.h.b16 %v1968
  %v2227 = vunpack.c.l.b16 %v1969
  %v2228 = vunpack.c.h.b16 %v1969
  %v2229 = vunpack.c.l.b16 %v1970
  %v2230 = vunpack.c.h.b16 %v1970
  %v2231 = vunpack.c.l.b16 %v1971
  %v2232 = vunpack.c.h.b16 %v1971
  %v2233 = vunpack.c.l.b16 %v1972
  %v2234 = vunpack.c.h.b16 %v1972
  %v2235 = vunpack.c.l.b16 %v1973
  %v2236 = vunpack.c.h.b16 %v1973
  %v2237 = vunpack.c.l.b16 %v1974
  %v2238 = vunpack.c.h.b16 %v1974
  %v2239 = vunpack.c.l.b16 %v1975
  %v2240 = vunpack.c.h.b16 %v1975
  %v2241 = vunpack.c.l.b16 %v1976
  %v2242 = vunpack.c.h.b16 %v1976
  %v2243 = vunpack.c.l.b16 %v1977
  %v2244 = vunpack.c.h.b16 %v1977
  %v2245 = vunpack.c.l.b16 %v1978
  %v2246 = vunpack.c.h.b16 %v1978
  %v2247 = vunpack.c.l.b16 %v1979
  %v2248 = vunpack.c.h.b16 %v1979
  %v2249 = vunpack.c.l.b16 %v1980
  %v2250 = vunpack.c.h.b16 %v1980
  %v2251 = vunpack.c.l.b16 %v1981
  %v2252 = vunpack.c.h.b16 %v1981
  %v2253 = vunpack.c.l.b16 %v1982
  %v2254 = vunpack.c.h.b16 %v1982
  %v2255 = vunpack.c.l.b16 %v1983
  %v2256 = vunpack.c.h.b16 %v1983
  %v2257 = vunpack.c.l.b16 %v1984
  %v2258 = vunpack.c.h.b16 %v1984
  %v2259 = vunpack.c.l.b16 %v1985
  %v2260 = vunpack.c.h.b16 %v1985
  %v2261 = vunpack.c.l.b16 %v1986
  %v2262 = vunpack.c.h.b16 %v1986
  %v2263 = vunpack.c.l.b16 %v1987
  %v2264 = vunpack.c.h.b16 %v1987
  %v2265 = vunpack.c.l.b16 %v1988
  %v2266 = vunpack.c.h.b16 %v1988
  %v2267 = vunpack.c.l.b16 %v1989
  %v2268 = vunpack.c.h.b16 %v1989
  %v2269 = vpack.c.b16 %v2129, %v2125
  %v2270 = vpack.c.b16 %v2130, %v2126
  %v2271 = vpack.c.b16 %v2131, %v2127
  %v2272 = vpack.c.b16 %v2132, %v2128
  %v2273 = vpack.c.b16 %v2137, %v2133
  %v2274 = vpack.c.b16 %v2138, %v2134
  %v2275 = vpack.c.b16 %v2139, %v2135
  %v2276 = vpack.c.b16 %v2140, %v2136
  %v2277 = vpack.c.b16 %v2145, %v2141
  %v2278 = vpack.c.b16 %v2146, %v2142
  %v2279 = vpack.c.b16 %v2147, %v2143
  %v2280 = vpack.c.b16 %v2148, %v2144
  %v2281 = vpack.c.b16 %v2153, %v2149
  %v2282 = vpack.c.b16 %v2154, %v2150
  %v2283 = vpack.c.b16 %v2155, %v2151
  %v2284 = vpack.c.b16 %v2156, %v2152
  %v2285 = vpack.c.b16 %v2161, %v2157
  %v2286 = vpack.c.b16 %v2162, %v2158
  %v2287 = vpack.c.b16 %v2163, %v2159
  %v2288 = vpack.c.b16 %v2164, %v2160
  %v2289 = vpack.c.b16 %v2169, %v2165
  %v2290 = vpack.c.b16 %v2170, %v2166
  %v2291 = vpack.c.b16 %v2171, %v2167
  %v2292 = vpack.c.b16 %v2172, %v2168
  %v2293 = vpack.c.b16 %v2177, %v2173
  %v2294 = vpack.c.b16 %v2178, %v2174
  %v2295 = vpack.c.b16 %v2179, %v2175
  %v2296 = vpack.c.b16 %v2180, %v2176
  %v2297 = vpack.c.b16 %v2185, %v2181
  %v2298 = vpack.c.b16 %v2186, %v2182
  %v2299 = vpack.c.b16 %v2187, %v2183
  %v2300 = vpack.c.b16 %v2188, %v2184
  %v2301 = vpack.c.b16 %v2193, %v2189
  %v2302 = vpack.c.b16 %v2194, %v2190
  %v2303 = vpack.c.b16 %v2195, %v2191
  %v2304 = vpack.c.b16 %v2196, %v2192
  %v2305 = vpack.c.b16 %v2201, %v2197
  %v2306 = vpack.c.b16 %v2202, %v2198
  %v2307 = vpack.c.b16 %v2203, %v2199
  %v2308 = vpack.c.b16 %v2204, %v2200
  %v2309 = vpack.c.b16 %v2209, %v2205
  %v2310 = vpack.c.b16 %v2210, %v2206
  %v2311 = vpack.c.b16 %v2211, %v2207
  %v2312 = vpack.c.b16 %v2212, %v2208
  %v2313 = vpack.c.b16 %v2217, %v2213
  %v2314 = vpack.c.b16 %v2218, %v2214
  %v2315 = vpack.c.b16 %v2219, %v2215
  %v2316 = vpack.c.b16 %v2220, %v2216
  %v2317 = vpack.c.b16 %v2225, %v2221
  %v2318 = vpack.c.b16 %v2226, %v2222
  %v2319 = vpack.c.b16 %v2227, %v2223
  %v2320 = vpack.c.b16 %v2228, %v2224
  %v2321 = vpack.c.b16 %v2233, %v2229
  %v2322 = vpack.c.b16 %v2234, %v2230
  %v2323 = vpack.c.b16 %v2235, %v2231
  %v2324 = vpack.c.b16 %v2236, %v2232
  %v2325 = vpack.c.b16 %v2241, %v2237
  %v2326 = vpack.c.b16 %v2242, %v2238
  %v2327 = vpack.c.b16 %v2243, %v2239
  %v2328 = vpack.c.b16 %v2244, %v2240
  %v2329 = vpack.c.b16 %v2249, %v2245
  %v2330 = vpack.c.b16 %v2250, %v2246
  %v2331 = vpack.c.b16 %v2251, %v2247
  %v2332 = vpack.c.b16 %v2252, %v2248
  %v2333 = vpack.c.b16 %v2257, %v2253
  %v2334 = vpack.c.b16 %v2258, %v2254
  %v2335 = vpack.c.b16 %v2259, %v2255
  %v2336 = vpack.c.b16 %v2260, %v2256
  %v2337 = vpack.c.b16 %v2265, %v2261
  %v2338 = vpack.c.b16 %v2266, %v2262
  %v2339 = vpack.c.b16 %v2267, %v2263
  %v2340 = vpack.c.b16 %v2268, %v2264
  %v2414 = vsel %vm571, %v2050, 0
  %2416 = vmatpush.bf16.msra.mxu0 %v2297
  %2417 = vmatpush.bf16.msra.mxu0 %v2293
  %2418 = vmatpush.bf16.msra.mxu0 %v2289
  %2419 = vmatpush.bf16.msra.mxu0 %v2285
  %2420 = vmatpush.bf16.msra.mxu0 %v2281
  %2421 = vmatpush.bf16.msra.mxu0 %v2277
  %2422 = vmatpush.bf16.msra.mxu0 %v2273
  %2423 = vmatpush.bf16.msra.mxu0 %v2269
  %2424 = vmatmul.bf16.gmra.mxu0 %v2024
  %v2425 = vpop.f32.mrf.mxu0
  %v2426 = vadd.f32 0.0, %v2425
  %v2427 = vpop.f32.mrf.mxu0
  %v2428 = vadd.f32 0.0, %v2427
  %2429 = vdwg.mxu0
  %2430 = vmatpush.bf16.msra.mxu0 %v2329
  %2431 = vmatpush.bf16.msra.mxu0 %v2325
  %2432 = vmatpush.bf16.msra.mxu0 %v2321
  %2433 = vmatpush.bf16.msra.mxu0 %v2317
  %2434 = vmatpush.bf16.msra.mxu0 %v2313
  %2435 = vmatpush.bf16.msra.mxu0 %v2309
  %2436 = vmatpush.bf16.msra.mxu0 %v2305
  %2437 = vmatpush.bf16.msra.mxu0 %v2301
  %2438 = vmatmul.bf16.gmra.mxu0 %v2037
  %v2439 = vpop.f32.mrf.mxu0
  %v2440 = vadd.f32 %v2426, %v2439
  %v2441 = vpop.f32.mrf.mxu0
  %v2442 = vadd.f32 %v2428, %v2441
  %2443 = vdwg.mxu0
  %2444 = vmatpush.bf16.msra.mxu0 0
  %2445 = vmatpush.bf16.msra.mxu0 0
  %2446 = vmatpush.bf16.msra.mxu0 0
  %2447 = vmatpush.bf16.msra.mxu0 0
  %2448 = vmatpush.bf16.msra.mxu0 0
  %2449 = vmatpush.bf16.msra.mxu0 0
  %2450 = vmatpush.bf16.msra.mxu0 %v2337
  %2451 = vmatpush.bf16.msra.mxu0 %v2333
  %2452 = vmatmul.bf16.gmra.mxu0 %v2414
  %v2453 = vpop.f32.mrf.mxu0
  %v2454 = vadd.f32 %v2440, %v2453
  %v2455 = vpop.f32.mrf.mxu0
  %v2456 = vadd.f32 %v2442, %v2455
  %2457 = vdwg.mxu0
  %2458 = vmatpush.bf16.msra.mxu0 %v2298
  %2459 = vmatpush.bf16.msra.mxu0 %v2294
  %2460 = vmatpush.bf16.msra.mxu0 %v2290
  %2461 = vmatpush.bf16.msra.mxu0 %v2286
  %2462 = vmatpush.bf16.msra.mxu0 %v2282
  %2463 = vmatpush.bf16.msra.mxu0 %v2278
  %2464 = vmatpush.bf16.msra.mxu0 %v2274
  %2465 = vmatpush.bf16.msra.mxu0 %v2270
  %2466 = vmatmul.bf16.gmra.mxu0 %v2024
  %v2467 = vpop.f32.mrf.mxu0
  %v2468 = vadd.f32 0.0, %v2467
  %v2469 = vpop.f32.mrf.mxu0
  %v2470 = vadd.f32 0.0, %v2469
  %2471 = vdwg.mxu0
  %2472 = vmatpush.bf16.msra.mxu0 %v2330
  %2473 = vmatpush.bf16.msra.mxu0 %v2326
  %2474 = vmatpush.bf16.msra.mxu0 %v2322
  %2475 = vmatpush.bf16.msra.mxu0 %v2318
  %2476 = vmatpush.bf16.msra.mxu0 %v2314
  %2477 = vmatpush.bf16.msra.mxu0 %v2310
  %2478 = vmatpush.bf16.msra.mxu0 %v2306
  %2479 = vmatpush.bf16.msra.mxu0 %v2302
  %2480 = vmatmul.bf16.gmra.mxu0 %v2037
  %v2481 = vpop.f32.mrf.mxu0
  %v2482 = vadd.f32 %v2468, %v2481
  %v2483 = vpop.f32.mrf.mxu0
  %v2484 = vadd.f32 %v2470, %v2483
  %2485 = vdwg.mxu0
  %2486 = vmatpush.bf16.msra.mxu0 0
  %2487 = vmatpush.bf16.msra.mxu0 0
  %2488 = vmatpush.bf16.msra.mxu0 0
  %2489 = vmatpush.bf16.msra.mxu0 0
  %2490 = vmatpush.bf16.msra.mxu0 0
  %2491 = vmatpush.bf16.msra.mxu0 0
  %2492 = vmatpush.bf16.msra.mxu0 %v2338
  %2493 = vmatpush.bf16.msra.mxu0 %v2334
  %2494 = vmatmul.bf16.gmra.mxu0 %v2414
  %v2495 = vpop.f32.mrf.mxu0
  %v2496 = vadd.f32 %v2482, %v2495
  %v2497 = vpop.f32.mrf.mxu0
  %v2498 = vadd.f32 %v2484, %v2497
  %2499 = vdwg.mxu0
  %2500 = vmatpush.bf16.msra.mxu0 %v2299
  %2501 = vmatpush.bf16.msra.mxu0 %v2295
  %2502 = vmatpush.bf16.msra.mxu0 %v2291
  %2503 = vmatpush.bf16.msra.mxu0 %v2287
  %2504 = vmatpush.bf16.msra.mxu0 %v2283
  %2505 = vmatpush.bf16.msra.mxu0 %v2279
  %2506 = vmatpush.bf16.msra.mxu0 %v2275
  %2507 = vmatpush.bf16.msra.mxu0 %v2271
  %2508 = vmatmul.bf16.gmra.mxu0 %v2024
  %v2509 = vpop.f32.mrf.mxu0
  %v2510 = vadd.f32 0.0, %v2509
  %v2511 = vpop.f32.mrf.mxu0
  %v2512 = vadd.f32 0.0, %v2511
  %2513 = vdwg.mxu0
  %2514 = vmatpush.bf16.msra.mxu0 %v2331
  %2515 = vmatpush.bf16.msra.mxu0 %v2327
  %2516 = vmatpush.bf16.msra.mxu0 %v2323
  %2517 = vmatpush.bf16.msra.mxu0 %v2319
  %2518 = vmatpush.bf16.msra.mxu0 %v2315
  %2519 = vmatpush.bf16.msra.mxu0 %v2311
  %2520 = vmatpush.bf16.msra.mxu0 %v2307
  %2521 = vmatpush.bf16.msra.mxu0 %v2303
  %2522 = vmatmul.bf16.gmra.mxu0 %v2037
  %v2523 = vpop.f32.mrf.mxu0
  %v2524 = vadd.f32 %v2510, %v2523
  %v2525 = vpop.f32.mrf.mxu0
  %v2526 = vadd.f32 %v2512, %v2525
  %2527 = vdwg.mxu0
  %2528 = vmatpush.bf16.msra.mxu0 0
  %2529 = vmatpush.bf16.msra.mxu0 0
  %2530 = vmatpush.bf16.msra.mxu0 0
  %2531 = vmatpush.bf16.msra.mxu0 0
  %2532 = vmatpush.bf16.msra.mxu0 0
  %2533 = vmatpush.bf16.msra.mxu0 0
  %2534 = vmatpush.bf16.msra.mxu0 %v2339
  %2535 = vmatpush.bf16.msra.mxu0 %v2335
  %2536 = vmatmul.bf16.gmra.mxu0 %v2414
  %v2537 = vpop.f32.mrf.mxu0
  %v2538 = vadd.f32 %v2524, %v2537
  %v2539 = vpop.f32.mrf.mxu0
  %v2540 = vadd.f32 %v2526, %v2539
  %2541 = vdwg.mxu0
  %2542 = vmatpush.bf16.msra.mxu0 %v2300
  %2543 = vmatpush.bf16.msra.mxu0 %v2296
  %2544 = vmatpush.bf16.msra.mxu0 %v2292
  %2545 = vmatpush.bf16.msra.mxu0 %v2288
  %2546 = vmatpush.bf16.msra.mxu0 %v2284
  %2547 = vmatpush.bf16.msra.mxu0 %v2280
  %2548 = vmatpush.bf16.msra.mxu0 %v2276
  %2549 = vmatpush.bf16.msra.mxu0 %v2272
  %2550 = vmatmul.bf16.gmra.mxu0 %v2024
  %v2551 = vpop.f32.mrf.mxu0
  %v2552 = vadd.f32 0.0, %v2551
  %v2553 = vpop.f32.mrf.mxu0
  %v2554 = vadd.f32 0.0, %v2553
  %2555 = vdwg.mxu0
  %2556 = vmatpush.bf16.msra.mxu0 %v2332
  %2557 = vmatpush.bf16.msra.mxu0 %v2328
  %2558 = vmatpush.bf16.msra.mxu0 %v2324
  %2559 = vmatpush.bf16.msra.mxu0 %v2320
  %2560 = vmatpush.bf16.msra.mxu0 %v2316
  %2561 = vmatpush.bf16.msra.mxu0 %v2312
  %2562 = vmatpush.bf16.msra.mxu0 %v2308
  %2563 = vmatpush.bf16.msra.mxu0 %v2304
  %2564 = vmatmul.bf16.gmra.mxu0 %v2037
  %v2565 = vpop.f32.mrf.mxu0
  %v2566 = vadd.f32 %v2552, %v2565
  %v2567 = vpop.f32.mrf.mxu0
  %v2568 = vadd.f32 %v2554, %v2567
  %2569 = vdwg.mxu0
  %2570 = vmatpush.bf16.msra.mxu0 0
  %2571 = vmatpush.bf16.msra.mxu0 0
  %2572 = vmatpush.bf16.msra.mxu0 0
  %2573 = vmatpush.bf16.msra.mxu0 0
  %2574 = vmatpush.bf16.msra.mxu0 0
  %2575 = vmatpush.bf16.msra.mxu0 0
  %2576 = vmatpush.bf16.msra.mxu0 %v2340
  %2577 = vmatpush.bf16.msra.mxu0 %v2336
  %2578 = vmatmul.bf16.gmra.mxu0 %v2414
  %v2579 = vpop.f32.mrf.mxu0
  %v2580 = vadd.f32 %v2566, %v2579
  %v2581 = vpop.f32.mrf.mxu0
  %v2582 = vadd.f32 %v2568, %v2581
  %2583 = vdwg.mxu0
  %v2584 = vadd.f32 %v1903, %v2454
  %v2585 = vadd.f32 %v1904, %v2496
  %v2586 = vadd.f32 %v1905, %v2538
  %v2587 = vadd.f32 %v1906, %v2580
  %v2588 = vadd.f32 %v1907, %v2456
  %v2589 = vadd.f32 %v1908, %v2498
  %v2590 = vadd.f32 %v1909, %v2540
  %v2591 = vadd.f32 %v1910, %v2582
  %v2592 = vld [vmem:[%s0] sm:$0xcc]
  %v2593 = vld [vmem:[%s0 + $0x8] sm:$0xc]
  %s2594 = scalar_lea.vmem %s1, 2304
  %v2595 = vld [vmem:[%s2594] sm:$0xff]
  %v2596 = vld [vmem:[%s2594 + $0x8] sm:$0xff]
  %v2597 = vld [vmem:[%s2594 + $0x10] sm:$0xff]
  %v2598 = vld [vmem:[%s2594 + $0x18] sm:$0xff]
  %v2599 = vld [vmem:[%s2594 + $0x20] sm:$0xff]
  %v2600 = vld [vmem:[%s2594 + $0x28] sm:$0xff]
  %v2601 = vld [vmem:[%s2594 + $0x30] sm:$0xff]
  %v2602 = vld [vmem:[%s2594 + $0x38] sm:$0xff]
  %v2603 = vld [vmem:[%s2594 + $0x40] sm:$0xff]
  %v2604 = vld [vmem:[%s2594 + $0x48] sm:$0xff]
  %v2605 = vld [vmem:[%s2594 + $0x50] sm:$0xff]
  %v2606 = vld [vmem:[%s2594 + $0x58] sm:$0xff]
  %v2607 = vld [vmem:[%s2594 + $0x60] sm:$0xff]
  %v2608 = vld [vmem:[%s2594 + $0x68] sm:$0xff]
  %v2609 = vld [vmem:[%s2594 + $0x70] sm:$0xff]
  %v2610 = vld [vmem:[%s2594 + $0x78] sm:$0xff]
  %v2611 = vld [vmem:[%s2594 + $0x80] sm:$0xff]
  %v2612 = vld [vmem:[%s2594 + $0x88] sm:$0xff]
  %v2613 = vld [vmem:[%s2594 + $0x90] sm:$0xff]
  %v2614 = vld [vmem:[%s2594 + $0x98] sm:$0xff]
  %v2615 = vld [vmem:[%s2594 + $0xa0] sm:$0xff]
  %v2616 = vld [vmem:[%s2594 + $0xa8] sm:$0xff]
  %v2617 = vld [vmem:[%s2594 + $0xb0] sm:$0xff]
  %v2618 = vld [vmem:[%s2594 + $0xb8] sm:$0xff]
  %v2619 = vld [vmem:[%s2594 + $0xc0] sm:$0xff]
  %v2620 = vld [vmem:[%s2594 + $0xc8] sm:$0xff]
  %v2621 = vld [vmem:[%s2594 + $0xd0] sm:$0xff]
  %v2622 = vld [vmem:[%s2594 + $0xd8] sm:$0xff]
  %v2623 = vld [vmem:[%s2594 + $0xe0] sm:$0xff]
  %v2624 = vld [vmem:[%s2594 + $0xe8] sm:$0xff]
  %v2625 = vld [vmem:[%s2594 + $0xf0] sm:$0xff]
  %v2626 = vld [vmem:[%s2594 + $0xf8] sm:$0xff]
  %v2627 = vld [vmem:[%s2594 + $0x100] sm:$0xff]
  %v2628 = vld [vmem:[%s2594 + $0x108] sm:$0xff]
  %v2629 = vld [vmem:[%s2594 + $0x110] sm:$0xff]
  %v2630 = vld [vmem:[%s2594 + $0x118] sm:$0xff]
  %v2631 = vld [vmem:[%s2594 + $0x120] sm:$0xff]
  %v2632 = vld [vmem:[%s2594 + $0x128] sm:$0xff]
  %v2633 = vld [vmem:[%s2594 + $0x130] sm:$0xff]
  %v2634 = vld [vmem:[%s2594 + $0x138] sm:$0xff]
  %v2635 = vld [vmem:[%s2594 + $0x140] sm:$0xff]
  %v2636 = vld [vmem:[%s2594 + $0x148] sm:$0xff]
  %v2637 = vld [vmem:[%s2594 + $0x150] sm:$0xff]
  %v2638 = vld [vmem:[%s2594 + $0x158] sm:$0xff]
  %v2639 = vld [vmem:[%s2594 + $0x160] sm:$0xff]
  %v2640 = vld [vmem:[%s2594 + $0x168] sm:$0xff]
  %v2641 = vld [vmem:[%s2594 + $0x170] sm:$0xff]
  %v2642 = vld [vmem:[%s2594 + $0x178] sm:$0xff]
  %v2643 = vld [vmem:[%s2594 + $0x180] sm:$0xff]
  %v2644 = vld [vmem:[%s2594 + $0x188] sm:$0xff]
  %v2645 = vld [vmem:[%s2594 + $0x190] sm:$0xff]
  %v2646 = vld [vmem:[%s2594 + $0x198] sm:$0xff]
  %v2647 = vld [vmem:[%s2594 + $0x1a0] sm:$0xff]
  %v2648 = vld [vmem:[%s2594 + $0x1a8] sm:$0xff]
  %v2649 = vld [vmem:[%s2594 + $0x1b0] sm:$0xff]
  %v2650 = vld [vmem:[%s2594 + $0x1b8] sm:$0xff]
  %v2651 = vld [vmem:[%s2594 + $0x1c0] sm:$0xff]
  %v2652 = vld [vmem:[%s2594 + $0x1c8] sm:$0xff]
  %v2653 = vld [vmem:[%s2594 + $0x1d0] sm:$0xff]
  %v2654 = vld [vmem:[%s2594 + $0x1d8] sm:$0xff]
  %v2655 = vld [vmem:[%s2594 + $0x1e0] sm:$0xff]
  %v2656 = vld [vmem:[%s2594 + $0x1e8] sm:$0xff]
  %v2657 = vld [vmem:[%s2594 + $0x1f0] sm:$0xff]
  %v2658 = vld [vmem:[%s2594 + $0x1f8] sm:$0xff]
  %v2659 = vld [vmem:[%s2594 + $0x200] sm:$0xff]
  %v2660 = vld [vmem:[%s2594 + $0x208] sm:$0xff]
  %v2661 = vld [vmem:[%s2594 + $0x210] sm:$0xff]
  %v2662 = vld [vmem:[%s2594 + $0x218] sm:$0xff]
  %v2663 = vld [vmem:[%s2594 + $0x220] sm:$0xff]
  %v2664 = vld [vmem:[%s2594 + $0x228] sm:$0xff]
  %v2665 = vld [vmem:[%s2594 + $0x230] sm:$0xff]
  %v2666 = vld [vmem:[%s2594 + $0x238] sm:$0xff]
  %v2669 = vunpack.c.l.b16 %v2592
  %v2670 = vunpack.c.h.b16 %v2592
  %v2671 = vunpack.c.l.b16 %v2593
  %v2672 = vpack.c.b16 %v1999, %v2669
  %v2673 = vpack.c.b16 %v2000, %v2670
  %v2674 = vpack.c.b16 %v2001, %v2671
  %vm2675 = vcmask 1045504
  %v2676 = vrot.slane %v2672, 2
  %v2677 = vrot.slane %v2008, 2
  %v2678 = vsel %vm2675, %v2676, %v2677
  %v2679 = vrot.slane %v2673, 2
  %v2680 = vrot.slane %v2009, 2
  %v2681 = vsel %vm2675, %v2679, %v2680
  %v2682 = vrot.slane %v2674, 2
  %v2683 = vrot.slane %v2010, 2
  %v2684 = vsel %vm2675, %v2682, %v2683
  %v2759 = vunpack.c.l.b16 %v2595
  %v2760 = vunpack.c.h.b16 %v2595
  %v2761 = vunpack.c.l.b16 %v2596
  %v2762 = vunpack.c.h.b16 %v2596
  %v2763 = vunpack.c.l.b16 %v2597
  %v2764 = vunpack.c.h.b16 %v2597
  %v2765 = vunpack.c.l.b16 %v2598
  %v2766 = vunpack.c.h.b16 %v2598
  %v2767 = vunpack.c.l.b16 %v2599
  %v2768 = vunpack.c.h.b16 %v2599
  %v2769 = vunpack.c.l.b16 %v2600
  %v2770 = vunpack.c.h.b16 %v2600
  %v2771 = vunpack.c.l.b16 %v2601
  %v2772 = vunpack.c.h.b16 %v2601
  %v2773 = vunpack.c.l.b16 %v2602
  %v2774 = vunpack.c.h.b16 %v2602
  %v2775 = vunpack.c.l.b16 %v2603
  %v2776 = vunpack.c.h.b16 %v2603
  %v2777 = vunpack.c.l.b16 %v2604
  %v2778 = vunpack.c.h.b16 %v2604
  %v2779 = vunpack.c.l.b16 %v2605
  %v2780 = vunpack.c.h.b16 %v2605
  %v2781 = vunpack.c.l.b16 %v2606
  %v2782 = vunpack.c.h.b16 %v2606
  %v2783 = vunpack.c.l.b16 %v2607
  %v2784 = vunpack.c.h.b16 %v2607
  %v2785 = vunpack.c.l.b16 %v2608
  %v2786 = vunpack.c.h.b16 %v2608
  %v2787 = vunpack.c.l.b16 %v2609
  %v2788 = vunpack.c.h.b16 %v2609
  %v2789 = vunpack.c.l.b16 %v2610
  %v2790 = vunpack.c.h.b16 %v2610
  %v2791 = vunpack.c.l.b16 %v2611
  %v2792 = vunpack.c.h.b16 %v2611
  %v2793 = vunpack.c.l.b16 %v2612
  %v2794 = vunpack.c.h.b16 %v2612
  %v2795 = vunpack.c.l.b16 %v2613
  %v2796 = vunpack.c.h.b16 %v2613
  %v2797 = vunpack.c.l.b16 %v2614
  %v2798 = vunpack.c.h.b16 %v2614
  %v2799 = vunpack.c.l.b16 %v2615
  %v2800 = vunpack.c.h.b16 %v2615
  %v2801 = vunpack.c.l.b16 %v2616
  %v2802 = vunpack.c.h.b16 %v2616
  %v2803 = vunpack.c.l.b16 %v2617
  %v2804 = vunpack.c.h.b16 %v2617
  %v2805 = vunpack.c.l.b16 %v2618
  %v2806 = vunpack.c.h.b16 %v2618
  %v2807 = vunpack.c.l.b16 %v2619
  %v2808 = vunpack.c.h.b16 %v2619
  %v2809 = vunpack.c.l.b16 %v2620
  %v2810 = vunpack.c.h.b16 %v2620
  %v2811 = vunpack.c.l.b16 %v2621
  %v2812 = vunpack.c.h.b16 %v2621
  %v2813 = vunpack.c.l.b16 %v2622
  %v2814 = vunpack.c.h.b16 %v2622
  %v2815 = vunpack.c.l.b16 %v2623
  %v2816 = vunpack.c.h.b16 %v2623
  %v2817 = vunpack.c.l.b16 %v2624
  %v2818 = vunpack.c.h.b16 %v2624
  %v2819 = vunpack.c.l.b16 %v2625
  %v2820 = vunpack.c.h.b16 %v2625
  %v2821 = vunpack.c.l.b16 %v2626
  %v2822 = vunpack.c.h.b16 %v2626
  %v2823 = vunpack.c.l.b16 %v2627
  %v2824 = vunpack.c.h.b16 %v2627
  %v2825 = vunpack.c.l.b16 %v2628
  %v2826 = vunpack.c.h.b16 %v2628
  %v2827 = vunpack.c.l.b16 %v2629
  %v2828 = vunpack.c.h.b16 %v2629
  %v2829 = vunpack.c.l.b16 %v2630
  %v2830 = vunpack.c.h.b16 %v2630
  %v2831 = vunpack.c.l.b16 %v2631
  %v2832 = vunpack.c.h.b16 %v2631
  %v2833 = vunpack.c.l.b16 %v2632
  %v2834 = vunpack.c.h.b16 %v2632
  %v2835 = vunpack.c.l.b16 %v2633
  %v2836 = vunpack.c.h.b16 %v2633
  %v2837 = vunpack.c.l.b16 %v2634
  %v2838 = vunpack.c.h.b16 %v2634
  %v2839 = vunpack.c.l.b16 %v2635
  %v2840 = vunpack.c.h.b16 %v2635
  %v2841 = vunpack.c.l.b16 %v2636
  %v2842 = vunpack.c.h.b16 %v2636
  %v2843 = vunpack.c.l.b16 %v2637
  %v2844 = vunpack.c.h.b16 %v2637
  %v2845 = vunpack.c.l.b16 %v2638
  %v2846 = vunpack.c.h.b16 %v2638
  %v2847 = vunpack.c.l.b16 %v2639
  %v2848 = vunpack.c.h.b16 %v2639
  %v2849 = vunpack.c.l.b16 %v2640
  %v2850 = vunpack.c.h.b16 %v2640
  %v2851 = vunpack.c.l.b16 %v2641
  %v2852 = vunpack.c.h.b16 %v2641
  %v2853 = vunpack.c.l.b16 %v2642
  %v2854 = vunpack.c.h.b16 %v2642
  %v2855 = vunpack.c.l.b16 %v2643
  %v2856 = vunpack.c.h.b16 %v2643
  %v2857 = vunpack.c.l.b16 %v2644
  %v2858 = vunpack.c.h.b16 %v2644
  %v2859 = vunpack.c.l.b16 %v2645
  %v2860 = vunpack.c.h.b16 %v2645
  %v2861 = vunpack.c.l.b16 %v2646
  %v2862 = vunpack.c.h.b16 %v2646
  %v2863 = vunpack.c.l.b16 %v2647
  %v2864 = vunpack.c.h.b16 %v2647
  %v2865 = vunpack.c.l.b16 %v2648
  %v2866 = vunpack.c.h.b16 %v2648
  %v2867 = vunpack.c.l.b16 %v2649
  %v2868 = vunpack.c.h.b16 %v2649
  %v2869 = vunpack.c.l.b16 %v2650
  %v2870 = vunpack.c.h.b16 %v2650
  %v2871 = vunpack.c.l.b16 %v2651
  %v2872 = vunpack.c.h.b16 %v2651
  %v2873 = vunpack.c.l.b16 %v2652
  %v2874 = vunpack.c.h.b16 %v2652
  %v2875 = vunpack.c.l.b16 %v2653
  %v2876 = vunpack.c.h.b16 %v2653
  %v2877 = vunpack.c.l.b16 %v2654
  %v2878 = vunpack.c.h.b16 %v2654
  %v2879 = vunpack.c.l.b16 %v2655
  %v2880 = vunpack.c.h.b16 %v2655
  %v2881 = vunpack.c.l.b16 %v2656
  %v2882 = vunpack.c.h.b16 %v2656
  %v2883 = vunpack.c.l.b16 %v2657
  %v2884 = vunpack.c.h.b16 %v2657
  %v2885 = vunpack.c.l.b16 %v2658
  %v2886 = vunpack.c.h.b16 %v2658
  %v2887 = vunpack.c.l.b16 %v2659
  %v2888 = vunpack.c.h.b16 %v2659
  %v2889 = vunpack.c.l.b16 %v2660
  %v2890 = vunpack.c.h.b16 %v2660
  %v2891 = vunpack.c.l.b16 %v2661
  %v2892 = vunpack.c.h.b16 %v2661
  %v2893 = vunpack.c.l.b16 %v2662
  %v2894 = vunpack.c.h.b16 %v2662
  %v2895 = vunpack.c.l.b16 %v2663
  %v2896 = vunpack.c.h.b16 %v2663
  %v2897 = vunpack.c.l.b16 %v2664
  %v2898 = vunpack.c.h.b16 %v2664
  %v2899 = vunpack.c.l.b16 %v2665
  %v2900 = vunpack.c.h.b16 %v2665
  %v2901 = vunpack.c.l.b16 %v2666
  %v2902 = vunpack.c.h.b16 %v2666
  %v2903 = vpack.c.b16 %v2763, %v2759
  %v2904 = vpack.c.b16 %v2764, %v2760
  %v2905 = vpack.c.b16 %v2765, %v2761
  %v2906 = vpack.c.b16 %v2766, %v2762
  %v2907 = vpack.c.b16 %v2771, %v2767
  %v2908 = vpack.c.b16 %v2772, %v2768
  %v2909 = vpack.c.b16 %v2773, %v2769
  %v2910 = vpack.c.b16 %v2774, %v2770
  %v2911 = vpack.c.b16 %v2779, %v2775
  %v2912 = vpack.c.b16 %v2780, %v2776
  %v2913 = vpack.c.b16 %v2781, %v2777
  %v2914 = vpack.c.b16 %v2782, %v2778
  %v2915 = vpack.c.b16 %v2787, %v2783
  %v2916 = vpack.c.b16 %v2788, %v2784
  %v2917 = vpack.c.b16 %v2789, %v2785
  %v2918 = vpack.c.b16 %v2790, %v2786
  %v2919 = vpack.c.b16 %v2795, %v2791
  %v2920 = vpack.c.b16 %v2796, %v2792
  %v2921 = vpack.c.b16 %v2797, %v2793
  %v2922 = vpack.c.b16 %v2798, %v2794
  %v2923 = vpack.c.b16 %v2803, %v2799
  %v2924 = vpack.c.b16 %v2804, %v2800
  %v2925 = vpack.c.b16 %v2805, %v2801
  %v2926 = vpack.c.b16 %v2806, %v2802
  %v2927 = vpack.c.b16 %v2811, %v2807
  %v2928 = vpack.c.b16 %v2812, %v2808
  %v2929 = vpack.c.b16 %v2813, %v2809
  %v2930 = vpack.c.b16 %v2814, %v2810
  %v2931 = vpack.c.b16 %v2819, %v2815
  %v2932 = vpack.c.b16 %v2820, %v2816
  %v2933 = vpack.c.b16 %v2821, %v2817
  %v2934 = vpack.c.b16 %v2822, %v2818
  %v2935 = vpack.c.b16 %v2827, %v2823
  %v2936 = vpack.c.b16 %v2828, %v2824
  %v2937 = vpack.c.b16 %v2829, %v2825
  %v2938 = vpack.c.b16 %v2830, %v2826
  %v2939 = vpack.c.b16 %v2835, %v2831
  %v2940 = vpack.c.b16 %v2836, %v2832
  %v2941 = vpack.c.b16 %v2837, %v2833
  %v2942 = vpack.c.b16 %v2838, %v2834
  %v2943 = vpack.c.b16 %v2843, %v2839
  %v2944 = vpack.c.b16 %v2844, %v2840
  %v2945 = vpack.c.b16 %v2845, %v2841
  %v2946 = vpack.c.b16 %v2846, %v2842
  %v2947 = vpack.c.b16 %v2851, %v2847
  %v2948 = vpack.c.b16 %v2852, %v2848
  %v2949 = vpack.c.b16 %v2853, %v2849
  %v2950 = vpack.c.b16 %v2854, %v2850
  %v2951 = vpack.c.b16 %v2859, %v2855
  %v2952 = vpack.c.b16 %v2860, %v2856
  %v2953 = vpack.c.b16 %v2861, %v2857
  %v2954 = vpack.c.b16 %v2862, %v2858
  %v2955 = vpack.c.b16 %v2867, %v2863
  %v2956 = vpack.c.b16 %v2868, %v2864
  %v2957 = vpack.c.b16 %v2869, %v2865
  %v2958 = vpack.c.b16 %v2870, %v2866
  %v2959 = vpack.c.b16 %v2875, %v2871
  %v2960 = vpack.c.b16 %v2876, %v2872
  %v2961 = vpack.c.b16 %v2877, %v2873
  %v2962 = vpack.c.b16 %v2878, %v2874
  %v2963 = vpack.c.b16 %v2883, %v2879
  %v2964 = vpack.c.b16 %v2884, %v2880
  %v2965 = vpack.c.b16 %v2885, %v2881
  %v2966 = vpack.c.b16 %v2886, %v2882
  %v2967 = vpack.c.b16 %v2891, %v2887
  %v2968 = vpack.c.b16 %v2892, %v2888
  %v2969 = vpack.c.b16 %v2893, %v2889
  %v2970 = vpack.c.b16 %v2894, %v2890
  %v2971 = vpack.c.b16 %v2899, %v2895
  %v2972 = vpack.c.b16 %v2900, %v2896
  %v2973 = vpack.c.b16 %v2901, %v2897
  %v2974 = vpack.c.b16 %v2902, %v2898
  %v3048 = vsel %vm571, %v2684, 0
  %3050 = vmatpush.bf16.msra.mxu0 %v2931
  %3051 = vmatpush.bf16.msra.mxu0 %v2927
  %3052 = vmatpush.bf16.msra.mxu0 %v2923
  %3053 = vmatpush.bf16.msra.mxu0 %v2919
  %3054 = vmatpush.bf16.msra.mxu0 %v2915
  %3055 = vmatpush.bf16.msra.mxu0 %v2911
  %3056 = vmatpush.bf16.msra.mxu0 %v2907
  %3057 = vmatpush.bf16.msra.mxu0 %v2903
  %3058 = vmatmul.bf16.gmra.mxu0 %v2678
  %v3059 = vpop.f32.mrf.mxu0
  %v3060 = vadd.f32 0.0, %v3059
  %v3061 = vpop.f32.mrf.mxu0
  %v3062 = vadd.f32 0.0, %v3061
  %3063 = vdwg.mxu0
  %3064 = vmatpush.bf16.msra.mxu0 %v2963
  %3065 = vmatpush.bf16.msra.mxu0 %v2959
  %3066 = vmatpush.bf16.msra.mxu0 %v2955
  %3067 = vmatpush.bf16.msra.mxu0 %v2951
  %3068 = vmatpush.bf16.msra.mxu0 %v2947
  %3069 = vmatpush.bf16.msra.mxu0 %v2943
  %3070 = vmatpush.bf16.msra.mxu0 %v2939
  %3071 = vmatpush.bf16.msra.mxu0 %v2935
  %3072 = vmatmul.bf16.gmra.mxu0 %v2681
  %v3073 = vpop.f32.mrf.mxu0
  %v3074 = vadd.f32 %v3060, %v3073
  %v3075 = vpop.f32.mrf.mxu0
  %v3076 = vadd.f32 %v3062, %v3075
  %3077 = vdwg.mxu0
  %3078 = vmatpush.bf16.msra.mxu0 0
  %3079 = vmatpush.bf16.msra.mxu0 0
  %3080 = vmatpush.bf16.msra.mxu0 0
  %3081 = vmatpush.bf16.msra.mxu0 0
  %3082 = vmatpush.bf16.msra.mxu0 0
  %3083 = vmatpush.bf16.msra.mxu0 0
  %3084 = vmatpush.bf16.msra.mxu0 %v2971
  %3085 = vmatpush.bf16.msra.mxu0 %v2967
  %3086 = vmatmul.bf16.gmra.mxu0 %v3048
  %v3087 = vpop.f32.mrf.mxu0
  %v3088 = vadd.f32 %v3074, %v3087
  %v3089 = vpop.f32.mrf.mxu0
  %v3090 = vadd.f32 %v3076, %v3089
  %3091 = vdwg.mxu0
  %3092 = vmatpush.bf16.msra.mxu0 %v2932
  %3093 = vmatpush.bf16.msra.mxu0 %v2928
  %3094 = vmatpush.bf16.msra.mxu0 %v2924
  %3095 = vmatpush.bf16.msra.mxu0 %v2920
  %3096 = vmatpush.bf16.msra.mxu0 %v2916
  %3097 = vmatpush.bf16.msra.mxu0 %v2912
  %3098 = vmatpush.bf16.msra.mxu0 %v2908
  %3099 = vmatpush.bf16.msra.mxu0 %v2904
  %3100 = vmatmul.bf16.gmra.mxu0 %v2678
  %v3101 = vpop.f32.mrf.mxu0
  %v3102 = vadd.f32 0.0, %v3101
  %v3103 = vpop.f32.mrf.mxu0
  %v3104 = vadd.f32 0.0, %v3103
  %3105 = vdwg.mxu0
  %3106 = vmatpush.bf16.msra.mxu0 %v2964
  %3107 = vmatpush.bf16.msra.mxu0 %v2960
  %3108 = vmatpush.bf16.msra.mxu0 %v2956
  %3109 = vmatpush.bf16.msra.mxu0 %v2952
  %3110 = vmatpush.bf16.msra.mxu0 %v2948
  %3111 = vmatpush.bf16.msra.mxu0 %v2944
  %3112 = vmatpush.bf16.msra.mxu0 %v2940
  %3113 = vmatpush.bf16.msra.mxu0 %v2936
  %3114 = vmatmul.bf16.gmra.mxu0 %v2681
  %v3115 = vpop.f32.mrf.mxu0
  %v3116 = vadd.f32 %v3102, %v3115
  %v3117 = vpop.f32.mrf.mxu0
  %v3118 = vadd.f32 %v3104, %v3117
  %3119 = vdwg.mxu0
  %3120 = vmatpush.bf16.msra.mxu0 0
  %3121 = vmatpush.bf16.msra.mxu0 0
  %3122 = vmatpush.bf16.msra.mxu0 0
  %3123 = vmatpush.bf16.msra.mxu0 0
  %3124 = vmatpush.bf16.msra.mxu0 0
  %3125 = vmatpush.bf16.msra.mxu0 0
  %3126 = vmatpush.bf16.msra.mxu0 %v2972
  %3127 = vmatpush.bf16.msra.mxu0 %v2968
  %3128 = vmatmul.bf16.gmra.mxu0 %v3048
  %v3129 = vpop.f32.mrf.mxu0
  %v3130 = vadd.f32 %v3116, %v3129
  %v3131 = vpop.f32.mrf.mxu0
  %v3132 = vadd.f32 %v3118, %v3131
  %3133 = vdwg.mxu0
  %3134 = vmatpush.bf16.msra.mxu0 %v2933
  %3135 = vmatpush.bf16.msra.mxu0 %v2929
  %3136 = vmatpush.bf16.msra.mxu0 %v2925
  %3137 = vmatpush.bf16.msra.mxu0 %v2921
  %3138 = vmatpush.bf16.msra.mxu0 %v2917
  %3139 = vmatpush.bf16.msra.mxu0 %v2913
  %3140 = vmatpush.bf16.msra.mxu0 %v2909
  %3141 = vmatpush.bf16.msra.mxu0 %v2905
  %3142 = vmatmul.bf16.gmra.mxu0 %v2678
  %v3143 = vpop.f32.mrf.mxu0
  %v3144 = vadd.f32 0.0, %v3143
  %v3145 = vpop.f32.mrf.mxu0
  %v3146 = vadd.f32 0.0, %v3145
  %3147 = vdwg.mxu0
  %3148 = vmatpush.bf16.msra.mxu0 %v2965
  %3149 = vmatpush.bf16.msra.mxu0 %v2961
  %3150 = vmatpush.bf16.msra.mxu0 %v2957
  %3151 = vmatpush.bf16.msra.mxu0 %v2953
  %3152 = vmatpush.bf16.msra.mxu0 %v2949
  %3153 = vmatpush.bf16.msra.mxu0 %v2945
  %3154 = vmatpush.bf16.msra.mxu0 %v2941
  %3155 = vmatpush.bf16.msra.mxu0 %v2937
  %3156 = vmatmul.bf16.gmra.mxu0 %v2681
  %v3157 = vpop.f32.mrf.mxu0
  %v3158 = vadd.f32 %v3144, %v3157
  %v3159 = vpop.f32.mrf.mxu0
  %v3160 = vadd.f32 %v3146, %v3159
  %3161 = vdwg.mxu0
  %3162 = vmatpush.bf16.msra.mxu0 0
  %3163 = vmatpush.bf16.msra.mxu0 0
  %3164 = vmatpush.bf16.msra.mxu0 0
  %3165 = vmatpush.bf16.msra.mxu0 0
  %3166 = vmatpush.bf16.msra.mxu0 0
  %3167 = vmatpush.bf16.msra.mxu0 0
  %3168 = vmatpush.bf16.msra.mxu0 %v2973
  %3169 = vmatpush.bf16.msra.mxu0 %v2969
  %3170 = vmatmul.bf16.gmra.mxu0 %v3048
  %v3171 = vpop.f32.mrf.mxu0
  %v3172 = vadd.f32 %v3158, %v3171
  %v3173 = vpop.f32.mrf.mxu0
  %v3174 = vadd.f32 %v3160, %v3173
  %3175 = vdwg.mxu0
  %3176 = vmatpush.bf16.msra.mxu0 %v2934
  %3177 = vmatpush.bf16.msra.mxu0 %v2930
  %3178 = vmatpush.bf16.msra.mxu0 %v2926
  %3179 = vmatpush.bf16.msra.mxu0 %v2922
  %3180 = vmatpush.bf16.msra.mxu0 %v2918
  %3181 = vmatpush.bf16.msra.mxu0 %v2914
  %3182 = vmatpush.bf16.msra.mxu0 %v2910
  %3183 = vmatpush.bf16.msra.mxu0 %v2906
  %3184 = vmatmul.bf16.gmra.mxu0 %v2678
  %v3185 = vpop.f32.mrf.mxu0
  %v3186 = vadd.f32 0.0, %v3185
  %v3187 = vpop.f32.mrf.mxu0
  %v3188 = vadd.f32 0.0, %v3187
  %3189 = vdwg.mxu0
  %3190 = vmatpush.bf16.msra.mxu0 %v2966
  %3191 = vmatpush.bf16.msra.mxu0 %v2962
  %3192 = vmatpush.bf16.msra.mxu0 %v2958
  %3193 = vmatpush.bf16.msra.mxu0 %v2954
  %3194 = vmatpush.bf16.msra.mxu0 %v2950
  %3195 = vmatpush.bf16.msra.mxu0 %v2946
  %3196 = vmatpush.bf16.msra.mxu0 %v2942
  %3197 = vmatpush.bf16.msra.mxu0 %v2938
  %3198 = vmatmul.bf16.gmra.mxu0 %v2681
  %v3199 = vpop.f32.mrf.mxu0
  %v3200 = vadd.f32 %v3186, %v3199
  %v3201 = vpop.f32.mrf.mxu0
  %v3202 = vadd.f32 %v3188, %v3201
  %3203 = vdwg.mxu0
  %3204 = vmatpush.bf16.msra.mxu0 0
  %3205 = vmatpush.bf16.msra.mxu0 0
  %3206 = vmatpush.bf16.msra.mxu0 0
  %3207 = vmatpush.bf16.msra.mxu0 0
  %3208 = vmatpush.bf16.msra.mxu0 0
  %3209 = vmatpush.bf16.msra.mxu0 0
  %3210 = vmatpush.bf16.msra.mxu0 %v2974
  %3211 = vmatpush.bf16.msra.mxu0 %v2970
  %3212 = vmatmul.bf16.gmra.mxu0 %v3048
  %v3213 = vpop.f32.mrf.mxu0
  %v3214 = vadd.f32 %v3200, %v3213
  %v3215 = vpop.f32.mrf.mxu0
  %v3216 = vadd.f32 %v3202, %v3215
  %3217 = vdwg.mxu0
  %v3218 = vadd.f32 %v2584, %v3088
  %v3219 = vadd.f32 %v2585, %v3130
  %v3220 = vadd.f32 %v2586, %v3172
  %v3221 = vadd.f32 %v2587, %v3214
  %v3222 = vadd.f32 %v2588, %v3090
  %v3223 = vadd.f32 %v2589, %v3132
  %v3224 = vadd.f32 %v2590, %v3174
  %v3225 = vadd.f32 %v2591, %v3216
  %s3226 = scalar_lea.vmem %s0, 36
  %v3227 = vld [vmem:[%s3226] sm:$0xff]
  %v3228 = vld [vmem:[%s3226 + $0x8] sm:$0xf]
  %v3229 = vld [vmem:[%s3226 + $0xc] sm:$0x77]
  %v3230 = vld [vmem:[%s3226 + $0x14] sm:$0x7]
  %v3231 = vld [vmem:[%s3226 + $0xc] sm:$0xff]
  %v3232 = vld [vmem:[%s3226 + $0x14] sm:$0xf]
  %v3237 = vunpack.c.l.b16 %v3227
  %v3238 = vunpack.c.h.b16 %v3227
  %v3239 = vunpack.c.l.b16 %v3228
  %v3240 = vunpack.c.l.b16 %v3231
  %v3241 = vunpack.c.h.b16 %v3231
  %v3242 = vunpack.c.l.b16 %v3232
  %v3243 = vpack.c.b16 %v3240, %v3237
  %v3244 = vpack.c.b16 %v3241, %v3238
  %v3245 = vpack.c.b16 %v3242, %v3239
  %v3247 = vshrl.u32 %v3243, 16
  %v3249 = vshll.u32 %v3243, 16
  %v3251 = vrot.slane %v3249, 1
  %v3252 = vor.u32 %v3247, %v3251
  %v3254 = vshrl.u32 %v3244, 16
  %v3256 = vshll.u32 %v3244, 16
  %v3258 = vrot.slane %v3256, 1
  %v3259 = vor.u32 %v3254, %v3258
  %v3261 = vshrl.u32 %v3245, 16
  %v3263 = vshll.u32 %v3245, 16
  %v3265 = vrot.slane %v3263, 1
  %v3266 = vor.u32 %v3261, %v3265
  %v3270 = vsel %vm571, %v3266, 0
  %3272 = vmatpush.bf16.msra.mxu0 %v455
  %3273 = vmatpush.bf16.msra.mxu0 %v451
  %3274 = vmatpush.bf16.msra.mxu0 %v447
  %3275 = vmatpush.bf16.msra.mxu0 %v443
  %3276 = vmatpush.bf16.msra.mxu0 %v439
  %3277 = vmatpush.bf16.msra.mxu0 %v435
  %3278 = vmatpush.bf16.msra.mxu0 %v431
  %3279 = vmatpush.bf16.msra.mxu0 %v427
  %3280 = vmatmul.bf16.gmra.mxu0 %v3252
  %v3281 = vpop.f32.mrf.mxu0
  %v3282 = vadd.f32 0.0, %v3281
  %v3283 = vpop.f32.mrf.mxu0
  %v3284 = vadd.f32 0.0, %v3283
  %3285 = vdwg.mxu0
  %3286 = vmatpush.bf16.msra.mxu0 %v487
  %3287 = vmatpush.bf16.msra.mxu0 %v483
  %3288 = vmatpush.bf16.msra.mxu0 %v479
  %3289 = vmatpush.bf16.msra.mxu0 %v475
  %3290 = vmatpush.bf16.msra.mxu0 %v471
  %3291 = vmatpush.bf16.msra.mxu0 %v467
  %3292 = vmatpush.bf16.msra.mxu0 %v463
  %3293 = vmatpush.bf16.msra.mxu0 %v459
  %3294 = vmatmul.bf16.gmra.mxu0 %v3259
  %v3295 = vpop.f32.mrf.mxu0
  %v3296 = vadd.f32 %v3282, %v3295
  %v3297 = vpop.f32.mrf.mxu0
  %v3298 = vadd.f32 %v3284, %v3297
  %3299 = vdwg.mxu0
  %3300 = vmatpush.bf16.msra.mxu0 0
  %3301 = vmatpush.bf16.msra.mxu0 0
  %3302 = vmatpush.bf16.msra.mxu0 0
  %3303 = vmatpush.bf16.msra.mxu0 0
  %3304 = vmatpush.bf16.msra.mxu0 0
  %3305 = vmatpush.bf16.msra.mxu0 0
  %3306 = vmatpush.bf16.msra.mxu0 %v495
  %3307 = vmatpush.bf16.msra.mxu0 %v491
  %3308 = vmatmul.bf16.gmra.mxu0 %v3270
  %v3309 = vpop.f32.mrf.mxu0
  %v3310 = vadd.f32 %v3296, %v3309
  %v3311 = vpop.f32.mrf.mxu0
  %v3312 = vadd.f32 %v3298, %v3311
  %3313 = vdwg.mxu0
  %3314 = vmatpush.bf16.msra.mxu0 %v456
  %3315 = vmatpush.bf16.msra.mxu0 %v452
  %3316 = vmatpush.bf16.msra.mxu0 %v448
  %3317 = vmatpush.bf16.msra.mxu0 %v444
  %3318 = vmatpush.bf16.msra.mxu0 %v440
  %3319 = vmatpush.bf16.msra.mxu0 %v436
  %3320 = vmatpush.bf16.msra.mxu0 %v432
  %3321 = vmatpush.bf16.msra.mxu0 %v428
  %3322 = vmatmul.bf16.gmra.mxu0 %v3252
  %v3323 = vpop.f32.mrf.mxu0
  %v3324 = vadd.f32 0.0, %v3323
  %v3325 = vpop.f32.mrf.mxu0
  %v3326 = vadd.f32 0.0, %v3325
  %3327 = vdwg.mxu0
  %3328 = vmatpush.bf16.msra.mxu0 %v488
  %3329 = vmatpush.bf16.msra.mxu0 %v484
  %3330 = vmatpush.bf16.msra.mxu0 %v480
  %3331 = vmatpush.bf16.msra.mxu0 %v476
  %3332 = vmatpush.bf16.msra.mxu0 %v472
  %3333 = vmatpush.bf16.msra.mxu0 %v468
  %3334 = vmatpush.bf16.msra.mxu0 %v464
  %3335 = vmatpush.bf16.msra.mxu0 %v460
  %3336 = vmatmul.bf16.gmra.mxu0 %v3259
  %v3337 = vpop.f32.mrf.mxu0
  %v3338 = vadd.f32 %v3324, %v3337
  %v3339 = vpop.f32.mrf.mxu0
  %v3340 = vadd.f32 %v3326, %v3339
  %3341 = vdwg.mxu0
  %3342 = vmatpush.bf16.msra.mxu0 0
  %3343 = vmatpush.bf16.msra.mxu0 0
  %3344 = vmatpush.bf16.msra.mxu0 0
  %3345 = vmatpush.bf16.msra.mxu0 0
  %3346 = vmatpush.bf16.msra.mxu0 0
  %3347 = vmatpush.bf16.msra.mxu0 0
  %3348 = vmatpush.bf16.msra.mxu0 %v496
  %3349 = vmatpush.bf16.msra.mxu0 %v492
  %3350 = vmatmul.bf16.gmra.mxu0 %v3270
  %v3351 = vpop.f32.mrf.mxu0
  %v3352 = vadd.f32 %v3338, %v3351
  %v3353 = vpop.f32.mrf.mxu0
  %v3354 = vadd.f32 %v3340, %v3353
  %3355 = vdwg.mxu0
  %3356 = vmatpush.bf16.msra.mxu0 %v457
  %3357 = vmatpush.bf16.msra.mxu0 %v453
  %3358 = vmatpush.bf16.msra.mxu0 %v449
  %3359 = vmatpush.bf16.msra.mxu0 %v445
  %3360 = vmatpush.bf16.msra.mxu0 %v441
  %3361 = vmatpush.bf16.msra.mxu0 %v437
  %3362 = vmatpush.bf16.msra.mxu0 %v433
  %3363 = vmatpush.bf16.msra.mxu0 %v429
  %3364 = vmatmul.bf16.gmra.mxu0 %v3252
  %v3365 = vpop.f32.mrf.mxu0
  %v3366 = vadd.f32 0.0, %v3365
  %v3367 = vpop.f32.mrf.mxu0
  %v3368 = vadd.f32 0.0, %v3367
  %3369 = vdwg.mxu0
  %3370 = vmatpush.bf16.msra.mxu0 %v489
  %3371 = vmatpush.bf16.msra.mxu0 %v485
  %3372 = vmatpush.bf16.msra.mxu0 %v481
  %3373 = vmatpush.bf16.msra.mxu0 %v477
  %3374 = vmatpush.bf16.msra.mxu0 %v473
  %3375 = vmatpush.bf16.msra.mxu0 %v469
  %3376 = vmatpush.bf16.msra.mxu0 %v465
  %3377 = vmatpush.bf16.msra.mxu0 %v461
  %3378 = vmatmul.bf16.gmra.mxu0 %v3259
  %v3379 = vpop.f32.mrf.mxu0
  %v3380 = vadd.f32 %v3366, %v3379
  %v3381 = vpop.f32.mrf.mxu0
  %v3382 = vadd.f32 %v3368, %v3381
  %3383 = vdwg.mxu0
  %3384 = vmatpush.bf16.msra.mxu0 0
  %3385 = vmatpush.bf16.msra.mxu0 0
  %3386 = vmatpush.bf16.msra.mxu0 0
  %3387 = vmatpush.bf16.msra.mxu0 0
  %3388 = vmatpush.bf16.msra.mxu0 0
  %3389 = vmatpush.bf16.msra.mxu0 0
  %3390 = vmatpush.bf16.msra.mxu0 %v497
  %3391 = vmatpush.bf16.msra.mxu0 %v493
  %3392 = vmatmul.bf16.gmra.mxu0 %v3270
  %v3393 = vpop.f32.mrf.mxu0
  %v3394 = vadd.f32 %v3380, %v3393
  %v3395 = vpop.f32.mrf.mxu0
  %v3396 = vadd.f32 %v3382, %v3395
  %3397 = vdwg.mxu0
  %3398 = vmatpush.bf16.msra.mxu0 %v458
  %3399 = vmatpush.bf16.msra.mxu0 %v454
  %3400 = vmatpush.bf16.msra.mxu0 %v450
  %3401 = vmatpush.bf16.msra.mxu0 %v446
  %3402 = vmatpush.bf16.msra.mxu0 %v442
  %3403 = vmatpush.bf16.msra.mxu0 %v438
  %3404 = vmatpush.bf16.msra.mxu0 %v434
  %3405 = vmatpush.bf16.msra.mxu0 %v430
  %3406 = vmatmul.bf16.gmra.mxu0 %v3252
  %v3407 = vpop.f32.mrf.mxu0
  %v3408 = vadd.f32 0.0, %v3407
  %v3409 = vpop.f32.mrf.mxu0
  %v3410 = vadd.f32 0.0, %v3409
  %3411 = vdwg.mxu0
  %3412 = vmatpush.bf16.msra.mxu0 %v490
  %3413 = vmatpush.bf16.msra.mxu0 %v486
  %3414 = vmatpush.bf16.msra.mxu0 %v482
  %3415 = vmatpush.bf16.msra.mxu0 %v478
  %3416 = vmatpush.bf16.msra.mxu0 %v474
  %3417 = vmatpush.bf16.msra.mxu0 %v470
  %3418 = vmatpush.bf16.msra.mxu0 %v466
  %3419 = vmatpush.bf16.msra.mxu0 %v462
  %3420 = vmatmul.bf16.gmra.mxu0 %v3259
  %v3421 = vpop.f32.mrf.mxu0
  %v3422 = vadd.f32 %v3408, %v3421
  %v3423 = vpop.f32.mrf.mxu0
  %v3424 = vadd.f32 %v3410, %v3423
  %3425 = vdwg.mxu0
  %3426 = vmatpush.bf16.msra.mxu0 0
  %3427 = vmatpush.bf16.msra.mxu0 0
  %3428 = vmatpush.bf16.msra.mxu0 0
  %3429 = vmatpush.bf16.msra.mxu0 0
  %3430 = vmatpush.bf16.msra.mxu0 0
  %3431 = vmatpush.bf16.msra.mxu0 0
  %3432 = vmatpush.bf16.msra.mxu0 %v498
  %3433 = vmatpush.bf16.msra.mxu0 %v494
  %3434 = vmatmul.bf16.gmra.mxu0 %v3270
  %v3435 = vpop.f32.mrf.mxu0
  %v3436 = vadd.f32 %v3422, %v3435
  %v3437 = vpop.f32.mrf.mxu0
  %v3438 = vadd.f32 %v3424, %v3437
  %3439 = vdwg.mxu0
  %v3442 = vunpack.c.l.b16 %v3229
  %v3443 = vunpack.c.h.b16 %v3229
  %v3444 = vunpack.c.l.b16 %v3230
  %v3445 = vpack.c.b16 %v3442, %v3237
  %v3446 = vpack.c.b16 %v3443, %v3238
  %v3447 = vpack.c.b16 %v3444, %v3239
  %v3451 = vsel %vm571, %v3447, 0
  %3453 = vmatpush.bf16.msra.mxu0 %v997
  %3454 = vmatpush.bf16.msra.mxu0 %v993
  %3455 = vmatpush.bf16.msra.mxu0 %v989
  %3456 = vmatpush.bf16.msra.mxu0 %v985
  %3457 = vmatpush.bf16.msra.mxu0 %v981
  %3458 = vmatpush.bf16.msra.mxu0 %v977
  %3459 = vmatpush.bf16.msra.mxu0 %v973
  %3460 = vmatpush.bf16.msra.mxu0 %v969
  %3461 = vmatmul.bf16.gmra.mxu0 %v3445
  %v3462 = vpop.f32.mrf.mxu0
  %v3463 = vadd.f32 %v3310, %v3462
  %v3464 = vpop.f32.mrf.mxu0
  %v3465 = vadd.f32 %v3312, %v3464
  %3466 = vdwg.mxu0
  %3467 = vmatpush.bf16.msra.mxu0 %v1029
  %3468 = vmatpush.bf16.msra.mxu0 %v1025
  %3469 = vmatpush.bf16.msra.mxu0 %v1021
  %3470 = vmatpush.bf16.msra.mxu0 %v1017
  %3471 = vmatpush.bf16.msra.mxu0 %v1013
  %3472 = vmatpush.bf16.msra.mxu0 %v1009
  %3473 = vmatpush.bf16.msra.mxu0 %v1005
  %3474 = vmatpush.bf16.msra.mxu0 %v1001
  %3475 = vmatmul.bf16.gmra.mxu0 %v3446
  %v3476 = vpop.f32.mrf.mxu0
  %v3477 = vadd.f32 %v3463, %v3476
  %v3478 = vpop.f32.mrf.mxu0
  %v3479 = vadd.f32 %v3465, %v3478
  %3480 = vdwg.mxu0
  %3481 = vmatpush.bf16.msra.mxu0 0
  %3482 = vmatpush.bf16.msra.mxu0 0
  %3483 = vmatpush.bf16.msra.mxu0 0
  %3484 = vmatpush.bf16.msra.mxu0 0
  %3485 = vmatpush.bf16.msra.mxu0 0
  %3486 = vmatpush.bf16.msra.mxu0 0
  %3487 = vmatpush.bf16.msra.mxu0 %v1037
  %3488 = vmatpush.bf16.msra.mxu0 %v1033
  %3489 = vmatmul.bf16.gmra.mxu0 %v3451
  %v3490 = vpop.f32.mrf.mxu0
  %v3491 = vadd.f32 %v3477, %v3490
  %v3492 = vpop.f32.mrf.mxu0
  %v3493 = vadd.f32 %v3479, %v3492
  %3494 = vdwg.mxu0
  %3495 = vmatpush.bf16.msra.mxu0 %v998
  %3496 = vmatpush.bf16.msra.mxu0 %v994
  %3497 = vmatpush.bf16.msra.mxu0 %v990
  %3498 = vmatpush.bf16.msra.mxu0 %v986
  %3499 = vmatpush.bf16.msra.mxu0 %v982
  %3500 = vmatpush.bf16.msra.mxu0 %v978
  %3501 = vmatpush.bf16.msra.mxu0 %v974
  %3502 = vmatpush.bf16.msra.mxu0 %v970
  %3503 = vmatmul.bf16.gmra.mxu0 %v3445
  %v3504 = vpop.f32.mrf.mxu0
  %v3505 = vadd.f32 %v3352, %v3504
  %v3506 = vpop.f32.mrf.mxu0
  %v3507 = vadd.f32 %v3354, %v3506
  %3508 = vdwg.mxu0
  %3509 = vmatpush.bf16.msra.mxu0 %v1030
  %3510 = vmatpush.bf16.msra.mxu0 %v1026
  %3511 = vmatpush.bf16.msra.mxu0 %v1022
  %3512 = vmatpush.bf16.msra.mxu0 %v1018
  %3513 = vmatpush.bf16.msra.mxu0 %v1014
  %3514 = vmatpush.bf16.msra.mxu0 %v1010
  %3515 = vmatpush.bf16.msra.mxu0 %v1006
  %3516 = vmatpush.bf16.msra.mxu0 %v1002
  %3517 = vmatmul.bf16.gmra.mxu0 %v3446
  %v3518 = vpop.f32.mrf.mxu0
  %v3519 = vadd.f32 %v3505, %v3518
  %v3520 = vpop.f32.mrf.mxu0
  %v3521 = vadd.f32 %v3507, %v3520
  %3522 = vdwg.mxu0
  %3523 = vmatpush.bf16.msra.mxu0 0
  %3524 = vmatpush.bf16.msra.mxu0 0
  %3525 = vmatpush.bf16.msra.mxu0 0
  %3526 = vmatpush.bf16.msra.mxu0 0
  %3527 = vmatpush.bf16.msra.mxu0 0
  %3528 = vmatpush.bf16.msra.mxu0 0
  %3529 = vmatpush.bf16.msra.mxu0 %v1038
  %3530 = vmatpush.bf16.msra.mxu0 %v1034
  %3531 = vmatmul.bf16.gmra.mxu0 %v3451
  %v3532 = vpop.f32.mrf.mxu0
  %v3533 = vadd.f32 %v3519, %v3532
  %v3534 = vpop.f32.mrf.mxu0
  %v3535 = vadd.f32 %v3521, %v3534
  %3536 = vdwg.mxu0
  %3537 = vmatpush.bf16.msra.mxu0 %v999
  %3538 = vmatpush.bf16.msra.mxu0 %v995
  %3539 = vmatpush.bf16.msra.mxu0 %v991
  %3540 = vmatpush.bf16.msra.mxu0 %v987
  %3541 = vmatpush.bf16.msra.mxu0 %v983
  %3542 = vmatpush.bf16.msra.mxu0 %v979
  %3543 = vmatpush.bf16.msra.mxu0 %v975
  %3544 = vmatpush.bf16.msra.mxu0 %v971
  %3545 = vmatmul.bf16.gmra.mxu0 %v3445
  %v3546 = vpop.f32.mrf.mxu0
  %v3547 = vadd.f32 %v3394, %v3546
  %v3548 = vpop.f32.mrf.mxu0
  %v3549 = vadd.f32 %v3396, %v3548
  %3550 = vdwg.mxu0
  %3551 = vmatpush.bf16.msra.mxu0 %v1031
  %3552 = vmatpush.bf16.msra.mxu0 %v1027
  %3553 = vmatpush.bf16.msra.mxu0 %v1023
  %3554 = vmatpush.bf16.msra.mxu0 %v1019
  %3555 = vmatpush.bf16.msra.mxu0 %v1015
  %3556 = vmatpush.bf16.msra.mxu0 %v1011
  %3557 = vmatpush.bf16.msra.mxu0 %v1007
  %3558 = vmatpush.bf16.msra.mxu0 %v1003
  %3559 = vmatmul.bf16.gmra.mxu0 %v3446
  %v3560 = vpop.f32.mrf.mxu0
  %v3561 = vadd.f32 %v3547, %v3560
  %v3562 = vpop.f32.mrf.mxu0
  %v3563 = vadd.f32 %v3549, %v3562
  %3564 = vdwg.mxu0
  %3565 = vmatpush.bf16.msra.mxu0 0
  %3566 = vmatpush.bf16.msra.mxu0 0
  %3567 = vmatpush.bf16.msra.mxu0 0
  %3568 = vmatpush.bf16.msra.mxu0 0
  %3569 = vmatpush.bf16.msra.mxu0 0
  %3570 = vmatpush.bf16.msra.mxu0 0
  %3571 = vmatpush.bf16.msra.mxu0 %v1039
  %3572 = vmatpush.bf16.msra.mxu0 %v1035
  %3573 = vmatmul.bf16.gmra.mxu0 %v3451
  %v3574 = vpop.f32.mrf.mxu0
  %v3575 = vadd.f32 %v3561, %v3574
  %v3576 = vpop.f32.mrf.mxu0
  %v3577 = vadd.f32 %v3563, %v3576
  %3578 = vdwg.mxu0
  %3579 = vmatpush.bf16.msra.mxu0 %v1000
  %3580 = vmatpush.bf16.msra.mxu0 %v996
  %3581 = vmatpush.bf16.msra.mxu0 %v992
  %3582 = vmatpush.bf16.msra.mxu0 %v988
  %3583 = vmatpush.bf16.msra.mxu0 %v984
  %3584 = vmatpush.bf16.msra.mxu0 %v980
  %3585 = vmatpush.bf16.msra.mxu0 %v976
  %3586 = vmatpush.bf16.msra.mxu0 %v972
  %3587 = vmatmul.bf16.gmra.mxu0 %v3445
  %v3588 = vpop.f32.mrf.mxu0
  %v3589 = vadd.f32 %v3436, %v3588
  %v3590 = vpop.f32.mrf.mxu0
  %v3591 = vadd.f32 %v3438, %v3590
  %3592 = vdwg.mxu0
  %3593 = vmatpush.bf16.msra.mxu0 %v1032
  %3594 = vmatpush.bf16.msra.mxu0 %v1028
  %3595 = vmatpush.bf16.msra.mxu0 %v1024
  %3596 = vmatpush.bf16.msra.mxu0 %v1020
  %3597 = vmatpush.bf16.msra.mxu0 %v1016
  %3598 = vmatpush.bf16.msra.mxu0 %v1012
  %3599 = vmatpush.bf16.msra.mxu0 %v1008
  %3600 = vmatpush.bf16.msra.mxu0 %v1004
  %3601 = vmatmul.bf16.gmra.mxu0 %v3446
  %v3602 = vpop.f32.mrf.mxu0
  %v3603 = vadd.f32 %v3589, %v3602
  %v3604 = vpop.f32.mrf.mxu0
  %v3605 = vadd.f32 %v3591, %v3604
  %3606 = vdwg.mxu0
  %3607 = vmatpush.bf16.msra.mxu0 0
  %3608 = vmatpush.bf16.msra.mxu0 0
  %3609 = vmatpush.bf16.msra.mxu0 0
  %3610 = vmatpush.bf16.msra.mxu0 0
  %3611 = vmatpush.bf16.msra.mxu0 0
  %3612 = vmatpush.bf16.msra.mxu0 0
  %3613 = vmatpush.bf16.msra.mxu0 %v1040
  %3614 = vmatpush.bf16.msra.mxu0 %v1036
  %3615 = vmatmul.bf16.gmra.mxu0 %v3451
  %v3616 = vpop.f32.mrf.mxu0
  %v3617 = vadd.f32 %v3603, %v3616
  %v3618 = vpop.f32.mrf.mxu0
  %v3619 = vadd.f32 %v3605, %v3618
  %3620 = vdwg.mxu0
  %v3621 = vld [vmem:[%s3226] sm:$0xee]
  %v3622 = vld [vmem:[%s3226 + $0x8] sm:$0xe]
  %v3625 = vunpack.c.l.b16 %v3621
  %v3626 = vunpack.c.h.b16 %v3621
  %v3627 = vunpack.c.l.b16 %v3622
  %v3628 = vpack.c.b16 %v3240, %v3625
  %v3629 = vpack.c.b16 %v3241, %v3626
  %v3630 = vpack.c.b16 %v3242, %v3627
  %v3631 = vrot.slane %v3628, 1
  %v3632 = vrot.slane %v3629, 1
  %v3633 = vrot.slane %v3630, 1
  %v3637 = vsel %vm571, %v3633, 0
  %3639 = vmatpush.bf16.msra.mxu0 %v1616
  %3640 = vmatpush.bf16.msra.mxu0 %v1612
  %3641 = vmatpush.bf16.msra.mxu0 %v1608
  %3642 = vmatpush.bf16.msra.mxu0 %v1604
  %3643 = vmatpush.bf16.msra.mxu0 %v1600
  %3644 = vmatpush.bf16.msra.mxu0 %v1596
  %3645 = vmatpush.bf16.msra.mxu0 %v1592
  %3646 = vmatpush.bf16.msra.mxu0 %v1588
  %3647 = vmatmul.bf16.gmra.mxu0 %v3631
  %v3648 = vpop.f32.mrf.mxu0
  %v3649 = vadd.f32 0.0, %v3648
  %v3650 = vpop.f32.mrf.mxu0
  %v3651 = vadd.f32 0.0, %v3650
  %3652 = vdwg.mxu0
  %3653 = vmatpush.bf16.msra.mxu0 %v1648
  %3654 = vmatpush.bf16.msra.mxu0 %v1644
  %3655 = vmatpush.bf16.msra.mxu0 %v1640
  %3656 = vmatpush.bf16.msra.mxu0 %v1636
  %3657 = vmatpush.bf16.msra.mxu0 %v1632
  %3658 = vmatpush.bf16.msra.mxu0 %v1628
  %3659 = vmatpush.bf16.msra.mxu0 %v1624
  %3660 = vmatpush.bf16.msra.mxu0 %v1620
  %3661 = vmatmul.bf16.gmra.mxu0 %v3632
  %v3662 = vpop.f32.mrf.mxu0
  %v3663 = vadd.f32 %v3649, %v3662
  %v3664 = vpop.f32.mrf.mxu0
  %v3665 = vadd.f32 %v3651, %v3664
  %3666 = vdwg.mxu0
  %3667 = vmatpush.bf16.msra.mxu0 0
  %3668 = vmatpush.bf16.msra.mxu0 0
  %3669 = vmatpush.bf16.msra.mxu0 0
  %3670 = vmatpush.bf16.msra.mxu0 0
  %3671 = vmatpush.bf16.msra.mxu0 0
  %3672 = vmatpush.bf16.msra.mxu0 0
  %3673 = vmatpush.bf16.msra.mxu0 %v1656
  %3674 = vmatpush.bf16.msra.mxu0 %v1652
  %3675 = vmatmul.bf16.gmra.mxu0 %v3637
  %v3676 = vpop.f32.mrf.mxu0
  %v3677 = vadd.f32 %v3663, %v3676
  %v3678 = vpop.f32.mrf.mxu0
  %v3679 = vadd.f32 %v3665, %v3678
  %3680 = vdwg.mxu0
  %3681 = vmatpush.bf16.msra.mxu0 %v1617
  %3682 = vmatpush.bf16.msra.mxu0 %v1613
  %3683 = vmatpush.bf16.msra.mxu0 %v1609
  %3684 = vmatpush.bf16.msra.mxu0 %v1605
  %3685 = vmatpush.bf16.msra.mxu0 %v1601
  %3686 = vmatpush.bf16.msra.mxu0 %v1597
  %3687 = vmatpush.bf16.msra.mxu0 %v1593
  %3688 = vmatpush.bf16.msra.mxu0 %v1589
  %3689 = vmatmul.bf16.gmra.mxu0 %v3631
  %v3690 = vpop.f32.mrf.mxu0
  %v3691 = vadd.f32 0.0, %v3690
  %v3692 = vpop.f32.mrf.mxu0
  %v3693 = vadd.f32 0.0, %v3692
  %3694 = vdwg.mxu0
  %3695 = vmatpush.bf16.msra.mxu0 %v1649
  %3696 = vmatpush.bf16.msra.mxu0 %v1645
  %3697 = vmatpush.bf16.msra.mxu0 %v1641
  %3698 = vmatpush.bf16.msra.mxu0 %v1637
  %3699 = vmatpush.bf16.msra.mxu0 %v1633
  %3700 = vmatpush.bf16.msra.mxu0 %v1629
  %3701 = vmatpush.bf16.msra.mxu0 %v1625
  %3702 = vmatpush.bf16.msra.mxu0 %v1621
  %3703 = vmatmul.bf16.gmra.mxu0 %v3632
  %v3704 = vpop.f32.mrf.mxu0
  %v3705 = vadd.f32 %v3691, %v3704
  %v3706 = vpop.f32.mrf.mxu0
  %v3707 = vadd.f32 %v3693, %v3706
  %3708 = vdwg.mxu0
  %3709 = vmatpush.bf16.msra.mxu0 0
  %3710 = vmatpush.bf16.msra.mxu0 0
  %3711 = vmatpush.bf16.msra.mxu0 0
  %3712 = vmatpush.bf16.msra.mxu0 0
  %3713 = vmatpush.bf16.msra.mxu0 0
  %3714 = vmatpush.bf16.msra.mxu0 0
  %3715 = vmatpush.bf16.msra.mxu0 %v1657
  %3716 = vmatpush.bf16.msra.mxu0 %v1653
  %3717 = vmatmul.bf16.gmra.mxu0 %v3637
  %v3718 = vpop.f32.mrf.mxu0
  %v3719 = vadd.f32 %v3705, %v3718
  %v3720 = vpop.f32.mrf.mxu0
  %v3721 = vadd.f32 %v3707, %v3720
  %3722 = vdwg.mxu0
  %3723 = vmatpush.bf16.msra.mxu0 %v1618
  %3724 = vmatpush.bf16.msra.mxu0 %v1614
  %3725 = vmatpush.bf16.msra.mxu0 %v1610
  %3726 = vmatpush.bf16.msra.mxu0 %v1606
  %3727 = vmatpush.bf16.msra.mxu0 %v1602
  %3728 = vmatpush.bf16.msra.mxu0 %v1598
  %3729 = vmatpush.bf16.msra.mxu0 %v1594
  %3730 = vmatpush.bf16.msra.mxu0 %v1590
  %3731 = vmatmul.bf16.gmra.mxu0 %v3631
  %v3732 = vpop.f32.mrf.mxu0
  %v3733 = vadd.f32 0.0, %v3732
  %v3734 = vpop.f32.mrf.mxu0
  %v3735 = vadd.f32 0.0, %v3734
  %3736 = vdwg.mxu0
  %3737 = vmatpush.bf16.msra.mxu0 %v1650
  %3738 = vmatpush.bf16.msra.mxu0 %v1646
  %3739 = vmatpush.bf16.msra.mxu0 %v1642
  %3740 = vmatpush.bf16.msra.mxu0 %v1638
  %3741 = vmatpush.bf16.msra.mxu0 %v1634
  %3742 = vmatpush.bf16.msra.mxu0 %v1630
  %3743 = vmatpush.bf16.msra.mxu0 %v1626
  %3744 = vmatpush.bf16.msra.mxu0 %v1622
  %3745 = vmatmul.bf16.gmra.mxu0 %v3632
  %v3746 = vpop.f32.mrf.mxu0
  %v3747 = vadd.f32 %v3733, %v3746
  %v3748 = vpop.f32.mrf.mxu0
  %v3749 = vadd.f32 %v3735, %v3748
  %3750 = vdwg.mxu0
  %3751 = vmatpush.bf16.msra.mxu0 0
  %3752 = vmatpush.bf16.msra.mxu0 0
  %3753 = vmatpush.bf16.msra.mxu0 0
  %3754 = vmatpush.bf16.msra.mxu0 0
  %3755 = vmatpush.bf16.msra.mxu0 0
  %3756 = vmatpush.bf16.msra.mxu0 0
  %3757 = vmatpush.bf16.msra.mxu0 %v1658
  %3758 = vmatpush.bf16.msra.mxu0 %v1654
  %3759 = vmatmul.bf16.gmra.mxu0 %v3637
  %v3760 = vpop.f32.mrf.mxu0
  %v3761 = vadd.f32 %v3747, %v3760
  %v3762 = vpop.f32.mrf.mxu0
  %v3763 = vadd.f32 %v3749, %v3762
  %3764 = vdwg.mxu0
  %3765 = vmatpush.bf16.msra.mxu0 %v1619
  %3766 = vmatpush.bf16.msra.mxu0 %v1615
  %3767 = vmatpush.bf16.msra.mxu0 %v1611
  %3768 = vmatpush.bf16.msra.mxu0 %v1607
  %3769 = vmatpush.bf16.msra.mxu0 %v1603
  %3770 = vmatpush.bf16.msra.mxu0 %v1599
  %3771 = vmatpush.bf16.msra.mxu0 %v1595
  %3772 = vmatpush.bf16.msra.mxu0 %v1591
  %3773 = vmatmul.bf16.gmra.mxu0 %v3631
  %v3774 = vpop.f32.mrf.mxu0
  %v3775 = vadd.f32 0.0, %v3774
  %v3776 = vpop.f32.mrf.mxu0
  %v3777 = vadd.f32 0.0, %v3776
  %3778 = vdwg.mxu0
  %3779 = vmatpush.bf16.msra.mxu0 %v1651
  %3780 = vmatpush.bf16.msra.mxu0 %v1647
  %3781 = vmatpush.bf16.msra.mxu0 %v1643
  %3782 = vmatpush.bf16.msra.mxu0 %v1639
  %3783 = vmatpush.bf16.msra.mxu0 %v1635
  %3784 = vmatpush.bf16.msra.mxu0 %v1631
  %3785 = vmatpush.bf16.msra.mxu0 %v1627
  %3786 = vmatpush.bf16.msra.mxu0 %v1623
  %3787 = vmatmul.bf16.gmra.mxu0 %v3632
  %v3788 = vpop.f32.mrf.mxu0
  %v3789 = vadd.f32 %v3775, %v3788
  %v3790 = vpop.f32.mrf.mxu0
  %v3791 = vadd.f32 %v3777, %v3790
  %3792 = vdwg.mxu0
  %3793 = vmatpush.bf16.msra.mxu0 0
  %3794 = vmatpush.bf16.msra.mxu0 0
  %3795 = vmatpush.bf16.msra.mxu0 0
  %3796 = vmatpush.bf16.msra.mxu0 0
  %3797 = vmatpush.bf16.msra.mxu0 0
  %3798 = vmatpush.bf16.msra.mxu0 0
  %3799 = vmatpush.bf16.msra.mxu0 %v1659
  %3800 = vmatpush.bf16.msra.mxu0 %v1655
  %3801 = vmatmul.bf16.gmra.mxu0 %v3637
  %v3802 = vpop.f32.mrf.mxu0
  %v3803 = vadd.f32 %v3789, %v3802
  %v3804 = vpop.f32.mrf.mxu0
  %v3805 = vadd.f32 %v3791, %v3804
  %3806 = vdwg.mxu0
  %v3807 = vadd.f32 %v3491, %v3677
  %v3808 = vadd.f32 %v3533, %v3719
  %v3809 = vadd.f32 %v3575, %v3761
  %v3810 = vadd.f32 %v3617, %v3803
  %v3811 = vadd.f32 %v3493, %v3679
  %v3812 = vadd.f32 %v3535, %v3721
  %v3813 = vadd.f32 %v3577, %v3763
  %v3814 = vadd.f32 %v3619, %v3805
  %v3815 = vld [vmem:[%s3226] sm:$0xee]
  %v3816 = vld [vmem:[%s3226 + $0x8] sm:$0xe]
  %v3817 = vld [vmem:[%s3226 + $0xc] sm:$0xff]
  %v3818 = vld [vmem:[%s3226 + $0x14] sm:$0xf]
  %v3819 = vld [vmem:[%s3226 + $0x18] sm:$0x11]
  %v3820 = vld [vmem:[%s3226 + $0x20] sm:$0x1]
  %v3827 = vunpack.c.l.b16 %v3815
  %v3828 = vunpack.c.h.b16 %v3815
  %v3829 = vunpack.c.l.b16 %v3816
  %v3830 = vunpack.c.l.b16 %v3817
  %v3831 = vunpack.c.h.b16 %v3817
  %v3832 = vunpack.c.l.b16 %v3818
  %v3833 = vunpack.c.l.b16 %v3819
  %v3834 = vunpack.c.h.b16 %v3819
  %v3835 = vunpack.c.l.b16 %v3820
  %v3836 = vpack.c.b16 %v3830, %v3827
  %v3837 = vpack.c.b16 %v3831, %v3828
  %v3838 = vpack.c.b16 %v3832, %v3829
  %v3839 = vpack.c.b16 %v3833, %v3833
  %v3840 = vpack.c.b16 %v3834, %v3834
  %v3841 = vpack.c.b16 %v3835, %v3835
  %v3843 = vshrl.u32 %v3836, 16
  %v3845 = vrot.slane %v3843, 1
  %v3846 = vshll.u32 %v3836, 16
  %v3848 = vrot.slane %v3846, 2
  %v3849 = vor.u32 %v3845, %v3848
  %v3851 = vshll.u32 %v3839, 16
  %v3853 = vrot.slane %v3851, 2
  %v3854 = vsel %vm2011, %v3849, %v3853
  %v3856 = vshrl.u32 %v3837, 16
  %v3858 = vrot.slane %v3856, 1
  %v3859 = vshll.u32 %v3837, 16
  %v3861 = vrot.slane %v3859, 2
  %v3862 = vor.u32 %v3858, %v3861
  %v3864 = vshll.u32 %v3840, 16
  %v3866 = vrot.slane %v3864, 2
  %v3867 = vsel %vm2011, %v3862, %v3866
  %v3869 = vshrl.u32 %v3838, 16
  %v3871 = vrot.slane %v3869, 1
  %v3872 = vshll.u32 %v3838, 16
  %v3874 = vrot.slane %v3872, 2
  %v3875 = vor.u32 %v3871, %v3874
  %v3877 = vshll.u32 %v3841, 16
  %v3879 = vrot.slane %v3877, 2
  %v3880 = vsel %vm2011, %v3875, %v3879
  %v3884 = vsel %vm571, %v3880, 0
  %3886 = vmatpush.bf16.msra.mxu0 %v2297
  %3887 = vmatpush.bf16.msra.mxu0 %v2293
  %3888 = vmatpush.bf16.msra.mxu0 %v2289
  %3889 = vmatpush.bf16.msra.mxu0 %v2285
  %3890 = vmatpush.bf16.msra.mxu0 %v2281
  %3891 = vmatpush.bf16.msra.mxu0 %v2277
  %3892 = vmatpush.bf16.msra.mxu0 %v2273
  %3893 = vmatpush.bf16.msra.mxu0 %v2269
  %3894 = vmatmul.bf16.gmra.mxu0 %v3854
  %v3895 = vpop.f32.mrf.mxu0
  %v3896 = vadd.f32 0.0, %v3895
  %v3897 = vpop.f32.mrf.mxu0
  %v3898 = vadd.f32 0.0, %v3897
  %3899 = vdwg.mxu0
  %3900 = vmatpush.bf16.msra.mxu0 %v2329
  %3901 = vmatpush.bf16.msra.mxu0 %v2325
  %3902 = vmatpush.bf16.msra.mxu0 %v2321
  %3903 = vmatpush.bf16.msra.mxu0 %v2317
  %3904 = vmatpush.bf16.msra.mxu0 %v2313
  %3905 = vmatpush.bf16.msra.mxu0 %v2309
  %3906 = vmatpush.bf16.msra.mxu0 %v2305
  %3907 = vmatpush.bf16.msra.mxu0 %v2301
  %3908 = vmatmul.bf16.gmra.mxu0 %v3867
  %v3909 = vpop.f32.mrf.mxu0
  %v3910 = vadd.f32 %v3896, %v3909
  %v3911 = vpop.f32.mrf.mxu0
  %v3912 = vadd.f32 %v3898, %v3911
  %3913 = vdwg.mxu0
  %3914 = vmatpush.bf16.msra.mxu0 0
  %3915 = vmatpush.bf16.msra.mxu0 0
  %3916 = vmatpush.bf16.msra.mxu0 0
  %3917 = vmatpush.bf16.msra.mxu0 0
  %3918 = vmatpush.bf16.msra.mxu0 0
  %3919 = vmatpush.bf16.msra.mxu0 0
  %3920 = vmatpush.bf16.msra.mxu0 %v2337
  %3921 = vmatpush.bf16.msra.mxu0 %v2333
  %3922 = vmatmul.bf16.gmra.mxu0 %v3884
  %v3923 = vpop.f32.mrf.mxu0
  %v3924 = vadd.f32 %v3910, %v3923
  %v3925 = vpop.f32.mrf.mxu0
  %v3926 = vadd.f32 %v3912, %v3925
  %3927 = vdwg.mxu0
  %3928 = vmatpush.bf16.msra.mxu0 %v2298
  %3929 = vmatpush.bf16.msra.mxu0 %v2294
  %3930 = vmatpush.bf16.msra.mxu0 %v2290
  %3931 = vmatpush.bf16.msra.mxu0 %v2286
  %3932 = vmatpush.bf16.msra.mxu0 %v2282
  %3933 = vmatpush.bf16.msra.mxu0 %v2278
  %3934 = vmatpush.bf16.msra.mxu0 %v2274
  %3935 = vmatpush.bf16.msra.mxu0 %v2270
  %3936 = vmatmul.bf16.gmra.mxu0 %v3854
  %v3937 = vpop.f32.mrf.mxu0
  %v3938 = vadd.f32 0.0, %v3937
  %v3939 = vpop.f32.mrf.mxu0
  %v3940 = vadd.f32 0.0, %v3939
  %3941 = vdwg.mxu0
  %3942 = vmatpush.bf16.msra.mxu0 %v2330
  %3943 = vmatpush.bf16.msra.mxu0 %v2326
  %3944 = vmatpush.bf16.msra.mxu0 %v2322
  %3945 = vmatpush.bf16.msra.mxu0 %v2318
  %3946 = vmatpush.bf16.msra.mxu0 %v2314
  %3947 = vmatpush.bf16.msra.mxu0 %v2310
  %3948 = vmatpush.bf16.msra.mxu0 %v2306
  %3949 = vmatpush.bf16.msra.mxu0 %v2302
  %3950 = vmatmul.bf16.gmra.mxu0 %v3867
  %v3951 = vpop.f32.mrf.mxu0
  %v3952 = vadd.f32 %v3938, %v3951
  %v3953 = vpop.f32.mrf.mxu0
  %v3954 = vadd.f32 %v3940, %v3953
  %3955 = vdwg.mxu0
  %3956 = vmatpush.bf16.msra.mxu0 0
  %3957 = vmatpush.bf16.msra.mxu0 0
  %3958 = vmatpush.bf16.msra.mxu0 0
  %3959 = vmatpush.bf16.msra.mxu0 0
  %3960 = vmatpush.bf16.msra.mxu0 0
  %3961 = vmatpush.bf16.msra.mxu0 0
  %3962 = vmatpush.bf16.msra.mxu0 %v2338
  %3963 = vmatpush.bf16.msra.mxu0 %v2334
  %3964 = vmatmul.bf16.gmra.mxu0 %v3884
  %v3965 = vpop.f32.mrf.mxu0
  %v3966 = vadd.f32 %v3952, %v3965
  %v3967 = vpop.f32.mrf.mxu0
  %v3968 = vadd.f32 %v3954, %v3967
  %3969 = vdwg.mxu0
  %3970 = vmatpush.bf16.msra.mxu0 %v2299
  %3971 = vmatpush.bf16.msra.mxu0 %v2295
  %3972 = vmatpush.bf16.msra.mxu0 %v2291
  %3973 = vmatpush.bf16.msra.mxu0 %v2287
  %3974 = vmatpush.bf16.msra.mxu0 %v2283
  %3975 = vmatpush.bf16.msra.mxu0 %v2279
  %3976 = vmatpush.bf16.msra.mxu0 %v2275
  %3977 = vmatpush.bf16.msra.mxu0 %v2271
  %3978 = vmatmul.bf16.gmra.mxu0 %v3854
  %v3979 = vpop.f32.mrf.mxu0
  %v3980 = vadd.f32 0.0, %v3979
  %v3981 = vpop.f32.mrf.mxu0
  %v3982 = vadd.f32 0.0, %v3981
  %3983 = vdwg.mxu0
  %3984 = vmatpush.bf16.msra.mxu0 %v2331
  %3985 = vmatpush.bf16.msra.mxu0 %v2327
  %3986 = vmatpush.bf16.msra.mxu0 %v2323
  %3987 = vmatpush.bf16.msra.mxu0 %v2319
  %3988 = vmatpush.bf16.msra.mxu0 %v2315
  %3989 = vmatpush.bf16.msra.mxu0 %v2311
  %3990 = vmatpush.bf16.msra.mxu0 %v2307
  %3991 = vmatpush.bf16.msra.mxu0 %v2303
  %3992 = vmatmul.bf16.gmra.mxu0 %v3867
  %v3993 = vpop.f32.mrf.mxu0
  %v3994 = vadd.f32 %v3980, %v3993
  %v3995 = vpop.f32.mrf.mxu0
  %v3996 = vadd.f32 %v3982, %v3995
  %3997 = vdwg.mxu0
  %3998 = vmatpush.bf16.msra.mxu0 0
  %3999 = vmatpush.bf16.msra.mxu0 0
  %4000 = vmatpush.bf16.msra.mxu0 0
  %4001 = vmatpush.bf16.msra.mxu0 0
  %4002 = vmatpush.bf16.msra.mxu0 0
  %4003 = vmatpush.bf16.msra.mxu0 0
  %4004 = vmatpush.bf16.msra.mxu0 %v2339
  %4005 = vmatpush.bf16.msra.mxu0 %v2335
  %4006 = vmatmul.bf16.gmra.mxu0 %v3884
  %v4007 = vpop.f32.mrf.mxu0
  %v4008 = vadd.f32 %v3994, %v4007
  %v4009 = vpop.f32.mrf.mxu0
  %v4010 = vadd.f32 %v3996, %v4009
  %4011 = vdwg.mxu0
  %4012 = vmatpush.bf16.msra.mxu0 %v2300
  %4013 = vmatpush.bf16.msra.mxu0 %v2296
  %4014 = vmatpush.bf16.msra.mxu0 %v2292
  %4015 = vmatpush.bf16.msra.mxu0 %v2288
  %4016 = vmatpush.bf16.msra.mxu0 %v2284
  %4017 = vmatpush.bf16.msra.mxu0 %v2280
  %4018 = vmatpush.bf16.msra.mxu0 %v2276
  %4019 = vmatpush.bf16.msra.mxu0 %v2272
  %4020 = vmatmul.bf16.gmra.mxu0 %v3854
  %v4021 = vpop.f32.mrf.mxu0
  %v4022 = vadd.f32 0.0, %v4021
  %v4023 = vpop.f32.mrf.mxu0
  %v4024 = vadd.f32 0.0, %v4023
  %4025 = vdwg.mxu0
  %4026 = vmatpush.bf16.msra.mxu0 %v2332
  %4027 = vmatpush.bf16.msra.mxu0 %v2328
  %4028 = vmatpush.bf16.msra.mxu0 %v2324
  %4029 = vmatpush.bf16.msra.mxu0 %v2320
  %4030 = vmatpush.bf16.msra.mxu0 %v2316
  %4031 = vmatpush.bf16.msra.mxu0 %v2312
  %4032 = vmatpush.bf16.msra.mxu0 %v2308
  %4033 = vmatpush.bf16.msra.mxu0 %v2304
  %4034 = vmatmul.bf16.gmra.mxu0 %v3867
  %v4035 = vpop.f32.mrf.mxu0
  %v4036 = vadd.f32 %v4022, %v4035
  %v4037 = vpop.f32.mrf.mxu0
  %v4038 = vadd.f32 %v4024, %v4037
  %4039 = vdwg.mxu0
  %4040 = vmatpush.bf16.msra.mxu0 0
  %4041 = vmatpush.bf16.msra.mxu0 0
  %4042 = vmatpush.bf16.msra.mxu0 0
  %4043 = vmatpush.bf16.msra.mxu0 0
  %4044 = vmatpush.bf16.msra.mxu0 0
  %4045 = vmatpush.bf16.msra.mxu0 0
  %4046 = vmatpush.bf16.msra.mxu0 %v2340
  %4047 = vmatpush.bf16.msra.mxu0 %v2336
  %4048 = vmatmul.bf16.gmra.mxu0 %v3884
  %v4049 = vpop.f32.mrf.mxu0
  %v4050 = vadd.f32 %v4036, %v4049
  %v4051 = vpop.f32.mrf.mxu0
  %v4052 = vadd.f32 %v4038, %v4051
  %4053 = vdwg.mxu0
  %v4054 = vadd.f32 %v3807, %v3924
  %v4055 = vadd.f32 %v3808, %v3966
  %v4056 = vadd.f32 %v3809, %v4008
  %v4057 = vadd.f32 %v3810, %v4050
  %v4058 = vadd.f32 %v3811, %v3926
  %v4059 = vadd.f32 %v3812, %v3968
  %v4060 = vadd.f32 %v3813, %v4010
  %v4061 = vadd.f32 %v3814, %v4052
  %v4062 = vld [vmem:[%s3226] sm:$0xcc]
  %v4063 = vld [vmem:[%s3226 + $0x8] sm:$0xc]
  %v4066 = vunpack.c.l.b16 %v4062
  %v4067 = vunpack.c.h.b16 %v4062
  %v4068 = vunpack.c.l.b16 %v4063
  %v4069 = vpack.c.b16 %v3830, %v4066
  %v4070 = vpack.c.b16 %v3831, %v4067
  %v4071 = vpack.c.b16 %v3832, %v4068
  %v4072 = vrot.slane %v4069, 2
  %v4073 = vrot.slane %v3839, 2
  %v4074 = vsel %vm2675, %v4072, %v4073
  %v4075 = vrot.slane %v4070, 2
  %v4076 = vrot.slane %v3840, 2
  %v4077 = vsel %vm2675, %v4075, %v4076
  %v4078 = vrot.slane %v4071, 2
  %v4079 = vrot.slane %v3841, 2
  %v4080 = vsel %vm2675, %v4078, %v4079
  %v4084 = vsel %vm571, %v4080, 0
  %4086 = vmatpush.bf16.msra.mxu0 %v2931
  %4087 = vmatpush.bf16.msra.mxu0 %v2927
  %4088 = vmatpush.bf16.msra.mxu0 %v2923
  %4089 = vmatpush.bf16.msra.mxu0 %v2919
  %4090 = vmatpush.bf16.msra.mxu0 %v2915
  %4091 = vmatpush.bf16.msra.mxu0 %v2911
  %4092 = vmatpush.bf16.msra.mxu0 %v2907
  %4093 = vmatpush.bf16.msra.mxu0 %v2903
  %4094 = vmatmul.bf16.gmra.mxu0 %v4074
  %v4095 = vpop.f32.mrf.mxu0
  %v4096 = vadd.f32 0.0, %v4095
  %v4097 = vpop.f32.mrf.mxu0
  %v4098 = vadd.f32 0.0, %v4097
  %4099 = vdwg.mxu0
  %4100 = vmatpush.bf16.msra.mxu0 %v2963
  %4101 = vmatpush.bf16.msra.mxu0 %v2959
  %4102 = vmatpush.bf16.msra.mxu0 %v2955
  %4103 = vmatpush.bf16.msra.mxu0 %v2951
  %4104 = vmatpush.bf16.msra.mxu0 %v2947
  %4105 = vmatpush.bf16.msra.mxu0 %v2943
  %4106 = vmatpush.bf16.msra.mxu0 %v2939
  %4107 = vmatpush.bf16.msra.mxu0 %v2935
  %4108 = vmatmul.bf16.gmra.mxu0 %v4077
  %v4109 = vpop.f32.mrf.mxu0
  %v4110 = vadd.f32 %v4096, %v4109
  %v4111 = vpop.f32.mrf.mxu0
  %v4112 = vadd.f32 %v4098, %v4111
  %4113 = vdwg.mxu0
  %4114 = vmatpush.bf16.msra.mxu0 0
  %4115 = vmatpush.bf16.msra.mxu0 0
  %4116 = vmatpush.bf16.msra.mxu0 0
  %4117 = vmatpush.bf16.msra.mxu0 0
  %4118 = vmatpush.bf16.msra.mxu0 0
  %4119 = vmatpush.bf16.msra.mxu0 0
  %4120 = vmatpush.bf16.msra.mxu0 %v2971
  %4121 = vmatpush.bf16.msra.mxu0 %v2967
  %4122 = vmatmul.bf16.gmra.mxu0 %v4084
  %v4123 = vpop.f32.mrf.mxu0
  %v4124 = vadd.f32 %v4110, %v4123
  %v4125 = vpop.f32.mrf.mxu0
  %v4126 = vadd.f32 %v4112, %v4125
  %4127 = vdwg.mxu0
  %4128 = vmatpush.bf16.msra.mxu0 %v2932
  %4129 = vmatpush.bf16.msra.mxu0 %v2928
  %4130 = vmatpush.bf16.msra.mxu0 %v2924
  %4131 = vmatpush.bf16.msra.mxu0 %v2920
  %4132 = vmatpush.bf16.msra.mxu0 %v2916
  %4133 = vmatpush.bf16.msra.mxu0 %v2912
  %4134 = vmatpush.bf16.msra.mxu0 %v2908
  %4135 = vmatpush.bf16.msra.mxu0 %v2904
  %4136 = vmatmul.bf16.gmra.mxu0 %v4074
  %v4137 = vpop.f32.mrf.mxu0
  %v4138 = vadd.f32 0.0, %v4137
  %v4139 = vpop.f32.mrf.mxu0
  %v4140 = vadd.f32 0.0, %v4139
  %4141 = vdwg.mxu0
  %4142 = vmatpush.bf16.msra.mxu0 %v2964
  %4143 = vmatpush.bf16.msra.mxu0 %v2960
  %4144 = vmatpush.bf16.msra.mxu0 %v2956
  %4145 = vmatpush.bf16.msra.mxu0 %v2952
  %4146 = vmatpush.bf16.msra.mxu0 %v2948
  %4147 = vmatpush.bf16.msra.mxu0 %v2944
  %4148 = vmatpush.bf16.msra.mxu0 %v2940
  %4149 = vmatpush.bf16.msra.mxu0 %v2936
  %4150 = vmatmul.bf16.gmra.mxu0 %v4077
  %v4151 = vpop.f32.mrf.mxu0
  %v4152 = vadd.f32 %v4138, %v4151
  %v4153 = vpop.f32.mrf.mxu0
  %v4154 = vadd.f32 %v4140, %v4153
  %4155 = vdwg.mxu0
  %4156 = vmatpush.bf16.msra.mxu0 0
  %4157 = vmatpush.bf16.msra.mxu0 0
  %4158 = vmatpush.bf16.msra.mxu0 0
  %4159 = vmatpush.bf16.msra.mxu0 0
  %4160 = vmatpush.bf16.msra.mxu0 0
  %4161 = vmatpush.bf16.msra.mxu0 0
  %4162 = vmatpush.bf16.msra.mxu0 %v2972
  %4163 = vmatpush.bf16.msra.mxu0 %v2968
  %4164 = vmatmul.bf16.gmra.mxu0 %v4084
  %v4165 = vpop.f32.mrf.mxu0
  %v4166 = vadd.f32 %v4152, %v4165
  %v4167 = vpop.f32.mrf.mxu0
  %v4168 = vadd.f32 %v4154, %v4167
  %4169 = vdwg.mxu0
  %4170 = vmatpush.bf16.msra.mxu0 %v2933
  %4171 = vmatpush.bf16.msra.mxu0 %v2929
  %4172 = vmatpush.bf16.msra.mxu0 %v2925
  %4173 = vmatpush.bf16.msra.mxu0 %v2921
  %4174 = vmatpush.bf16.msra.mxu0 %v2917
  %4175 = vmatpush.bf16.msra.mxu0 %v2913
  %4176 = vmatpush.bf16.msra.mxu0 %v2909
  %4177 = vmatpush.bf16.msra.mxu0 %v2905
  %4178 = vmatmul.bf16.gmra.mxu0 %v4074
  %v4179 = vpop.f32.mrf.mxu0
  %v4180 = vadd.f32 0.0, %v4179
  %v4181 = vpop.f32.mrf.mxu0
  %v4182 = vadd.f32 0.0, %v4181
  %4183 = vdwg.mxu0
  %4184 = vmatpush.bf16.msra.mxu0 %v2965
  %4185 = vmatpush.bf16.msra.mxu0 %v2961
  %4186 = vmatpush.bf16.msra.mxu0 %v2957
  %4187 = vmatpush.bf16.msra.mxu0 %v2953
  %4188 = vmatpush.bf16.msra.mxu0 %v2949
  %4189 = vmatpush.bf16.msra.mxu0 %v2945
  %4190 = vmatpush.bf16.msra.mxu0 %v2941
  %4191 = vmatpush.bf16.msra.mxu0 %v2937
  %4192 = vmatmul.bf16.gmra.mxu0 %v4077
  %v4193 = vpop.f32.mrf.mxu0
  %v4194 = vadd.f32 %v4180, %v4193
  %v4195 = vpop.f32.mrf.mxu0
  %v4196 = vadd.f32 %v4182, %v4195
  %4197 = vdwg.mxu0
  %4198 = vmatpush.bf16.msra.mxu0 0
  %4199 = vmatpush.bf16.msra.mxu0 0
  %4200 = vmatpush.bf16.msra.mxu0 0
  %4201 = vmatpush.bf16.msra.mxu0 0
  %4202 = vmatpush.bf16.msra.mxu0 0
  %4203 = vmatpush.bf16.msra.mxu0 0
  %4204 = vmatpush.bf16.msra.mxu0 %v2973
  %4205 = vmatpush.bf16.msra.mxu0 %v2969
  %4206 = vmatmul.bf16.gmra.mxu0 %v4084
  %v4207 = vpop.f32.mrf.mxu0
  %v4208 = vadd.f32 %v4194, %v4207
  %v4209 = vpop.f32.mrf.mxu0
  %v4210 = vadd.f32 %v4196, %v4209
  %4211 = vdwg.mxu0
  %4212 = vmatpush.bf16.msra.mxu0 %v2934
  %4213 = vmatpush.bf16.msra.mxu0 %v2930
  %4214 = vmatpush.bf16.msra.mxu0 %v2926
  %4215 = vmatpush.bf16.msra.mxu0 %v2922
  %4216 = vmatpush.bf16.msra.mxu0 %v2918
  %4217 = vmatpush.bf16.msra.mxu0 %v2914
  %4218 = vmatpush.bf16.msra.mxu0 %v2910
  %4219 = vmatpush.bf16.msra.mxu0 %v2906
  %4220 = vmatmul.bf16.gmra.mxu0 %v4074
  %v4221 = vpop.f32.mrf.mxu0
  %v4222 = vadd.f32 0.0, %v4221
  %v4223 = vpop.f32.mrf.mxu0
  %v4224 = vadd.f32 0.0, %v4223
  %4225 = vdwg.mxu0
  %4226 = vmatpush.bf16.msra.mxu0 %v2966
  %4227 = vmatpush.bf16.msra.mxu0 %v2962
  %4228 = vmatpush.bf16.msra.mxu0 %v2958
  %4229 = vmatpush.bf16.msra.mxu0 %v2954
  %4230 = vmatpush.bf16.msra.mxu0 %v2950
  %4231 = vmatpush.bf16.msra.mxu0 %v2946
  %4232 = vmatpush.bf16.msra.mxu0 %v2942
  %4233 = vmatpush.bf16.msra.mxu0 %v2938
  %4234 = vmatmul.bf16.gmra.mxu0 %v4077
  %v4235 = vpop.f32.mrf.mxu0
  %v4236 = vadd.f32 %v4222, %v4235
  %v4237 = vpop.f32.mrf.mxu0
  %v4238 = vadd.f32 %v4224, %v4237
  %4239 = vdwg.mxu0
  %4240 = vmatpush.bf16.msra.mxu0 0
  %4241 = vmatpush.bf16.msra.mxu0 0
  %4242 = vmatpush.bf16.msra.mxu0 0
  %4243 = vmatpush.bf16.msra.mxu0 0
  %4244 = vmatpush.bf16.msra.mxu0 0
  %4245 = vmatpush.bf16.msra.mxu0 0
  %4246 = vmatpush.bf16.msra.mxu0 %v2974
  %4247 = vmatpush.bf16.msra.mxu0 %v2970
  %4248 = vmatmul.bf16.gmra.mxu0 %v4084
  %v4249 = vpop.f32.mrf.mxu0
  %v4250 = vadd.f32 %v4236, %v4249
  %v4251 = vpop.f32.mrf.mxu0
  %v4252 = vadd.f32 %v4238, %v4251
  %4253 = vdwg.mxu0
  %v4254 = vadd.f32 %v4054, %v4124
  %v4255 = vadd.f32 %v4055, %v4166
  %v4256 = vadd.f32 %v4056, %v4208
  %v4257 = vadd.f32 %v4057, %v4250
  %v4258 = vadd.f32 %v4058, %v4126
  %v4259 = vadd.f32 %v4059, %v4168
  %v4260 = vadd.f32 %v4060, %v4210
  %v4261 = vadd.f32 %v4061, %v4252
  %vm4262 = vcmask 1045504
  %v4263 = vsel %vm4262, %v3222, 0.0
  %v4264 = vadd.f32 %v3218, %v4263
  %v4265 = vrot.slane %v4264, 4
  %v4266 = vadd.f32 %v4264, %v4265
  %v4267 = vrot.slane %v4266, 2
  %v4268 = vadd.f32 %v4266, %v4267
  %v4269 = vrot.slane %v4268, 1
  %v4270 = vadd.f32 %v4268, %v4269
  %v4271 = vsel %vm4262, %v3223, 0.0
  %v4272 = vadd.f32 %v3219, %v4271
  %v4273 = vrot.slane %v4272, 4
  %v4274 = vadd.f32 %v4272, %v4273
  %v4275 = vrot.slane %v4274, 2
  %v4276 = vadd.f32 %v4274, %v4275
  %v4277 = vrot.slane %v4276, 1
  %v4278 = vadd.f32 %v4276, %v4277
  %v4279 = vsel %vm4262, %v3224, 0.0
  %v4280 = vadd.f32 %v3220, %v4279
  %v4281 = vrot.slane %v4280, 4
  %v4282 = vadd.f32 %v4280, %v4281
  %v4283 = vrot.slane %v4282, 2
  %v4284 = vadd.f32 %v4282, %v4283
  %v4285 = vrot.slane %v4284, 1
  %v4286 = vadd.f32 %v4284, %v4285
  %vm4287 = vcmask 523264
  %v4288 = vsel %vm4287, %v3221, 0.0
  %vm4289 = vcmask 521216
  %v4290 = vsel %vm4289, %v3225, 0.0
  %v4291 = vadd.f32 %v4288, %v4290
  %v4292 = vrot.slane %v4291, 4
  %v4293 = vadd.f32 %v4291, %v4292
  %v4294 = vrot.slane %v4293, 2
  %v4295 = vadd.f32 %v4293, %v4294
  %v4296 = vrot.slane %v4295, 1
  %v4297 = vadd.f32 %v4295, %v4296
  %v4298 = vmul.f32 %v3218, %v3218
  %v4299 = vmul.f32 %v3219, %v3219
  %v4300 = vmul.f32 %v3220, %v3220
  %v4301 = vmul.f32 %v3221, %v3221
  %v4302 = vmul.f32 %v3222, %v3222
  %v4303 = vmul.f32 %v3223, %v3223
  %v4304 = vmul.f32 %v3224, %v3224
  %v4305 = vmul.f32 %v3225, %v3225
  %v4306 = vsel %vm4262, %v4302, 0.0
  %v4307 = vadd.f32 %v4298, %v4306
  %v4308 = vrot.slane %v4307, 4
  %v4309 = vadd.f32 %v4307, %v4308
  %v4310 = vrot.slane %v4309, 2
  %v4311 = vadd.f32 %v4309, %v4310
  %v4312 = vrot.slane %v4311, 1
  %v4313 = vadd.f32 %v4311, %v4312
  %v4314 = vsel %vm4262, %v4303, 0.0
  %v4315 = vadd.f32 %v4299, %v4314
  %v4316 = vrot.slane %v4315, 4
  %v4317 = vadd.f32 %v4315, %v4316
  %v4318 = vrot.slane %v4317, 2
  %v4319 = vadd.f32 %v4317, %v4318
  %v4320 = vrot.slane %v4319, 1
  %v4321 = vadd.f32 %v4319, %v4320
  %v4322 = vsel %vm4262, %v4304, 0.0
  %v4323 = vadd.f32 %v4300, %v4322
  %v4324 = vrot.slane %v4323, 4
  %v4325 = vadd.f32 %v4323, %v4324
  %v4326 = vrot.slane %v4325, 2
  %v4327 = vadd.f32 %v4325, %v4326
  %v4328 = vrot.slane %v4327, 1
  %v4329 = vadd.f32 %v4327, %v4328
  %v4330 = vsel %vm4287, %v4301, 0.0
  %v4331 = vsel %vm4289, %v4305, 0.0
  %v4332 = vadd.f32 %v4330, %v4331
  %v4333 = vrot.slane %v4332, 4
  %v4334 = vadd.f32 %v4332, %v4333
  %v4335 = vrot.slane %v4334, 2
  %v4336 = vadd.f32 %v4334, %v4335
  %v4337 = vrot.slane %v4336, 1
  %v4338 = vadd.f32 %v4336, %v4337
  %v4339 = vsel %vm4262, %v4258, 0.0
  %v4340 = vadd.f32 %v4254, %v4339
  %v4341 = vrot.slane %v4340, 4
  %v4342 = vadd.f32 %v4340, %v4341
  %v4343 = vrot.slane %v4342, 2
  %v4344 = vadd.f32 %v4342, %v4343
  %v4345 = vrot.slane %v4344, 1
  %v4346 = vadd.f32 %v4344, %v4345
  %v4347 = vsel %vm4262, %v4259, 0.0
  %v4348 = vadd.f32 %v4255, %v4347
  %v4349 = vrot.slane %v4348, 4
  %v4350 = vadd.f32 %v4348, %v4349
  %v4351 = vrot.slane %v4350, 2
  %v4352 = vadd.f32 %v4350, %v4351
  %v4353 = vrot.slane %v4352, 1
  %v4354 = vadd.f32 %v4352, %v4353
  %v4355 = vsel %vm4262, %v4260, 0.0
  %v4356 = vadd.f32 %v4256, %v4355
  %v4357 = vrot.slane %v4356, 4
  %v4358 = vadd.f32 %v4356, %v4357
  %v4359 = vrot.slane %v4358, 2
  %v4360 = vadd.f32 %v4358, %v4359
  %v4361 = vrot.slane %v4360, 1
  %v4362 = vadd.f32 %v4360, %v4361
  %v4363 = vsel %vm4287, %v4257, 0.0
  %v4364 = vsel %vm4289, %v4261, 0.0
  %v4365 = vadd.f32 %v4363, %v4364
  %v4366 = vrot.slane %v4365, 4
  %v4367 = vadd.f32 %v4365, %v4366
  %v4368 = vrot.slane %v4367, 2
  %v4369 = vadd.f32 %v4367, %v4368
  %v4370 = vrot.slane %v4369, 1
  %v4371 = vadd.f32 %v4369, %v4370
  %v4372 = vadd.f32 %v4270, %v4346
  %v4373 = vadd.f32 %v4278, %v4354
  %v4374 = vadd.f32 %v4286, %v4362
  %v4375 = vadd.f32 %v4297, %v4371
  %v4376 = vmul.f32 %v4254, %v4254
  %v4377 = vmul.f32 %v4255, %v4255
  %v4378 = vmul.f32 %v4256, %v4256
  %v4379 = vmul.f32 %v4257, %v4257
  %v4380 = vmul.f32 %v4258, %v4258
  %v4381 = vmul.f32 %v4259, %v4259
  %v4382 = vmul.f32 %v4260, %v4260
  %v4383 = vmul.f32 %v4261, %v4261
  %v4384 = vsel %vm4262, %v4380, 0.0
  %v4385 = vadd.f32 %v4376, %v4384
  %v4386 = vrot.slane %v4385, 4
  %v4387 = vadd.f32 %v4385, %v4386
  %v4388 = vrot.slane %v4387, 2
  %v4389 = vadd.f32 %v4387, %v4388
  %v4390 = vrot.slane %v4389, 1
  %v4391 = vadd.f32 %v4389, %v4390
  %v4392 = vsel %vm4262, %v4381, 0.0
  %v4393 = vadd.f32 %v4377, %v4392
  %v4394 = vrot.slane %v4393, 4
  %v4395 = vadd.f32 %v4393, %v4394
  %v4396 = vrot.slane %v4395, 2
  %v4397 = vadd.f32 %v4395, %v4396
  %v4398 = vrot.slane %v4397, 1
  %v4399 = vadd.f32 %v4397, %v4398
  %v4400 = vsel %vm4262, %v4382, 0.0
  %v4401 = vadd.f32 %v4378, %v4400
  %v4402 = vrot.slane %v4401, 4
  %v4403 = vadd.f32 %v4401, %v4402
  %v4404 = vrot.slane %v4403, 2
  %v4405 = vadd.f32 %v4403, %v4404
  %v4406 = vrot.slane %v4405, 1
  %v4407 = vadd.f32 %v4405, %v4406
  %v4408 = vsel %vm4287, %v4379, 0.0
  %v4409 = vsel %vm4289, %v4383, 0.0
  %v4410 = vadd.f32 %v4408, %v4409
  %v4411 = vrot.slane %v4410, 4
  %v4412 = vadd.f32 %v4410, %v4411
  %v4413 = vrot.slane %v4412, 2
  %v4414 = vadd.f32 %v4412, %v4413
  %v4415 = vrot.slane %v4414, 1
  %v4416 = vadd.f32 %v4414, %v4415
  %v4417 = vadd.f32 %v4313, %v4391
  %v4418 = vadd.f32 %v4321, %v4399
  %v4419 = vadd.f32 %v4329, %v4407
  %v4420 = vadd.f32 %v4338, %v4416
  %v4421 = vld [vmem:[%s2] sm:$0xff]
  %v4422 = vld [vmem:[%s2 + $0x8] sm:$0xff]
  %v4423 = vld [vmem:[%s2 + $0x10] sm:$0xff]
  %v4424 = vld [vmem:[%s2 + $0x18] sm:$0xff]
  %v4425 = vld [vmem:[%s2 + $0x20] sm:$0xff]
  %v4426 = vld [vmem:[%s2 + $0x28] sm:$0xff]
  %v4427 = vld [vmem:[%s2 + $0x30] sm:$0xff]
  %v4428 = vld [vmem:[%s2 + $0x38] sm:$0xff]
  %v4429 = vld [vmem:[%s2 + $0x40] sm:$0xff]
  %v4430 = vld [vmem:[%s2 + $0x48] sm:$0xff]
  %v4431 = vld [vmem:[%s2 + $0x50] sm:$0xff]
  %v4432 = vld [vmem:[%s2 + $0x58] sm:$0xff]
  %v4433 = vld [vmem:[%s2 + $0x60] sm:$0xff]
  %v4434 = vld [vmem:[%s2 + $0x68] sm:$0xff]
  %v4435 = vld [vmem:[%s2 + $0x70] sm:$0xff]
  %v4436 = vld [vmem:[%s2 + $0x78] sm:$0xff]
  %v4437 = vld [vmem:[%s2 + $0x80] sm:$0xff]
  %v4438 = vld [vmem:[%s2 + $0x88] sm:$0xff]
  %v4439 = vld [vmem:[%s2 + $0x90] sm:$0xff]
  %v4440 = vld [vmem:[%s2 + $0x98] sm:$0xff]
  %v4441 = vld [vmem:[%s2 + $0xa0] sm:$0xff]
  %v4442 = vld [vmem:[%s2 + $0xa8] sm:$0xff]
  %v4443 = vld [vmem:[%s2 + $0xb0] sm:$0xff]
  %v4444 = vld [vmem:[%s2 + $0xb8] sm:$0xff]
  %v4445 = vld [vmem:[%s2 + $0xc0] sm:$0xff]
  %v4446 = vld [vmem:[%s2 + $0xc8] sm:$0xff]
  %v4447 = vld [vmem:[%s2 + $0xd0] sm:$0xff]
  %v4448 = vld [vmem:[%s2 + $0xd8] sm:$0xff]
  %v4449 = vld [vmem:[%s2 + $0xe0] sm:$0xff]
  %v4450 = vld [vmem:[%s2 + $0xe8] sm:$0xff]
  %v4451 = vld [vmem:[%s2 + $0xf0] sm:$0xff]
  %v4452 = vld [vmem:[%s2 + $0xf8] sm:$0xff]
  %v4453 = vld [vmem:[%s2 + $0x100] sm:$0xff]
  %v4454 = vld [vmem:[%s2 + $0x108] sm:$0xff]
  %v4455 = vld [vmem:[%s2 + $0x110] sm:$0xff]
  %v4456 = vld [vmem:[%s2 + $0x118] sm:$0xff]
  %v4457 = vld [vmem:[%s2 + $0x120] sm:$0xff]
  %v4458 = vld [vmem:[%s2 + $0x128] sm:$0xff]
  %v4459 = vld [vmem:[%s2 + $0x130] sm:$0xff]
  %v4460 = vld [vmem:[%s2 + $0x138] sm:$0xff]
  %v4461 = vld [vmem:[%s2 + $0x140] sm:$0xff]
  %v4462 = vld [vmem:[%s2 + $0x148] sm:$0xff]
  %v4463 = vld [vmem:[%s2 + $0x150] sm:$0xff]
  %v4464 = vld [vmem:[%s2 + $0x158] sm:$0xff]
  %v4465 = vld [vmem:[%s2 + $0x160] sm:$0xff]
  %v4466 = vld [vmem:[%s2 + $0x168] sm:$0xff]
  %v4467 = vld [vmem:[%s2 + $0x170] sm:$0xff]
  %v4468 = vld [vmem:[%s2 + $0x178] sm:$0xff]
  %v4469 = vld [vmem:[%s2 + $0x180] sm:$0xff]
  %v4470 = vld [vmem:[%s2 + $0x188] sm:$0xff]
  %v4471 = vld [vmem:[%s2 + $0x190] sm:$0xff]
  %v4472 = vld [vmem:[%s2 + $0x198] sm:$0xff]
  %v4473 = vld [vmem:[%s2 + $0x1a0] sm:$0xff]
  %v4474 = vld [vmem:[%s2 + $0x1a8] sm:$0xff]
  %v4475 = vld [vmem:[%s2 + $0x1b0] sm:$0xff]
  %v4476 = vld [vmem:[%s2 + $0x1b8] sm:$0xff]
  %v4478 = vsel %vm4287, %v4375, 0
  %4480 = vmatpush.msra.mxu0 %v4436
  %4481 = vmatpush.msra.mxu0 %v4435
  %4482 = vmatpush.msra.mxu0 %v4434
  %4483 = vmatpush.msra.mxu0 %v4433
  %4484 = vmatpush.msra.mxu0 %v4432
  %4485 = vmatpush.msra.mxu0 %v4431
  %4486 = vmatpush.msra.mxu0 %v4430
  %4487 = vmatpush.msra.mxu0 %v4429
  %4488 = vmatpush.msra.mxu0 %v4428
  %4489 = vmatpush.msra.mxu0 %v4427
  %4490 = vmatpush.msra.mxu0 %v4426
  %4491 = vmatpush.msra.mxu0 %v4425
  %4492 = vmatpush.msra.mxu0 %v4424
  %4493 = vmatpush.msra.mxu0 %v4423
  %4494 = vmatpush.msra.mxu0 %v4422
  %4495 = vmatpush.msra.mxu0 %v4421
  %4496 = vmatmul.f32.gmra.mxu0 %v4372
  %v4497 = vpop.f32.mrf.mxu0
  %v4498 = vadd.f32 0.0, %v4497
  %4499 = vdwg.mxu0
  %4500 = vmatpush.msra.mxu0 %v4452
  %4501 = vmatpush.msra.mxu0 %v4451
  %4502 = vmatpush.msra.mxu0 %v4450
  %4503 = vmatpush.msra.mxu0 %v4449
  %4504 = vmatpush.msra.mxu0 %v4448
  %4505 = vmatpush.msra.mxu0 %v4447
  %4506 = vmatpush.msra.mxu0 %v4446
  %4507 = vmatpush.msra.mxu0 %v4445
  %4508 = vmatpush.msra.mxu0 %v4444
  %4509 = vmatpush.msra.mxu0 %v4443
  %4510 = vmatpush.msra.mxu0 %v4442
  %4511 = vmatpush.msra.mxu0 %v4441
  %4512 = vmatpush.msra.mxu0 %v4440
  %4513 = vmatpush.msra.mxu0 %v4439
  %4514 = vmatpush.msra.mxu0 %v4438
  %4515 = vmatpush.msra.mxu0 %v4437
  %4516 = vmatmul.f32.gmra.mxu0 %v4373
  %v4517 = vpop.f32.mrf.mxu0
  %v4518 = vadd.f32 %v4498, %v4517
  %4519 = vdwg.mxu0
  %4520 = vmatpush.msra.mxu0 %v4468
  %4521 = vmatpush.msra.mxu0 %v4467
  %4522 = vmatpush.msra.mxu0 %v4466
  %4523 = vmatpush.msra.mxu0 %v4465
  %4524 = vmatpush.msra.mxu0 %v4464
  %4525 = vmatpush.msra.mxu0 %v4463
  %4526 = vmatpush.msra.mxu0 %v4462
  %4527 = vmatpush.msra.mxu0 %v4461
  %4528 = vmatpush.msra.mxu0 %v4460
  %4529 = vmatpush.msra.mxu0 %v4459
  %4530 = vmatpush.msra.mxu0 %v4458
  %4531 = vmatpush.msra.mxu0 %v4457
  %4532 = vmatpush.msra.mxu0 %v4456
  %4533 = vmatpush.msra.mxu0 %v4455
  %4534 = vmatpush.msra.mxu0 %v4454
  %4535 = vmatpush.msra.mxu0 %v4453
  %4536 = vmatmul.f32.gmra.mxu0 %v4374
  %v4537 = vpop.f32.mrf.mxu0
  %v4538 = vadd.f32 %v4518, %v4537
  %4539 = vdwg.mxu0
  %4540 = vmatpush.msra.mxu0 0.0
  %4541 = vmatpush.msra.mxu0 0.0
  %4542 = vmatpush.msra.mxu0 0.0
  %4543 = vmatpush.msra.mxu0 0.0
  %4544 = vmatpush.msra.mxu0 0.0
  %4545 = vmatpush.msra.mxu0 0.0
  %4546 = vmatpush.msra.mxu0 0.0
  %4547 = vmatpush.msra.mxu0 0.0
  %4548 = vmatpush.msra.mxu0 %v4476
  %4549 = vmatpush.msra.mxu0 %v4475
  %4550 = vmatpush.msra.mxu0 %v4474
  %4551 = vmatpush.msra.mxu0 %v4473
  %4552 = vmatpush.msra.mxu0 %v4472
  %4553 = vmatpush.msra.mxu0 %v4471
  %4554 = vmatpush.msra.mxu0 %v4470
  %4555 = vmatpush.msra.mxu0 %v4469
  %4556 = vmatmul.f32.gmra.mxu0 %v4478
  %v4557 = vpop.f32.mrf.mxu0
  %v4558 = vadd.f32 %v4538, %v4557
  %4559 = vdwg.mxu0
  %v4561 = vsel %vm4287, %v4420, 0
  %4563 = vmatpush.msra.mxu0 %v4436
  %4564 = vmatpush.msra.mxu0 %v4435
  %4565 = vmatpush.msra.mxu0 %v4434
  %4566 = vmatpush.msra.mxu0 %v4433
  %4567 = vmatpush.msra.mxu0 %v4432
  %4568 = vmatpush.msra.mxu0 %v4431
  %4569 = vmatpush.msra.mxu0 %v4430
  %4570 = vmatpush.msra.mxu0 %v4429
  %4571 = vmatpush.msra.mxu0 %v4428
  %4572 = vmatpush.msra.mxu0 %v4427
  %4573 = vmatpush.msra.mxu0 %v4426
  %4574 = vmatpush.msra.mxu0 %v4425
  %4575 = vmatpush.msra.mxu0 %v4424
  %4576 = vmatpush.msra.mxu0 %v4423
  %4577 = vmatpush.msra.mxu0 %v4422
  %4578 = vmatpush.msra.mxu0 %v4421
  %4579 = vmatmul.f32.gmra.mxu0 %v4417
  %v4580 = vpop.f32.mrf.mxu0
  %v4581 = vadd.f32 0.0, %v4580
  %4582 = vdwg.mxu0
  %4583 = vmatpush.msra.mxu0 %v4452
  %4584 = vmatpush.msra.mxu0 %v4451
  %4585 = vmatpush.msra.mxu0 %v4450
  %4586 = vmatpush.msra.mxu0 %v4449
  %4587 = vmatpush.msra.mxu0 %v4448
  %4588 = vmatpush.msra.mxu0 %v4447
  %4589 = vmatpush.msra.mxu0 %v4446
  %4590 = vmatpush.msra.mxu0 %v4445
  %4591 = vmatpush.msra.mxu0 %v4444
  %4592 = vmatpush.msra.mxu0 %v4443
  %4593 = vmatpush.msra.mxu0 %v4442
  %4594 = vmatpush.msra.mxu0 %v4441
  %4595 = vmatpush.msra.mxu0 %v4440
  %4596 = vmatpush.msra.mxu0 %v4439
  %4597 = vmatpush.msra.mxu0 %v4438
  %4598 = vmatpush.msra.mxu0 %v4437
  %4599 = vmatmul.f32.gmra.mxu0 %v4418
  %v4600 = vpop.f32.mrf.mxu0
  %v4601 = vadd.f32 %v4581, %v4600
  %4602 = vdwg.mxu0
  %4603 = vmatpush.msra.mxu0 %v4468
  %4604 = vmatpush.msra.mxu0 %v4467
  %4605 = vmatpush.msra.mxu0 %v4466
  %4606 = vmatpush.msra.mxu0 %v4465
  %4607 = vmatpush.msra.mxu0 %v4464
  %4608 = vmatpush.msra.mxu0 %v4463
  %4609 = vmatpush.msra.mxu0 %v4462
  %4610 = vmatpush.msra.mxu0 %v4461
  %4611 = vmatpush.msra.mxu0 %v4460
  %4612 = vmatpush.msra.mxu0 %v4459
  %4613 = vmatpush.msra.mxu0 %v4458
  %4614 = vmatpush.msra.mxu0 %v4457
  %4615 = vmatpush.msra.mxu0 %v4456
  %4616 = vmatpush.msra.mxu0 %v4455
  %4617 = vmatpush.msra.mxu0 %v4454
  %4618 = vmatpush.msra.mxu0 %v4453
  %4619 = vmatmul.f32.gmra.mxu0 %v4419
  %v4620 = vpop.f32.mrf.mxu0
  %v4621 = vadd.f32 %v4601, %v4620
  %4622 = vdwg.mxu0
  %4623 = vmatpush.msra.mxu0 0.0
  %4624 = vmatpush.msra.mxu0 0.0
  %4625 = vmatpush.msra.mxu0 0.0
  %4626 = vmatpush.msra.mxu0 0.0
  %4627 = vmatpush.msra.mxu0 0.0
  %4628 = vmatpush.msra.mxu0 0.0
  %4629 = vmatpush.msra.mxu0 0.0
  %4630 = vmatpush.msra.mxu0 0.0
  %4631 = vmatpush.msra.mxu0 %v4476
  %4632 = vmatpush.msra.mxu0 %v4475
  %4633 = vmatpush.msra.mxu0 %v4474
  %4634 = vmatpush.msra.mxu0 %v4473
  %4635 = vmatpush.msra.mxu0 %v4472
  %4636 = vmatpush.msra.mxu0 %v4471
  %4637 = vmatpush.msra.mxu0 %v4470
  %4638 = vmatpush.msra.mxu0 %v4469
  %4639 = vmatmul.f32.gmra.mxu0 %v4561
  %v4640 = vpop.f32.mrf.mxu0
  %v4641 = vadd.f32 %v4621, %v4640
  %4642 = vdwg.mxu0
  %v4643 = vmul.f32 %v4558, %v4558
  %v4644 = vsub.f32 %v4641, %v4643
  %v4645 = vadd.f32 %v4644, 1e-05
  %v4646 = vrsqrt.pop %v4645
  %v4647 = vmul.f32 %v4646, %v4645
  %v4648 = vmul.f32 %v4647, %v4646
  %v4649 = vmul.f32 0.5, %v4648
  %v4650 = vsub.f32 1.5, %v4649
  %v4651 = vmul.f32 %v4646, %v4650
  %vm4652 = vweird.f32 %v4645
  %vm4653 = vweird.f32 %v4646
  %vm4654 = vmor %vm4652, %vm4653
  %v4655 = vsel %vm4654, %v4646, %v4651
  %v4656 = vld [vmem:[%s3] sm:$0xff]
  %v4657 = vld [vmem:[%s3 + $0x8] sm:$0xff]
  %v4658 = vld [vmem:[%s3 + $0x10] sm:$0xff]
  %v4659 = vld [vmem:[%s3 + $0x18] sm:$0xff]
  %v4660 = vld [vmem:[%s3 + $0x20] sm:$0xff]
  %v4661 = vld [vmem:[%s3 + $0x28] sm:$0xff]
  %v4662 = vld [vmem:[%s3 + $0x30] sm:$0xff]
  %v4663 = vld [vmem:[%s3 + $0x38] sm:$0xff]
  %v4664 = vld [vmem:[%s3 + $0x40] sm:$0xff]
  %v4665 = vld [vmem:[%s3 + $0x48] sm:$0xff]
  %v4666 = vld [vmem:[%s3 + $0x50] sm:$0xff]
  %v4667 = vld [vmem:[%s3 + $0x58] sm:$0xff]
  %v4668 = vld [vmem:[%s3 + $0x60] sm:$0xff]
  %v4669 = vld [vmem:[%s3 + $0x68] sm:$0xff]
  %v4670 = vld [vmem:[%s3 + $0x70] sm:$0xff]
  %v4671 = vld [vmem:[%s3 + $0x78] sm:$0xff]
  %v4673 = vsel %vm571, %v4558, 0
  %4675 = vmatpush.msra.mxu0 0.0
  %4676 = vmatpush.msra.mxu0 0.0
  %4677 = vmatpush.msra.mxu0 0.0
  %4678 = vmatpush.msra.mxu0 0.0
  %4679 = vmatpush.msra.mxu0 0.0
  %4680 = vmatpush.msra.mxu0 0.0
  %4681 = vmatpush.msra.mxu0 0.0
  %4682 = vmatpush.msra.mxu0 0.0
  %4683 = vmatpush.msra.mxu0 0.0
  %4684 = vmatpush.msra.mxu0 0.0
  %4685 = vmatpush.msra.mxu0 0.0
  %4686 = vmatpush.msra.mxu0 0.0
  %4687 = vmatpush.msra.mxu0 %v4668
  %4688 = vmatpush.msra.mxu0 %v4664
  %4689 = vmatpush.msra.mxu0 %v4660
  %4690 = vmatpush.msra.mxu0 %v4656
  %4691 = vmatmul.f32.gmra.mxu0 %v4673
  %v4692 = vpop.f32.mrf.mxu0
  %v4693 = vadd.f32 0.0, %v4692
  %4694 = vdwg.mxu0
  %4695 = vmatpush.msra.mxu0 0.0
  %4696 = vmatpush.msra.mxu0 0.0
  %4697 = vmatpush.msra.mxu0 0.0
  %4698 = vmatpush.msra.mxu0 0.0
  %4699 = vmatpush.msra.mxu0 0.0
  %4700 = vmatpush.msra.mxu0 0.0
  %4701 = vmatpush.msra.mxu0 0.0
  %4702 = vmatpush.msra.mxu0 0.0
  %4703 = vmatpush.msra.mxu0 0.0
  %4704 = vmatpush.msra.mxu0 0.0
  %4705 = vmatpush.msra.mxu0 0.0
  %4706 = vmatpush.msra.mxu0 0.0
  %4707 = vmatpush.msra.mxu0 %v4669
  %4708 = vmatpush.msra.mxu0 %v4665
  %4709 = vmatpush.msra.mxu0 %v4661
  %4710 = vmatpush.msra.mxu0 %v4657
  %4711 = vmatmul.f32.gmra.mxu0 %v4673
  %v4712 = vpop.f32.mrf.mxu0
  %v4713 = vadd.f32 0.0, %v4712
  %4714 = vdwg.mxu0
  %4715 = vmatpush.msra.mxu0 0.0
  %4716 = vmatpush.msra.mxu0 0.0
  %4717 = vmatpush.msra.mxu0 0.0
  %4718 = vmatpush.msra.mxu0 0.0
  %4719 = vmatpush.msra.mxu0 0.0
  %4720 = vmatpush.msra.mxu0 0.0
  %4721 = vmatpush.msra.mxu0 0.0
  %4722 = vmatpush.msra.mxu0 0.0
  %4723 = vmatpush.msra.mxu0 0.0
  %4724 = vmatpush.msra.mxu0 0.0
  %4725 = vmatpush.msra.mxu0 0.0
  %4726 = vmatpush.msra.mxu0 0.0
  %4727 = vmatpush.msra.mxu0 %v4670
  %4728 = vmatpush.msra.mxu0 %v4666
  %4729 = vmatpush.msra.mxu0 %v4662
  %4730 = vmatpush.msra.mxu0 %v4658
  %4731 = vmatmul.f32.gmra.mxu0 %v4673
  %v4732 = vpop.f32.mrf.mxu0
  %v4733 = vadd.f32 0.0, %v4732
  %4734 = vdwg.mxu0
  %4735 = vmatpush.msra.mxu0 0.0
  %4736 = vmatpush.msra.mxu0 0.0
  %4737 = vmatpush.msra.mxu0 0.0
  %4738 = vmatpush.msra.mxu0 0.0
  %4739 = vmatpush.msra.mxu0 0.0
  %4740 = vmatpush.msra.mxu0 0.0
  %4741 = vmatpush.msra.mxu0 0.0
  %4742 = vmatpush.msra.mxu0 0.0
  %4743 = vmatpush.msra.mxu0 0.0
  %4744 = vmatpush.msra.mxu0 0.0
  %4745 = vmatpush.msra.mxu0 0.0
  %4746 = vmatpush.msra.mxu0 0.0
  %4747 = vmatpush.msra.mxu0 %v4671
  %4748 = vmatpush.msra.mxu0 %v4667
  %4749 = vmatpush.msra.mxu0 %v4663
  %4750 = vmatpush.msra.mxu0 %v4659
  %4751 = vmatmul.f32.gmra.mxu0 %v4673
  %v4752 = vpop.f32.mrf.mxu0
  %v4753 = vadd.f32 0.0, %v4752
  %4754 = vdwg.mxu0
  %v4756 = vsel %vm571, %v4655, 0
  %4758 = vmatpush.msra.mxu0 0.0
  %4759 = vmatpush.msra.mxu0 0.0
  %4760 = vmatpush.msra.mxu0 0.0
  %4761 = vmatpush.msra.mxu0 0.0
  %4762 = vmatpush.msra.mxu0 0.0
  %4763 = vmatpush.msra.mxu0 0.0
  %4764 = vmatpush.msra.mxu0 0.0
  %4765 = vmatpush.msra.mxu0 0.0
  %4766 = vmatpush.msra.mxu0 0.0
  %4767 = vmatpush.msra.mxu0 0.0
  %4768 = vmatpush.msra.mxu0 0.0
  %4769 = vmatpush.msra.mxu0 0.0
  %4770 = vmatpush.msra.mxu0 %v4668
  %4771 = vmatpush.msra.mxu0 %v4664
  %4772 = vmatpush.msra.mxu0 %v4660
  %4773 = vmatpush.msra.mxu0 %v4656
  %4774 = vmatmul.f32.gmra.mxu0 %v4756
  %v4775 = vpop.f32.mrf.mxu0
  %v4776 = vadd.f32 0.0, %v4775
  %4777 = vdwg.mxu0
  %4778 = vmatpush.msra.mxu0 0.0
  %4779 = vmatpush.msra.mxu0 0.0
  %4780 = vmatpush.msra.mxu0 0.0
  %4781 = vmatpush.msra.mxu0 0.0
  %4782 = vmatpush.msra.mxu0 0.0
  %4783 = vmatpush.msra.mxu0 0.0
  %4784 = vmatpush.msra.mxu0 0.0
  %4785 = vmatpush.msra.mxu0 0.0
  %4786 = vmatpush.msra.mxu0 0.0
  %4787 = vmatpush.msra.mxu0 0.0
  %4788 = vmatpush.msra.mxu0 0.0
  %4789 = vmatpush.msra.mxu0 0.0
  %4790 = vmatpush.msra.mxu0 %v4669
  %4791 = vmatpush.msra.mxu0 %v4665
  %4792 = vmatpush.msra.mxu0 %v4661
  %4793 = vmatpush.msra.mxu0 %v4657
  %4794 = vmatmul.f32.gmra.mxu0 %v4756
  %v4795 = vpop.f32.mrf.mxu0
  %v4796 = vadd.f32 0.0, %v4795
  %4797 = vdwg.mxu0
  %4798 = vmatpush.msra.mxu0 0.0
  %4799 = vmatpush.msra.mxu0 0.0
  %4800 = vmatpush.msra.mxu0 0.0
  %4801 = vmatpush.msra.mxu0 0.0
  %4802 = vmatpush.msra.mxu0 0.0
  %4803 = vmatpush.msra.mxu0 0.0
  %4804 = vmatpush.msra.mxu0 0.0
  %4805 = vmatpush.msra.mxu0 0.0
  %4806 = vmatpush.msra.mxu0 0.0
  %4807 = vmatpush.msra.mxu0 0.0
  %4808 = vmatpush.msra.mxu0 0.0
  %4809 = vmatpush.msra.mxu0 0.0
  %4810 = vmatpush.msra.mxu0 %v4670
  %4811 = vmatpush.msra.mxu0 %v4666
  %4812 = vmatpush.msra.mxu0 %v4662
  %4813 = vmatpush.msra.mxu0 %v4658
  %4814 = vmatmul.f32.gmra.mxu0 %v4756
  %v4815 = vpop.f32.mrf.mxu0
  %v4816 = vadd.f32 0.0, %v4815
  %4817 = vdwg.mxu0
  %4818 = vmatpush.msra.mxu0 0.0
  %4819 = vmatpush.msra.mxu0 0.0
  %4820 = vmatpush.msra.mxu0 0.0
  %4821 = vmatpush.msra.mxu0 0.0
  %4822 = vmatpush.msra.mxu0 0.0
  %4823 = vmatpush.msra.mxu0 0.0
  %4824 = vmatpush.msra.mxu0 0.0
  %4825 = vmatpush.msra.mxu0 0.0
  %4826 = vmatpush.msra.mxu0 0.0
  %4827 = vmatpush.msra.mxu0 0.0
  %4828 = vmatpush.msra.mxu0 0.0
  %4829 = vmatpush.msra.mxu0 0.0
  %4830 = vmatpush.msra.mxu0 %v4671
  %4831 = vmatpush.msra.mxu0 %v4667
  %4832 = vmatpush.msra.mxu0 %v4663
  %4833 = vmatpush.msra.mxu0 %v4659
  %4834 = vmatmul.f32.gmra.mxu0 %v4756
  %v4835 = vpop.f32.mrf.mxu0
  %v4836 = vadd.f32 0.0, %v4835
  %4837 = vdwg.mxu0
  %v4838 = vld [vmem:[%s4] sm:$0xf]
  %v4840 = vperm.slane %v4838, 0
  %v4841 = vperm.slane %v4838, 1
  %v4842 = vperm.slane %v4838, 2
  %v4843 = vperm.slane %v4838, 3
  %v4848 = vmul.f32 %v4776, %v4840
  %v4849 = vmul.f32 %v4796, %v4841
  %v4850 = vmul.f32 %v4816, %v4842
  %v4851 = vmul.f32 %v4836, %v4843
  %v4852 = vld [vmem:[%s5] sm:$0xf]
  %v4853 = vmul.f32 %v4693, %v4848
  %v4854 = vmul.f32 %v4713, %v4849
  %v4855 = vmul.f32 %v4733, %v4850
  %v4856 = vmul.f32 %v4753, %v4851
  %v4861 = vrot.slane %v4854, 7
  %v4862 = vrot.slane %v4855, 6
  %v4863 = vrot.slane %v4856, 5
  %vm4864 = vcmask 1040384
  %v4865 = vsel %vm4864, %v4853, %v4861
  %vm4866 = vcmask 1042434
  %v4867 = vsel %vm4866, %v4862, %v4863
  %vm4868 = vcmask 1041408
  %v4869 = vsel %vm4868, %v4865, %v4867
  %v4871 = vsub.f32 %v4852, %v4869
  %v4872 = vperm.slane %v4848, 0
  %v4873 = vperm.slane %v4849, 0
  %v4874 = vperm.slane %v4850, 0
  %v4875 = vperm.slane %v4851, 0
  %v4876 = vmul.f32 %v3218, %v4872
  %v4877 = vmul.f32 %v3219, %v4873
  %v4878 = vmul.f32 %v3220, %v4874
  %v4879 = vmul.f32 %v3221, %v4875
  %v4880 = vmul.f32 %v3222, %v4872
  %v4881 = vmul.f32 %v3223, %v4873
  %v4882 = vmul.f32 %v3224, %v4874
  %v4883 = vmul.f32 %v3225, %v4875
  %v4885 = vperm.slane %v4871, 0
  %v4886 = vperm.slane %v4871, 1
  %v4887 = vperm.slane %v4871, 2
  %v4888 = vperm.slane %v4871, 3
  %v4893 = vadd.f32 %v4876, %v4885
  %v4894 = vadd.f32 %v4877, %v4886
  %v4895 = vadd.f32 %v4878, %v4887
  %v4896 = vadd.f32 %v4879, %v4888
  %v4897 = vadd.f32 %v4880, %v4885
  %v4898 = vadd.f32 %v4881, %v4886
  %v4899 = vadd.f32 %v4882, %v4887
  %v4900 = vadd.f32 %v4883, %v4888
  %vm4901 = vcmp.ge.f32.partialorder %v4893, 0.0
  %vm4902 = vcmp.ge.f32.partialorder %v4894, 0.0
  %vm4903 = vcmp.ge.f32.partialorder %v4895, 0.0
  %vm4904 = vcmp.ge.f32.partialorder %v4896, 0.0
  %vm4905 = vcmp.ge.f32.partialorder %v4897, 0.0
  %vm4906 = vcmp.ge.f32.partialorder %v4898, 0.0
  %vm4907 = vcmp.ge.f32.partialorder %v4899, 0.0
  %vm4908 = vcmp.ge.f32.partialorder %v4900, 0.0
  %v4909 = vmul.f32 %v4893, 0.2
  %v4910 = vmul.f32 %v4894, 0.2
  %v4911 = vmul.f32 %v4895, 0.2
  %v4912 = vmul.f32 %v4896, 0.2
  %v4913 = vmul.f32 %v4897, 0.2
  %v4914 = vmul.f32 %v4898, 0.2
  %v4915 = vmul.f32 %v4899, 0.2
  %v4916 = vmul.f32 %v4900, 0.2
  %v4917 = vsel %vm4901, %v4893, %v4909
  %v4918 = vsel %vm4902, %v4894, %v4910
  %v4919 = vsel %vm4903, %v4895, %v4911
  %v4920 = vsel %vm4904, %v4896, %v4912
  %v4921 = vsel %vm4905, %v4897, %v4913
  %v4922 = vsel %vm4906, %v4898, %v4914
  %v4923 = vsel %vm4907, %v4899, %v4915
  %v4924 = vsel %vm4908, %v4900, %v4916
  %v4925 = vpack.c.bf16 %v4918, %v4917
  %v4926 = vpack.c.bf16 %v4920, %v4919
  %v4927 = vpack.c.bf16 %v4922, %v4921
  %v4928 = vpack.c.bf16 %v4924, %v4923
  %4929 = vst [vmem:[%s6] sm:$0xff] %v4925
  %vm4930 = vcmask 1043456
  %vm4931 = vcmask 523268
  %vm4932 = vmor %vm4931, %vm4930
  %4933 = vst.msk [vmem:[%s6 + $0x8] sm:$0xff] %vm4932, %v4926
  %4934 = vst [vmem:[%s6 + $0x10] sm:$0x77] %v4927
  %vm4935 = vcmask 1042432
  %vm4936 = vcmask 522244
  %vm4937 = vmor %vm4936, %vm4935
  %4938 = vst.msk [vmem:[%s6 + $0x18] sm:$0x77] %vm4937, %v4928
  %v4939 = vmul.f32 %v4254, %v4872
  %v4940 = vmul.f32 %v4255, %v4873
  %v4941 = vmul.f32 %v4256, %v4874
  %v4942 = vmul.f32 %v4257, %v4875
  %v4943 = vmul.f32 %v4258, %v4872
  %v4944 = vmul.f32 %v4259, %v4873
  %v4945 = vmul.f32 %v4260, %v4874
  %v4946 = vmul.f32 %v4261, %v4875
  %v4947 = vadd.f32 %v4939, %v4885
  %v4948 = vadd.f32 %v4940, %v4886
  %v4949 = vadd.f32 %v4941, %v4887
  %v4950 = vadd.f32 %v4942, %v4888
  %v4951 = vadd.f32 %v4943, %v4885
  %v4952 = vadd.f32 %v4944, %v4886
  %v4953 = vadd.f32 %v4945, %v4887
  %v4954 = vadd.f32 %v4946, %v4888
  %vm4955 = vcmp.ge.f32.partialorder %v4947, 0.0
  %vm4956 = vcmp.ge.f32.partialorder %v4948, 0.0
  %vm4957 = vcmp.ge.f32.partialorder %v4949, 0.0
  %vm4958 = vcmp.ge.f32.partialorder %v4950, 0.0
  %vm4959 = vcmp.ge.f32.partialorder %v4951, 0.0
  %vm4960 = vcmp.ge.f32.partialorder %v4952, 0.0
  %vm4961 = vcmp.ge.f32.partialorder %v4953, 0.0
  %vm4962 = vcmp.ge.f32.partialorder %v4954, 0.0
  %v4963 = vmul.f32 %v4947, 0.2
  %v4964 = vmul.f32 %v4948, 0.2
  %v4965 = vmul.f32 %v4949, 0.2
  %v4966 = vmul.f32 %v4950, 0.2
  %v4967 = vmul.f32 %v4951, 0.2
  %v4968 = vmul.f32 %v4952, 0.2
  %v4969 = vmul.f32 %v4953, 0.2
  %v4970 = vmul.f32 %v4954, 0.2
  %v4971 = vsel %vm4955, %v4947, %v4963
  %v4972 = vsel %vm4956, %v4948, %v4964
  %v4973 = vsel %vm4957, %v4949, %v4965
  %v4974 = vsel %vm4958, %v4950, %v4966
  %v4975 = vsel %vm4959, %v4951, %v4967
  %v4976 = vsel %vm4960, %v4952, %v4968
  %v4977 = vsel %vm4961, %v4953, %v4969
  %v4978 = vsel %vm4962, %v4954, %v4970
  %v4979 = vpack.c.bf16 %v4972, %v4971
  %v4980 = vpack.c.bf16 %v4974, %v4973
  %v4981 = vpack.c.bf16 %v4976, %v4975
  %v4982 = vpack.c.bf16 %v4978, %v4977
  %s4983 = scalar_lea.vmem %s6, 32
  %4984 = vst [vmem:[%s4983] sm:$0xff] %v4979
  %4985 = vst.msk [vmem:[%s4983 + $0x8] sm:$0xff] %vm4932, %v4980
  %4986 = vst [vmem:[%s4983 + $0x10] sm:$0x77] %v4981
  %4987 = vst.msk [vmem:[%s4983 + $0x18] sm:$0x77] %vm4937, %v4982
  // Predicated region
  $region26: #{generator_forward.4} parent=0 // pred_check
    _
  $region27: #{generator_forward.4} parent=0 // pred_check_branch
    %4989 = sbr.rel (0) target = $region29
  $region28: #{generator_forward.4} parent=0 // pred_region
    _
  $region29: #{generator_forward.4} parent=0 // pred_fallthru
    _
  // Predicated region
  $region30: #{generator_forward.4} parent=0 // pred_check
    _
  $region31: #{generator_forward.4} parent=0 // pred_check_branch
    %4991 = sbr.rel (0) target = $region33
  $region32: #{generator_forward.4} parent=0 // pred_region
    _
  $region33: #{generator_forward.4} parent=0 // pred_fallthru
    _

// kernel: generator_forward.5
$region0: #{generator_forward.5}
  #allocation0 [shape = 'u32[]', space=smem, size = 0x4, offset = 0x4, fixed_abs, tag = 'smem constant byte address 0x4 - core index']
  #allocation1 [shape = 'u32[72,128]{1,0:T(1,128)}', space=vmem, size = 0x9000, scoped, tag = 'internal scratch']
  %s0 = inlined_call_operand.vmem [shape: bf16[2,32,1024], index: 0, kind: input, shape index: {}]
  %s1 = inlined_call_operand.vmem [shape: bf16[5,1024,28], index: 1, kind: input, shape index: {}]
  %s2 = inlined_call_operand.vmem [shape: f32[2,28,28], index: 2, kind: output, shape index: {}]
  %s3 = sld [smem:[#allocation0]]
  $region41: #{generator_forward.5} parent=0
    _
  %s5 = ssub.s32 1, %s3
  %s6 = scalar_select 0, %s5, %s3
  loop: start=0, step=1, limit=4
  $region2: #{generator_forward.5} parent=0 // loop_pre_header
    _
  $region3: #{generator_forward.5} parent=0 // loop_header
    %s8 = sphi 0, %s12
    %p9 = scmp.ge.s32.totalorder %s8, 4
    %s18 = sphi 0, %s20
    %s21 = sphi 0, %s18
    %s22 = sphi 0, %s21
    %s38 = sphi 0, %s22
    %s42 = sphi 0, %s42
    %s44 = sphi 0, %s42
    %s45 = sphi 0, %s44
    %s59 = sphi 0, %s45
    %s65 = sphi 0, %s67
    %s68 = sphi 0, %s65
    %s69 = sphi 0, %s68
    %s85 = sphi 0, %s69
  $region4: #{generator_forward.5} parent=0 // loop_header_branch
    %11 = sbr.rel (%p9) target = $region8
  $region5: #{generator_forward.5} parent=0 // loop_body
    %s13 = ssub.s32 %s8, 1
    %s14 = ssub.s32 %s8, 2
    %s15 = sadd.s32 %s8, 1
    %s16 = ssub.s32 %s8, %s15
    %p17 = scmp.eq.s32.totalorder %s16, 0
    %s19 = sadd.s32 %s18, 1
    %s20 = scalar_select %p17, %s18, %s19
    %p23 = pneg %p17
    %p24 = scmp.eq.s32.totalorder %s8, 1
    %p25 = por %p23, %p24
    %p26 = scmp.ne.s32.totalorder %s18, %s21
    %p27 = scmp.eq.s32.totalorder %s8, 0
    %p28 = por %p26, %p27
    %p29 = scmp.ne.s32.totalorder %s18, %s21
    %p30 = scmp.eq.s32.totalorder %s13, 1
    %p31 = por %p29, %p30
    %p32 = scmp.ne.s32.totalorder %s21, %s22
    %p33 = scmp.eq.s32.totalorder %s13, 0
    %p34 = por %p32, %p33
    %p35 = scmp.ne.s32.totalorder %s21, %s22
    %p36 = scmp.eq.s32.totalorder %s14, 1
    %p37 = por %p35, %p36
    %p39 = scmp.ne.s32.totalorder %s22, %s38
    %p40 = scmp.eq.s32.totalorder %s14, 0
    %p41 = por %p39, %p40
    %s43 = sadd.s32 %s42, 1
    %p46 = scmp.eq.s32.totalorder %s8, 1
    %p47 = scmp.ne.s32.totalorder %s42, %s44
    %p48 = scmp.eq.s32.totalorder %s8, 0
    %p49 = por %p47, %p48
    %p50 = scmp.ne.s32.totalorder %s42, %s44
    %p51 = scmp.eq.s32.totalorder %s13, 1
    %p52 = por %p50, %p51
    %p53 = scmp.ne.s32.totalorder %s44, %s45
    %p54 = scmp.eq.s32.totalorder %s13, 0
    %p55 = por %p53, %p54
    %p56 = scmp.ne.s32.totalorder %s44, %s45
    %p57 = scmp.eq.s32.totalorder %s14, 1
    %p58 = por %p56, %p57
    %p60 = scmp.ne.s32.totalorder %s45, %s59
    %p61 = scmp.eq.s32.totalorder %s14, 0
    %p62 = por %p60, %p61
    %s63 = ssub.s32 %s8, %s15
    %p64 = scmp.eq.s32.totalorder %s63, 0
    %s66 = sadd.s32 %s65, 1
    %s67 = scalar_select %p64, %s65, %s66
    %p70 = pneg %p64
    %p71 = scmp.eq.s32.totalorder %s8, 1
    %p72 = por %p70, %p71
    %p73 = scmp.ne.s32.totalorder %s65, %s68
    %p74 = scmp.eq.s32.totalorder %s8, 0
    %p75 = por %p73, %p74
    %p76 = scmp.ne.s32.totalorder %s65, %s68
    %p77 = scmp.eq.s32.totalorder %s13, 1
    %p78 = por %p76, %p77
    %p79 = scmp.ne.s32.totalorder %s68, %s69
    %p80 = scmp.eq.s32.totalorder %s13, 0
    %p81 = por %p79, %p80
    %p82 = scmp.ne.s32.totalorder %s68, %s69
    %p83 = scmp.eq.s32.totalorder %s14, 1
    %p84 = por %p82, %p83
    %p86 = scmp.ne.s32.totalorder %s69, %s85
    %p87 = scmp.eq.s32.totalorder %s14, 0
    %p88 = por %p86, %p87
    %p89 = scmp.le.s32.totalorder 1, %s8
    %p90 = scmp.lt.s32.totalorder %s8, 3
    %p91 = pnand %p89, %p90
    %p92 = pneg %p91
    // Predicated region
    $region9: #{generator_forward.5} parent=5 // pred_check
      _
    $region10: #{generator_forward.5} parent=5 // pred_check_branch
      %94 = sbr.rel (%p91) target = $region12
    $region11: #{generator_forward.5} parent=5 // pred_region
      %s95 = ssub.s32 %s8, 1
      // Predicated region
      $region13: #{generator_forward.5} parent=11 // pred_check
        %p96 = pneg %p55
      $region14: #{generator_forward.5} parent=11 // pred_check_branch
        %98 = sbr.rel (%p96) target = $region16
      $region15: #{generator_forward.5} parent=11 // pred_region
        _
      $region16: #{generator_forward.5} parent=11 // pred_fallthru
        _
    $region12: #{generator_forward.5} parent=5 // pred_fallthru
      _
    %p99 = scmp.lt.s32.totalorder %s8, 2
    // Predicated region
    $region17: #{generator_forward.5} parent=5 // pred_check
      %p100 = pneg %p99
    $region18: #{generator_forward.5} parent=5 // pred_check_branch
      %102 = sbr.rel (%p100) target = $region20
    $region19: #{generator_forward.5} parent=5 // pred_region
      // Predicated region
      $region21: #{generator_forward.5} parent=19 // pred_check
        %p103 = pneg %p28
      $region22: #{generator_forward.5} parent=19 // pred_check_branch
        %105 = sbr.rel (%p103) target = $region24
      $region23: #{generator_forward.5} parent=19 // pred_region
        %p106 = scmp.lt.s32.totalorder %s8, 1
        %s107 = scalar_select %p106, %s8, 1
        %s108 = smul.addr %s107, 32
        %s109 = smul.addr %s108, 4
        %s110 = scalar_lea.vmem %s0, %s109
      $region24: #{generator_forward.5} parent=19 // pred_fallthru
        _
    $region20: #{generator_forward.5} parent=5 // pred_fallthru
      _
    %p111 = scmp.le.s32.totalorder 1, %s8
    %p112 = scmp.lt.s32.totalorder %s8, 3
    %p113 = pnand %p111, %p112
    %p114 = pneg %p113
    // Predicated region
    $region25: #{generator_forward.5} parent=5 // pred_check
      _
    $region26: #{generator_forward.5} parent=5 // pred_check_branch
      %116 = sbr.rel (%p113) target = $region28
    $region27: #{generator_forward.5} parent=5 // pred_region
      %s117 = ssub.s32 %s8, 1
      %p118 = scmp.lt.s32.totalorder %s13, 1
      %s119 = scalar_select %p118, %s13, 1
      %s120 = smul.addr %s119, 32
      %s121 = smul.addr %s120, 4
      %s122 = scalar_lea.vmem %s0, %s121
      %p123 = pneg %p34
      %p124 = pneg %p31
      %p125 = pneg %p55
      %p126 = pneg %p52
      %p127 = pneg %p81
      %p128 = pneg %p78
      %p129 = scmp.lt.s32.totalorder %s13, 1
      %s130 = scalar_select %p129, %s13, 1
      %s131 = smul.addr %s130, 4
      %s132 = smul.addr %s131, 8
      %s133 = scalar_lea.vmem %s2, %s132
      %p134 = scmp.lt.s32.totalorder %s13, 1
      %s135 = scalar_select %p134, %s13, 1
      %s136 = smul.addr %s135, 32
      %s137 = smul.addr %s136, 4
      %s138 = scalar_lea.vmem %s0, %s137
      %p139 = scmp.lt.s32.totalorder %s13, 1
      %s140 = scalar_select %p139, %s13, 1
      %s141 = smul.addr %s140, 4
      %s142 = smul.addr %s141, 8
      %s143 = scalar_lea.vmem %s2, %s142
      %v144 = vld [vmem:[%s138] sm:$0xff]
      %v145 = vld [vmem:[%s138 + $0x8] sm:$0xff]
      %v146 = vld [vmem:[%s138 + $0x10] sm:$0xff]
      %v147 = vld [vmem:[%s138 + $0x18] sm:$0xff]
      %v148 = vld [vmem:[%s138 + $0x20] sm:$0xff]
      %v149 = vld [vmem:[%s138 + $0x28] sm:$0xff]
      %v150 = vld [vmem:[%s138 + $0x30] sm:$0xff]
      %v151 = vld [vmem:[%s138 + $0x38] sm:$0xff]
      %v152 = vld [vmem:[%s138 + $0x40] sm:$0xff]
      %v153 = vld [vmem:[%s138 + $0x48] sm:$0xff]
      %v154 = vld [vmem:[%s138 + $0x50] sm:$0xff]
      %v155 = vld [vmem:[%s138 + $0x58] sm:$0xff]
      %v156 = vld [vmem:[%s138 + $0x60] sm:$0x33]
      %v157 = vld [vmem:[%s138 + $0x68] sm:$0x33]
      %v158 = vld [vmem:[%s138 + $0x70] sm:$0x33]
      %v159 = vld [vmem:[%s138 + $0x78] sm:$0x33]
      %v160 = vld [vmem:[%s1] sm:$0xf]
      %v161 = vld [vmem:[%s1 + $0x4] sm:$0xf]
      %v162 = vld [vmem:[%s1 + $0x8] sm:$0xf]
      %v163 = vld [vmem:[%s1 + $0xc] sm:$0xf]
      %v164 = vld [vmem:[%s1 + $0x10] sm:$0xf]
      %v165 = vld [vmem:[%s1 + $0x14] sm:$0xf]
      %v166 = vld [vmem:[%s1 + $0x18] sm:$0xf]
      %v167 = vld [vmem:[%s1 + $0x1c] sm:$0xf]
      %v168 = vld [vmem:[%s1 + $0x20] sm:$0xf]
      %v169 = vld [vmem:[%s1 + $0x24] sm:$0xf]
      %v170 = vld [vmem:[%s1 + $0x28] sm:$0xf]
      %v171 = vld [vmem:[%s1 + $0x2c] sm:$0xf]
      %v172 = vld [vmem:[%s1 + $0x30] sm:$0xf]
      %v173 = vld [vmem:[%s1 + $0x34] sm:$0xf]
      %v174 = vld [vmem:[%s1 + $0x38] sm:$0xf]
      %v175 = vld [vmem:[%s1 + $0x3c] sm:$0xf]
      %v176 = vld [vmem:[%s1 + $0x40] sm:$0xf]
      %v177 = vld [vmem:[%s1 + $0x44] sm:$0xf]
      %v178 = vld [vmem:[%s1 + $0x48] sm:$0xf]
      %v179 = vld [vmem:[%s1 + $0x4c] sm:$0xf]
      %v180 = vld [vmem:[%s1 + $0x50] sm:$0xf]
      %v181 = vld [vmem:[%s1 + $0x54] sm:$0xf]
      %v182 = vld [vmem:[%s1 + $0x58] sm:$0xf]
      %v183 = vld [vmem:[%s1 + $0x5c] sm:$0xf]
      %v184 = vld [vmem:[%s1 + $0x60] sm:$0xf]
      %v185 = vld [vmem:[%s1 + $0x64] sm:$0xf]
      %v186 = vld [vmem:[%s1 + $0x68] sm:$0xf]
      %v187 = vld [vmem:[%s1 + $0x6c] sm:$0xf]
      %v188 = vld [vmem:[%s1 + $0x70] sm:$0xf]
      %v189 = vld [vmem:[%s1 + $0x74] sm:$0xf]
      %v190 = vld [vmem:[%s1 + $0x78] sm:$0xf]
      %v191 = vld [vmem:[%s1 + $0x7c] sm:$0xf]
      %v192 = vld [vmem:[%s1 + $0x80] sm:$0xf]
      %v193 = vld [vmem:[%s1 + $0x84] sm:$0xf]
      %v194 = vld [vmem:[%s1 + $0x88] sm:$0xf]
      %v195 = vld [vmem:[%s1 + $0x8c] sm:$0xf]
      %v196 = vld [vmem:[%s1 + $0x90] sm:$0xf]
      %v197 = vld [vmem:[%s1 + $0x94] sm:$0xf]
      %v198 = vld [vmem:[%s1 + $0x98] sm:$0xf]
      %v199 = vld [vmem:[%s1 + $0x9c] sm:$0xf]
      %v200 = vld [vmem:[%s1 + $0xa0] sm:$0xf]
      %v201 = vld [vmem:[%s1 + $0xa4] sm:$0xf]
      %v202 = vld [vmem:[%s1 + $0xa8] sm:$0xf]
      %v203 = vld [vmem:[%s1 + $0xac] sm:$0xf]
      %v204 = vld [vmem:[%s1 + $0xb0] sm:$0xf]
      %v205 = vld [vmem:[%s1 + $0xb4] sm:$0xf]
      %v206 = vld [vmem:[%s1 + $0xb8] sm:$0xf]
      %v207 = vld [vmem:[%s1 + $0xbc] sm:$0xf]
      %v208 = vld [vmem:[%s1 + $0xc0] sm:$0xf]
      %v209 = vld [vmem:[%s1 + $0xc4] sm:$0xf]
      %v210 = vld [vmem:[%s1 + $0xc8] sm:$0xf]
      %v211 = vld [vmem:[%s1 + $0xcc] sm:$0xf]
      %v212 = vld [vmem:[%s1 + $0xd0] sm:$0xf]
      %v213 = vld [vmem:[%s1 + $0xd4] sm:$0xf]
      %v214 = vld [vmem:[%s1 + $0xd8] sm:$0xf]
      %v215 = vld [vmem:[%s1 + $0xdc] sm:$0xf]
      %v216 = vld [vmem:[%s1 + $0xe0] sm:$0xf]
      %v217 = vld [vmem:[%s1 + $0xe4] sm:$0xf]
      %v218 = vld [vmem:[%s1 + $0xe8] sm:$0xf]
      %v219 = vld [vmem:[%s1 + $0xec] sm:$0xf]
      %v220 = vld [vmem:[%s1 + $0xf0] sm:$0xf]
      %v221 = vld [vmem:[%s1 + $0xf4] sm:$0xf]
      %v222 = vld [vmem:[%s1 + $0xf8] sm:$0xf]
      %v223 = vld [vmem:[%s1 + $0xfc] sm:$0xf]
      %v224 = vld [vmem:[%s1 + $0x100] sm:$0xf]
      %v225 = vld [vmem:[%s1 + $0x104] sm:$0xf]
      %v226 = vld [vmem:[%s1 + $0x108] sm:$0xf]
      %v227 = vld [vmem:[%s1 + $0x10c] sm:$0xf]
      %v228 = vld [vmem:[%s1 + $0x110] sm:$0xf]
      %v229 = vld [vmem:[%s1 + $0x114] sm:$0xf]
      %v230 = vld [vmem:[%s1 + $0x118] sm:$0xf]
      %v231 = vld [vmem:[%s1 + $0x11c] sm:$0xf]
      %v232 = vld [vmem:[%s1 + $0x120] sm:$0xf]
      %v233 = vld [vmem:[%s1 + $0x124] sm:$0xf]
      %v234 = vld [vmem:[%s1 + $0x128] sm:$0xf]
      %v235 = vld [vmem:[%s1 + $0x12c] sm:$0xf]
      %v236 = vld [vmem:[%s1 + $0x130] sm:$0xf]
      %v237 = vld [vmem:[%s1 + $0x134] sm:$0xf]
      %v238 = vld [vmem:[%s1 + $0x138] sm:$0xf]
      %v239 = vld [vmem:[%s1 + $0x13c] sm:$0xf]
      %v240 = vld [vmem:[%s1 + $0x140] sm:$0xf]
      %v241 = vld [vmem:[%s1 + $0x144] sm:$0xf]
      %v242 = vld [vmem:[%s1 + $0x148] sm:$0xf]
      %v243 = vld [vmem:[%s1 + $0x14c] sm:$0xf]
      %v244 = vld [vmem:[%s1 + $0x150] sm:$0xf]
      %v245 = vld [vmem:[%s1 + $0x154] sm:$0xf]
      %v246 = vld [vmem:[%s1 + $0x158] sm:$0xf]
      %v247 = vld [vmem:[%s1 + $0x15c] sm:$0xf]
      %v248 = vld [vmem:[%s1 + $0x160] sm:$0xf]
      %v249 = vld [vmem:[%s1 + $0x164] sm:$0xf]
      %v250 = vld [vmem:[%s1 + $0x168] sm:$0xf]
      %v251 = vld [vmem:[%s1 + $0x16c] sm:$0xf]
      %v252 = vld [vmem:[%s1 + $0x170] sm:$0xf]
      %v253 = vld [vmem:[%s1 + $0x174] sm:$0xf]
      %v254 = vld [vmem:[%s1 + $0x178] sm:$0xf]
      %v255 = vld [vmem:[%s1 + $0x17c] sm:$0xf]
      %v256 = vld [vmem:[%s1 + $0x180] sm:$0xf]
      %v257 = vld [vmem:[%s1 + $0x184] sm:$0xf]
      %v258 = vld [vmem:[%s1 + $0x188] sm:$0xf]
      %v259 = vld [vmem:[%s1 + $0x18c] sm:$0xf]
      %v260 = vld [vmem:[%s1 + $0x190] sm:$0xf]
      %v261 = vld [vmem:[%s1 + $0x194] sm:$0xf]
      %v262 = vld [vmem:[%s1 + $0x198] sm:$0xf]
      %v263 = vld [vmem:[%s1 + $0x19c] sm:$0xf]
      %v264 = vld [vmem:[%s1 + $0x1a0] sm:$0xf]
      %v265 = vld [vmem:[%s1 + $0x1a4] sm:$0xf]
      %v266 = vld [vmem:[%s1 + $0x1a8] sm:$0xf]
      %v267 = vld [vmem:[%s1 + $0x1ac] sm:$0xf]
      %v268 = vld [vmem:[%s1 + $0x1b0] sm:$0xf]
      %v269 = vld [vmem:[%s1 + $0x1b4] sm:$0xf]
      %v270 = vld [vmem:[%s1 + $0x1b8] sm:$0xf]
      %v271 = vld [vmem:[%s1 + $0x1bc] sm:$0xf]
      %v272 = vld [vmem:[%s1 + $0x1c0] sm:$0xf]
      %v273 = vld [vmem:[%s1 + $0x1c4] sm:$0xf]
      %v274 = vld [vmem:[%s1 + $0x1c8] sm:$0xf]
      %v275 = vld [vmem:[%s1 + $0x1cc] sm:$0xf]
      %v276 = vld [vmem:[%s1 + $0x1d0] sm:$0xf]
      %v277 = vld [vmem:[%s1 + $0x1d4] sm:$0xf]
      %v278 = vld [vmem:[%s1 + $0x1d8] sm:$0xf]
      %v279 = vld [vmem:[%s1 + $0x1dc] sm:$0xf]
      %v280 = vld [vmem:[%s1 + $0x1e0] sm:$0xf]
      %v281 = vld [vmem:[%s1 + $0x1e4] sm:$0xf]
      %v282 = vld [vmem:[%s1 + $0x1e8] sm:$0xf]
      %v283 = vld [vmem:[%s1 + $0x1ec] sm:$0xf]
      %v284 = vld [vmem:[%s1 + $0x1f0] sm:$0xf]
      %v285 = vld [vmem:[%s1 + $0x1f4] sm:$0xf]
      %v286 = vld [vmem:[%s1 + $0x1f8] sm:$0xf]
      %v287 = vld [vmem:[%s1 + $0x1fc] sm:$0xf]
      %v288 = vld [vmem:[%s138 + $0x60] sm:$0x77]
      %v289 = vld [vmem:[%s138 + $0x68] sm:$0x77]
      %v290 = vld [vmem:[%s138 + $0x70] sm:$0x77]
      %v291 = vld [vmem:[%s138 + $0x78] sm:$0x77]
      %s292 = scalar_lea.vmem %s1, 512
      %v293 = vld [vmem:[%s292] sm:$0xf]
      %v294 = vld [vmem:[%s292 + $0x4] sm:$0xf]
      %v295 = vld [vmem:[%s292 + $0x8] sm:$0xf]
      %v296 = vld [vmem:[%s292 + $0xc] sm:$0xf]
      %v297 = vld [vmem:[%s292 + $0x10] sm:$0xf]
      %v298 = vld [vmem:[%s292 + $0x14] sm:$0xf]
      %v299 = vld [vmem:[%s292 + $0x18] sm:$0xf]
      %v300 = vld [vmem:[%s292 + $0x1c] sm:$0xf]
      %v301 = vld [vmem:[%s292 + $0x20] sm:$0xf]
      %v302 = vld [vmem:[%s292 + $0x24] sm:$0xf]
      %v303 = vld [vmem:[%s292 + $0x28] sm:$0xf]
      %v304 = vld [vmem:[%s292 + $0x2c] sm:$0xf]
      %v305 = vld [vmem:[%s292 + $0x30] sm:$0xf]
      %v306 = vld [vmem:[%s292 + $0x34] sm:$0xf]
      %v307 = vld [vmem:[%s292 + $0x38] sm:$0xf]
      %v308 = vld [vmem:[%s292 + $0x3c] sm:$0xf]
      %v309 = vld [vmem:[%s292 + $0x40] sm:$0xf]
      %v310 = vld [vmem:[%s292 + $0x44] sm:$0xf]
      %v311 = vld [vmem:[%s292 + $0x48] sm:$0xf]
      %v312 = vld [vmem:[%s292 + $0x4c] sm:$0xf]
      %v313 = vld [vmem:[%s292 + $0x50] sm:$0xf]
      %v314 = vld [vmem:[%s292 + $0x54] sm:$0xf]
      %v315 = vld [vmem:[%s292 + $0x58] sm:$0xf]
      %v316 = vld [vmem:[%s292 + $0x5c] sm:$0xf]
      %v317 = vld [vmem:[%s292 + $0x60] sm:$0xf]
      %v318 = vld [vmem:[%s292 + $0x64] sm:$0xf]
      %v319 = vld [vmem:[%s292 + $0x68] sm:$0xf]
      %v320 = vld [vmem:[%s292 + $0x6c] sm:$0xf]
      %v321 = vld [vmem:[%s292 + $0x70] sm:$0xf]
      %v322 = vld [vmem:[%s292 + $0x74] sm:$0xf]
      %v323 = vld [vmem:[%s292 + $0x78] sm:$0xf]
      %v324 = vld [vmem:[%s292 + $0x7c] sm:$0xf]
      %v325 = vld [vmem:[%s292 + $0x80] sm:$0xf]
      %v326 = vld [vmem:[%s292 + $0x84] sm:$0xf]
      %v327 = vld [vmem:[%s292 + $0x88] sm:$0xf]
      %v328 = vld [vmem:[%s292 + $0x8c] sm:$0xf]
      %v329 = vld [vmem:[%s292 + $0x90] sm:$0xf]
      %v330 = vld [vmem:[%s292 + $0x94] sm:$0xf]
      %v331 = vld [vmem:[%s292 + $0x98] sm:$0xf]
      %v332 = vld [vmem:[%s292 + $0x9c] sm:$0xf]
      %v333 = vld [vmem:[%s292 + $0xa0] sm:$0xf]
      %v334 = vld [vmem:[%s292 + $0xa4] sm:$0xf]
      %v335 = vld [vmem:[%s292 + $0xa8] sm:$0xf]
      %v336 = vld [vmem:[%s292 + $0xac] sm:$0xf]
      %v337 = vld [vmem:[%s292 + $0xb0] sm:$0xf]
      %v338 = vld [vmem:[%s292 + $0xb4] sm:$0xf]
      %v339 = vld [vmem:[%s292 + $0xb8] sm:$0xf]
      %v340 = vld [vmem:[%s292 + $0xbc] sm:$0xf]
      %v341 = vld [vmem:[%s292 + $0xc0] sm:$0xf]
      %v342 = vld [vmem:[%s292 + $0xc4] sm:$0xf]
      %v343 = vld [vmem:[%s292 + $0xc8] sm:$0xf]
      %v344 = vld [vmem:[%s292 + $0xcc] sm:$0xf]
      %v345 = vld [vmem:[%s292 + $0xd0] sm:$0xf]
      %v346 = vld [vmem:[%s292 + $0xd4] sm:$0xf]
      %v347 = vld [vmem:[%s292 + $0xd8] sm:$0xf]
      %v348 = vld [vmem:[%s292 + $0xdc] sm:$0xf]
      %v349 = vld [vmem:[%s292 + $0xe0] sm:$0xf]
      %v350 = vld [vmem:[%s292 + $0xe4] sm:$0xf]
      %v351 = vld [vmem:[%s292 + $0xe8] sm:$0xf]
      %v352 = vld [vmem:[%s292 + $0xec] sm:$0xf]
      %v353 = vld [vmem:[%s292 + $0xf0] sm:$0xf]
      %v354 = vld [vmem:[%s292 + $0xf4] sm:$0xf]
      %v355 = vld [vmem:[%s292 + $0xf8] sm:$0xf]
      %v356 = vld [vmem:[%s292 + $0xfc] sm:$0xf]
      %v357 = vld [vmem:[%s292 + $0x100] sm:$0xf]
      %v358 = vld [vmem:[%s292 + $0x104] sm:$0xf]
      %v359 = vld [vmem:[%s292 + $0x108] sm:$0xf]
      %v360 = vld [vmem:[%s292 + $0x10c] sm:$0xf]
      %v361 = vld [vmem:[%s292 + $0x110] sm:$0xf]
      %v362 = vld [vmem:[%s292 + $0x114] sm:$0xf]
      %v363 = vld [vmem:[%s292 + $0x118] sm:$0xf]
      %v364 = vld [vmem:[%s292 + $0x11c] sm:$0xf]
      %v365 = vld [vmem:[%s292 + $0x120] sm:$0xf]
      %v366 = vld [vmem:[%s292 + $0x124] sm:$0xf]
      %v367 = vld [vmem:[%s292 + $0x128] sm:$0xf]
      %v368 = vld [vmem:[%s292 + $0x12c] sm:$0xf]
      %v369 = vld [vmem:[%s292 + $0x130] sm:$0xf]
      %v370 = vld [vmem:[%s292 + $0x134] sm:$0xf]
      %v371 = vld [vmem:[%s292 + $0x138] sm:$0xf]
      %v372 = vld [vmem:[%s292 + $0x13c] sm:$0xf]
      %v373 = vld [vmem:[%s292 + $0x140] sm:$0xf]
      %v374 = vld [vmem:[%s292 + $0x144] sm:$0xf]
      %v375 = vld [vmem:[%s292 + $0x148] sm:$0xf]
      %v376 = vld [vmem:[%s292 + $0x14c] sm:$0xf]
      %v377 = vld [vmem:[%s292 + $0x150] sm:$0xf]
      %v378 = vld [vmem:[%s292 + $0x154] sm:$0xf]
      %v379 = vld [vmem:[%s292 + $0x158] sm:$0xf]
      %v380 = vld [vmem:[%s292 + $0x15c] sm:$0xf]
      %v381 = vld [vmem:[%s292 + $0x160] sm:$0xf]
      %v382 = vld [vmem:[%s292 + $0x164] sm:$0xf]
      %v383 = vld [vmem:[%s292 + $0x168] sm:$0xf]
      %v384 = vld [vmem:[%s292 + $0x16c] sm:$0xf]
      %v385 = vld [vmem:[%s292 + $0x170] sm:$0xf]
      %v386 = vld [vmem:[%s292 + $0x174] sm:$0xf]
      %v387 = vld [vmem:[%s292 + $0x178] sm:$0xf]
      %v388 = vld [vmem:[%s292 + $0x17c] sm:$0xf]
      %v389 = vld [vmem:[%s292 + $0x180] sm:$0xf]
      %v390 = vld [vmem:[%s292 + $0x184] sm:$0xf]
      %v391 = vld [vmem:[%s292 + $0x188] sm:$0xf]
      %v392 = vld [vmem:[%s292 + $0x18c] sm:$0xf]
      %v393 = vld [vmem:[%s292 + $0x190] sm:$0xf]
      %v394 = vld [vmem:[%s292 + $0x194] sm:$0xf]
      %v395 = vld [vmem:[%s292 + $0x198] sm:$0xf]
      %v396 = vld [vmem:[%s292 + $0x19c] sm:$0xf]
      %v397 = vld [vmem:[%s292 + $0x1a0] sm:$0xf]
      %v398 = vld [vmem:[%s292 + $0x1a4] sm:$0xf]
      %v399 = vld [vmem:[%s292 + $0x1a8] sm:$0xf]
      %v400 = vld [vmem:[%s292 + $0x1ac] sm:$0xf]
      %v401 = vld [vmem:[%s292 + $0x1b0] sm:$0xf]
      %v402 = vld [vmem:[%s292 + $0x1b4] sm:$0xf]
      %v403 = vld [vmem:[%s292 + $0x1b8] sm:$0xf]
      %v404 = vld [vmem:[%s292 + $0x1bc] sm:$0xf]
      %v405 = vld [vmem:[%s292 + $0x1c0] sm:$0xf]
      %v406 = vld [vmem:[%s292 + $0x1c4] sm:$0xf]
      %v407 = vld [vmem:[%s292 + $0x1c8] sm:$0xf]
      %v408 = vld [vmem:[%s292 + $0x1cc] sm:$0xf]
      %v409 = vld [vmem:[%s292 + $0x1d0] sm:$0xf]
      %v410 = vld [vmem:[%s292 + $0x1d4] sm:$0xf]
      %v411 = vld [vmem:[%s292 + $0x1d8] sm:$0xf]
      %v412 = vld [vmem:[%s292 + $0x1dc] sm:$0xf]
      %v413 = vld [vmem:[%s292 + $0x1e0] sm:$0xf]
      %v414 = vld [vmem:[%s292 + $0x1e4] sm:$0xf]
      %v415 = vld [vmem:[%s292 + $0x1e8] sm:$0xf]
      %v416 = vld [vmem:[%s292 + $0x1ec] sm:$0xf]
      %v417 = vld [vmem:[%s292 + $0x1f0] sm:$0xf]
      %v418 = vld [vmem:[%s292 + $0x1f4] sm:$0xf]
      %v419 = vld [vmem:[%s292 + $0x1f8] sm:$0xf]
      %v420 = vld [vmem:[%s292 + $0x1fc] sm:$0xf]
      %v437 = vunpack.c.l.b16 %v144
      %v438 = vunpack.c.h.b16 %v144
      %v439 = vunpack.c.l.b16 %v145
      %v440 = vunpack.c.h.b16 %v145
      %v441 = vunpack.c.l.b16 %v146
      %v442 = vunpack.c.h.b16 %v146
      %v443 = vunpack.c.l.b16 %v147
      %v444 = vunpack.c.h.b16 %v147
      %v445 = vunpack.c.l.b16 %v148
      %v446 = vunpack.c.h.b16 %v148
      %v447 = vunpack.c.l.b16 %v149
      %v448 = vunpack.c.h.b16 %v149
      %v449 = vunpack.c.l.b16 %v150
      %v450 = vunpack.c.h.b16 %v150
      %v451 = vunpack.c.l.b16 %v151
      %v452 = vunpack.c.h.b16 %v151
      %v453 = vunpack.c.l.b16 %v152
      %v454 = vunpack.c.h.b16 %v152
      %v455 = vunpack.c.l.b16 %v153
      %v456 = vunpack.c.h.b16 %v153
      %v457 = vunpack.c.l.b16 %v154
      %v458 = vunpack.c.h.b16 %v154
      %v459 = vunpack.c.l.b16 %v155
      %v460 = vunpack.c.h.b16 %v155
      %v461 = vunpack.c.l.b16 %v288
      %v462 = vunpack.c.h.b16 %v288
      %v463 = vunpack.c.l.b16 %v289
      %v464 = vunpack.c.h.b16 %v289
      %v465 = vunpack.c.l.b16 %v290
      %v466 = vunpack.c.h.b16 %v290
      %v467 = vunpack.c.l.b16 %v291
      %v468 = vunpack.c.h.b16 %v291
      %v469 = vpack.c.b16 %v445, %v437
      %v470 = vpack.c.b16 %v446, %v438
      %v471 = vpack.c.b16 %v447, %v439
      %v472 = vpack.c.b16 %v448, %v440
      %v473 = vpack.c.b16 %v449, %v441
      %v474 = vpack.c.b16 %v450, %v442
      %v475 = vpack.c.b16 %v451, %v443
      %v476 = vpack.c.b16 %v452, %v444
      %v477 = vpack.c.b16 %v461, %v453
      %v478 = vpack.c.b16 %v462, %v454
      %v479 = vpack.c.b16 %v463, %v455
      %v480 = vpack.c.b16 %v464, %v456
      %v481 = vpack.c.b16 %v465, %v457
      %v482 = vpack.c.b16 %v466, %v458
      %v483 = vpack.c.b16 %v467, %v459
      %v484 = vpack.c.b16 %v468, %v460
      %vm485 = vsmask.f32 7424
      %v487 = vshrl.u32 %v469, 16
      %v489 = vshll.u32 %v469, 16
      %v491 = vrot.slane %v489, 1
      %v492 = vor.u32 %v487, %v491
      %v494 = vshll.u32 %v477, 16
      %v496 = vrot.slane %v494, 1
      %v497 = vsel %vm485, %v492, %v496
      %v499 = vshrl.u32 %v470, 16
      %v501 = vshll.u32 %v470, 16
      %v503 = vrot.slane %v501, 1
      %v504 = vor.u32 %v499, %v503
      %v506 = vshll.u32 %v478, 16
      %v508 = vrot.slane %v506, 1
      %v509 = vsel %vm485, %v504, %v508
      %v511 = vshrl.u32 %v471, 16
      %v513 = vshll.u32 %v471, 16
      %v515 = vrot.slane %v513, 1
      %v516 = vor.u32 %v511, %v515
      %v518 = vshll.u32 %v479, 16
      %v520 = vrot.slane %v518, 1
      %v521 = vsel %vm485, %v516, %v520
      %v523 = vshrl.u32 %v472, 16
      %v525 = vshll.u32 %v472, 16
      %v527 = vrot.slane %v525, 1
      %v528 = vor.u32 %v523, %v527
      %v530 = vshll.u32 %v480, 16
      %v532 = vrot.slane %v530, 1
      %v533 = vsel %vm485, %v528, %v532
      %v535 = vshrl.u32 %v473, 16
      %v537 = vshll.u32 %v473, 16
      %v539 = vrot.slane %v537, 1
      %v540 = vor.u32 %v535, %v539
      %v542 = vshll.u32 %v481, 16
      %v544 = vrot.slane %v542, 1
      %v545 = vsel %vm485, %v540, %v544
      %v547 = vshrl.u32 %v474, 16
      %v549 = vshll.u32 %v474, 16
      %v551 = vrot.slane %v549, 1
      %v552 = vor.u32 %v547, %v551
      %v554 = vshll.u32 %v482, 16
      %v556 = vrot.slane %v554, 1
      %v557 = vsel %vm485, %v552, %v556
      %v559 = vshrl.u32 %v475, 16
      %v561 = vshll.u32 %v475, 16
      %v563 = vrot.slane %v561, 1
      %v564 = vor.u32 %v559, %v563
      %v566 = vshll.u32 %v483, 16
      %v568 = vrot.slane %v566, 1
      %v569 = vsel %vm485, %v564, %v568
      %v571 = vshrl.u32 %v476, 16
      %v573 = vshll.u32 %v476, 16
      %v575 = vrot.slane %v573, 1
      %v576 = vor.u32 %v571, %v575
      %v578 = vshll.u32 %v484, 16
      %v580 = vrot.slane %v578, 1
      %v581 = vsel %vm485, %v576, %v580
      %v582 = vshrl.u32 %v477, 16
      %v584 = vor.u32 %v582, %v496
      %v585 = vshrl.u32 %v478, 16
      %v587 = vor.u32 %v585, %v508
      %v588 = vshrl.u32 %v479, 16
      %v590 = vor.u32 %v588, %v520
      %v591 = vshrl.u32 %v480, 16
      %v593 = vor.u32 %v591, %v532
      %v594 = vshrl.u32 %v481, 16
      %v596 = vor.u32 %v594, %v544
      %v597 = vshrl.u32 %v482, 16
      %v599 = vor.u32 %v597, %v556
      %v600 = vshrl.u32 %v483, 16
      %v602 = vor.u32 %v600, %v568
      %v603 = vshrl.u32 %v484, 16
      %v605 = vor.u32 %v603, %v580
      %v750 = vunpack.c.l.b16 %v293
      %v751 = vunpack.c.l.b16 %v294
      %v752 = vunpack.c.l.b16 %v295
      %v753 = vunpack.c.l.b16 %v296
      %v754 = vunpack.c.l.b16 %v297
      %v755 = vunpack.c.l.b16 %v298
      %v756 = vunpack.c.l.b16 %v299
      %v757 = vunpack.c.l.b16 %v300
      %v758 = vunpack.c.l.b16 %v301
      %v759 = vunpack.c.l.b16 %v302
      %v760 = vunpack.c.l.b16 %v303
      %v761 = vunpack.c.l.b16 %v304
      %v762 = vunpack.c.l.b16 %v305
      %v763 = vunpack.c.l.b16 %v306
      %v764 = vunpack.c.l.b16 %v307
      %v765 = vunpack.c.l.b16 %v308
      %v766 = vunpack.c.l.b16 %v309
      %v767 = vunpack.c.l.b16 %v310
      %v768 = vunpack.c.l.b16 %v311
      %v769 = vunpack.c.l.b16 %v312
      %v770 = vunpack.c.l.b16 %v313
      %v771 = vunpack.c.l.b16 %v314
      %v772 = vunpack.c.l.b16 %v315
      %v773 = vunpack.c.l.b16 %v316
      %v774 = vunpack.c.l.b16 %v317
      %v775 = vunpack.c.l.b16 %v318
      %v776 = vunpack.c.l.b16 %v319
      %v777 = vunpack.c.l.b16 %v320
      %v778 = vunpack.c.l.b16 %v321
      %v779 = vunpack.c.l.b16 %v322
      %v780 = vunpack.c.l.b16 %v323
      %v781 = vunpack.c.l.b16 %v324
      %v782 = vunpack.c.l.b16 %v325
      %v783 = vunpack.c.l.b16 %v326
      %v784 = vunpack.c.l.b16 %v327
      %v785 = vunpack.c.l.b16 %v328
      %v786 = vunpack.c.l.b16 %v329
      %v787 = vunpack.c.l.b16 %v330
      %v788 = vunpack.c.l.b16 %v331
      %v789 = vunpack.c.l.b16 %v332
      %v790 = vunpack.c.l.b16 %v333
      %v791 = vunpack.c.l.b16 %v334
      %v792 = vunpack.c.l.b16 %v335
      %v793 = vunpack.c.l.b16 %v336
      %v794 = vunpack.c.l.b16 %v337
      %v795 = vunpack.c.l.b16 %v338
      %v796 = vunpack.c.l.b16 %v339
      %v797 = vunpack.c.l.b16 %v340
      %v798 = vunpack.c.l.b16 %v341
      %v799 = vunpack.c.l.b16 %v342
      %v800 = vunpack.c.l.b16 %v343
      %v801 = vunpack.c.l.b16 %v344
      %v802 = vunpack.c.l.b16 %v345
      %v803 = vunpack.c.l.b16 %v346
      %v804 = vunpack.c.l.b16 %v347
      %v805 = vunpack.c.l.b16 %v348
      %v806 = vunpack.c.l.b16 %v349
      %v807 = vunpack.c.l.b16 %v350
      %v808 = vunpack.c.l.b16 %v351
      %v809 = vunpack.c.l.b16 %v352
      %v810 = vunpack.c.l.b16 %v353
      %v811 = vunpack.c.l.b16 %v354
      %v812 = vunpack.c.l.b16 %v355
      %v813 = vunpack.c.l.b16 %v356
      %v814 = vunpack.c.l.b16 %v357
      %v815 = vunpack.c.l.b16 %v358
      %v816 = vunpack.c.l.b16 %v359
      %v817 = vunpack.c.l.b16 %v360
      %v818 = vunpack.c.l.b16 %v361
      %v819 = vunpack.c.l.b16 %v362
      %v820 = vunpack.c.l.b16 %v363
      %v821 = vunpack.c.l.b16 %v364
      %v822 = vunpack.c.l.b16 %v365
      %v823 = vunpack.c.l.b16 %v366
      %v824 = vunpack.c.l.b16 %v367
      %v825 = vunpack.c.l.b16 %v368
      %v826 = vunpack.c.l.b16 %v369
      %v827 = vunpack.c.l.b16 %v370
      %v828 = vunpack.c.l.b16 %v371
      %v829 = vunpack.c.l.b16 %v372
      %v830 = vunpack.c.l.b16 %v373
      %v831 = vunpack.c.l.b16 %v374
      %v832 = vunpack.c.l.b16 %v375
      %v833 = vunpack.c.l.b16 %v376
      %v834 = vunpack.c.l.b16 %v377
      %v835 = vunpack.c.l.b16 %v378
      %v836 = vunpack.c.l.b16 %v379
      %v837 = vunpack.c.l.b16 %v380
      %v838 = vunpack.c.l.b16 %v381
      %v839 = vunpack.c.l.b16 %v382
      %v840 = vunpack.c.l.b16 %v383
      %v841 = vunpack.c.l.b16 %v384
      %v842 = vunpack.c.l.b16 %v385
      %v843 = vunpack.c.l.b16 %v386
      %v844 = vunpack.c.l.b16 %v387
      %v845 = vunpack.c.l.b16 %v388
      %v846 = vunpack.c.l.b16 %v389
      %v847 = vunpack.c.l.b16 %v390
      %v848 = vunpack.c.l.b16 %v391
      %v849 = vunpack.c.l.b16 %v392
      %v850 = vunpack.c.l.b16 %v393
      %v851 = vunpack.c.l.b16 %v394
      %v852 = vunpack.c.l.b16 %v395
      %v853 = vunpack.c.l.b16 %v396
      %v854 = vunpack.c.l.b16 %v397
      %v855 = vunpack.c.l.b16 %v398
      %v856 = vunpack.c.l.b16 %v399
      %v857 = vunpack.c.l.b16 %v400
      %v858 = vunpack.c.l.b16 %v401
      %v859 = vunpack.c.l.b16 %v402
      %v860 = vunpack.c.l.b16 %v403
      %v861 = vunpack.c.l.b16 %v404
      %v862 = vunpack.c.l.b16 %v405
      %v863 = vunpack.c.l.b16 %v406
      %v864 = vunpack.c.l.b16 %v407
      %v865 = vunpack.c.l.b16 %v408
      %v866 = vunpack.c.l.b16 %v409
      %v867 = vunpack.c.l.b16 %v410
      %v868 = vunpack.c.l.b16 %v411
      %v869 = vunpack.c.l.b16 %v412
      %v870 = vunpack.c.l.b16 %v413
      %v871 = vunpack.c.l.b16 %v414
      %v872 = vunpack.c.l.b16 %v415
      %v873 = vunpack.c.l.b16 %v416
      %v874 = vunpack.c.l.b16 %v417
      %v875 = vunpack.c.l.b16 %v418
      %v876 = vunpack.c.l.b16 %v419
      %v877 = vunpack.c.l.b16 %v420
      %v878 = vpack.c.b16 %v751, %v750
      %v879 = vpack.c.b16 %v753, %v752
      %v880 = vpack.c.b16 %v755, %v754
      %v881 = vpack.c.b16 %v757, %v756
      %v882 = vpack.c.b16 %v759, %v758
      %v883 = vpack.c.b16 %v761, %v760
      %v884 = vpack.c.b16 %v763, %v762
      %v885 = vpack.c.b16 %v765, %v764
      %v886 = vpack.c.b16 %v767, %v766
      %v887 = vpack.c.b16 %v769, %v768
      %v888 = vpack.c.b16 %v771, %v770
      %v889 = vpack.c.b16 %v773, %v772
      %v890 = vpack.c.b16 %v775, %v774
      %v891 = vpack.c.b16 %v777, %v776
      %v892 = vpack.c.b16 %v779, %v778
      %v893 = vpack.c.b16 %v781, %v780
      %v894 = vpack.c.b16 %v783, %v782
      %v895 = vpack.c.b16 %v785, %v784
      %v896 = vpack.c.b16 %v787, %v786
      %v897 = vpack.c.b16 %v789, %v788
      %v898 = vpack.c.b16 %v791, %v790
      %v899 = vpack.c.b16 %v793, %v792
      %v900 = vpack.c.b16 %v795, %v794
      %v901 = vpack.c.b16 %v797, %v796
      %v902 = vpack.c.b16 %v799, %v798
      %v903 = vpack.c.b16 %v801, %v800
      %v904 = vpack.c.b16 %v803, %v802
      %v905 = vpack.c.b16 %v805, %v804
      %v906 = vpack.c.b16 %v807, %v806
      %v907 = vpack.c.b16 %v809, %v808
      %v908 = vpack.c.b16 %v811, %v810
      %v909 = vpack.c.b16 %v813, %v812
      %v910 = vpack.c.b16 %v815, %v814
      %v911 = vpack.c.b16 %v817, %v816
      %v912 = vpack.c.b16 %v819, %v818
      %v913 = vpack.c.b16 %v821, %v820
      %v914 = vpack.c.b16 %v823, %v822
      %v915 = vpack.c.b16 %v825, %v824
      %v916 = vpack.c.b16 %v827, %v826
      %v917 = vpack.c.b16 %v829, %v828
      %v918 = vpack.c.b16 %v831, %v830
      %v919 = vpack.c.b16 %v833, %v832
      %v920 = vpack.c.b16 %v835, %v834
      %v921 = vpack.c.b16 %v837, %v836
      %v922 = vpack.c.b16 %v839, %v838
      %v923 = vpack.c.b16 %v841, %v840
      %v924 = vpack.c.b16 %v843, %v842
      %v925 = vpack.c.b16 %v845, %v844
      %v926 = vpack.c.b16 %v847, %v846
      %v927 = vpack.c.b16 %v849, %v848
      %v928 = vpack.c.b16 %v851, %v850
      %v929 = vpack.c.b16 %v853, %v852
      %v930 = vpack.c.b16 %v855, %v854
      %v931 = vpack.c.b16 %v857, %v856
      %v932 = vpack.c.b16 %v859, %v858
      %v933 = vpack.c.b16 %v861, %v860
      %v934 = vpack.c.b16 %v863, %v862
      %v935 = vpack.c.b16 %v865, %v864
      %v936 = vpack.c.b16 %v867, %v866
      %v937 = vpack.c.b16 %v869, %v868
      %v938 = vpack.c.b16 %v871, %v870
      %v939 = vpack.c.b16 %v873, %v872
      %v940 = vpack.c.b16 %v875, %v874
      %v941 = vpack.c.b16 %v877, %v876
      %1006 = vmatpush.bf16.msra.mxu0 %v885
      %1007 = vmatpush.bf16.msra.mxu0 %v884
      %1008 = vmatpush.bf16.msra.mxu0 %v883
      %1009 = vmatpush.bf16.msra.mxu0 %v882
      %1010 = vmatpush.bf16.msra.mxu0 %v881
      %1011 = vmatpush.bf16.msra.mxu0 %v880
      %1012 = vmatpush.bf16.msra.mxu0 %v879
      %1013 = vmatpush.bf16.msra.mxu0 %v878
      %1014 = vmatmul.bf16.gmra.mxu0 %v497
      %v1015 = vpop.f32.mrf.mxu0
      %v1016 = vadd.f32 0.0, %v1015
      %v1017 = vpop.f32.mrf.mxu0
      %v1018 = vadd.f32 0.0, %v1017
      %1019 = vmatmul.bf16.gmra.mxu0 %v584
      %v1020 = vpop.f32.mrf.mxu0
      %v1021 = vadd.f32 0.0, %v1020
      %v1022 = vpop.f32.mrf.mxu0
      %v1023 = vadd.f32 0.0, %v1022
      %1024 = vdwg.mxu0
      %1025 = vmatpush.bf16.msra.mxu0 %v893
      %1026 = vmatpush.bf16.msra.mxu0 %v892
      %1027 = vmatpush.bf16.msra.mxu0 %v891
      %1028 = vmatpush.bf16.msra.mxu0 %v890
      %1029 = vmatpush.bf16.msra.mxu0 %v889
      %1030 = vmatpush.bf16.msra.mxu0 %v888
      %1031 = vmatpush.bf16.msra.mxu0 %v887
      %1032 = vmatpush.bf16.msra.mxu0 %v886
      %1033 = vmatmul.bf16.gmra.mxu0 %v509
      %v1034 = vpop.f32.mrf.mxu0
      %v1035 = vadd.f32 %v1016, %v1034
      %v1036 = vpop.f32.mrf.mxu0
      %v1037 = vadd.f32 %v1018, %v1036
      %1038 = vmatmul.bf16.gmra.mxu0 %v587
      %v1039 = vpop.f32.mrf.mxu0
      %v1040 = vadd.f32 %v1021, %v1039
      %v1041 = vpop.f32.mrf.mxu0
      %v1042 = vadd.f32 %v1023, %v1041
      %1043 = vdwg.mxu0
      %1044 = vmatpush.bf16.msra.mxu0 %v901
      %1045 = vmatpush.bf16.msra.mxu0 %v900
      %1046 = vmatpush.bf16.msra.mxu0 %v899
      %1047 = vmatpush.bf16.msra.mxu0 %v898
      %1048 = vmatpush.bf16.msra.mxu0 %v897
      %1049 = vmatpush.bf16.msra.mxu0 %v896
      %1050 = vmatpush.bf16.msra.mxu0 %v895
      %1051 = vmatpush.bf16.msra.mxu0 %v894
      %1052 = vmatmul.bf16.gmra.mxu0 %v521
      %v1053 = vpop.f32.mrf.mxu0
      %v1054 = vadd.f32 %v1035, %v1053
      %v1055 = vpop.f32.mrf.mxu0
      %v1056 = vadd.f32 %v1037, %v1055
      %1057 = vmatmul.bf16.gmra.mxu0 %v590
      %v1058 = vpop.f32.mrf.mxu0
      %v1059 = vadd.f32 %v1040, %v1058
      %v1060 = vpop.f32.mrf.mxu0
      %v1061 = vadd.f32 %v1042, %v1060
      %1062 = vdwg.mxu0
      %1063 = vmatpush.bf16.msra.mxu0 %v909
      %1064 = vmatpush.bf16.msra.mxu0 %v908
      %1065 = vmatpush.bf16.msra.mxu0 %v907
      %1066 = vmatpush.bf16.msra.mxu0 %v906
      %1067 = vmatpush.bf16.msra.mxu0 %v905
      %1068 = vmatpush.bf16.msra.mxu0 %v904
      %1069 = vmatpush.bf16.msra.mxu0 %v903
      %1070 = vmatpush.bf16.msra.mxu0 %v902
      %1071 = vmatmul.bf16.gmra.mxu0 %v533
      %v1072 = vpop.f32.mrf.mxu0
      %v1073 = vadd.f32 %v1054, %v1072
      %v1074 = vpop.f32.mrf.mxu0
      %v1075 = vadd.f32 %v1056, %v1074
      %1076 = vmatmul.bf16.gmra.mxu0 %v593
      %v1077 = vpop.f32.mrf.mxu0
      %v1078 = vadd.f32 %v1059, %v1077
      %v1079 = vpop.f32.mrf.mxu0
      %v1080 = vadd.f32 %v1061, %v1079
      %1081 = vdwg.mxu0
      %1082 = vmatpush.bf16.msra.mxu0 %v917
      %1083 = vmatpush.bf16.msra.mxu0 %v916
      %1084 = vmatpush.bf16.msra.mxu0 %v915
      %1085 = vmatpush.bf16.msra.mxu0 %v914
      %1086 = vmatpush.bf16.msra.mxu0 %v913
      %1087 = vmatpush.bf16.msra.mxu0 %v912
      %1088 = vmatpush.bf16.msra.mxu0 %v911
      %1089 = vmatpush.bf16.msra.mxu0 %v910
      %1090 = vmatmul.bf16.gmra.mxu0 %v545
      %v1091 = vpop.f32.mrf.mxu0
      %v1092 = vadd.f32 %v1073, %v1091
      %v1093 = vpop.f32.mrf.mxu0
      %v1094 = vadd.f32 %v1075, %v1093
      %1095 = vmatmul.bf16.gmra.mxu0 %v596
      %v1096 = vpop.f32.mrf.mxu0
      %v1097 = vadd.f32 %v1078, %v1096
      %v1098 = vpop.f32.mrf.mxu0
      %v1099 = vadd.f32 %v1080, %v1098
      %1100 = vdwg.mxu0
      %1101 = vmatpush.bf16.msra.mxu0 %v925
      %1102 = vmatpush.bf16.msra.mxu0 %v924
      %1103 = vmatpush.bf16.msra.mxu0 %v923
      %1104 = vmatpush.bf16.msra.mxu0 %v922
      %1105 = vmatpush.bf16.msra.mxu0 %v921
      %1106 = vmatpush.bf16.msra.mxu0 %v920
      %1107 = vmatpush.bf16.msra.mxu0 %v919
      %1108 = vmatpush.bf16.msra.mxu0 %v918
      %1109 = vmatmul.bf16.gmra.mxu0 %v557
      %v1110 = vpop.f32.mrf.mxu0
      %v1111 = vadd.f32 %v1092, %v1110
      %v1112 = vpop.f32.mrf.mxu0
      %v1113 = vadd.f32 %v1094, %v1112
      %1114 = vmatmul.bf16.gmra.mxu0 %v599
      %v1115 = vpop.f32.mrf.mxu0
      %v1116 = vadd.f32 %v1097, %v1115
      %v1117 = vpop.f32.mrf.mxu0
      %v1118 = vadd.f32 %v1099, %v1117
      %1119 = vdwg.mxu0
      %1120 = vmatpush.bf16.msra.mxu0 %v933
      %1121 = vmatpush.bf16.msra.mxu0 %v932
      %1122 = vmatpush.bf16.msra.mxu0 %v931
      %1123 = vmatpush.bf16.msra.mxu0 %v930
      %1124 = vmatpush.bf16.msra.mxu0 %v929
      %1125 = vmatpush.bf16.msra.mxu0 %v928
      %1126 = vmatpush.bf16.msra.mxu0 %v927
      %1127 = vmatpush.bf16.msra.mxu0 %v926
      %1128 = vmatmul.bf16.gmra.mxu0 %v569
      %v1129 = vpop.f32.mrf.mxu0
      %v1130 = vadd.f32 %v1111, %v1129
      %v1131 = vpop.f32.mrf.mxu0
      %v1132 = vadd.f32 %v1113, %v1131
      %1133 = vmatmul.bf16.gmra.mxu0 %v602
      %v1134 = vpop.f32.mrf.mxu0
      %v1135 = vadd.f32 %v1116, %v1134
      %v1136 = vpop.f32.mrf.mxu0
      %v1137 = vadd.f32 %v1118, %v1136
      %1138 = vdwg.mxu0
      %1139 = vmatpush.bf16.msra.mxu0 %v941
      %1140 = vmatpush.bf16.msra.mxu0 %v940
      %1141 = vmatpush.bf16.msra.mxu0 %v939
      %1142 = vmatpush.bf16.msra.mxu0 %v938
      %1143 = vmatpush.bf16.msra.mxu0 %v937
      %1144 = vmatpush.bf16.msra.mxu0 %v936
      %1145 = vmatpush.bf16.msra.mxu0 %v935
      %1146 = vmatpush.bf16.msra.mxu0 %v934
      %1147 = vmatmul.bf16.gmra.mxu0 %v581
      %v1148 = vpop.f32.mrf.mxu0
      %v1149 = vadd.f32 %v1130, %v1148
      %v1150 = vpop.f32.mrf.mxu0
      %v1151 = vadd.f32 %v1132, %v1150
      %1152 = vmatmul.bf16.gmra.mxu0 %v605
      %v1153 = vpop.f32.mrf.mxu0
      %v1154 = vadd.f32 %v1135, %v1153
      %v1155 = vpop.f32.mrf.mxu0
      %v1156 = vadd.f32 %v1137, %v1155
      %1157 = vdwg.mxu0
      %v1162 = vunpack.c.l.b16 %v156
      %v1163 = vunpack.c.h.b16 %v156
      %v1164 = vunpack.c.l.b16 %v157
      %v1165 = vunpack.c.h.b16 %v157
      %v1166 = vunpack.c.l.b16 %v158
      %v1167 = vunpack.c.h.b16 %v158
      %v1168 = vunpack.c.l.b16 %v159
      %v1169 = vunpack.c.h.b16 %v159
      %v1170 = vpack.c.b16 %v1162, %v453
      %v1171 = vpack.c.b16 %v1163, %v454
      %v1172 = vpack.c.b16 %v1164, %v455
      %v1173 = vpack.c.b16 %v1165, %v456
      %v1174 = vpack.c.b16 %v1166, %v457
      %v1175 = vpack.c.b16 %v1167, %v458
      %v1176 = vpack.c.b16 %v1168, %v459
      %v1177 = vpack.c.b16 %v1169, %v460
      %v1322 = vunpack.c.l.b16 %v160
      %v1323 = vunpack.c.l.b16 %v161
      %v1324 = vunpack.c.l.b16 %v162
      %v1325 = vunpack.c.l.b16 %v163
      %v1326 = vunpack.c.l.b16 %v164
      %v1327 = vunpack.c.l.b16 %v165
      %v1328 = vunpack.c.l.b16 %v166
      %v1329 = vunpack.c.l.b16 %v167
      %v1330 = vunpack.c.l.b16 %v168
      %v1331 = vunpack.c.l.b16 %v169
      %v1332 = vunpack.c.l.b16 %v170
      %v1333 = vunpack.c.l.b16 %v171
      %v1334 = vunpack.c.l.b16 %v172
      %v1335 = vunpack.c.l.b16 %v173
      %v1336 = vunpack.c.l.b16 %v174
      %v1337 = vunpack.c.l.b16 %v175
      %v1338 = vunpack.c.l.b16 %v176
      %v1339 = vunpack.c.l.b16 %v177
      %v1340 = vunpack.c.l.b16 %v178
      %v1341 = vunpack.c.l.b16 %v179
      %v1342 = vunpack.c.l.b16 %v180
      %v1343 = vunpack.c.l.b16 %v181
      %v1344 = vunpack.c.l.b16 %v182
      %v1345 = vunpack.c.l.b16 %v183
      %v1346 = vunpack.c.l.b16 %v184
      %v1347 = vunpack.c.l.b16 %v185
      %v1348 = vunpack.c.l.b16 %v186
      %v1349 = vunpack.c.l.b16 %v187
      %v1350 = vunpack.c.l.b16 %v188
      %v1351 = vunpack.c.l.b16 %v189
      %v1352 = vunpack.c.l.b16 %v190
      %v1353 = vunpack.c.l.b16 %v191
      %v1354 = vunpack.c.l.b16 %v192
      %v1355 = vunpack.c.l.b16 %v193
      %v1356 = vunpack.c.l.b16 %v194
      %v1357 = vunpack.c.l.b16 %v195
      %v1358 = vunpack.c.l.b16 %v196
      %v1359 = vunpack.c.l.b16 %v197
      %v1360 = vunpack.c.l.b16 %v198
      %v1361 = vunpack.c.l.b16 %v199
      %v1362 = vunpack.c.l.b16 %v200
      %v1363 = vunpack.c.l.b16 %v201
      %v1364 = vunpack.c.l.b16 %v202
      %v1365 = vunpack.c.l.b16 %v203
      %v1366 = vunpack.c.l.b16 %v204
      %v1367 = vunpack.c.l.b16 %v205
      %v1368 = vunpack.c.l.b16 %v206
      %v1369 = vunpack.c.l.b16 %v207
      %v1370 = vunpack.c.l.b16 %v208
      %v1371 = vunpack.c.l.b16 %v209
      %v1372 = vunpack.c.l.b16 %v210
      %v1373 = vunpack.c.l.b16 %v211
      %v1374 = vunpack.c.l.b16 %v212
      %v1375 = vunpack.c.l.b16 %v213
      %v1376 = vunpack.c.l.b16 %v214
      %v1377 = vunpack.c.l.b16 %v215
      %v1378 = vunpack.c.l.b16 %v216
      %v1379 = vunpack.c.l.b16 %v217
      %v1380 = vunpack.c.l.b16 %v218
      %v1381 = vunpack.c.l.b16 %v219
      %v1382 = vunpack.c.l.b16 %v220
      %v1383 = vunpack.c.l.b16 %v221
      %v1384 = vunpack.c.l.b16 %v222
      %v1385 = vunpack.c.l.b16 %v223
      %v1386 = vunpack.c.l.b16 %v224
      %v1387 = vunpack.c.l.b16 %v225
      %v1388 = vunpack.c.l.b16 %v226
      %v1389 = vunpack.c.l.b16 %v227
      %v1390 = vunpack.c.l.b16 %v228
      %v1391 = vunpack.c.l.b16 %v229
      %v1392 = vunpack.c.l.b16 %v230
      %v1393 = vunpack.c.l.b16 %v231
      %v1394 = vunpack.c.l.b16 %v232
      %v1395 = vunpack.c.l.b16 %v233
      %v1396 = vunpack.c.l.b16 %v234
      %v1397 = vunpack.c.l.b16 %v235
      %v1398 = vunpack.c.l.b16 %v236
      %v1399 = vunpack.c.l.b16 %v237
      %v1400 = vunpack.c.l.b16 %v238
      %v1401 = vunpack.c.l.b16 %v239
      %v1402 = vunpack.c.l.b16 %v240
      %v1403 = vunpack.c.l.b16 %v241
      %v1404 = vunpack.c.l.b16 %v242
      %v1405 = vunpack.c.l.b16 %v243
      %v1406 = vunpack.c.l.b16 %v244
      %v1407 = vunpack.c.l.b16 %v245
      %v1408 = vunpack.c.l.b16 %v246
      %v1409 = vunpack.c.l.b16 %v247
      %v1410 = vunpack.c.l.b16 %v248
      %v1411 = vunpack.c.l.b16 %v249
      %v1412 = vunpack.c.l.b16 %v250
      %v1413 = vunpack.c.l.b16 %v251
      %v1414 = vunpack.c.l.b16 %v252
      %v1415 = vunpack.c.l.b16 %v253
      %v1416 = vunpack.c.l.b16 %v254
      %v1417 = vunpack.c.l.b16 %v255
      %v1418 = vunpack.c.l.b16 %v256
      %v1419 = vunpack.c.l.b16 %v257
      %v1420 = vunpack.c.l.b16 %v258
      %v1421 = vunpack.c.l.b16 %v259
      %v1422 = vunpack.c.l.b16 %v260
      %v1423 = vunpack.c.l.b16 %v261
      %v1424 = vunpack.c.l.b16 %v262
      %v1425 = vunpack.c.l.b16 %v263
      %v1426 = vunpack.c.l.b16 %v264
      %v1427 = vunpack.c.l.b16 %v265
      %v1428 = vunpack.c.l.b16 %v266
      %v1429 = vunpack.c.l.b16 %v267
      %v1430 = vunpack.c.l.b16 %v268
      %v1431 = vunpack.c.l.b16 %v269
      %v1432 = vunpack.c.l.b16 %v270
      %v1433 = vunpack.c.l.b16 %v271
      %v1434 = vunpack.c.l.b16 %v272
      %v1435 = vunpack.c.l.b16 %v273
      %v1436 = vunpack.c.l.b16 %v274
      %v1437 = vunpack.c.l.b16 %v275
      %v1438 = vunpack.c.l.b16 %v276
      %v1439 = vunpack.c.l.b16 %v277
      %v1440 = vunpack.c.l.b16 %v278
      %v1441 = vunpack.c.l.b16 %v279
      %v1442 = vunpack.c.l.b16 %v280
      %v1443 = vunpack.c.l.b16 %v281
      %v1444 = vunpack.c.l.b16 %v282
      %v1445 = vunpack.c.l.b16 %v283
      %v1446 = vunpack.c.l.b16 %v284
      %v1447 = vunpack.c.l.b16 %v285
      %v1448 = vunpack.c.l.b16 %v286
      %v1449 = vunpack.c.l.b16 %v287
      %v1450 = vpack.c.b16 %v1323, %v1322
      %v1451 = vpack.c.b16 %v1325, %v1324
      %v1452 = vpack.c.b16 %v1327, %v1326
      %v1453 = vpack.c.b16 %v1329, %v1328
      %v1454 = vpack.c.b16 %v1331, %v1330
      %v1455 = vpack.c.b16 %v1333, %v1332
      %v1456 = vpack.c.b16 %v1335, %v1334
      %v1457 = vpack.c.b16 %v1337, %v1336
      %v1458 = vpack.c.b16 %v1339, %v1338
      %v1459 = vpack.c.b16 %v1341, %v1340
      %v1460 = vpack.c.b16 %v1343, %v1342
      %v1461 = vpack.c.b16 %v1345, %v1344
      %v1462 = vpack.c.b16 %v1347, %v1346
      %v1463 = vpack.c.b16 %v1349, %v1348
      %v1464 = vpack.c.b16 %v1351, %v1350
      %v1465 = vpack.c.b16 %v1353, %v1352
      %v1466 = vpack.c.b16 %v1355, %v1354
      %v1467 = vpack.c.b16 %v1357, %v1356
      %v1468 = vpack.c.b16 %v1359, %v1358
      %v1469 = vpack.c.b16 %v1361, %v1360
      %v1470 = vpack.c.b16 %v1363, %v1362
      %v1471 = vpack.c.b16 %v1365, %v1364
      %v1472 = vpack.c.b16 %v1367, %v1366
      %v1473 = vpack.c.b16 %v1369, %v1368
      %v1474 = vpack.c.b16 %v1371, %v1370
      %v1475 = vpack.c.b16 %v1373, %v1372
      %v1476 = vpack.c.b16 %v1375, %v1374
      %v1477 = vpack.c.b16 %v1377, %v1376
      %v1478 = vpack.c.b16 %v1379, %v1378
      %v1479 = vpack.c.b16 %v1381, %v1380
      %v1480 = vpack.c.b16 %v1383, %v1382
      %v1481 = vpack.c.b16 %v1385, %v1384
      %v1482 = vpack.c.b16 %v1387, %v1386
      %v1483 = vpack.c.b16 %v1389, %v1388
      %v1484 = vpack.c.b16 %v1391, %v1390
      %v1485 = vpack.c.b16 %v1393, %v1392
      %v1486 = vpack.c.b16 %v1395, %v1394
      %v1487 = vpack.c.b16 %v1397, %v1396
      %v1488 = vpack.c.b16 %v1399, %v1398
      %v1489 = vpack.c.b16 %v1401, %v1400
      %v1490 = vpack.c.b16 %v1403, %v1402
      %v1491 = vpack.c.b16 %v1405, %v1404
      %v1492 = vpack.c.b16 %v1407, %v1406
      %v1493 = vpack.c.b16 %v1409, %v1408
      %v1494 = vpack.c.b16 %v1411, %v1410
      %v1495 = vpack.c.b16 %v1413, %v1412
      %v1496 = vpack.c.b16 %v1415, %v1414
      %v1497 = vpack.c.b16 %v1417, %v1416
      %v1498 = vpack.c.b16 %v1419, %v1418
      %v1499 = vpack.c.b16 %v1421, %v1420
      %v1500 = vpack.c.b16 %v1423, %v1422
      %v1501 = vpack.c.b16 %v1425, %v1424
      %v1502 = vpack.c.b16 %v1427, %v1426
      %v1503 = vpack.c.b16 %v1429, %v1428
      %v1504 = vpack.c.b16 %v1431, %v1430
      %v1505 = vpack.c.b16 %v1433, %v1432
      %v1506 = vpack.c.b16 %v1435, %v1434
      %v1507 = vpack.c.b16 %v1437, %v1436
      %v1508 = vpack.c.b16 %v1439, %v1438
      %v1509 = vpack.c.b16 %v1441, %v1440
      %v1510 = vpack.c.b16 %v1443, %v1442
      %v1511 = vpack.c.b16 %v1445, %v1444
      %v1512 = vpack.c.b16 %v1447, %v1446
      %v1513 = vpack.c.b16 %v1449, %v1448
      %1578 = vmatpush.bf16.msra.mxu0 %v1457
      %1579 = vmatpush.bf16.msra.mxu0 %v1456
      %1580 = vmatpush.bf16.msra.mxu0 %v1455
      %1581 = vmatpush.bf16.msra.mxu0 %v1454
      %1582 = vmatpush.bf16.msra.mxu0 %v1453
      %1583 = vmatpush.bf16.msra.mxu0 %v1452
      %1584 = vmatpush.bf16.msra.mxu0 %v1451
      %1585 = vmatpush.bf16.msra.mxu0 %v1450
      %1586 = vmatmul.bf16.gmra.mxu0 %v469
      %v1587 = vpop.f32.mrf.mxu0
      %v1588 = vadd.f32 %v1149, %v1587
      %v1589 = vpop.f32.mrf.mxu0
      %v1590 = vadd.f32 %v1151, %v1589
      %1591 = vmatmul.bf16.gmra.mxu0 %v1170
      %v1592 = vpop.f32.mrf.mxu0
      %v1593 = vadd.f32 %v1154, %v1592
      %v1594 = vpop.f32.mrf.mxu0
      %v1595 = vadd.f32 %v1156, %v1594
      %1596 = vdwg.mxu0
      %1597 = vmatpush.bf16.msra.mxu0 %v1465
      %1598 = vmatpush.bf16.msra.mxu0 %v1464
      %1599 = vmatpush.bf16.msra.mxu0 %v1463
      %1600 = vmatpush.bf16.msra.mxu0 %v1462
      %1601 = vmatpush.bf16.msra.mxu0 %v1461
      %1602 = vmatpush.bf16.msra.mxu0 %v1460
      %1603 = vmatpush.bf16.msra.mxu0 %v1459
      %1604 = vmatpush.bf16.msra.mxu0 %v1458
      %1605 = vmatmul.bf16.gmra.mxu0 %v470
      %v1606 = vpop.f32.mrf.mxu0
      %v1607 = vadd.f32 %v1588, %v1606
      %v1608 = vpop.f32.mrf.mxu0
      %v1609 = vadd.f32 %v1590, %v1608
      %1610 = vmatmul.bf16.gmra.mxu0 %v1171
      %v1611 = vpop.f32.mrf.mxu0
      %v1612 = vadd.f32 %v1593, %v1611
      %v1613 = vpop.f32.mrf.mxu0
      %v1614 = vadd.f32 %v1595, %v1613
      %1615 = vdwg.mxu0
      %1616 = vmatpush.bf16.msra.mxu0 %v1473
      %1617 = vmatpush.bf16.msra.mxu0 %v1472
      %1618 = vmatpush.bf16.msra.mxu0 %v1471
      %1619 = vmatpush.bf16.msra.mxu0 %v1470
      %1620 = vmatpush.bf16.msra.mxu0 %v1469
      %1621 = vmatpush.bf16.msra.mxu0 %v1468
      %1622 = vmatpush.bf16.msra.mxu0 %v1467
      %1623 = vmatpush.bf16.msra.mxu0 %v1466
      %1624 = vmatmul.bf16.gmra.mxu0 %v471
      %v1625 = vpop.f32.mrf.mxu0
      %v1626 = vadd.f32 %v1607, %v1625
      %v1627 = vpop.f32.mrf.mxu0
      %v1628 = vadd.f32 %v1609, %v1627
      %1629 = vmatmul.bf16.gmra.mxu0 %v1172
      %v1630 = vpop.f32.mrf.mxu0
      %v1631 = vadd.f32 %v1612, %v1630
      %v1632 = vpop.f32.mrf.mxu0
      %v1633 = vadd.f32 %v1614, %v1632
      %1634 = vdwg.mxu0
      %1635 = vmatpush.bf16.msra.mxu0 %v1481
      %1636 = vmatpush.bf16.msra.mxu0 %v1480
      %1637 = vmatpush.bf16.msra.mxu0 %v1479
      %1638 = vmatpush.bf16.msra.mxu0 %v1478
      %1639 = vmatpush.bf16.msra.mxu0 %v1477
      %1640 = vmatpush.bf16.msra.mxu0 %v1476
      %1641 = vmatpush.bf16.msra.mxu0 %v1475
      %1642 = vmatpush.bf16.msra.mxu0 %v1474
      %1643 = vmatmul.bf16.gmra.mxu0 %v472
      %v1644 = vpop.f32.mrf.mxu0
      %v1645 = vadd.f32 %v1626, %v1644
      %v1646 = vpop.f32.mrf.mxu0
      %v1647 = vadd.f32 %v1628, %v1646
      %1648 = vmatmul.bf16.gmra.mxu0 %v1173
      %v1649 = vpop.f32.mrf.mxu0
      %v1650 = vadd.f32 %v1631, %v1649
      %v1651 = vpop.f32.mrf.mxu0
      %v1652 = vadd.f32 %v1633, %v1651
      %1653 = vdwg.mxu0
      %1654 = vmatpush.bf16.msra.mxu0 %v1489
      %1655 = vmatpush.bf16.msra.mxu0 %v1488
      %1656 = vmatpush.bf16.msra.mxu0 %v1487
      %1657 = vmatpush.bf16.msra.mxu0 %v1486
      %1658 = vmatpush.bf16.msra.mxu0 %v1485
      %1659 = vmatpush.bf16.msra.mxu0 %v1484
      %1660 = vmatpush.bf16.msra.mxu0 %v1483
      %1661 = vmatpush.bf16.msra.mxu0 %v1482
      %1662 = vmatmul.bf16.gmra.mxu0 %v473
      %v1663 = vpop.f32.mrf.mxu0
      %v1664 = vadd.f32 %v1645, %v1663
      %v1665 = vpop.f32.mrf.mxu0
      %v1666 = vadd.f32 %v1647, %v1665
      %1667 = vmatmul.bf16.gmra.mxu0 %v1174
      %v1668 = vpop.f32.mrf.mxu0
      %v1669 = vadd.f32 %v1650, %v1668
      %v1670 = vpop.f32.mrf.mxu0
      %v1671 = vadd.f32 %v1652, %v1670
      %1672 = vdwg.mxu0
      %1673 = vmatpush.bf16.msra.mxu0 %v1497
      %1674 = vmatpush.bf16.msra.mxu0 %v1496
      %1675 = vmatpush.bf16.msra.mxu0 %v1495
      %1676 = vmatpush.bf16.msra.mxu0 %v1494
      %1677 = vmatpush.bf16.msra.mxu0 %v1493
      %1678 = vmatpush.bf16.msra.mxu0 %v1492
      %1679 = vmatpush.bf16.msra.mxu0 %v1491
      %1680 = vmatpush.bf16.msra.mxu0 %v1490
      %1681 = vmatmul.bf16.gmra.mxu0 %v474
      %v1682 = vpop.f32.mrf.mxu0
      %v1683 = vadd.f32 %v1664, %v1682
      %v1684 = vpop.f32.mrf.mxu0
      %v1685 = vadd.f32 %v1666, %v1684
      %1686 = vmatmul.bf16.gmra.mxu0 %v1175
      %v1687 = vpop.f32.mrf.mxu0
      %v1688 = vadd.f32 %v1669, %v1687
      %v1689 = vpop.f32.mrf.mxu0
      %v1690 = vadd.f32 %v1671, %v1689
      %1691 = vdwg.mxu0
      %1692 = vmatpush.bf16.msra.mxu0 %v1505
      %1693 = vmatpush.bf16.msra.mxu0 %v1504
      %1694 = vmatpush.bf16.msra.mxu0 %v1503
      %1695 = vmatpush.bf16.msra.mxu0 %v1502
      %1696 = vmatpush.bf16.msra.mxu0 %v1501
      %1697 = vmatpush.bf16.msra.mxu0 %v1500
      %1698 = vmatpush.bf16.msra.mxu0 %v1499
      %1699 = vmatpush.bf16.msra.mxu0 %v1498
      %1700 = vmatmul.bf16.gmra.mxu0 %v475
      %v1701 = vpop.f32.mrf.mxu0
      %v1702 = vadd.f32 %v1683, %v1701
      %v1703 = vpop.f32.mrf.mxu0
      %v1704 = vadd.f32 %v1685, %v1703
      %1705 = vmatmul.bf16.gmra.mxu0 %v1176
      %v1706 = vpop.f32.mrf.mxu0
      %v1707 = vadd.f32 %v1688, %v1706
      %v1708 = vpop.f32.mrf.mxu0
      %v1709 = vadd.f32 %v1690, %v1708
      %1710 = vdwg.mxu0
      %1711 = vmatpush.bf16.msra.mxu0 %v1513
      %1712 = vmatpush.bf16.msra.mxu0 %v1512
      %1713 = vmatpush.bf16.msra.mxu0 %v1511
      %1714 = vmatpush.bf16.msra.mxu0 %v1510
      %1715 = vmatpush.bf16.msra.mxu0 %v1509
      %1716 = vmatpush.bf16.msra.mxu0 %v1508
      %1717 = vmatpush.bf16.msra.mxu0 %v1507
      %1718 = vmatpush.bf16.msra.mxu0 %v1506
      %1719 = vmatmul.bf16.gmra.mxu0 %v476
      %v1720 = vpop.f32.mrf.mxu0
      %v1721 = vadd.f32 %v1702, %v1720
      %v1722 = vpop.f32.mrf.mxu0
      %v1723 = vadd.f32 %v1704, %v1722
      %1724 = vmatmul.bf16.gmra.mxu0 %v1177
      %v1725 = vpop.f32.mrf.mxu0
      %v1726 = vadd.f32 %v1707, %v1725
      %v1727 = vpop.f32.mrf.mxu0
      %v1728 = vadd.f32 %v1709, %v1727
      %1729 = vdwg.mxu0
      %v1730 = vld [vmem:[%s138] sm:$0xee]
      %v1731 = vld [vmem:[%s138 + $0x8] sm:$0xee]
      %v1732 = vld [vmem:[%s138 + $0x10] sm:$0xee]
      %v1733 = vld [vmem:[%s138 + $0x18] sm:$0xee]
      %s1734 = scalar_lea.vmem %s1, 1024
      %v1735 = vld [vmem:[%s1734] sm:$0xf]
      %v1736 = vld [vmem:[%s1734 + $0x4] sm:$0xf]
      %v1737 = vld [vmem:[%s1734 + $0x8] sm:$0xf]
      %v1738 = vld [vmem:[%s1734 + $0xc] sm:$0xf]
      %v1739 = vld [vmem:[%s1734 + $0x10] sm:$0xf]
      %v1740 = vld [vmem:[%s1734 + $0x14] sm:$0xf]
      %v1741 = vld [vmem:[%s1734 + $0x18] sm:$0xf]
      %v1742 = vld [vmem:[%s1734 + $0x1c] sm:$0xf]
      %v1743 = vld [vmem:[%s1734 + $0x20] sm:$0xf]
      %v1744 = vld [vmem:[%s1734 + $0x24] sm:$0xf]
      %v1745 = vld [vmem:[%s1734 + $0x28] sm:$0xf]
      %v1746 = vld [vmem:[%s1734 + $0x2c] sm:$0xf]
      %v1747 = vld [vmem:[%s1734 + $0x30] sm:$0xf]
      %v1748 = vld [vmem:[%s1734 + $0x34] sm:$0xf]
      %v1749 = vld [vmem:[%s1734 + $0x38] sm:$0xf]
      %v1750 = vld [vmem:[%s1734 + $0x3c] sm:$0xf]
      %v1751 = vld [vmem:[%s1734 + $0x40] sm:$0xf]
      %v1752 = vld [vmem:[%s1734 + $0x44] sm:$0xf]
      %v1753 = vld [vmem:[%s1734 + $0x48] sm:$0xf]
      %v1754 = vld [vmem:[%s1734 + $0x4c] sm:$0xf]
      %v1755 = vld [vmem:[%s1734 + $0x50] sm:$0xf]
      %v1756 = vld [vmem:[%s1734 + $0x54] sm:$0xf]
      %v1757 = vld [vmem:[%s1734 + $0x58] sm:$0xf]
      %v1758 = vld [vmem:[%s1734 + $0x5c] sm:$0xf]
      %v1759 = vld [vmem:[%s1734 + $0x60] sm:$0xf]
      %v1760 = vld [vmem:[%s1734 + $0x64] sm:$0xf]
      %v1761 = vld [vmem:[%s1734 + $0x68] sm:$0xf]
      %v1762 = vld [vmem:[%s1734 + $0x6c] sm:$0xf]
      %v1763 = vld [vmem:[%s1734 + $0x70] sm:$0xf]
      %v1764 = vld [vmem:[%s1734 + $0x74] sm:$0xf]
      %v1765 = vld [vmem:[%s1734 + $0x78] sm:$0xf]
      %v1766 = vld [vmem:[%s1734 + $0x7c] sm:$0xf]
      %v1767 = vld [vmem:[%s1734 + $0x80] sm:$0xf]
      %v1768 = vld [vmem:[%s1734 + $0x84] sm:$0xf]
      %v1769 = vld [vmem:[%s1734 + $0x88] sm:$0xf]
      %v1770 = vld [vmem:[%s1734 + $0x8c] sm:$0xf]
      %v1771 = vld [vmem:[%s1734 + $0x90] sm:$0xf]
      %v1772 = vld [vmem:[%s1734 + $0x94] sm:$0xf]
      %v1773 = vld [vmem:[%s1734 + $0x98] sm:$0xf]
      %v1774 = vld [vmem:[%s1734 + $0x9c] sm:$0xf]
      %v1775 = vld [vmem:[%s1734 + $0xa0] sm:$0xf]
      %v1776 = vld [vmem:[%s1734 + $0xa4] sm:$0xf]
      %v1777 = vld [vmem:[%s1734 + $0xa8] sm:$0xf]
      %v1778 = vld [vmem:[%s1734 + $0xac] sm:$0xf]
      %v1779 = vld [vmem:[%s1734 + $0xb0] sm:$0xf]
      %v1780 = vld [vmem:[%s1734 + $0xb4] sm:$0xf]
      %v1781 = vld [vmem:[%s1734 + $0xb8] sm:$0xf]
      %v1782 = vld [vmem:[%s1734 + $0xbc] sm:$0xf]
      %v1783 = vld [vmem:[%s1734 + $0xc0] sm:$0xf]
      %v1784 = vld [vmem:[%s1734 + $0xc4] sm:$0xf]
      %v1785 = vld [vmem:[%s1734 + $0xc8] sm:$0xf]
      %v1786 = vld [vmem:[%s1734 + $0xcc] sm:$0xf]
      %v1787 = vld [vmem:[%s1734 + $0xd0] sm:$0xf]
      %v1788 = vld [vmem:[%s1734 + $0xd4] sm:$0xf]
      %v1789 = vld [vmem:[%s1734 + $0xd8] sm:$0xf]
      %v1790 = vld [vmem:[%s1734 + $0xdc] sm:$0xf]
      %v1791 = vld [vmem:[%s1734 + $0xe0] sm:$0xf]
      %v1792 = vld [vmem:[%s1734 + $0xe4] sm:$0xf]
      %v1793 = vld [vmem:[%s1734 + $0xe8] sm:$0xf]
      %v1794 = vld [vmem:[%s1734 + $0xec] sm:$0xf]
      %v1795 = vld [vmem:[%s1734 + $0xf0] sm:$0xf]
      %v1796 = vld [vmem:[%s1734 + $0xf4] sm:$0xf]
      %v1797 = vld [vmem:[%s1734 + $0xf8] sm:$0xf]
      %v1798 = vld [vmem:[%s1734 + $0xfc] sm:$0xf]
      %v1799 = vld [vmem:[%s1734 + $0x100] sm:$0xf]
      %v1800 = vld [vmem:[%s1734 + $0x104] sm:$0xf]
      %v1801 = vld [vmem:[%s1734 + $0x108] sm:$0xf]
      %v1802 = vld [vmem:[%s1734 + $0x10c] sm:$0xf]
      %v1803 = vld [vmem:[%s1734 + $0x110] sm:$0xf]
      %v1804 = vld [vmem:[%s1734 + $0x114] sm:$0xf]
      %v1805 = vld [vmem:[%s1734 + $0x118] sm:$0xf]
      %v1806 = vld [vmem:[%s1734 + $0x11c] sm:$0xf]
      %v1807 = vld [vmem:[%s1734 + $0x120] sm:$0xf]
      %v1808 = vld [vmem:[%s1734 + $0x124] sm:$0xf]
      %v1809 = vld [vmem:[%s1734 + $0x128] sm:$0xf]
      %v1810 = vld [vmem:[%s1734 + $0x12c] sm:$0xf]
      %v1811 = vld [vmem:[%s1734 + $0x130] sm:$0xf]
      %v1812 = vld [vmem:[%s1734 + $0x134] sm:$0xf]
      %v1813 = vld [vmem:[%s1734 + $0x138] sm:$0xf]
      %v1814 = vld [vmem:[%s1734 + $0x13c] sm:$0xf]
      %v1815 = vld [vmem:[%s1734 + $0x140] sm:$0xf]
      %v1816 = vld [vmem:[%s1734 + $0x144] sm:$0xf]
      %v1817 = vld [vmem:[%s1734 + $0x148] sm:$0xf]
      %v1818 = vld [vmem:[%s1734 + $0x14c] sm:$0xf]
      %v1819 = vld [vmem:[%s1734 + $0x150] sm:$0xf]
      %v1820 = vld [vmem:[%s1734 + $0x154] sm:$0xf]
      %v1821 = vld [vmem:[%s1734 + $0x158] sm:$0xf]
      %v1822 = vld [vmem:[%s1734 + $0x15c] sm:$0xf]
      %v1823 = vld [vmem:[%s1734 + $0x160] sm:$0xf]
      %v1824 = vld [vmem:[%s1734 + $0x164] sm:$0xf]
      %v1825 = vld [vmem:[%s1734 + $0x168] sm:$0xf]
      %v1826 = vld [vmem:[%s1734 + $0x16c] sm:$0xf]
      %v1827 = vld [vmem:[%s1734 + $0x170] sm:$0xf]
      %v1828 = vld [vmem:[%s1734 + $0x174] sm:$0xf]
      %v1829 = vld [vmem:[%s1734 + $0x178] sm:$0xf]
      %v1830 = vld [vmem:[%s1734 + $0x17c] sm:$0xf]
      %v1831 = vld [vmem:[%s1734 + $0x180] sm:$0xf]
      %v1832 = vld [vmem:[%s1734 + $0x184] sm:$0xf]
      %v1833 = vld [vmem:[%s1734 + $0x188] sm:$0xf]
      %v1834 = vld [vmem:[%s1734 + $0x18c] sm:$0xf]
      %v1835 = vld [vmem:[%s1734 + $0x190] sm:$0xf]
      %v1836 = vld [vmem:[%s1734 + $0x194] sm:$0xf]
      %v1837 = vld [vmem:[%s1734 + $0x198] sm:$0xf]
      %v1838 = vld [vmem:[%s1734 + $0x19c] sm:$0xf]
      %v1839 = vld [vmem:[%s1734 + $0x1a0] sm:$0xf]
      %v1840 = vld [vmem:[%s1734 + $0x1a4] sm:$0xf]
      %v1841 = vld [vmem:[%s1734 + $0x1a8] sm:$0xf]
      %v1842 = vld [vmem:[%s1734 + $0x1ac] sm:$0xf]
      %v1843 = vld [vmem:[%s1734 + $0x1b0] sm:$0xf]
      %v1844 = vld [vmem:[%s1734 + $0x1b4] sm:$0xf]
      %v1845 = vld [vmem:[%s1734 + $0x1b8] sm:$0xf]
      %v1846 = vld [vmem:[%s1734 + $0x1bc] sm:$0xf]
      %v1847 = vld [vmem:[%s1734 + $0x1c0] sm:$0xf]
      %v1848 = vld [vmem:[%s1734 + $0x1c4] sm:$0xf]
      %v1849 = vld [vmem:[%s1734 + $0x1c8] sm:$0xf]
      %v1850 = vld [vmem:[%s1734 + $0x1cc] sm:$0xf]
      %v1851 = vld [vmem:[%s1734 + $0x1d0] sm:$0xf]
      %v1852 = vld [vmem:[%s1734 + $0x1d4] sm:$0xf]
      %v1853 = vld [vmem:[%s1734 + $0x1d8] sm:$0xf]
      %v1854 = vld [vmem:[%s1734 + $0x1dc] sm:$0xf]
      %v1855 = vld [vmem:[%s1734 + $0x1e0] sm:$0xf]
      %v1856 = vld [vmem:[%s1734 + $0x1e4] sm:$0xf]
      %v1857 = vld [vmem:[%s1734 + $0x1e8] sm:$0xf]
      %v1858 = vld [vmem:[%s1734 + $0x1ec] sm:$0xf]
      %v1859 = vld [vmem:[%s1734 + $0x1f0] sm:$0xf]
      %v1860 = vld [vmem:[%s1734 + $0x1f4] sm:$0xf]
      %v1861 = vld [vmem:[%s1734 + $0x1f8] sm:$0xf]
      %v1862 = vld [vmem:[%s1734 + $0x1fc] sm:$0xf]
      %v1867 = vunpack.c.l.b16 %v1730
      %v1868 = vunpack.c.h.b16 %v1730
      %v1869 = vunpack.c.l.b16 %v1731
      %v1870 = vunpack.c.h.b16 %v1731
      %v1871 = vunpack.c.l.b16 %v1732
      %v1872 = vunpack.c.h.b16 %v1732
      %v1873 = vunpack.c.l.b16 %v1733
      %v1874 = vunpack.c.h.b16 %v1733
      %v1875 = vpack.c.b16 %v445, %v1867
      %v1876 = vpack.c.b16 %v446, %v1868
      %v1877 = vpack.c.b16 %v447, %v1869
      %v1878 = vpack.c.b16 %v448, %v1870
      %v1879 = vpack.c.b16 %v449, %v1871
      %v1880 = vpack.c.b16 %v450, %v1872
      %v1881 = vpack.c.b16 %v451, %v1873
      %v1882 = vpack.c.b16 %v452, %v1874
      %vm1883 = vcmask 1046528
      %v1884 = vrot.slane %v1875, 1
      %v1885 = vrot.slane %v477, 1
      %v1886 = vsel %vm1883, %v1884, %v1885
      %v1887 = vrot.slane %v1876, 1
      %v1888 = vrot.slane %v478, 1
      %v1889 = vsel %vm1883, %v1887, %v1888
      %v1890 = vrot.slane %v1877, 1
      %v1891 = vrot.slane %v479, 1
      %v1892 = vsel %vm1883, %v1890, %v1891
      %v1893 = vrot.slane %v1878, 1
      %v1894 = vrot.slane %v480, 1
      %v1895 = vsel %vm1883, %v1893, %v1894
      %v1896 = vrot.slane %v1879, 1
      %v1897 = vrot.slane %v481, 1
      %v1898 = vsel %vm1883, %v1896, %v1897
      %v1899 = vrot.slane %v1880, 1
      %v1900 = vrot.slane %v482, 1
      %v1901 = vsel %vm1883, %v1899, %v1900
      %v1902 = vrot.slane %v1881, 1
      %v1903 = vrot.slane %v483, 1
      %v1904 = vsel %vm1883, %v1902, %v1903
      %v1905 = vrot.slane %v1882, 1
      %v1906 = vrot.slane %v484, 1
      %v1907 = vsel %vm1883, %v1905, %v1906
      %v2052 = vunpack.c.l.b16 %v1735
      %v2053 = vunpack.c.l.b16 %v1736
      %v2054 = vunpack.c.l.b16 %v1737
      %v2055 = vunpack.c.l.b16 %v1738
      %v2056 = vunpack.c.l.b16 %v1739
      %v2057 = vunpack.c.l.b16 %v1740
      %v2058 = vunpack.c.l.b16 %v1741
      %v2059 = vunpack.c.l.b16 %v1742
      %v2060 = vunpack.c.l.b16 %v1743
      %v2061 = vunpack.c.l.b16 %v1744
      %v2062 = vunpack.c.l.b16 %v1745
      %v2063 = vunpack.c.l.b16 %v1746
      %v2064 = vunpack.c.l.b16 %v1747
      %v2065 = vunpack.c.l.b16 %v1748
      %v2066 = vunpack.c.l.b16 %v1749
      %v2067 = vunpack.c.l.b16 %v1750
      %v2068 = vunpack.c.l.b16 %v1751
      %v2069 = vunpack.c.l.b16 %v1752
      %v2070 = vunpack.c.l.b16 %v1753
      %v2071 = vunpack.c.l.b16 %v1754
      %v2072 = vunpack.c.l.b16 %v1755
      %v2073 = vunpack.c.l.b16 %v1756
      %v2074 = vunpack.c.l.b16 %v1757
      %v2075 = vunpack.c.l.b16 %v1758
      %v2076 = vunpack.c.l.b16 %v1759
      %v2077 = vunpack.c.l.b16 %v1760
      %v2078 = vunpack.c.l.b16 %v1761
      %v2079 = vunpack.c.l.b16 %v1762
      %v2080 = vunpack.c.l.b16 %v1763
      %v2081 = vunpack.c.l.b16 %v1764
      %v2082 = vunpack.c.l.b16 %v1765
      %v2083 = vunpack.c.l.b16 %v1766
      %v2084 = vunpack.c.l.b16 %v1767
      %v2085 = vunpack.c.l.b16 %v1768
      %v2086 = vunpack.c.l.b16 %v1769
      %v2087 = vunpack.c.l.b16 %v1770
      %v2088 = vunpack.c.l.b16 %v1771
      %v2089 = vunpack.c.l.b16 %v1772
      %v2090 = vunpack.c.l.b16 %v1773
      %v2091 = vunpack.c.l.b16 %v1774
      %v2092 = vunpack.c.l.b16 %v1775
      %v2093 = vunpack.c.l.b16 %v1776
      %v2094 = vunpack.c.l.b16 %v1777
      %v2095 = vunpack.c.l.b16 %v1778
      %v2096 = vunpack.c.l.b16 %v1779
      %v2097 = vunpack.c.l.b16 %v1780
      %v2098 = vunpack.c.l.b16 %v1781
      %v2099 = vunpack.c.l.b16 %v1782
      %v2100 = vunpack.c.l.b16 %v1783
      %v2101 = vunpack.c.l.b16 %v1784
      %v2102 = vunpack.c.l.b16 %v1785
      %v2103 = vunpack.c.l.b16 %v1786
      %v2104 = vunpack.c.l.b16 %v1787
      %v2105 = vunpack.c.l.b16 %v1788
      %v2106 = vunpack.c.l.b16 %v1789
      %v2107 = vunpack.c.l.b16 %v1790
      %v2108 = vunpack.c.l.b16 %v1791
      %v2109 = vunpack.c.l.b16 %v1792
      %v2110 = vunpack.c.l.b16 %v1793
      %v2111 = vunpack.c.l.b16 %v1794
      %v2112 = vunpack.c.l.b16 %v1795
      %v2113 = vunpack.c.l.b16 %v1796
      %v2114 = vunpack.c.l.b16 %v1797
      %v2115 = vunpack.c.l.b16 %v1798
      %v2116 = vunpack.c.l.b16 %v1799
      %v2117 = vunpack.c.l.b16 %v1800
      %v2118 = vunpack.c.l.b16 %v1801
      %v2119 = vunpack.c.l.b16 %v1802
      %v2120 = vunpack.c.l.b16 %v1803
      %v2121 = vunpack.c.l.b16 %v1804
      %v2122 = vunpack.c.l.b16 %v1805
      %v2123 = vunpack.c.l.b16 %v1806
      %v2124 = vunpack.c.l.b16 %v1807
      %v2125 = vunpack.c.l.b16 %v1808
      %v2126 = vunpack.c.l.b16 %v1809
      %v2127 = vunpack.c.l.b16 %v1810
      %v2128 = vunpack.c.l.b16 %v1811
      %v2129 = vunpack.c.l.b16 %v1812
      %v2130 = vunpack.c.l.b16 %v1813
      %v2131 = vunpack.c.l.b16 %v1814
      %v2132 = vunpack.c.l.b16 %v1815
      %v2133 = vunpack.c.l.b16 %v1816
      %v2134 = vunpack.c.l.b16 %v1817
      %v2135 = vunpack.c.l.b16 %v1818
      %v2136 = vunpack.c.l.b16 %v1819
      %v2137 = vunpack.c.l.b16 %v1820
      %v2138 = vunpack.c.l.b16 %v1821
      %v2139 = vunpack.c.l.b16 %v1822
      %v2140 = vunpack.c.l.b16 %v1823
      %v2141 = vunpack.c.l.b16 %v1824
      %v2142 = vunpack.c.l.b16 %v1825
      %v2143 = vunpack.c.l.b16 %v1826
      %v2144 = vunpack.c.l.b16 %v1827
      %v2145 = vunpack.c.l.b16 %v1828
      %v2146 = vunpack.c.l.b16 %v1829
      %v2147 = vunpack.c.l.b16 %v1830
      %v2148 = vunpack.c.l.b16 %v1831
      %v2149 = vunpack.c.l.b16 %v1832
      %v2150 = vunpack.c.l.b16 %v1833
      %v2151 = vunpack.c.l.b16 %v1834
      %v2152 = vunpack.c.l.b16 %v1835
      %v2153 = vunpack.c.l.b16 %v1836
      %v2154 = vunpack.c.l.b16 %v1837
      %v2155 = vunpack.c.l.b16 %v1838
      %v2156 = vunpack.c.l.b16 %v1839
      %v2157 = vunpack.c.l.b16 %v1840
      %v2158 = vunpack.c.l.b16 %v1841
      %v2159 = vunpack.c.l.b16 %v1842
      %v2160 = vunpack.c.l.b16 %v1843
      %v2161 = vunpack.c.l.b16 %v1844
      %v2162 = vunpack.c.l.b16 %v1845
      %v2163 = vunpack.c.l.b16 %v1846
      %v2164 = vunpack.c.l.b16 %v1847
      %v2165 = vunpack.c.l.b16 %v1848
      %v2166 = vunpack.c.l.b16 %v1849
      %v2167 = vunpack.c.l.b16 %v1850
      %v2168 = vunpack.c.l.b16 %v1851
      %v2169 = vunpack.c.l.b16 %v1852
      %v2170 = vunpack.c.l.b16 %v1853
      %v2171 = vunpack.c.l.b16 %v1854
      %v2172 = vunpack.c.l.b16 %v1855
      %v2173 = vunpack.c.l.b16 %v1856
      %v2174 = vunpack.c.l.b16 %v1857
      %v2175 = vunpack.c.l.b16 %v1858
      %v2176 = vunpack.c.l.b16 %v1859
      %v2177 = vunpack.c.l.b16 %v1860
      %v2178 = vunpack.c.l.b16 %v1861
      %v2179 = vunpack.c.l.b16 %v1862
      %v2180 = vpack.c.b16 %v2053, %v2052
      %v2181 = vpack.c.b16 %v2055, %v2054
      %v2182 = vpack.c.b16 %v2057, %v2056
      %v2183 = vpack.c.b16 %v2059, %v2058
      %v2184 = vpack.c.b16 %v2061, %v2060
      %v2185 = vpack.c.b16 %v2063, %v2062
      %v2186 = vpack.c.b16 %v2065, %v2064
      %v2187 = vpack.c.b16 %v2067, %v2066
      %v2188 = vpack.c.b16 %v2069, %v2068
      %v2189 = vpack.c.b16 %v2071, %v2070
      %v2190 = vpack.c.b16 %v2073, %v2072
      %v2191 = vpack.c.b16 %v2075, %v2074
      %v2192 = vpack.c.b16 %v2077, %v2076
      %v2193 = vpack.c.b16 %v2079, %v2078
      %v2194 = vpack.c.b16 %v2081, %v2080
      %v2195 = vpack.c.b16 %v2083, %v2082
      %v2196 = vpack.c.b16 %v2085, %v2084
      %v2197 = vpack.c.b16 %v2087, %v2086
      %v2198 = vpack.c.b16 %v2089, %v2088
      %v2199 = vpack.c.b16 %v2091, %v2090
      %v2200 = vpack.c.b16 %v2093, %v2092
      %v2201 = vpack.c.b16 %v2095, %v2094
      %v2202 = vpack.c.b16 %v2097, %v2096
      %v2203 = vpack.c.b16 %v2099, %v2098
      %v2204 = vpack.c.b16 %v2101, %v2100
      %v2205 = vpack.c.b16 %v2103, %v2102
      %v2206 = vpack.c.b16 %v2105, %v2104
      %v2207 = vpack.c.b16 %v2107, %v2106
      %v2208 = vpack.c.b16 %v2109, %v2108
      %v2209 = vpack.c.b16 %v2111, %v2110
      %v2210 = vpack.c.b16 %v2113, %v2112
      %v2211 = vpack.c.b16 %v2115, %v2114
      %v2212 = vpack.c.b16 %v2117, %v2116
      %v2213 = vpack.c.b16 %v2119, %v2118
      %v2214 = vpack.c.b16 %v2121, %v2120
      %v2215 = vpack.c.b16 %v2123, %v2122
      %v2216 = vpack.c.b16 %v2125, %v2124
      %v2217 = vpack.c.b16 %v2127, %v2126
      %v2218 = vpack.c.b16 %v2129, %v2128
      %v2219 = vpack.c.b16 %v2131, %v2130
      %v2220 = vpack.c.b16 %v2133, %v2132
      %v2221 = vpack.c.b16 %v2135, %v2134
      %v2222 = vpack.c.b16 %v2137, %v2136
      %v2223 = vpack.c.b16 %v2139, %v2138
      %v2224 = vpack.c.b16 %v2141, %v2140
      %v2225 = vpack.c.b16 %v2143, %v2142
      %v2226 = vpack.c.b16 %v2145, %v2144
      %v2227 = vpack.c.b16 %v2147, %v2146
      %v2228 = vpack.c.b16 %v2149, %v2148
      %v2229 = vpack.c.b16 %v2151, %v2150
      %v2230 = vpack.c.b16 %v2153, %v2152
      %v2231 = vpack.c.b16 %v2155, %v2154
      %v2232 = vpack.c.b16 %v2157, %v2156
      %v2233 = vpack.c.b16 %v2159, %v2158
      %v2234 = vpack.c.b16 %v2161, %v2160
      %v2235 = vpack.c.b16 %v2163, %v2162
      %v2236 = vpack.c.b16 %v2165, %v2164
      %v2237 = vpack.c.b16 %v2167, %v2166
      %v2238 = vpack.c.b16 %v2169, %v2168
      %v2239 = vpack.c.b16 %v2171, %v2170
      %v2240 = vpack.c.b16 %v2173, %v2172
      %v2241 = vpack.c.b16 %v2175, %v2174
      %v2242 = vpack.c.b16 %v2177, %v2176
      %v2243 = vpack.c.b16 %v2179, %v2178
      %2308 = vmatpush.bf16.msra.mxu0 %v2187
      %2309 = vmatpush.bf16.msra.mxu0 %v2186
      %2310 = vmatpush.bf16.msra.mxu0 %v2185
      %2311 = vmatpush.bf16.msra.mxu0 %v2184
      %2312 = vmatpush.bf16.msra.mxu0 %v2183
      %2313 = vmatpush.bf16.msra.mxu0 %v2182
      %2314 = vmatpush.bf16.msra.mxu0 %v2181
      %2315 = vmatpush.bf16.msra.mxu0 %v2180
      %2316 = vmatmul.bf16.gmra.mxu0 %v1886
      %v2317 = vpop.f32.mrf.mxu0
      %v2318 = vadd.f32 0.0, %v2317
      %v2319 = vpop.f32.mrf.mxu0
      %v2320 = vadd.f32 0.0, %v2319
      %2321 = vmatmul.bf16.gmra.mxu0 %v1885
      %v2322 = vpop.f32.mrf.mxu0
      %v2323 = vadd.f32 0.0, %v2322
      %v2324 = vpop.f32.mrf.mxu0
      %v2325 = vadd.f32 0.0, %v2324
      %2326 = vdwg.mxu0
      %2327 = vmatpush.bf16.msra.mxu0 %v2195
      %2328 = vmatpush.bf16.msra.mxu0 %v2194
      %2329 = vmatpush.bf16.msra.mxu0 %v2193
      %2330 = vmatpush.bf16.msra.mxu0 %v2192
      %2331 = vmatpush.bf16.msra.mxu0 %v2191
      %2332 = vmatpush.bf16.msra.mxu0 %v2190
      %2333 = vmatpush.bf16.msra.mxu0 %v2189
      %2334 = vmatpush.bf16.msra.mxu0 %v2188
      %2335 = vmatmul.bf16.gmra.mxu0 %v1889
      %v2336 = vpop.f32.mrf.mxu0
      %v2337 = vadd.f32 %v2318, %v2336
      %v2338 = vpop.f32.mrf.mxu0
      %v2339 = vadd.f32 %v2320, %v2338
      %2340 = vmatmul.bf16.gmra.mxu0 %v1888
      %v2341 = vpop.f32.mrf.mxu0
      %v2342 = vadd.f32 %v2323, %v2341
      %v2343 = vpop.f32.mrf.mxu0
      %v2344 = vadd.f32 %v2325, %v2343
      %2345 = vdwg.mxu0
      %2346 = vmatpush.bf16.msra.mxu0 %v2203
      %2347 = vmatpush.bf16.msra.mxu0 %v2202
      %2348 = vmatpush.bf16.msra.mxu0 %v2201
      %2349 = vmatpush.bf16.msra.mxu0 %v2200
      %2350 = vmatpush.bf16.msra.mxu0 %v2199
      %2351 = vmatpush.bf16.msra.mxu0 %v2198
      %2352 = vmatpush.bf16.msra.mxu0 %v2197
      %2353 = vmatpush.bf16.msra.mxu0 %v2196
      %2354 = vmatmul.bf16.gmra.mxu0 %v1892
      %v2355 = vpop.f32.mrf.mxu0
      %v2356 = vadd.f32 %v2337, %v2355
      %v2357 = vpop.f32.mrf.mxu0
      %v2358 = vadd.f32 %v2339, %v2357
      %2359 = vmatmul.bf16.gmra.mxu0 %v1891
      %v2360 = vpop.f32.mrf.mxu0
      %v2361 = vadd.f32 %v2342, %v2360
      %v2362 = vpop.f32.mrf.mxu0
      %v2363 = vadd.f32 %v2344, %v2362
      %2364 = vdwg.mxu0
      %2365 = vmatpush.bf16.msra.mxu0 %v2211
      %2366 = vmatpush.bf16.msra.mxu0 %v2210
      %2367 = vmatpush.bf16.msra.mxu0 %v2209
      %2368 = vmatpush.bf16.msra.mxu0 %v2208
      %2369 = vmatpush.bf16.msra.mxu0 %v2207
      %2370 = vmatpush.bf16.msra.mxu0 %v2206
      %2371 = vmatpush.bf16.msra.mxu0 %v2205
      %2372 = vmatpush.bf16.msra.mxu0 %v2204
      %2373 = vmatmul.bf16.gmra.mxu0 %v1895
      %v2374 = vpop.f32.mrf.mxu0
      %v2375 = vadd.f32 %v2356, %v2374
      %v2376 = vpop.f32.mrf.mxu0
      %v2377 = vadd.f32 %v2358, %v2376
      %2378 = vmatmul.bf16.gmra.mxu0 %v1894
      %v2379 = vpop.f32.mrf.mxu0
      %v2380 = vadd.f32 %v2361, %v2379
      %v2381 = vpop.f32.mrf.mxu0
      %v2382 = vadd.f32 %v2363, %v2381
      %2383 = vdwg.mxu0
      %2384 = vmatpush.bf16.msra.mxu0 %v2219
      %2385 = vmatpush.bf16.msra.mxu0 %v2218
      %2386 = vmatpush.bf16.msra.mxu0 %v2217
      %2387 = vmatpush.bf16.msra.mxu0 %v2216
      %2388 = vmatpush.bf16.msra.mxu0 %v2215
      %2389 = vmatpush.bf16.msra.mxu0 %v2214
      %2390 = vmatpush.bf16.msra.mxu0 %v2213
      %2391 = vmatpush.bf16.msra.mxu0 %v2212
      %2392 = vmatmul.bf16.gmra.mxu0 %v1898
      %v2393 = vpop.f32.mrf.mxu0
      %v2394 = vadd.f32 %v2375, %v2393
      %v2395 = vpop.f32.mrf.mxu0
      %v2396 = vadd.f32 %v2377, %v2395
      %2397 = vmatmul.bf16.gmra.mxu0 %v1897
      %v2398 = vpop.f32.mrf.mxu0
      %v2399 = vadd.f32 %v2380, %v2398
      %v2400 = vpop.f32.mrf.mxu0
      %v2401 = vadd.f32 %v2382, %v2400
      %2402 = vdwg.mxu0
      %2403 = vmatpush.bf16.msra.mxu0 %v2227
      %2404 = vmatpush.bf16.msra.mxu0 %v2226
      %2405 = vmatpush.bf16.msra.mxu0 %v2225
      %2406 = vmatpush.bf16.msra.mxu0 %v2224
      %2407 = vmatpush.bf16.msra.mxu0 %v2223
      %2408 = vmatpush.bf16.msra.mxu0 %v2222
      %2409 = vmatpush.bf16.msra.mxu0 %v2221
      %2410 = vmatpush.bf16.msra.mxu0 %v2220
      %2411 = vmatmul.bf16.gmra.mxu0 %v1901
      %v2412 = vpop.f32.mrf.mxu0
      %v2413 = vadd.f32 %v2394, %v2412
      %v2414 = vpop.f32.mrf.mxu0
      %v2415 = vadd.f32 %v2396, %v2414
      %2416 = vmatmul.bf16.gmra.mxu0 %v1900
      %v2417 = vpop.f32.mrf.mxu0
      %v2418 = vadd.f32 %v2399, %v2417
      %v2419 = vpop.f32.mrf.mxu0
      %v2420 = vadd.f32 %v2401, %v2419
      %2421 = vdwg.mxu0
      %2422 = vmatpush.bf16.msra.mxu0 %v2235
      %2423 = vmatpush.bf16.msra.mxu0 %v2234
      %2424 = vmatpush.bf16.msra.mxu0 %v2233
      %2425 = vmatpush.bf16.msra.mxu0 %v2232
      %2426 = vmatpush.bf16.msra.mxu0 %v2231
      %2427 = vmatpush.bf16.msra.mxu0 %v2230
      %2428 = vmatpush.bf16.msra.mxu0 %v2229
      %2429 = vmatpush.bf16.msra.mxu0 %v2228
      %2430 = vmatmul.bf16.gmra.mxu0 %v1904
      %v2431 = vpop.f32.mrf.mxu0
      %v2432 = vadd.f32 %v2413, %v2431
      %v2433 = vpop.f32.mrf.mxu0
      %v2434 = vadd.f32 %v2415, %v2433
      %2435 = vmatmul.bf16.gmra.mxu0 %v1903
      %v2436 = vpop.f32.mrf.mxu0
      %v2437 = vadd.f32 %v2418, %v2436
      %v2438 = vpop.f32.mrf.mxu0
      %v2439 = vadd.f32 %v2420, %v2438
      %2440 = vdwg.mxu0
      %2441 = vmatpush.bf16.msra.mxu0 %v2243
      %2442 = vmatpush.bf16.msra.mxu0 %v2242
      %2443 = vmatpush.bf16.msra.mxu0 %v2241
      %2444 = vmatpush.bf16.msra.mxu0 %v2240
      %2445 = vmatpush.bf16.msra.mxu0 %v2239
      %2446 = vmatpush.bf16.msra.mxu0 %v2238
      %2447 = vmatpush.bf16.msra.mxu0 %v2237
      %2448 = vmatpush.bf16.msra.mxu0 %v2236
      %2449 = vmatmul.bf16.gmra.mxu0 %v1907
      %v2450 = vpop.f32.mrf.mxu0
      %v2451 = vadd.f32 %v2432, %v2450
      %v2452 = vpop.f32.mrf.mxu0
      %v2453 = vadd.f32 %v2434, %v2452
      %2454 = vmatmul.bf16.gmra.mxu0 %v1906
      %v2455 = vpop.f32.mrf.mxu0
      %v2456 = vadd.f32 %v2437, %v2455
      %v2457 = vpop.f32.mrf.mxu0
      %v2458 = vadd.f32 %v2439, %v2457
      %2459 = vdwg.mxu0
      %v2460 = vadd.f32 %v1721, %v2451
      %v2461 = vadd.f32 %v1723, %v2453
      %v2462 = vadd.f32 %v1726, %v2456
      %v2463 = vadd.f32 %v1728, %v2458
      %v2464 = vld [vmem:[%s138 + $0x60] sm:$0xff]
      %v2465 = vld [vmem:[%s138 + $0x68] sm:$0xff]
      %v2466 = vld [vmem:[%s138 + $0x70] sm:$0xff]
      %v2467 = vld [vmem:[%s138 + $0x78] sm:$0xff]
      %s2468 = scalar_lea.vmem %s1, 1536
      %v2469 = vld [vmem:[%s2468] sm:$0xf]
      %v2470 = vld [vmem:[%s2468 + $0x4] sm:$0xf]
      %v2471 = vld [vmem:[%s2468 + $0x8] sm:$0xf]
      %v2472 = vld [vmem:[%s2468 + $0xc] sm:$0xf]
      %v2473 = vld [vmem:[%s2468 + $0x10] sm:$0xf]
      %v2474 = vld [vmem:[%s2468 + $0x14] sm:$0xf]
      %v2475 = vld [vmem:[%s2468 + $0x18] sm:$0xf]
      %v2476 = vld [vmem:[%s2468 + $0x1c] sm:$0xf]
      %v2477 = vld [vmem:[%s2468 + $0x20] sm:$0xf]
      %v2478 = vld [vmem:[%s2468 + $0x24] sm:$0xf]
      %v2479 = vld [vmem:[%s2468 + $0x28] sm:$0xf]
      %v2480 = vld [vmem:[%s2468 + $0x2c] sm:$0xf]
      %v2481 = vld [vmem:[%s2468 + $0x30] sm:$0xf]
      %v2482 = vld [vmem:[%s2468 + $0x34] sm:$0xf]
      %v2483 = vld [vmem:[%s2468 + $0x38] sm:$0xf]
      %v2484 = vld [vmem:[%s2468 + $0x3c] sm:$0xf]
      %v2485 = vld [vmem:[%s2468 + $0x40] sm:$0xf]
      %v2486 = vld [vmem:[%s2468 + $0x44] sm:$0xf]
      %v2487 = vld [vmem:[%s2468 + $0x48] sm:$0xf]
      %v2488 = vld [vmem:[%s2468 + $0x4c] sm:$0xf]
      %v2489 = vld [vmem:[%s2468 + $0x50] sm:$0xf]
      %v2490 = vld [vmem:[%s2468 + $0x54] sm:$0xf]
      %v2491 = vld [vmem:[%s2468 + $0x58] sm:$0xf]
      %v2492 = vld [vmem:[%s2468 + $0x5c] sm:$0xf]
      %v2493 = vld [vmem:[%s2468 + $0x60] sm:$0xf]
      %v2494 = vld [vmem:[%s2468 + $0x64] sm:$0xf]
      %v2495 = vld [vmem:[%s2468 + $0x68] sm:$0xf]
      %v2496 = vld [vmem:[%s2468 + $0x6c] sm:$0xf]
      %v2497 = vld [vmem:[%s2468 + $0x70] sm:$0xf]
      %v2498 = vld [vmem:[%s2468 + $0x74] sm:$0xf]
      %v2499 = vld [vmem:[%s2468 + $0x78] sm:$0xf]
      %v2500 = vld [vmem:[%s2468 + $0x7c] sm:$0xf]
      %v2501 = vld [vmem:[%s2468 + $0x80] sm:$0xf]
      %v2502 = vld [vmem:[%s2468 + $0x84] sm:$0xf]
      %v2503 = vld [vmem:[%s2468 + $0x88] sm:$0xf]
      %v2504 = vld [vmem:[%s2468 + $0x8c] sm:$0xf]
      %v2505 = vld [vmem:[%s2468 + $0x90] sm:$0xf]
      %v2506 = vld [vmem:[%s2468 + $0x94] sm:$0xf]
      %v2507 = vld [vmem:[%s2468 + $0x98] sm:$0xf]
      %v2508 = vld [vmem:[%s2468 + $0x9c] sm:$0xf]
      %v2509 = vld [vmem:[%s2468 + $0xa0] sm:$0xf]
      %v2510 = vld [vmem:[%s2468 + $0xa4] sm:$0xf]
      %v2511 = vld [vmem:[%s2468 + $0xa8] sm:$0xf]
      %v2512 = vld [vmem:[%s2468 + $0xac] sm:$0xf]
      %v2513 = vld [vmem:[%s2468 + $0xb0] sm:$0xf]
      %v2514 = vld [vmem:[%s2468 + $0xb4] sm:$0xf]
      %v2515 = vld [vmem:[%s2468 + $0xb8] sm:$0xf]
      %v2516 = vld [vmem:[%s2468 + $0xbc] sm:$0xf]
      %v2517 = vld [vmem:[%s2468 + $0xc0] sm:$0xf]
      %v2518 = vld [vmem:[%s2468 + $0xc4] sm:$0xf]
      %v2519 = vld [vmem:[%s2468 + $0xc8] sm:$0xf]
      %v2520 = vld [vmem:[%s2468 + $0xcc] sm:$0xf]
      %v2521 = vld [vmem:[%s2468 + $0xd0] sm:$0xf]
      %v2522 = vld [vmem:[%s2468 + $0xd4] sm:$0xf]
      %v2523 = vld [vmem:[%s2468 + $0xd8] sm:$0xf]
      %v2524 = vld [vmem:[%s2468 + $0xdc] sm:$0xf]
      %v2525 = vld [vmem:[%s2468 + $0xe0] sm:$0xf]
      %v2526 = vld [vmem:[%s2468 + $0xe4] sm:$0xf]
      %v2527 = vld [vmem:[%s2468 + $0xe8] sm:$0xf]
      %v2528 = vld [vmem:[%s2468 + $0xec] sm:$0xf]
      %v2529 = vld [vmem:[%s2468 + $0xf0] sm:$0xf]
      %v2530 = vld [vmem:[%s2468 + $0xf4] sm:$0xf]
      %v2531 = vld [vmem:[%s2468 + $0xf8] sm:$0xf]
      %v2532 = vld [vmem:[%s2468 + $0xfc] sm:$0xf]
      %v2533 = vld [vmem:[%s2468 + $0x100] sm:$0xf]
      %v2534 = vld [vmem:[%s2468 + $0x104] sm:$0xf]
      %v2535 = vld [vmem:[%s2468 + $0x108] sm:$0xf]
      %v2536 = vld [vmem:[%s2468 + $0x10c] sm:$0xf]
      %v2537 = vld [vmem:[%s2468 + $0x110] sm:$0xf]
      %v2538 = vld [vmem:[%s2468 + $0x114] sm:$0xf]
      %v2539 = vld [vmem:[%s2468 + $0x118] sm:$0xf]
      %v2540 = vld [vmem:[%s2468 + $0x11c] sm:$0xf]
      %v2541 = vld [vmem:[%s2468 + $0x120] sm:$0xf]
      %v2542 = vld [vmem:[%s2468 + $0x124] sm:$0xf]
      %v2543 = vld [vmem:[%s2468 + $0x128] sm:$0xf]
      %v2544 = vld [vmem:[%s2468 + $0x12c] sm:$0xf]
      %v2545 = vld [vmem:[%s2468 + $0x130] sm:$0xf]
      %v2546 = vld [vmem:[%s2468 + $0x134] sm:$0xf]
      %v2547 = vld [vmem:[%s2468 + $0x138] sm:$0xf]
      %v2548 = vld [vmem:[%s2468 + $0x13c] sm:$0xf]
      %v2549 = vld [vmem:[%s2468 + $0x140] sm:$0xf]
      %v2550 = vld [vmem:[%s2468 + $0x144] sm:$0xf]
      %v2551 = vld [vmem:[%s2468 + $0x148] sm:$0xf]
      %v2552 = vld [vmem:[%s2468 + $0x14c] sm:$0xf]
      %v2553 = vld [vmem:[%s2468 + $0x150] sm:$0xf]
      %v2554 = vld [vmem:[%s2468 + $0x154] sm:$0xf]
      %v2555 = vld [vmem:[%s2468 + $0x158] sm:$0xf]
      %v2556 = vld [vmem:[%s2468 + $0x15c] sm:$0xf]
      %v2557 = vld [vmem:[%s2468 + $0x160] sm:$0xf]
      %v2558 = vld [vmem:[%s2468 + $0x164] sm:$0xf]
      %v2559 = vld [vmem:[%s2468 + $0x168] sm:$0xf]
      %v2560 = vld [vmem:[%s2468 + $0x16c] sm:$0xf]
      %v2561 = vld [vmem:[%s2468 + $0x170] sm:$0xf]
      %v2562 = vld [vmem:[%s2468 + $0x174] sm:$0xf]
      %v2563 = vld [vmem:[%s2468 + $0x178] sm:$0xf]
      %v2564 = vld [vmem:[%s2468 + $0x17c] sm:$0xf]
      %v2565 = vld [vmem:[%s2468 + $0x180] sm:$0xf]
      %v2566 = vld [vmem:[%s2468 + $0x184] sm:$0xf]
      %v2567 = vld [vmem:[%s2468 + $0x188] sm:$0xf]
      %v2568 = vld [vmem:[%s2468 + $0x18c] sm:$0xf]
      %v2569 = vld [vmem:[%s2468 + $0x190] sm:$0xf]
      %v2570 = vld [vmem:[%s2468 + $0x194] sm:$0xf]
      %v2571 = vld [vmem:[%s2468 + $0x198] sm:$0xf]
      %v2572 = vld [vmem:[%s2468 + $0x19c] sm:$0xf]
      %v2573 = vld [vmem:[%s2468 + $0x1a0] sm:$0xf]
      %v2574 = vld [vmem:[%s2468 + $0x1a4] sm:$0xf]
      %v2575 = vld [vmem:[%s2468 + $0x1a8] sm:$0xf]
      %v2576 = vld [vmem:[%s2468 + $0x1ac] sm:$0xf]
      %v2577 = vld [vmem:[%s2468 + $0x1b0] sm:$0xf]
      %v2578 = vld [vmem:[%s2468 + $0x1b4] sm:$0xf]
      %v2579 = vld [vmem:[%s2468 + $0x1b8] sm:$0xf]
      %v2580 = vld [vmem:[%s2468 + $0x1bc] sm:$0xf]
      %v2581 = vld [vmem:[%s2468 + $0x1c0] sm:$0xf]
      %v2582 = vld [vmem:[%s2468 + $0x1c4] sm:$0xf]
      %v2583 = vld [vmem:[%s2468 + $0x1c8] sm:$0xf]
      %v2584 = vld [vmem:[%s2468 + $0x1cc] sm:$0xf]
      %v2585 = vld [vmem:[%s2468 + $0x1d0] sm:$0xf]
      %v2586 = vld [vmem:[%s2468 + $0x1d4] sm:$0xf]
      %v2587 = vld [vmem:[%s2468 + $0x1d8] sm:$0xf]
      %v2588 = vld [vmem:[%s2468 + $0x1dc] sm:$0xf]
      %v2589 = vld [vmem:[%s2468 + $0x1e0] sm:$0xf]
      %v2590 = vld [vmem:[%s2468 + $0x1e4] sm:$0xf]
      %v2591 = vld [vmem:[%s2468 + $0x1e8] sm:$0xf]
      %v2592 = vld [vmem:[%s2468 + $0x1ec] sm:$0xf]
      %v2593 = vld [vmem:[%s2468 + $0x1f0] sm:$0xf]
      %v2594 = vld [vmem:[%s2468 + $0x1f4] sm:$0xf]
      %v2595 = vld [vmem:[%s2468 + $0x1f8] sm:$0xf]
      %v2596 = vld [vmem:[%s2468 + $0x1fc] sm:$0xf]
      %v2601 = vunpack.c.l.b16 %v2464
      %v2602 = vunpack.c.h.b16 %v2464
      %v2603 = vunpack.c.l.b16 %v2465
      %v2604 = vunpack.c.h.b16 %v2465
      %v2605 = vunpack.c.l.b16 %v2466
      %v2606 = vunpack.c.h.b16 %v2466
      %v2607 = vunpack.c.l.b16 %v2467
      %v2608 = vunpack.c.h.b16 %v2467
      %v2609 = vpack.c.b16 %v2601, %v453
      %v2610 = vpack.c.b16 %v2602, %v454
      %v2611 = vpack.c.b16 %v2603, %v455
      %v2612 = vpack.c.b16 %v2604, %v456
      %v2613 = vpack.c.b16 %v2605, %v457
      %v2614 = vpack.c.b16 %v2606, %v458
      %v2615 = vpack.c.b16 %v2607, %v459
      %v2616 = vpack.c.b16 %v2608, %v460
      %vm2617 = vsmask.f32 6400
      %v2619 = vshrl.u32 %v1875, 16
      %v2621 = vrot.slane %v2619, 1
      %v2622 = vshll.u32 %v1875, 16
      %v2624 = vrot.slane %v2622, 2
      %v2625 = vor.u32 %v2621, %v2624
      %v2627 = vshrl.u32 %v2609, 16
      %v2629 = vrot.slane %v2627, 1
      %v2630 = vshll.u32 %v2609, 16
      %v2632 = vrot.slane %v2630, 2
      %v2633 = vor.u32 %v2629, %v2632
      %v2634 = vsel %vm2617, %v2625, %v2633
      %v2636 = vshrl.u32 %v1876, 16
      %v2638 = vrot.slane %v2636, 1
      %v2639 = vshll.u32 %v1876, 16
      %v2641 = vrot.slane %v2639, 2
      %v2642 = vor.u32 %v2638, %v2641
      %v2644 = vshrl.u32 %v2610, 16
      %v2646 = vrot.slane %v2644, 1
      %v2647 = vshll.u32 %v2610, 16
      %v2649 = vrot.slane %v2647, 2
      %v2650 = vor.u32 %v2646, %v2649
      %v2651 = vsel %vm2617, %v2642, %v2650
      %v2653 = vshrl.u32 %v1877, 16
      %v2655 = vrot.slane %v2653, 1
      %v2656 = vshll.u32 %v1877, 16
      %v2658 = vrot.slane %v2656, 2
      %v2659 = vor.u32 %v2655, %v2658
      %v2661 = vshrl.u32 %v2611, 16
      %v2663 = vrot.slane %v2661, 1
      %v2664 = vshll.u32 %v2611, 16
      %v2666 = vrot.slane %v2664, 2
      %v2667 = vor.u32 %v2663, %v2666
      %v2668 = vsel %vm2617, %v2659, %v2667
      %v2670 = vshrl.u32 %v1878, 16
      %v2672 = vrot.slane %v2670, 1
      %v2673 = vshll.u32 %v1878, 16
      %v2675 = vrot.slane %v2673, 2
      %v2676 = vor.u32 %v2672, %v2675
      %v2678 = vshrl.u32 %v2612, 16
      %v2680 = vrot.slane %v2678, 1
      %v2681 = vshll.u32 %v2612, 16
      %v2683 = vrot.slane %v2681, 2
      %v2684 = vor.u32 %v2680, %v2683
      %v2685 = vsel %vm2617, %v2676, %v2684
      %v2687 = vshrl.u32 %v1879, 16
      %v2689 = vrot.slane %v2687, 1
      %v2690 = vshll.u32 %v1879, 16
      %v2692 = vrot.slane %v2690, 2
      %v2693 = vor.u32 %v2689, %v2692
      %v2695 = vshrl.u32 %v2613, 16
      %v2697 = vrot.slane %v2695, 1
      %v2698 = vshll.u32 %v2613, 16
      %v2700 = vrot.slane %v2698, 2
      %v2701 = vor.u32 %v2697, %v2700
      %v2702 = vsel %vm2617, %v2693, %v2701
      %v2704 = vshrl.u32 %v1880, 16
      %v2706 = vrot.slane %v2704, 1
      %v2707 = vshll.u32 %v1880, 16
      %v2709 = vrot.slane %v2707, 2
      %v2710 = vor.u32 %v2706, %v2709
      %v2712 = vshrl.u32 %v2614, 16
      %v2714 = vrot.slane %v2712, 1
      %v2715 = vshll.u32 %v2614, 16
      %v2717 = vrot.slane %v2715, 2
      %v2718 = vor.u32 %v2714, %v2717
      %v2719 = vsel %vm2617, %v2710, %v2718
      %v2721 = vshrl.u32 %v1881, 16
      %v2723 = vrot.slane %v2721, 1
      %v2724 = vshll.u32 %v1881, 16
      %v2726 = vrot.slane %v2724, 2
      %v2727 = vor.u32 %v2723, %v2726
      %v2729 = vshrl.u32 %v2615, 16
      %v2731 = vrot.slane %v2729, 1
      %v2732 = vshll.u32 %v2615, 16
      %v2734 = vrot.slane %v2732, 2
      %v2735 = vor.u32 %v2731, %v2734
      %v2736 = vsel %vm2617, %v2727, %v2735
      %v2738 = vshrl.u32 %v1882, 16
      %v2740 = vrot.slane %v2738, 1
      %v2741 = vshll.u32 %v1882, 16
      %v2743 = vrot.slane %v2741, 2
      %v2744 = vor.u32 %v2740, %v2743
      %v2746 = vshrl.u32 %v2616, 16
      %v2748 = vrot.slane %v2746, 1
      %v2749 = vshll.u32 %v2616, 16
      %v2751 = vrot.slane %v2749, 2
      %v2752 = vor.u32 %v2748, %v2751
      %v2753 = vsel %vm2617, %v2744, %v2752
      %v2898 = vunpack.c.l.b16 %v2469
      %v2899 = vunpack.c.l.b16 %v2470
      %v2900 = vunpack.c.l.b16 %v2471
      %v2901 = vunpack.c.l.b16 %v2472
      %v2902 = vunpack.c.l.b16 %v2473
      %v2903 = vunpack.c.l.b16 %v2474
      %v2904 = vunpack.c.l.b16 %v2475
      %v2905 = vunpack.c.l.b16 %v2476
      %v2906 = vunpack.c.l.b16 %v2477
      %v2907 = vunpack.c.l.b16 %v2478
      %v2908 = vunpack.c.l.b16 %v2479
      %v2909 = vunpack.c.l.b16 %v2480
      %v2910 = vunpack.c.l.b16 %v2481
      %v2911 = vunpack.c.l.b16 %v2482
      %v2912 = vunpack.c.l.b16 %v2483
      %v2913 = vunpack.c.l.b16 %v2484
      %v2914 = vunpack.c.l.b16 %v2485
      %v2915 = vunpack.c.l.b16 %v2486
      %v2916 = vunpack.c.l.b16 %v2487
      %v2917 = vunpack.c.l.b16 %v2488
      %v2918 = vunpack.c.l.b16 %v2489
      %v2919 = vunpack.c.l.b16 %v2490
      %v2920 = vunpack.c.l.b16 %v2491
      %v2921 = vunpack.c.l.b16 %v2492
      %v2922 = vunpack.c.l.b16 %v2493
      %v2923 = vunpack.c.l.b16 %v2494
      %v2924 = vunpack.c.l.b16 %v2495
      %v2925 = vunpack.c.l.b16 %v2496
      %v2926 = vunpack.c.l.b16 %v2497
      %v2927 = vunpack.c.l.b16 %v2498
      %v2928 = vunpack.c.l.b16 %v2499
      %v2929 = vunpack.c.l.b16 %v2500
      %v2930 = vunpack.c.l.b16 %v2501
      %v2931 = vunpack.c.l.b16 %v2502
      %v2932 = vunpack.c.l.b16 %v2503
      %v2933 = vunpack.c.l.b16 %v2504
      %v2934 = vunpack.c.l.b16 %v2505
      %v2935 = vunpack.c.l.b16 %v2506
      %v2936 = vunpack.c.l.b16 %v2507
      %v2937 = vunpack.c.l.b16 %v2508
      %v2938 = vunpack.c.l.b16 %v2509
      %v2939 = vunpack.c.l.b16 %v2510
      %v2940 = vunpack.c.l.b16 %v2511
      %v2941 = vunpack.c.l.b16 %v2512
      %v2942 = vunpack.c.l.b16 %v2513
      %v2943 = vunpack.c.l.b16 %v2514
      %v2944 = vunpack.c.l.b16 %v2515
      %v2945 = vunpack.c.l.b16 %v2516
      %v2946 = vunpack.c.l.b16 %v2517
      %v2947 = vunpack.c.l.b16 %v2518
      %v2948 = vunpack.c.l.b16 %v2519
      %v2949 = vunpack.c.l.b16 %v2520
      %v2950 = vunpack.c.l.b16 %v2521
      %v2951 = vunpack.c.l.b16 %v2522
      %v2952 = vunpack.c.l.b16 %v2523
      %v2953 = vunpack.c.l.b16 %v2524
      %v2954 = vunpack.c.l.b16 %v2525
      %v2955 = vunpack.c.l.b16 %v2526
      %v2956 = vunpack.c.l.b16 %v2527
      %v2957 = vunpack.c.l.b16 %v2528
      %v2958 = vunpack.c.l.b16 %v2529
      %v2959 = vunpack.c.l.b16 %v2530
      %v2960 = vunpack.c.l.b16 %v2531
      %v2961 = vunpack.c.l.b16 %v2532
      %v2962 = vunpack.c.l.b16 %v2533
      %v2963 = vunpack.c.l.b16 %v2534
      %v2964 = vunpack.c.l.b16 %v2535
      %v2965 = vunpack.c.l.b16 %v2536
      %v2966 = vunpack.c.l.b16 %v2537
      %v2967 = vunpack.c.l.b16 %v2538
      %v2968 = vunpack.c.l.b16 %v2539
      %v2969 = vunpack.c.l.b16 %v2540
      %v2970 = vunpack.c.l.b16 %v2541
      %v2971 = vunpack.c.l.b16 %v2542
      %v2972 = vunpack.c.l.b16 %v2543
      %v2973 = vunpack.c.l.b16 %v2544
      %v2974 = vunpack.c.l.b16 %v2545
      %v2975 = vunpack.c.l.b16 %v2546
      %v2976 = vunpack.c.l.b16 %v2547
      %v2977 = vunpack.c.l.b16 %v2548
      %v2978 = vunpack.c.l.b16 %v2549
      %v2979 = vunpack.c.l.b16 %v2550
      %v2980 = vunpack.c.l.b16 %v2551
      %v2981 = vunpack.c.l.b16 %v2552
      %v2982 = vunpack.c.l.b16 %v2553
      %v2983 = vunpack.c.l.b16 %v2554
      %v2984 = vunpack.c.l.b16 %v2555
      %v2985 = vunpack.c.l.b16 %v2556
      %v2986 = vunpack.c.l.b16 %v2557
      %v2987 = vunpack.c.l.b16 %v2558
      %v2988 = vunpack.c.l.b16 %v2559
      %v2989 = vunpack.c.l.b16 %v2560
      %v2990 = vunpack.c.l.b16 %v2561
      %v2991 = vunpack.c.l.b16 %v2562
      %v2992 = vunpack.c.l.b16 %v2563
      %v2993 = vunpack.c.l.b16 %v2564
      %v2994 = vunpack.c.l.b16 %v2565
      %v2995 = vunpack.c.l.b16 %v2566
      %v2996 = vunpack.c.l.b16 %v2567
      %v2997 = vunpack.c.l.b16 %v2568
      %v2998 = vunpack.c.l.b16 %v2569
      %v2999 = vunpack.c.l.b16 %v2570
      %v3000 = vunpack.c.l.b16 %v2571
      %v3001 = vunpack.c.l.b16 %v2572
      %v3002 = vunpack.c.l.b16 %v2573
      %v3003 = vunpack.c.l.b16 %v2574
      %v3004 = vunpack.c.l.b16 %v2575
      %v3005 = vunpack.c.l.b16 %v2576
      %v3006 = vunpack.c.l.b16 %v2577
      %v3007 = vunpack.c.l.b16 %v2578
      %v3008 = vunpack.c.l.b16 %v2579
      %v3009 = vunpack.c.l.b16 %v2580
      %v3010 = vunpack.c.l.b16 %v2581
      %v3011 = vunpack.c.l.b16 %v2582
      %v3012 = vunpack.c.l.b16 %v2583
      %v3013 = vunpack.c.l.b16 %v2584
      %v3014 = vunpack.c.l.b16 %v2585
      %v3015 = vunpack.c.l.b16 %v2586
      %v3016 = vunpack.c.l.b16 %v2587
      %v3017 = vunpack.c.l.b16 %v2588
      %v3018 = vunpack.c.l.b16 %v2589
      %v3019 = vunpack.c.l.b16 %v2590
      %v3020 = vunpack.c.l.b16 %v2591
      %v3021 = vunpack.c.l.b16 %v2592
      %v3022 = vunpack.c.l.b16 %v2593
      %v3023 = vunpack.c.l.b16 %v2594
      %v3024 = vunpack.c.l.b16 %v2595
      %v3025 = vunpack.c.l.b16 %v2596
      %v3026 = vpack.c.b16 %v2899, %v2898
      %v3027 = vpack.c.b16 %v2901, %v2900
      %v3028 = vpack.c.b16 %v2903, %v2902
      %v3029 = vpack.c.b16 %v2905, %v2904
      %v3030 = vpack.c.b16 %v2907, %v2906
      %v3031 = vpack.c.b16 %v2909, %v2908
      %v3032 = vpack.c.b16 %v2911, %v2910
      %v3033 = vpack.c.b16 %v2913, %v2912
      %v3034 = vpack.c.b16 %v2915, %v2914
      %v3035 = vpack.c.b16 %v2917, %v2916
      %v3036 = vpack.c.b16 %v2919, %v2918
      %v3037 = vpack.c.b16 %v2921, %v2920
      %v3038 = vpack.c.b16 %v2923, %v2922
      %v3039 = vpack.c.b16 %v2925, %v2924
      %v3040 = vpack.c.b16 %v2927, %v2926
      %v3041 = vpack.c.b16 %v2929, %v2928
      %v3042 = vpack.c.b16 %v2931, %v2930
      %v3043 = vpack.c.b16 %v2933, %v2932
      %v3044 = vpack.c.b16 %v2935, %v2934
      %v3045 = vpack.c.b16 %v2937, %v2936
      %v3046 = vpack.c.b16 %v2939, %v2938
      %v3047 = vpack.c.b16 %v2941, %v2940
      %v3048 = vpack.c.b16 %v2943, %v2942
      %v3049 = vpack.c.b16 %v2945, %v2944
      %v3050 = vpack.c.b16 %v2947, %v2946
      %v3051 = vpack.c.b16 %v2949, %v2948
      %v3052 = vpack.c.b16 %v2951, %v2950
      %v3053 = vpack.c.b16 %v2953, %v2952
      %v3054 = vpack.c.b16 %v2955, %v2954
      %v3055 = vpack.c.b16 %v2957, %v2956
      %v3056 = vpack.c.b16 %v2959, %v2958
      %v3057 = vpack.c.b16 %v2961, %v2960
      %v3058 = vpack.c.b16 %v2963, %v2962
      %v3059 = vpack.c.b16 %v2965, %v2964
      %v3060 = vpack.c.b16 %v2967, %v2966
      %v3061 = vpack.c.b16 %v2969, %v2968
      %v3062 = vpack.c.b16 %v2971, %v2970
      %v3063 = vpack.c.b16 %v2973, %v2972
      %v3064 = vpack.c.b16 %v2975, %v2974
      %v3065 = vpack.c.b16 %v2977, %v2976
      %v3066 = vpack.c.b16 %v2979, %v2978
      %v3067 = vpack.c.b16 %v2981, %v2980
      %v3068 = vpack.c.b16 %v2983, %v2982
      %v3069 = vpack.c.b16 %v2985, %v2984
      %v3070 = vpack.c.b16 %v2987, %v2986
      %v3071 = vpack.c.b16 %v2989, %v2988
      %v3072 = vpack.c.b16 %v2991, %v2990
      %v3073 = vpack.c.b16 %v2993, %v2992
      %v3074 = vpack.c.b16 %v2995, %v2994
      %v3075 = vpack.c.b16 %v2997, %v2996
      %v3076 = vpack.c.b16 %v2999, %v2998
      %v3077 = vpack.c.b16 %v3001, %v3000
      %v3078 = vpack.c.b16 %v3003, %v3002
      %v3079 = vpack.c.b16 %v3005, %v3004
      %v3080 = vpack.c.b16 %v3007, %v3006
      %v3081 = vpack.c.b16 %v3009, %v3008
      %v3082 = vpack.c.b16 %v3011, %v3010
      %v3083 = vpack.c.b16 %v3013, %v3012
      %v3084 = vpack.c.b16 %v3015, %v3014
      %v3085 = vpack.c.b16 %v3017, %v3016
      %v3086 = vpack.c.b16 %v3019, %v3018
      %v3087 = vpack.c.b16 %v3021, %v3020
      %v3088 = vpack.c.b16 %v3023, %v3022
      %v3089 = vpack.c.b16 %v3025, %v3024
      %3154 = vmatpush.bf16.msra.mxu0 %v3033
      %3155 = vmatpush.bf16.msra.mxu0 %v3032
      %3156 = vmatpush.bf16.msra.mxu0 %v3031
      %3157 = vmatpush.bf16.msra.mxu0 %v3030
      %3158 = vmatpush.bf16.msra.mxu0 %v3029
      %3159 = vmatpush.bf16.msra.mxu0 %v3028
      %3160 = vmatpush.bf16.msra.mxu0 %v3027
      %3161 = vmatpush.bf16.msra.mxu0 %v3026
      %3162 = vmatmul.bf16.gmra.mxu0 %v2634
      %v3163 = vpop.f32.mrf.mxu0
      %v3164 = vadd.f32 0.0, %v3163
      %v3165 = vpop.f32.mrf.mxu0
      %v3166 = vadd.f32 0.0, %v3165
      %3167 = vmatmul.bf16.gmra.mxu0 %v2633
      %v3168 = vpop.f32.mrf.mxu0
      %v3169 = vadd.f32 0.0, %v3168
      %v3170 = vpop.f32.mrf.mxu0
      %v3171 = vadd.f32 0.0, %v3170
      %3172 = vdwg.mxu0
      %3173 = vmatpush.bf16.msra.mxu0 %v3041
      %3174 = vmatpush.bf16.msra.mxu0 %v3040
      %3175 = vmatpush.bf16.msra.mxu0 %v3039
      %3176 = vmatpush.bf16.msra.mxu0 %v3038
      %3177 = vmatpush.bf16.msra.mxu0 %v3037
      %3178 = vmatpush.bf16.msra.mxu0 %v3036
      %3179 = vmatpush.bf16.msra.mxu0 %v3035
      %3180 = vmatpush.bf16.msra.mxu0 %v3034
      %3181 = vmatmul.bf16.gmra.mxu0 %v2651
      %v3182 = vpop.f32.mrf.mxu0
      %v3183 = vadd.f32 %v3164, %v3182
      %v3184 = vpop.f32.mrf.mxu0
      %v3185 = vadd.f32 %v3166, %v3184
      %3186 = vmatmul.bf16.gmra.mxu0 %v2650
      %v3187 = vpop.f32.mrf.mxu0
      %v3188 = vadd.f32 %v3169, %v3187
      %v3189 = vpop.f32.mrf.mxu0
      %v3190 = vadd.f32 %v3171, %v3189
      %3191 = vdwg.mxu0
      %3192 = vmatpush.bf16.msra.mxu0 %v3049
      %3193 = vmatpush.bf16.msra.mxu0 %v3048
      %3194 = vmatpush.bf16.msra.mxu0 %v3047
      %3195 = vmatpush.bf16.msra.mxu0 %v3046
      %3196 = vmatpush.bf16.msra.mxu0 %v3045
      %3197 = vmatpush.bf16.msra.mxu0 %v3044
      %3198 = vmatpush.bf16.msra.mxu0 %v3043
      %3199 = vmatpush.bf16.msra.mxu0 %v3042
      %3200 = vmatmul.bf16.gmra.mxu0 %v2668
      %v3201 = vpop.f32.mrf.mxu0
      %v3202 = vadd.f32 %v3183, %v3201
      %v3203 = vpop.f32.mrf.mxu0
      %v3204 = vadd.f32 %v3185, %v3203
      %3205 = vmatmul.bf16.gmra.mxu0 %v2667
      %v3206 = vpop.f32.mrf.mxu0
      %v3207 = vadd.f32 %v3188, %v3206
      %v3208 = vpop.f32.mrf.mxu0
      %v3209 = vadd.f32 %v3190, %v3208
      %3210 = vdwg.mxu0
      %3211 = vmatpush.bf16.msra.mxu0 %v3057
      %3212 = vmatpush.bf16.msra.mxu0 %v3056
      %3213 = vmatpush.bf16.msra.mxu0 %v3055
      %3214 = vmatpush.bf16.msra.mxu0 %v3054
      %3215 = vmatpush.bf16.msra.mxu0 %v3053
      %3216 = vmatpush.bf16.msra.mxu0 %v3052
      %3217 = vmatpush.bf16.msra.mxu0 %v3051
      %3218 = vmatpush.bf16.msra.mxu0 %v3050
      %3219 = vmatmul.bf16.gmra.mxu0 %v2685
      %v3220 = vpop.f32.mrf.mxu0
      %v3221 = vadd.f32 %v3202, %v3220
      %v3222 = vpop.f32.mrf.mxu0
      %v3223 = vadd.f32 %v3204, %v3222
      %3224 = vmatmul.bf16.gmra.mxu0 %v2684
      %v3225 = vpop.f32.mrf.mxu0
      %v3226 = vadd.f32 %v3207, %v3225
      %v3227 = vpop.f32.mrf.mxu0
      %v3228 = vadd.f32 %v3209, %v3227
      %3229 = vdwg.mxu0
      %3230 = vmatpush.bf16.msra.mxu0 %v3065
      %3231 = vmatpush.bf16.msra.mxu0 %v3064
      %3232 = vmatpush.bf16.msra.mxu0 %v3063
      %3233 = vmatpush.bf16.msra.mxu0 %v3062
      %3234 = vmatpush.bf16.msra.mxu0 %v3061
      %3235 = vmatpush.bf16.msra.mxu0 %v3060
      %3236 = vmatpush.bf16.msra.mxu0 %v3059
      %3237 = vmatpush.bf16.msra.mxu0 %v3058
      %3238 = vmatmul.bf16.gmra.mxu0 %v2702
      %v3239 = vpop.f32.mrf.mxu0
      %v3240 = vadd.f32 %v3221, %v3239
      %v3241 = vpop.f32.mrf.mxu0
      %v3242 = vadd.f32 %v3223, %v3241
      %3243 = vmatmul.bf16.gmra.mxu0 %v2701
      %v3244 = vpop.f32.mrf.mxu0
      %v3245 = vadd.f32 %v3226, %v3244
      %v3246 = vpop.f32.mrf.mxu0
      %v3247 = vadd.f32 %v3228, %v3246
      %3248 = vdwg.mxu0
      %3249 = vmatpush.bf16.msra.mxu0 %v3073
      %3250 = vmatpush.bf16.msra.mxu0 %v3072
      %3251 = vmatpush.bf16.msra.mxu0 %v3071
      %3252 = vmatpush.bf16.msra.mxu0 %v3070
      %3253 = vmatpush.bf16.msra.mxu0 %v3069
      %3254 = vmatpush.bf16.msra.mxu0 %v3068
      %3255 = vmatpush.bf16.msra.mxu0 %v3067
      %3256 = vmatpush.bf16.msra.mxu0 %v3066
      %3257 = vmatmul.bf16.gmra.mxu0 %v2719
      %v3258 = vpop.f32.mrf.mxu0
      %v3259 = vadd.f32 %v3240, %v3258
      %v3260 = vpop.f32.mrf.mxu0
      %v3261 = vadd.f32 %v3242, %v3260
      %3262 = vmatmul.bf16.gmra.mxu0 %v2718
      %v3263 = vpop.f32.mrf.mxu0
      %v3264 = vadd.f32 %v3245, %v3263
      %v3265 = vpop.f32.mrf.mxu0
      %v3266 = vadd.f32 %v3247, %v3265
      %3267 = vdwg.mxu0
      %3268 = vmatpush.bf16.msra.mxu0 %v3081
      %3269 = vmatpush.bf16.msra.mxu0 %v3080
      %3270 = vmatpush.bf16.msra.mxu0 %v3079
      %3271 = vmatpush.bf16.msra.mxu0 %v3078
      %3272 = vmatpush.bf16.msra.mxu0 %v3077
      %3273 = vmatpush.bf16.msra.mxu0 %v3076
      %3274 = vmatpush.bf16.msra.mxu0 %v3075
      %3275 = vmatpush.bf16.msra.mxu0 %v3074
      %3276 = vmatmul.bf16.gmra.mxu0 %v2736
      %v3277 = vpop.f32.mrf.mxu0
      %v3278 = vadd.f32 %v3259, %v3277
      %v3279 = vpop.f32.mrf.mxu0
      %v3280 = vadd.f32 %v3261, %v3279
      %3281 = vmatmul.bf16.gmra.mxu0 %v2735
      %v3282 = vpop.f32.mrf.mxu0
      %v3283 = vadd.f32 %v3264, %v3282
      %v3284 = vpop.f32.mrf.mxu0
      %v3285 = vadd.f32 %v3266, %v3284
      %3286 = vdwg.mxu0
      %3287 = vmatpush.bf16.msra.mxu0 %v3089
      %3288 = vmatpush.bf16.msra.mxu0 %v3088
      %3289 = vmatpush.bf16.msra.mxu0 %v3087
      %3290 = vmatpush.bf16.msra.mxu0 %v3086
      %3291 = vmatpush.bf16.msra.mxu0 %v3085
      %3292 = vmatpush.bf16.msra.mxu0 %v3084
      %3293 = vmatpush.bf16.msra.mxu0 %v3083
      %3294 = vmatpush.bf16.msra.mxu0 %v3082
      %3295 = vmatmul.bf16.gmra.mxu0 %v2753
      %v3296 = vpop.f32.mrf.mxu0
      %v3297 = vadd.f32 %v3278, %v3296
      %v3298 = vpop.f32.mrf.mxu0
      %v3299 = vadd.f32 %v3280, %v3298
      %3300 = vmatmul.bf16.gmra.mxu0 %v2752
      %v3301 = vpop.f32.mrf.mxu0
      %v3302 = vadd.f32 %v3283, %v3301
      %v3303 = vpop.f32.mrf.mxu0
      %v3304 = vadd.f32 %v3285, %v3303
      %3305 = vdwg.mxu0
      %v3306 = vadd.f32 %v2460, %v3297
      %v3307 = vadd.f32 %v2461, %v3299
      %v3308 = vadd.f32 %v2462, %v3302
      %v3309 = vadd.f32 %v2463, %v3304
      %v3310 = vld [vmem:[%s138] sm:$0xcc]
      %v3311 = vld [vmem:[%s138 + $0x8] sm:$0xcc]
      %v3312 = vld [vmem:[%s138 + $0x10] sm:$0xcc]
      %v3313 = vld [vmem:[%s138 + $0x18] sm:$0xcc]
      %s3314 = scalar_lea.vmem %s1, 2048
      %v3315 = vld [vmem:[%s3314] sm:$0xf]
      %v3316 = vld [vmem:[%s3314 + $0x4] sm:$0xf]
      %v3317 = vld [vmem:[%s3314 + $0x8] sm:$0xf]
      %v3318 = vld [vmem:[%s3314 + $0xc] sm:$0xf]
      %v3319 = vld [vmem:[%s3314 + $0x10] sm:$0xf]
      %v3320 = vld [vmem:[%s3314 + $0x14] sm:$0xf]
      %v3321 = vld [vmem:[%s3314 + $0x18] sm:$0xf]
      %v3322 = vld [vmem:[%s3314 + $0x1c] sm:$0xf]
      %v3323 = vld [vmem:[%s3314 + $0x20] sm:$0xf]
      %v3324 = vld [vmem:[%s3314 + $0x24] sm:$0xf]
      %v3325 = vld [vmem:[%s3314 + $0x28] sm:$0xf]
      %v3326 = vld [vmem:[%s3314 + $0x2c] sm:$0xf]
      %v3327 = vld [vmem:[%s3314 + $0x30] sm:$0xf]
      %v3328 = vld [vmem:[%s3314 + $0x34] sm:$0xf]
      %v3329 = vld [vmem:[%s3314 + $0x38] sm:$0xf]
      %v3330 = vld [vmem:[%s3314 + $0x3c] sm:$0xf]
      %v3331 = vld [vmem:[%s3314 + $0x40] sm:$0xf]
      %v3332 = vld [vmem:[%s3314 + $0x44] sm:$0xf]
      %v3333 = vld [vmem:[%s3314 + $0x48] sm:$0xf]
      %v3334 = vld [vmem:[%s3314 + $0x4c] sm:$0xf]
      %v3335 = vld [vmem:[%s3314 + $0x50] sm:$0xf]
      %v3336 = vld [vmem:[%s3314 + $0x54] sm:$0xf]
      %v3337 = vld [vmem:[%s3314 + $0x58] sm:$0xf]
      %v3338 = vld [vmem:[%s3314 + $0x5c] sm:$0xf]
      %v3339 = vld [vmem:[%s3314 + $0x60] sm:$0xf]
      %v3340 = vld [vmem:[%s3314 + $0x64] sm:$0xf]
      %v3341 = vld [vmem:[%s3314 + $0x68] sm:$0xf]
      %v3342 = vld [vmem:[%s3314 + $0x6c] sm:$0xf]
      %v3343 = vld [vmem:[%s3314 + $0x70] sm:$0xf]
      %v3344 = vld [vmem:[%s3314 + $0x74] sm:$0xf]
      %v3345 = vld [vmem:[%s3314 + $0x78] sm:$0xf]
      %v3346 = vld [vmem:[%s3314 + $0x7c] sm:$0xf]
      %v3347 = vld [vmem:[%s3314 + $0x80] sm:$0xf]
      %v3348 = vld [vmem:[%s3314 + $0x84] sm:$0xf]
      %v3349 = vld [vmem:[%s3314 + $0x88] sm:$0xf]
      %v3350 = vld [vmem:[%s3314 + $0x8c] sm:$0xf]
      %v3351 = vld [vmem:[%s3314 + $0x90] sm:$0xf]
      %v3352 = vld [vmem:[%s3314 + $0x94] sm:$0xf]
      %v3353 = vld [vmem:[%s3314 + $0x98] sm:$0xf]
      %v3354 = vld [vmem:[%s3314 + $0x9c] sm:$0xf]
      %v3355 = vld [vmem:[%s3314 + $0xa0] sm:$0xf]
      %v3356 = vld [vmem:[%s3314 + $0xa4] sm:$0xf]
      %v3357 = vld [vmem:[%s3314 + $0xa8] sm:$0xf]
      %v3358 = vld [vmem:[%s3314 + $0xac] sm:$0xf]
      %v3359 = vld [vmem:[%s3314 + $0xb0] sm:$0xf]
      %v3360 = vld [vmem:[%s3314 + $0xb4] sm:$0xf]
      %v3361 = vld [vmem:[%s3314 + $0xb8] sm:$0xf]
      %v3362 = vld [vmem:[%s3314 + $0xbc] sm:$0xf]
      %v3363 = vld [vmem:[%s3314 + $0xc0] sm:$0xf]
      %v3364 = vld [vmem:[%s3314 + $0xc4] sm:$0xf]
      %v3365 = vld [vmem:[%s3314 + $0xc8] sm:$0xf]
      %v3366 = vld [vmem:[%s3314 + $0xcc] sm:$0xf]
      %v3367 = vld [vmem:[%s3314 + $0xd0] sm:$0xf]
      %v3368 = vld [vmem:[%s3314 + $0xd4] sm:$0xf]
      %v3369 = vld [vmem:[%s3314 + $0xd8] sm:$0xf]
      %v3370 = vld [vmem:[%s3314 + $0xdc] sm:$0xf]
      %v3371 = vld [vmem:[%s3314 + $0xe0] sm:$0xf]
      %v3372 = vld [vmem:[%s3314 + $0xe4] sm:$0xf]
      %v3373 = vld [vmem:[%s3314 + $0xe8] sm:$0xf]
      %v3374 = vld [vmem:[%s3314 + $0xec] sm:$0xf]
      %v3375 = vld [vmem:[%s3314 + $0xf0] sm:$0xf]
      %v3376 = vld [vmem:[%s3314 + $0xf4] sm:$0xf]
      %v3377 = vld [vmem:[%s3314 + $0xf8] sm:$0xf]
      %v3378 = vld [vmem:[%s3314 + $0xfc] sm:$0xf]
      %v3379 = vld [vmem:[%s3314 + $0x100] sm:$0xf]
      %v3380 = vld [vmem:[%s3314 + $0x104] sm:$0xf]
      %v3381 = vld [vmem:[%s3314 + $0x108] sm:$0xf]
      %v3382 = vld [vmem:[%s3314 + $0x10c] sm:$0xf]
      %v3383 = vld [vmem:[%s3314 + $0x110] sm:$0xf]
      %v3384 = vld [vmem:[%s3314 + $0x114] sm:$0xf]
      %v3385 = vld [vmem:[%s3314 + $0x118] sm:$0xf]
      %v3386 = vld [vmem:[%s3314 + $0x11c] sm:$0xf]
      %v3387 = vld [vmem:[%s3314 + $0x120] sm:$0xf]
      %v3388 = vld [vmem:[%s3314 + $0x124] sm:$0xf]
      %v3389 = vld [vmem:[%s3314 + $0x128] sm:$0xf]
      %v3390 = vld [vmem:[%s3314 + $0x12c] sm:$0xf]
      %v3391 = vld [vmem:[%s3314 + $0x130] sm:$0xf]
      %v3392 = vld [vmem:[%s3314 + $0x134] sm:$0xf]
      %v3393 = vld [vmem:[%s3314 + $0x138] sm:$0xf]
      %v3394 = vld [vmem:[%s3314 + $0x13c] sm:$0xf]
      %v3395 = vld [vmem:[%s3314 + $0x140] sm:$0xf]
      %v3396 = vld [vmem:[%s3314 + $0x144] sm:$0xf]
      %v3397 = vld [vmem:[%s3314 + $0x148] sm:$0xf]
      %v3398 = vld [vmem:[%s3314 + $0x14c] sm:$0xf]
      %v3399 = vld [vmem:[%s3314 + $0x150] sm:$0xf]
      %v3400 = vld [vmem:[%s3314 + $0x154] sm:$0xf]
      %v3401 = vld [vmem:[%s3314 + $0x158] sm:$0xf]
      %v3402 = vld [vmem:[%s3314 + $0x15c] sm:$0xf]
      %v3403 = vld [vmem:[%s3314 + $0x160] sm:$0xf]
      %v3404 = vld [vmem:[%s3314 + $0x164] sm:$0xf]
      %v3405 = vld [vmem:[%s3314 + $0x168] sm:$0xf]
      %v3406 = vld [vmem:[%s3314 + $0x16c] sm:$0xf]
      %v3407 = vld [vmem:[%s3314 + $0x170] sm:$0xf]
      %v3408 = vld [vmem:[%s3314 + $0x174] sm:$0xf]
      %v3409 = vld [vmem:[%s3314 + $0x178] sm:$0xf]
      %v3410 = vld [vmem:[%s3314 + $0x17c] sm:$0xf]
      %v3411 = vld [vmem:[%s3314 + $0x180] sm:$0xf]
      %v3412 = vld [vmem:[%s3314 + $0x184] sm:$0xf]
      %v3413 = vld [vmem:[%s3314 + $0x188] sm:$0xf]
      %v3414 = vld [vmem:[%s3314 + $0x18c] sm:$0xf]
      %v3415 = vld [vmem:[%s3314 + $0x190] sm:$0xf]
      %v3416 = vld [vmem:[%s3314 + $0x194] sm:$0xf]
      %v3417 = vld [vmem:[%s3314 + $0x198] sm:$0xf]
      %v3418 = vld [vmem:[%s3314 + $0x19c] sm:$0xf]
      %v3419 = vld [vmem:[%s3314 + $0x1a0] sm:$0xf]
      %v3420 = vld [vmem:[%s3314 + $0x1a4] sm:$0xf]
      %v3421 = vld [vmem:[%s3314 + $0x1a8] sm:$0xf]
      %v3422 = vld [vmem:[%s3314 + $0x1ac] sm:$0xf]
      %v3423 = vld [vmem:[%s3314 + $0x1b0] sm:$0xf]
      %v3424 = vld [vmem:[%s3314 + $0x1b4] sm:$0xf]
      %v3425 = vld [vmem:[%s3314 + $0x1b8] sm:$0xf]
      %v3426 = vld [vmem:[%s3314 + $0x1bc] sm:$0xf]
      %v3427 = vld [vmem:[%s3314 + $0x1c0] sm:$0xf]
      %v3428 = vld [vmem:[%s3314 + $0x1c4] sm:$0xf]
      %v3429 = vld [vmem:[%s3314 + $0x1c8] sm:$0xf]
      %v3430 = vld [vmem:[%s3314 + $0x1cc] sm:$0xf]
      %v3431 = vld [vmem:[%s3314 + $0x1d0] sm:$0xf]
      %v3432 = vld [vmem:[%s3314 + $0x1d4] sm:$0xf]
      %v3433 = vld [vmem:[%s3314 + $0x1d8] sm:$0xf]
      %v3434 = vld [vmem:[%s3314 + $0x1dc] sm:$0xf]
      %v3435 = vld [vmem:[%s3314 + $0x1e0] sm:$0xf]
      %v3436 = vld [vmem:[%s3314 + $0x1e4] sm:$0xf]
      %v3437 = vld [vmem:[%s3314 + $0x1e8] sm:$0xf]
      %v3438 = vld [vmem:[%s3314 + $0x1ec] sm:$0xf]
      %v3439 = vld [vmem:[%s3314 + $0x1f0] sm:$0xf]
      %v3440 = vld [vmem:[%s3314 + $0x1f4] sm:$0xf]
      %v3441 = vld [vmem:[%s3314 + $0x1f8] sm:$0xf]
      %v3442 = vld [vmem:[%s3314 + $0x1fc] sm:$0xf]
      %v3447 = vunpack.c.l.b16 %v3310
      %v3448 = vunpack.c.h.b16 %v3310
      %v3449 = vunpack.c.l.b16 %v3311
      %v3450 = vunpack.c.h.b16 %v3311
      %v3451 = vunpack.c.l.b16 %v3312
      %v3452 = vunpack.c.h.b16 %v3312
      %v3453 = vunpack.c.l.b16 %v3313
      %v3454 = vunpack.c.h.b16 %v3313
      %v3455 = vpack.c.b16 %v445, %v3447
      %v3456 = vpack.c.b16 %v446, %v3448
      %v3457 = vpack.c.b16 %v447, %v3449
      %v3458 = vpack.c.b16 %v448, %v3450
      %v3459 = vpack.c.b16 %v449, %v3451
      %v3460 = vpack.c.b16 %v450, %v3452
      %v3461 = vpack.c.b16 %v451, %v3453
      %v3462 = vpack.c.b16 %v452, %v3454
      %vm3463 = vcmask 1045504
      %v3464 = vrot.slane %v3455, 2
      %v3465 = vrot.slane %v2609, 2
      %v3466 = vsel %vm3463, %v3464, %v3465
      %v3467 = vrot.slane %v3456, 2
      %v3468 = vrot.slane %v2610, 2
      %v3469 = vsel %vm3463, %v3467, %v3468
      %v3470 = vrot.slane %v3457, 2
      %v3471 = vrot.slane %v2611, 2
      %v3472 = vsel %vm3463, %v3470, %v3471
      %v3473 = vrot.slane %v3458, 2
      %v3474 = vrot.slane %v2612, 2
      %v3475 = vsel %vm3463, %v3473, %v3474
      %v3476 = vrot.slane %v3459, 2
      %v3477 = vrot.slane %v2613, 2
      %v3478 = vsel %vm3463, %v3476, %v3477
      %v3479 = vrot.slane %v3460, 2
      %v3480 = vrot.slane %v2614, 2
      %v3481 = vsel %vm3463, %v3479, %v3480
      %v3482 = vrot.slane %v3461, 2
      %v3483 = vrot.slane %v2615, 2
      %v3484 = vsel %vm3463, %v3482, %v3483
      %v3485 = vrot.slane %v3462, 2
      %v3486 = vrot.slane %v2616, 2
      %v3487 = vsel %vm3463, %v3485, %v3486
      %v3632 = vunpack.c.l.b16 %v3315
      %v3633 = vunpack.c.l.b16 %v3316
      %v3634 = vunpack.c.l.b16 %v3317
      %v3635 = vunpack.c.l.b16 %v3318
      %v3636 = vunpack.c.l.b16 %v3319
      %v3637 = vunpack.c.l.b16 %v3320
      %v3638 = vunpack.c.l.b16 %v3321
      %v3639 = vunpack.c.l.b16 %v3322
      %v3640 = vunpack.c.l.b16 %v3323
      %v3641 = vunpack.c.l.b16 %v3324
      %v3642 = vunpack.c.l.b16 %v3325
      %v3643 = vunpack.c.l.b16 %v3326
      %v3644 = vunpack.c.l.b16 %v3327
      %v3645 = vunpack.c.l.b16 %v3328
      %v3646 = vunpack.c.l.b16 %v3329
      %v3647 = vunpack.c.l.b16 %v3330
      %v3648 = vunpack.c.l.b16 %v3331
      %v3649 = vunpack.c.l.b16 %v3332
      %v3650 = vunpack.c.l.b16 %v3333
      %v3651 = vunpack.c.l.b16 %v3334
      %v3652 = vunpack.c.l.b16 %v3335
      %v3653 = vunpack.c.l.b16 %v3336
      %v3654 = vunpack.c.l.b16 %v3337
      %v3655 = vunpack.c.l.b16 %v3338
      %v3656 = vunpack.c.l.b16 %v3339
      %v3657 = vunpack.c.l.b16 %v3340
      %v3658 = vunpack.c.l.b16 %v3341
      %v3659 = vunpack.c.l.b16 %v3342
      %v3660 = vunpack.c.l.b16 %v3343
      %v3661 = vunpack.c.l.b16 %v3344
      %v3662 = vunpack.c.l.b16 %v3345
      %v3663 = vunpack.c.l.b16 %v3346
      %v3664 = vunpack.c.l.b16 %v3347
      %v3665 = vunpack.c.l.b16 %v3348
      %v3666 = vunpack.c.l.b16 %v3349
      %v3667 = vunpack.c.l.b16 %v3350
      %v3668 = vunpack.c.l.b16 %v3351
      %v3669 = vunpack.c.l.b16 %v3352
      %v3670 = vunpack.c.l.b16 %v3353
      %v3671 = vunpack.c.l.b16 %v3354
      %v3672 = vunpack.c.l.b16 %v3355
      %v3673 = vunpack.c.l.b16 %v3356
      %v3674 = vunpack.c.l.b16 %v3357
      %v3675 = vunpack.c.l.b16 %v3358
      %v3676 = vunpack.c.l.b16 %v3359
      %v3677 = vunpack.c.l.b16 %v3360
      %v3678 = vunpack.c.l.b16 %v3361
      %v3679 = vunpack.c.l.b16 %v3362
      %v3680 = vunpack.c.l.b16 %v3363
      %v3681 = vunpack.c.l.b16 %v3364
      %v3682 = vunpack.c.l.b16 %v3365
      %v3683 = vunpack.c.l.b16 %v3366
      %v3684 = vunpack.c.l.b16 %v3367
      %v3685 = vunpack.c.l.b16 %v3368
      %v3686 = vunpack.c.l.b16 %v3369
      %v3687 = vunpack.c.l.b16 %v3370
      %v3688 = vunpack.c.l.b16 %v3371
      %v3689 = vunpack.c.l.b16 %v3372
      %v3690 = vunpack.c.l.b16 %v3373
      %v3691 = vunpack.c.l.b16 %v3374
      %v3692 = vunpack.c.l.b16 %v3375
      %v3693 = vunpack.c.l.b16 %v3376
      %v3694 = vunpack.c.l.b16 %v3377
      %v3695 = vunpack.c.l.b16 %v3378
      %v3696 = vunpack.c.l.b16 %v3379
      %v3697 = vunpack.c.l.b16 %v3380
      %v3698 = vunpack.c.l.b16 %v3381
      %v3699 = vunpack.c.l.b16 %v3382
      %v3700 = vunpack.c.l.b16 %v3383
      %v3701 = vunpack.c.l.b16 %v3384
      %v3702 = vunpack.c.l.b16 %v3385
      %v3703 = vunpack.c.l.b16 %v3386
      %v3704 = vunpack.c.l.b16 %v3387
      %v3705 = vunpack.c.l.b16 %v3388
      %v3706 = vunpack.c.l.b16 %v3389
      %v3707 = vunpack.c.l.b16 %v3390
      %v3708 = vunpack.c.l.b16 %v3391
      %v3709 = vunpack.c.l.b16 %v3392
      %v3710 = vunpack.c.l.b16 %v3393
      %v3711 = vunpack.c.l.b16 %v3394
      %v3712 = vunpack.c.l.b16 %v3395
      %v3713 = vunpack.c.l.b16 %v3396
      %v3714 = vunpack.c.l.b16 %v3397
      %v3715 = vunpack.c.l.b16 %v3398
      %v3716 = vunpack.c.l.b16 %v3399
      %v3717 = vunpack.c.l.b16 %v3400
      %v3718 = vunpack.c.l.b16 %v3401
      %v3719 = vunpack.c.l.b16 %v3402
      %v3720 = vunpack.c.l.b16 %v3403
      %v3721 = vunpack.c.l.b16 %v3404
      %v3722 = vunpack.c.l.b16 %v3405
      %v3723 = vunpack.c.l.b16 %v3406
      %v3724 = vunpack.c.l.b16 %v3407
      %v3725 = vunpack.c.l.b16 %v3408
      %v3726 = vunpack.c.l.b16 %v3409
      %v3727 = vunpack.c.l.b16 %v3410
      %v3728 = vunpack.c.l.b16 %v3411
      %v3729 = vunpack.c.l.b16 %v3412
      %v3730 = vunpack.c.l.b16 %v3413
      %v3731 = vunpack.c.l.b16 %v3414
      %v3732 = vunpack.c.l.b16 %v3415
      %v3733 = vunpack.c.l.b16 %v3416
      %v3734 = vunpack.c.l.b16 %v3417
      %v3735 = vunpack.c.l.b16 %v3418
      %v3736 = vunpack.c.l.b16 %v3419
      %v3737 = vunpack.c.l.b16 %v3420
      %v3738 = vunpack.c.l.b16 %v3421
      %v3739 = vunpack.c.l.b16 %v3422
      %v3740 = vunpack.c.l.b16 %v3423
      %v3741 = vunpack.c.l.b16 %v3424
      %v3742 = vunpack.c.l.b16 %v3425
      %v3743 = vunpack.c.l.b16 %v3426
      %v3744 = vunpack.c.l.b16 %v3427
      %v3745 = vunpack.c.l.b16 %v3428
      %v3746 = vunpack.c.l.b16 %v3429
      %v3747 = vunpack.c.l.b16 %v3430
      %v3748 = vunpack.c.l.b16 %v3431
      %v3749 = vunpack.c.l.b16 %v3432
      %v3750 = vunpack.c.l.b16 %v3433
      %v3751 = vunpack.c.l.b16 %v3434
      %v3752 = vunpack.c.l.b16 %v3435
      %v3753 = vunpack.c.l.b16 %v3436
      %v3754 = vunpack.c.l.b16 %v3437
      %v3755 = vunpack.c.l.b16 %v3438
      %v3756 = vunpack.c.l.b16 %v3439
      %v3757 = vunpack.c.l.b16 %v3440
      %v3758 = vunpack.c.l.b16 %v3441
      %v3759 = vunpack.c.l.b16 %v3442
      %v3760 = vpack.c.b16 %v3633, %v3632
      %v3761 = vpack.c.b16 %v3635, %v3634
      %v3762 = vpack.c.b16 %v3637, %v3636
      %v3763 = vpack.c.b16 %v3639, %v3638
      %v3764 = vpack.c.b16 %v3641, %v3640
      %v3765 = vpack.c.b16 %v3643, %v3642
      %v3766 = vpack.c.b16 %v3645, %v3644
      %v3767 = vpack.c.b16 %v3647, %v3646
      %v3768 = vpack.c.b16 %v3649, %v3648
      %v3769 = vpack.c.b16 %v3651, %v3650
      %v3770 = vpack.c.b16 %v3653, %v3652
      %v3771 = vpack.c.b16 %v3655, %v3654
      %v3772 = vpack.c.b16 %v3657, %v3656
      %v3773 = vpack.c.b16 %v3659, %v3658
      %v3774 = vpack.c.b16 %v3661, %v3660
      %v3775 = vpack.c.b16 %v3663, %v3662
      %v3776 = vpack.c.b16 %v3665, %v3664
      %v3777 = vpack.c.b16 %v3667, %v3666
      %v3778 = vpack.c.b16 %v3669, %v3668
      %v3779 = vpack.c.b16 %v3671, %v3670
      %v3780 = vpack.c.b16 %v3673, %v3672
      %v3781 = vpack.c.b16 %v3675, %v3674
      %v3782 = vpack.c.b16 %v3677, %v3676
      %v3783 = vpack.c.b16 %v3679, %v3678
      %v3784 = vpack.c.b16 %v3681, %v3680
      %v3785 = vpack.c.b16 %v3683, %v3682
      %v3786 = vpack.c.b16 %v3685, %v3684
      %v3787 = vpack.c.b16 %v3687, %v3686
      %v3788 = vpack.c.b16 %v3689, %v3688
      %v3789 = vpack.c.b16 %v3691, %v3690
      %v3790 = vpack.c.b16 %v3693, %v3692
      %v3791 = vpack.c.b16 %v3695, %v3694
      %v3792 = vpack.c.b16 %v3697, %v3696
      %v3793 = vpack.c.b16 %v3699, %v3698
      %v3794 = vpack.c.b16 %v3701, %v3700
      %v3795 = vpack.c.b16 %v3703, %v3702
      %v3796 = vpack.c.b16 %v3705, %v3704
      %v3797 = vpack.c.b16 %v3707, %v3706
      %v3798 = vpack.c.b16 %v3709, %v3708
      %v3799 = vpack.c.b16 %v3711, %v3710
      %v3800 = vpack.c.b16 %v3713, %v3712
      %v3801 = vpack.c.b16 %v3715, %v3714
      %v3802 = vpack.c.b16 %v3717, %v3716
      %v3803 = vpack.c.b16 %v3719, %v3718
      %v3804 = vpack.c.b16 %v3721, %v3720
      %v3805 = vpack.c.b16 %v3723, %v3722
      %v3806 = vpack.c.b16 %v3725, %v3724
      %v3807 = vpack.c.b16 %v3727, %v3726
      %v3808 = vpack.c.b16 %v3729, %v3728
      %v3809 = vpack.c.b16 %v3731, %v3730
      %v3810 = vpack.c.b16 %v3733, %v3732
      %v3811 = vpack.c.b16 %v3735, %v3734
      %v3812 = vpack.c.b16 %v3737, %v3736
      %v3813 = vpack.c.b16 %v3739, %v3738
      %v3814 = vpack.c.b16 %v3741, %v3740
      %v3815 = vpack.c.b16 %v3743, %v3742
      %v3816 = vpack.c.b16 %v3745, %v3744
      %v3817 = vpack.c.b16 %v3747, %v3746
      %v3818 = vpack.c.b16 %v3749, %v3748
      %v3819 = vpack.c.b16 %v3751, %v3750
      %v3820 = vpack.c.b16 %v3753, %v3752
      %v3821 = vpack.c.b16 %v3755, %v3754
      %v3822 = vpack.c.b16 %v3757, %v3756
      %v3823 = vpack.c.b16 %v3759, %v3758
      %3888 = vmatpush.bf16.msra.mxu0 %v3767
      %3889 = vmatpush.bf16.msra.mxu0 %v3766
      %3890 = vmatpush.bf16.msra.mxu0 %v3765
      %3891 = vmatpush.bf16.msra.mxu0 %v3764
      %3892 = vmatpush.bf16.msra.mxu0 %v3763
      %3893 = vmatpush.bf16.msra.mxu0 %v3762
      %3894 = vmatpush.bf16.msra.mxu0 %v3761
      %3895 = vmatpush.bf16.msra.mxu0 %v3760
      %3896 = vmatmul.bf16.gmra.mxu0 %v3466
      %v3897 = vpop.f32.mrf.mxu0
      %v3898 = vadd.f32 0.0, %v3897
      %v3899 = vpop.f32.mrf.mxu0
      %v3900 = vadd.f32 0.0, %v3899
      %3901 = vmatmul.bf16.gmra.mxu0 %v3465
      %v3902 = vpop.f32.mrf.mxu0
      %v3903 = vadd.f32 0.0, %v3902
      %v3904 = vpop.f32.mrf.mxu0
      %v3905 = vadd.f32 0.0, %v3904
      %3906 = vdwg.mxu0
      %3907 = vmatpush.bf16.msra.mxu0 %v3775
      %3908 = vmatpush.bf16.msra.mxu0 %v3774
      %3909 = vmatpush.bf16.msra.mxu0 %v3773
      %3910 = vmatpush.bf16.msra.mxu0 %v3772
      %3911 = vmatpush.bf16.msra.mxu0 %v3771
      %3912 = vmatpush.bf16.msra.mxu0 %v3770
      %3913 = vmatpush.bf16.msra.mxu0 %v3769
      %3914 = vmatpush.bf16.msra.mxu0 %v3768
      %3915 = vmatmul.bf16.gmra.mxu0 %v3469
      %v3916 = vpop.f32.mrf.mxu0
      %v3917 = vadd.f32 %v3898, %v3916
      %v3918 = vpop.f32.mrf.mxu0
      %v3919 = vadd.f32 %v3900, %v3918
      %3920 = vmatmul.bf16.gmra.mxu0 %v3468
      %v3921 = vpop.f32.mrf.mxu0
      %v3922 = vadd.f32 %v3903, %v3921
      %v3923 = vpop.f32.mrf.mxu0
      %v3924 = vadd.f32 %v3905, %v3923
      %3925 = vdwg.mxu0
      %3926 = vmatpush.bf16.msra.mxu0 %v3783
      %3927 = vmatpush.bf16.msra.mxu0 %v3782
      %3928 = vmatpush.bf16.msra.mxu0 %v3781
      %3929 = vmatpush.bf16.msra.mxu0 %v3780
      %3930 = vmatpush.bf16.msra.mxu0 %v3779
      %3931 = vmatpush.bf16.msra.mxu0 %v3778
      %3932 = vmatpush.bf16.msra.mxu0 %v3777
      %3933 = vmatpush.bf16.msra.mxu0 %v3776
      %3934 = vmatmul.bf16.gmra.mxu0 %v3472
      %v3935 = vpop.f32.mrf.mxu0
      %v3936 = vadd.f32 %v3917, %v3935
      %v3937 = vpop.f32.mrf.mxu0
      %v3938 = vadd.f32 %v3919, %v3937
      %3939 = vmatmul.bf16.gmra.mxu0 %v3471
      %v3940 = vpop.f32.mrf.mxu0
      %v3941 = vadd.f32 %v3922, %v3940
      %v3942 = vpop.f32.mrf.mxu0
      %v3943 = vadd.f32 %v3924, %v3942
      %3944 = vdwg.mxu0
      %3945 = vmatpush.bf16.msra.mxu0 %v3791
      %3946 = vmatpush.bf16.msra.mxu0 %v3790
      %3947 = vmatpush.bf16.msra.mxu0 %v3789
      %3948 = vmatpush.bf16.msra.mxu0 %v3788
      %3949 = vmatpush.bf16.msra.mxu0 %v3787
      %3950 = vmatpush.bf16.msra.mxu0 %v3786
      %3951 = vmatpush.bf16.msra.mxu0 %v3785
      %3952 = vmatpush.bf16.msra.mxu0 %v3784
      %3953 = vmatmul.bf16.gmra.mxu0 %v3475
      %v3954 = vpop.f32.mrf.mxu0
      %v3955 = vadd.f32 %v3936, %v3954
      %v3956 = vpop.f32.mrf.mxu0
      %v3957 = vadd.f32 %v3938, %v3956
      %3958 = vmatmul.bf16.gmra.mxu0 %v3474
      %v3959 = vpop.f32.mrf.mxu0
      %v3960 = vadd.f32 %v3941, %v3959
      %v3961 = vpop.f32.mrf.mxu0
      %v3962 = vadd.f32 %v3943, %v3961
      %3963 = vdwg.mxu0
      %3964 = vmatpush.bf16.msra.mxu0 %v3799
      %3965 = vmatpush.bf16.msra.mxu0 %v3798
      %3966 = vmatpush.bf16.msra.mxu0 %v3797
      %3967 = vmatpush.bf16.msra.mxu0 %v3796
      %3968 = vmatpush.bf16.msra.mxu0 %v3795
      %3969 = vmatpush.bf16.msra.mxu0 %v3794
      %3970 = vmatpush.bf16.msra.mxu0 %v3793
      %3971 = vmatpush.bf16.msra.mxu0 %v3792
      %3972 = vmatmul.bf16.gmra.mxu0 %v3478
      %v3973 = vpop.f32.mrf.mxu0
      %v3974 = vadd.f32 %v3955, %v3973
      %v3975 = vpop.f32.mrf.mxu0
      %v3976 = vadd.f32 %v3957, %v3975
      %3977 = vmatmul.bf16.gmra.mxu0 %v3477
      %v3978 = vpop.f32.mrf.mxu0
      %v3979 = vadd.f32 %v3960, %v3978
      %v3980 = vpop.f32.mrf.mxu0
      %v3981 = vadd.f32 %v3962, %v3980
      %3982 = vdwg.mxu0
      %3983 = vmatpush.bf16.msra.mxu0 %v3807
      %3984 = vmatpush.bf16.msra.mxu0 %v3806
      %3985 = vmatpush.bf16.msra.mxu0 %v3805
      %3986 = vmatpush.bf16.msra.mxu0 %v3804
      %3987 = vmatpush.bf16.msra.mxu0 %v3803
      %3988 = vmatpush.bf16.msra.mxu0 %v3802
      %3989 = vmatpush.bf16.msra.mxu0 %v3801
      %3990 = vmatpush.bf16.msra.mxu0 %v3800
      %3991 = vmatmul.bf16.gmra.mxu0 %v3481
      %v3992 = vpop.f32.mrf.mxu0
      %v3993 = vadd.f32 %v3974, %v3992
      %v3994 = vpop.f32.mrf.mxu0
      %v3995 = vadd.f32 %v3976, %v3994
      %3996 = vmatmul.bf16.gmra.mxu0 %v3480
      %v3997 = vpop.f32.mrf.mxu0
      %v3998 = vadd.f32 %v3979, %v3997
      %v3999 = vpop.f32.mrf.mxu0
      %v4000 = vadd.f32 %v3981, %v3999
      %4001 = vdwg.mxu0
      %4002 = vmatpush.bf16.msra.mxu0 %v3815
      %4003 = vmatpush.bf16.msra.mxu0 %v3814
      %4004 = vmatpush.bf16.msra.mxu0 %v3813
      %4005 = vmatpush.bf16.msra.mxu0 %v3812
      %4006 = vmatpush.bf16.msra.mxu0 %v3811
      %4007 = vmatpush.bf16.msra.mxu0 %v3810
      %4008 = vmatpush.bf16.msra.mxu0 %v3809
      %4009 = vmatpush.bf16.msra.mxu0 %v3808
      %4010 = vmatmul.bf16.gmra.mxu0 %v3484
      %v4011 = vpop.f32.mrf.mxu0
      %v4012 = vadd.f32 %v3993, %v4011
      %v4013 = vpop.f32.mrf.mxu0
      %v4014 = vadd.f32 %v3995, %v4013
      %4015 = vmatmul.bf16.gmra.mxu0 %v3483
      %v4016 = vpop.f32.mrf.mxu0
      %v4017 = vadd.f32 %v3998, %v4016
      %v4018 = vpop.f32.mrf.mxu0
      %v4019 = vadd.f32 %v4000, %v4018
      %4020 = vdwg.mxu0
      %4021 = vmatpush.bf16.msra.mxu0 %v3823
      %4022 = vmatpush.bf16.msra.mxu0 %v3822
      %4023 = vmatpush.bf16.msra.mxu0 %v3821
      %4024 = vmatpush.bf16.msra.mxu0 %v3820
      %4025 = vmatpush.bf16.msra.mxu0 %v3819
      %4026 = vmatpush.bf16.msra.mxu0 %v3818
      %4027 = vmatpush.bf16.msra.mxu0 %v3817
      %4028 = vmatpush.bf16.msra.mxu0 %v3816
      %4029 = vmatmul.bf16.gmra.mxu0 %v3487
      %v4030 = vpop.f32.mrf.mxu0
      %v4031 = vadd.f32 %v4012, %v4030
      %v4032 = vpop.f32.mrf.mxu0
      %v4033 = vadd.f32 %v4014, %v4032
      %4034 = vmatmul.bf16.gmra.mxu0 %v3486
      %v4035 = vpop.f32.mrf.mxu0
      %v4036 = vadd.f32 %v4017, %v4035
      %v4037 = vpop.f32.mrf.mxu0
      %v4038 = vadd.f32 %v4019, %v4037
      %4039 = vdwg.mxu0
      %v4040 = vadd.f32 %v3306, %v4031
      %v4041 = vadd.f32 %v3307, %v4033
      %v4042 = vadd.f32 %v3308, %v4036
      %v4043 = vadd.f32 %v3309, %v4038
      %v4044 = vxor.u32 %v4040, 2147483648
      %v4045 = vxor.u32 %v4041, 2147483648
      %v4046 = vxor.u32 %v4042, 2147483648
      %v4047 = vxor.u32 %v4043, 2147483648
      %v4048 = vmul.f32 %v4044, 1.442695
      %v4049 = vpow.pop %v4048
      %v4050 = vmul.f32 %v4045, 1.442695
      %v4051 = vpow.pop %v4050
      %v4052 = vmul.f32 %v4046, 1.442695
      %v4053 = vpow.pop %v4052
      %v4054 = vmul.f32 %v4047, 1.442695
      %v4055 = vpow.pop %v4054
      %v4056 = vadd.f32 %v4049, 1.0
      %v4057 = vadd.f32 %v4051, 1.0
      %v4058 = vadd.f32 %v4053, 1.0
      %v4059 = vadd.f32 %v4055, 1.0
      %v4060 = vrcp.pop %v4056
      %v4061 = vmul.f32 %v4056, %v4060
      %v4062 = vsub.f32 1.0, %v4061
      %v4063 = vmul.f32 %v4060, %v4062
      %v4064 = vadd.f32 %v4060, %v4063
      %vm4065 = vweird.f32 %v4056
      %vm4066 = vweird.f32 %v4060
      %vm4067 = vmor %vm4065, %vm4066
      %v4068 = vsel %vm4067, %v4060, %v4064
      %v4069 = vand.u32 2147483647, %v4056
      %vm4070 = vcmp.eq.f32.partialorder %v4069, 8.507059e+37
      %v4071 = vand.u32 %v4056, 2147483648
      %v4072 = vor.u32 1.1754944e-38, %v4071
      %v4073 = vsel %vm4070, %v4072, %v4068
      %v4074 = vmul.f32 1.0, %v4073
      %v4075 = vrcp.pop %v4057
      %v4076 = vmul.f32 %v4057, %v4075
      %v4077 = vsub.f32 1.0, %v4076
      %v4078 = vmul.f32 %v4075, %v4077
      %v4079 = vadd.f32 %v4075, %v4078
      %vm4080 = vweird.f32 %v4057
      %vm4081 = vweird.f32 %v4075
      %vm4082 = vmor %vm4080, %vm4081
      %v4083 = vsel %vm4082, %v4075, %v4079
      %v4084 = vand.u32 2147483647, %v4057
      %vm4085 = vcmp.eq.f32.partialorder %v4084, 8.507059e+37
      %v4086 = vand.u32 %v4057, 2147483648
      %v4087 = vor.u32 1.1754944e-38, %v4086
      %v4088 = vsel %vm4085, %v4087, %v4083
      %v4089 = vmul.f32 1.0, %v4088
      %v4090 = vrcp.pop %v4058
      %v4091 = vmul.f32 %v4058, %v4090
      %v4092 = vsub.f32 1.0, %v4091
      %v4093 = vmul.f32 %v4090, %v4092
      %v4094 = vadd.f32 %v4090, %v4093
      %vm4095 = vweird.f32 %v4058
      %vm4096 = vweird.f32 %v4090
      %vm4097 = vmor %vm4095, %vm4096
      %v4098 = vsel %vm4097, %v4090, %v4094
      %v4099 = vand.u32 2147483647, %v4058
      %vm4100 = vcmp.eq.f32.partialorder %v4099, 8.507059e+37
      %v4101 = vand.u32 %v4058, 2147483648
      %v4102 = vor.u32 1.1754944e-38, %v4101
      %v4103 = vsel %vm4100, %v4102, %v4098
      %v4104 = vmul.f32 1.0, %v4103
      %v4105 = vrcp.pop %v4059
      %v4106 = vmul.f32 %v4059, %v4105
      %v4107 = vsub.f32 1.0, %v4106
      %v4108 = vmul.f32 %v4105, %v4107
      %v4109 = vadd.f32 %v4105, %v4108
      %vm4110 = vweird.f32 %v4059
      %vm4111 = vweird.f32 %v4105
      %vm4112 = vmor %vm4110, %vm4111
      %v4113 = vsel %vm4112, %v4105, %v4109
      %v4114 = vand.u32 2147483647, %v4059
      %vm4115 = vcmp.eq.f32.partialorder %v4114, 8.507059e+37
      %v4116 = vand.u32 %v4059, 2147483648
      %v4117 = vor.u32 1.1754944e-38, %v4116
      %v4118 = vsel %vm4115, %v4117, %v4113
      %v4119 = vmul.f32 1.0, %v4118
      %vm4120 = vcmask 228352
      %4121 = vst.msk [vmem:[%s143] sm:$0xff] %vm4120, %v4074
      %4122 = vst.msk [vmem:[%s143 + $0x8] sm:$0xff] %vm4120, %v4089
      %4123 = vst.msk [vmem:[%s143 + $0x10] sm:$0xff] %vm4120, %v4104
      %vm4124 = vcmask 224256
      %4125 = vst.msk [vmem:[%s143 + $0x18] sm:$0xf] %vm4124, %v4119
      %p4126 = scmp.lt.s32.totalorder %s13, 1
      %s4127 = scalar_select %p4126, %s13, 1
      %s4128 = smul.addr %s4127, 4
      %s4129 = smul.addr %s4128, 8
      %s4130 = scalar_lea.vmem %s2, %s4129
      // Predicated region
      $region29: #{generator_forward.5} parent=27 // pred_check
        %p4131 = pneg %p78
      $region30: #{generator_forward.5} parent=27 // pred_check_branch
        %4133 = sbr.rel (%p4131) target = $region32
      $region31: #{generator_forward.5} parent=27 // pred_region
        _
      $region32: #{generator_forward.5} parent=27 // pred_fallthru
        _
    $region28: #{generator_forward.5} parent=5 // pred_fallthru
      _
    %p4134 = scmp.le.s32.totalorder 2, %s8
    // Predicated region
    $region33: #{generator_forward.5} parent=5 // pred_check
      %p4135 = pneg %p4134
    $region34: #{generator_forward.5} parent=5 // pred_check_branch
      %4137 = sbr.rel (%p4135) target = $region36
    $region35: #{generator_forward.5} parent=5 // pred_region
      %s4138 = ssub.s32 %s8, 2
      // Predicated region
      $region37: #{generator_forward.5} parent=35 // pred_check
        %p4139 = pneg %p84
      $region38: #{generator_forward.5} parent=35 // pred_check_branch
        %4141 = sbr.rel (%p4139) target = $region40
      $region39: #{generator_forward.5} parent=35 // pred_region
        %p4142 = scmp.lt.s32.totalorder %s14, 1
        %s4143 = scalar_select %p4142, %s14, 1
        %s4144 = smul.addr %s4143, 4
        %s4145 = smul.addr %s4144, 8
        %s4146 = scalar_lea.vmem %s2, %s4145
      $region40: #{generator_forward.5} parent=35 // pred_fallthru
        _
    $region36: #{generator_forward.5} parent=5 // pred_fallthru
      _
  $region6: #{generator_forward.5} parent=0 // loop_footer
    %s12 = sadd.s32 1, %s8
  $region7: #{generator_forward.5} parent=0 // loop_footer_branch
    %7 = sbr.rel target = $region3
  $region8: #{generator_forward.5} parent=0 // loop_exit
    _

</llo_original>
